<compile_context>
chip_gen: v7x
topology: tpu7x:2x2x1
jax: 0.10.0
libtpu: 0.0.40
codegen_flags: <defaults>
</compile_context>

<pallas_src>
import jax
import jax.numpy as jnp
from jax.experimental import pallas as pl
from jax.experimental.pallas import tpu as pltpu

LSTM_HIDDEN = 64
LSTM_LAYER = 2          # both stacked layers are written out explicitly below
_TAIL = 16              # augmented-K tail rows ([x]/bias/zero-pad) per matmul


def _round_up(a, m):
    return ((a + m - 1) // m) * m


def _make_cpg_lstm_kernel(t_true, t_chunk, b_tile, w_dtype):
    """Build the kernel for a static (T, chunk, batch-tile, MXU dtype) config."""
    H = LSTM_HIDDEN
    n_chunks = _round_up(t_true, t_chunk) // t_chunk
    rem = t_true - (n_chunks - 1) * t_chunk          # steps in the last chunk

    def act(g, c):
        # PyTorch gate order i, f, g, o; gate-major on sublanes: (4H, B).
        # sigmoid(x) = 0.5*(1 + tanh(0.5x)): single EUP pass per gate.
        i = 0.5 * (1.0 + jnp.tanh(0.5 * g[0 * H:1 * H, :]))
        f = 0.5 * (1.0 + jnp.tanh(0.5 * g[1 * H:2 * H, :]))
        gg = jnp.tanh(g[2 * H:3 * H, :])
        o = 0.5 * (1.0 + jnp.tanh(0.5 * g[3 * H:4 * H, :]))
        c_new = f * c + i * gg
        h_new = o * jnp.tanh(c_new)
        return h_new, c_new

    def kernel(x_ref, w0_ref, w1_ref, fcw_ref, fcb_ref, out_ref,
               h0_ref, c0_ref, h1_ref, c1_ref):
        tc = pl.program_id(1)

        # Re-init the carried state at the start of every batch block.
        @pl.when(tc == 0)
        def _():
            h0_ref[...] = jnp.zeros_like(h0_ref)
            c0_ref[...] = jnp.zeros_like(c0_ref)
            h1_ref[...] = jnp.zeros_like(h1_ref)
            c1_ref[...] = jnp.zeros_like(c1_ref)

        # Loop-invariant tail helpers (hoisted: JAX does not CSE broadcasts).
        row_ids = jax.lax.broadcasted_iota(jnp.int32, (_TAIL, b_tile), 0)
        row0 = row_ids == 0
        tail0_const = jnp.where(row_ids == 1, 1.0, 0.0)   # [x-slot, 1(bias), 0..]
        tail1 = jnp.where(row0, 1.0, 0.0)                 # [1(bias), 0..]

        def one_step(x_row, h0, c0, h1, c1):
            # Layer 0: one fused MXU contraction; input term + bias folded in.
            tail0 = jnp.where(row0,
                              jnp.broadcast_to(x_row, (_TAIL, b_tile)),
                              tail0_const)
            z0 = jnp.concatenate([h0, tail0], axis=0).astype(w_dtype)      # (80, B)
            g0 = jnp.dot(w0_ref[...], z0, preferred_element_type=jnp.float32)
            h0n, c0n = act(g0, c0)
            # Layer 1: one fused contraction over [h0_new; h1_prev; 1; 0].
            z1 = jnp.concatenate([h0n, h1, tail1], axis=0).astype(w_dtype)  # (144, B)
            g1 = jnp.dot(w1_ref[...], z1, preferred_element_type=jnp.float32)
            h1n, c1n = act(g1, c1)
            return h0n, c0n, h1n, c1n

        def slab_steps(slab, count, carry):
            # `count` is static -> up to 8 steps visible to the LLO scheduler so
            # step t+1's layer-0 matmul overlaps step t's layer-1 EUP/VPU work.
            h0, c0, h1, c1 = carry
            for j in range(count):
                x_row = slab[j:j + 1, :]            # static in-slab row pick
                h0, c0, h1, c1 = one_step(x_row, h0, c0, h1, c1)
            return (h0, c0, h1, c1)

        def run_chunk(n_steps):
            # n_steps is a static python int: no per-step masking, no wasted
            # padded timesteps on the tail chunk.
            carry = (h0_ref[...], c0_ref[...], h1_ref[...], c1_ref[...])
            n_slabs = n_steps // 8
            leftover = n_steps - 8 * n_slabs
            if n_slabs > 0:
                def slab_body(s, carry):
                    base = pl.multiple_of(s * 8, 8)
                    slab = x_ref[pl.ds(base, 8), :]   # one aligned load / 8 steps
                    return slab_steps(slab, 8, carry)
                carry = jax.lax.fori_loop(0, n_slabs, slab_body, carry)
            if leftover > 0:
                slab = x_ref[pl.ds(8 * n_slabs, 8), :]
                carry = slab_steps(slab, leftover, carry)
            h0_ref[...], c0_ref[...], h1_ref[...], c1_ref[...] = carry

        if n_chunks == 1:
            run_chunk(rem)
        elif rem == t_chunk:
            run_chunk(t_chunk)
        else:
            @pl.when(tc < n_chunks - 1)
            def _():
                run_chunk(t_chunk)

            @pl.when(tc == n_chunks - 1)
            def _():
                run_chunk(rem)

        # Final FC on the last top-layer hidden state: VPU multiply + sublane
        # reduce (avoids an N=1 MXU matmul).  Output is lane-dense (1, B).
        @pl.when(tc == pl.num_programs(1) - 1)
        def _():
            logits = jnp.sum(h1_ref[...] * fcw_ref[...], axis=0, keepdims=True)
            out_ref[...] = logits + fcb_ref[...]

    return kernel


def cpg_predictor_forward(x, params, *, b_tile=128, t_chunk=256,
                          mxu_dtype=jnp.bfloat16):
    """Pallas-backed equivalent of CpGPredictor.forward (minus the prints).

    mxu_dtype=jnp.bfloat16 (default) runs the recurrent matmuls with bf16
    operands and f32 accumulation; pass jnp.float32 for strict f32 parity.
    """
    H = LSTM_HIDDEN
    x = x.astype(jnp.float32)
    B, T = x.shape
    (wih0, whh0, bih0, bhh0, wih1, whh1, bih1, bhh1, fcw, fcb) = params

    # Batch padded to a 128-lane tile; time padded to a multiple of the chunk
    # (padded timesteps are never executed - the tail chunk has a static trip
    # count).  Keep b_tile=128 for 128 < B <= 256 so the "parallel" batch axis
    # still spans both v7x TensorCores; b_tile=256 fills the 256-lane MXU on
    # v6e/v7x for large B.
    t_chunk = max(8, min(t_chunk, _round_up(T, 8)))
    t_chunk = _round_up(t_chunk, 8)
    t_pad = _round_up(T, t_chunk)
    b_pad = _round_up(B, b_tile)
    grid = (b_pad // b_tile, t_pad // t_chunk)

    # Time-major, zero-padded input (T_pad, B_pad).
    # TODO(synk): for very long sequences, produce x in this layout upstream (or
    # transpose per-chunk in-kernel on the XLU) to avoid this extra HBM copy.
    x_tm = jnp.zeros((t_pad, b_pad), jnp.float32).at[:T, :B].set(x.T)

    # Augmented, bias-folded weights (zero-padded to K multiples of 16):
    #   layer 0: [W_hh_l0 | W_ih_l0 | b_ih_l0+b_hh_l0 | 0]  -> (4H, H + 16)
    #   layer 1: [W_ih_l1 | W_hh_l1 | b_ih_l1+b_hh_l1 | 0]  -> (4H, 2H + 16)
    K0 = H + _TAIL
    K1 = 2 * H + _TAIL
    w0a = jnp.zeros((4 * H, K0), jnp.float32)
    w0a = w0a.at[:, :H].set(whh0)
    w0a = w0a.at[:, H].set(wih0.reshape(4 * H))
    w0a = w0a.at[:, H + 1].set(bih0 + bhh0)
    w1a = jnp.zeros((4 * H, K1), jnp.float32)
    w1a = w1a.at[:, :H].set(wih1)
    w1a = w1a.at[:, H:2 * H].set(whh1)
    w1a = w1a.at[:, 2 * H].set(bih1 + bhh1)

    args = (
        x_tm,
        w0a.astype(mxu_dtype),
        w1a.astype(mxu_dtype),
        fcw.reshape(H, 1),              # fc.weight as a column (stays f32)
        fcb.reshape(1, 1),
    )

    kernel = _make_cpg_lstm_kernel(T, t_chunk, b_tile, mxu_dtype)

    def w_spec(shape):
        return pl.BlockSpec(shape, lambda b, t: (0, 0))

    grid_spec = pltpu.PrefetchScalarGridSpec(
        num_scalar_prefetch=0,
        grid=grid,
        in_specs=[
            pl.BlockSpec((t_chunk, b_tile), lambda b, t: (t, b)),   # x, time-major
            w_spec((4 * H, K0)),
            w_spec((4 * H, K1)),
            w_spec((H, 1)),
            w_spec((1, 1)),
        ],
        out_specs=pl.BlockSpec((1, b_tile), lambda b, t: (0, b)),
        scratch_shapes=[pltpu.VMEM((H, b_tile), jnp.float32)] * 4,  # h0,c0,h1,c1
    )

    out_pad = pl.pallas_call(
        kernel,
        out_shape=jax.ShapeDtypeStruct((1, b_pad), jnp.float32),
        grid_spec=grid_spec,
        compiler_params=pltpu.CompilerParams(
            dimension_semantics=("parallel", "arbitrary"),
        ),
    )(*args)

    return jnp.squeeze(out_pad[0, :B])          # matches logits.squeeze()


def init_params(key):
    """Deterministic init mirroring PyTorch shapes (uniform(-1/sqrt(H), 1/sqrt(H)))."""
    H = LSTM_HIDDEN
    bound = 1.0 / float(jnp.sqrt(H))
    keys = jax.random.split(key, 10)

    def u(k_, shape):
        return jax.random.uniform(k_, shape, jnp.float32, -bound, bound)

    wih0 = u(keys[0], (4 * H, 1))       # weight_ih_l0
    whh0 = u(keys[1], (4 * H, H))       # weight_hh_l0
    bih0 = u(keys[2], (4 * H,))
    bhh0 = u(keys[3], (4 * H,))
    wih1 = u(keys[4], (4 * H, H))       # weight_ih_l1
    whh1 = u(keys[5], (4 * H, H))       # weight_hh_l1
    bih1 = u(keys[6], (4 * H,))
    bhh1 = u(keys[7], (4 * H,))
    fcw = u(keys[8], (1, H))            # fc.weight
    fcb = u(keys[9], (1,))              # fc.bias
    return (wih0, whh0, bih0, bhh0, wih1, whh1, bih1, bhh1, fcw, fcb)


def reference_forward(x, params):
    """Pure-JAX reference mirroring torch.nn.LSTM + Linear semantics."""
    (wih0, whh0, bih0, bhh0, wih1, whh1, bih1, bhh1, fcw, fcb) = params
    H = LSTM_HIDDEN
    x = x.astype(jnp.float32)[..., None]        # (B, T, 1)
    B, T, _ = x.shape

    def lstm_layer(inp, wih, whh, bih, bhh):
        def step(carry, x_t):
            h, c = carry
            gates = x_t @ wih.T + h @ whh.T + bih + bhh
            i, f, g, o = jnp.split(gates, 4, axis=-1)
            i, f, o = jax.nn.sigmoid(i), jax.nn.sigmoid(f), jax.nn.sigmoid(o)
            g = jnp.tanh(g)
            c = f * c + i * g
            h = o * jnp.tanh(c)
            return (h, c), h

        z = jnp.zeros((B, H), jnp.float32)
        _, hs = jax.lax.scan(step, (z, z), jnp.swapaxes(inp, 0, 1))
        return jnp.swapaxes(hs, 0, 1)

    out0 = lstm_layer(x, wih0, whh0, bih0, bhh0)
    out1 = lstm_layer(out0, wih1, whh1, bih1, bhh1)
    last = out1[:, -1, :]
    logits = last @ fcw.T + fcb
    return jnp.squeeze(logits)


if __name__ == "__main__":
    B, T = 2, 8
    key = jax.random.PRNGKey(0)
    kx, kp = jax.random.split(key)
    # Sequence of scalar "DNA" values, shape (B, T); module unsqueezes to (B, T, 1).
    x = jax.random.uniform(kx, (B, T), jnp.float32)
    params = init_params(kp)

    ref = reference_forward(x, params)

    # Default fast path: bf16 MXU operands (f32 accumulation / gate math).
    out = jax.block_until_ready(cpg_predictor_forward(x, params))
    assert out.shape == ref.shape == (B,), (out.shape, ref.shape)
    assert jnp.allclose(out, ref, atol=5e-2, rtol=5e-2), (out, ref)

    # Strict-parity path: f32 MXU operands.
    out_f32 = jax.block_until_ready(
        cpg_predictor_forward(x, params, mxu_dtype=jnp.float32))
    assert jnp.allclose(out_f32, ref, atol=1e-4, rtol=1e-4), (out_f32, ref)

    print("KERNEL_OK")
</pallas_src>

<mosaic_0001>
module attributes {stable_mosaic.version = 11 : i64} {
  func.func @kernel(%arg0: i32, %arg1: i32, %arg2: memref<8x128xf32, #tpu.memory_space<vmem>>, %arg3: memref<256x80xbf16, #tpu.memory_space<vmem>>, %arg4: memref<256x144xbf16, #tpu.memory_space<vmem>>, %arg5: memref<64x1xf32, #tpu.memory_space<vmem>>, %arg6: memref<1x1xf32, #tpu.memory_space<vmem>>, %arg7: memref<1x128xf32, #tpu.memory_space<vmem>>, %arg8: memref<64x128xf32, #tpu.memory_space<vmem>>, %arg9: memref<64x128xf32, #tpu.memory_space<vmem>>, %arg10: memref<64x128xf32, #tpu.memory_space<vmem>>, %arg11: memref<64x128xf32, #tpu.memory_space<vmem>>) attributes {dimension_semantics = [#tpu.dimension_semantics<parallel>, #tpu.dimension_semantics<arbitrary>], iteration_bounds = array<i64: 1, 1>, scalar_prefetch = 0 : i64, scratch_operands = 4 : i64, tpu.core_type = #tpu.core_type<tc>, window_params = [{transform_indices = @transform_0, window_bounds = array<i64: 8, 128>}, {pipeline_mode = #tpu.pipeline_mode<synchronous>, transform_indices = @transform_1, window_bounds = array<i64: 256, 80>}, {pipeline_mode = #tpu.pipeline_mode<synchronous>, transform_indices = @transform_2, window_bounds = array<i64: 256, 144>}, {pipeline_mode = #tpu.pipeline_mode<synchronous>, transform_indices = @transform_3, window_bounds = array<i64: 64, 1>}, {pipeline_mode = #tpu.pipeline_mode<synchronous>, transform_indices = @transform_4, window_bounds = array<i64: 1, 1>}, {transform_indices = @transform_5, window_bounds = array<i64: 1, 128>}]} {
    %c0_i32 = arith.constant 0 : i32
    %0 = arith.cmpi eq, %arg1, %c0_i32 : i32
    %1 = arith.extui %0 : i1 to i32
    %c0_i32_0 = arith.constant 0 : i32
    %2 = arith.cmpi ne, %1, %c0_i32_0 : i32
    scf.if %2 {
      %cst_217 = arith.constant 0.000000e+00 : f32
      %621 = vector.broadcast %cst_217 : f32 to vector<64x128xf32>
      %c0_218 = arith.constant 0 : index
      %c0_219 = arith.constant 0 : index
      %622 = vector.load %arg8[%c0_218, %c0_219] : memref<64x128xf32, #tpu.memory_space<vmem>>, vector<64x128xf32>
      tpu.vector_store %arg8[%c0_218, %c0_219], %621 {strides = array<i32>} : memref<64x128xf32, #tpu.memory_space<vmem>>, vector<64x128xf32>,
      %cst_220 = arith.constant 0.000000e+00 : f32
      %623 = vector.broadcast %cst_220 : f32 to vector<64x128xf32>
      %c0_221 = arith.constant 0 : index
      %c0_222 = arith.constant 0 : index
      %624 = vector.load %arg9[%c0_221, %c0_222] : memref<64x128xf32, #tpu.memory_space<vmem>>, vector<64x128xf32>
      tpu.vector_store %arg9[%c0_221, %c0_222], %623 {strides = array<i32>} : memref<64x128xf32, #tpu.memory_space<vmem>>, vector<64x128xf32>,
      %cst_223 = arith.constant 0.000000e+00 : f32
      %625 = vector.broadcast %cst_223 : f32 to vector<64x128xf32>
      %c0_224 = arith.constant 0 : index
      %c0_225 = arith.constant 0 : index
      %626 = vector.load %arg10[%c0_224, %c0_225] : memref<64x128xf32, #tpu.memory_space<vmem>>, vector<64x128xf32>
      tpu.vector_store %arg10[%c0_224, %c0_225], %625 {strides = array<i32>} : memref<64x128xf32, #tpu.memory_space<vmem>>, vector<64x128xf32>,
      %cst_226 = arith.constant 0.000000e+00 : f32
      %627 = vector.broadcast %cst_226 : f32 to vector<64x128xf32>
      %c0_227 = arith.constant 0 : index
      %c0_228 = arith.constant 0 : index
      %628 = vector.load %arg11[%c0_227, %c0_228] : memref<64x128xf32, #tpu.memory_space<vmem>>, vector<64x128xf32>
      tpu.vector_store %arg11[%c0_227, %c0_228], %627 {strides = array<i32>} : memref<64x128xf32, #tpu.memory_space<vmem>>, vector<64x128xf32>,
    } else {
    }
    %3 = tpu.iota {dimensions = array<i32: 0>} : vector<16x128xi32>
    %c0_i32_1 = arith.constant 0 : i32
    %4 = vector.broadcast %c0_i32_1 : i32 to vector<16x128xi32>
    %5 = arith.cmpi eq, %3, %4 : vector<16x128xi32>
    %c1_i32 = arith.constant 1 : i32
    %6 = vector.broadcast %c1_i32 : i32 to vector<16x128xi32>
    %7 = arith.cmpi eq, %3, %6 : vector<16x128xi32>
    %cst = arith.constant 1.000000e+00 : f32
    %cst_2 = arith.constant 0.000000e+00 : f32
    %8 = vector.broadcast %cst : f32 to vector<16x128xf32>
    %9 = vector.broadcast %cst_2 : f32 to vector<16x128xf32>
    %10 = arith.select %7, %8, %9 : vector<16x128xi1>, vector<16x128xf32>
    %cst_3 = arith.constant 1.000000e+00 : f32
    %cst_4 = arith.constant 0.000000e+00 : f32
    %11 = vector.broadcast %cst_3 : f32 to vector<16x128xf32>
    %12 = vector.broadcast %cst_4 : f32 to vector<16x128xf32>
    %13 = arith.select %5, %11, %12 : vector<16x128xi1>, vector<16x128xf32>
    %c0 = arith.constant 0 : index
    %c0_5 = arith.constant 0 : index
    %14 = vector.load %arg8[%c0, %c0_5] : memref<64x128xf32, #tpu.memory_space<vmem>>, vector<64x128xf32>
    %c0_6 = arith.constant 0 : index
    %c0_7 = arith.constant 0 : index
    %15 = vector.load %arg9[%c0_6, %c0_7] : memref<64x128xf32, #tpu.memory_space<vmem>>, vector<64x128xf32>
    %c0_8 = arith.constant 0 : index
    %c0_9 = arith.constant 0 : index
    %16 = vector.load %arg10[%c0_8, %c0_9] : memref<64x128xf32, #tpu.memory_space<vmem>>, vector<64x128xf32>
    %c0_10 = arith.constant 0 : index
    %c0_11 = arith.constant 0 : index
    %17 = vector.load %arg11[%c0_10, %c0_11] : memref<64x128xf32, #tpu.memory_space<vmem>>, vector<64x128xf32>
    %c0_i32_12 = arith.constant 0 : i32
    %c8_i32 = arith.constant 8 : i32
    %18 = arith.muli %c0_i32_12, %c8_i32 : i32
    %19 = tpu.assume_multiple %18, 8 : i32
    %20 = arith.index_cast %19 : i32 to index
    %c0_13 = arith.constant 0 : index
    %21 = vector.load %arg2[%20, %c0_13] : memref<8x128xf32, #tpu.memory_space<vmem>>, vector<8x128xf32>
    %22 = vector.extract_strided_slice %21 {offsets = [0, 0], sizes = [1, 128], strides = [1, 1]} : vector<8x128xf32> to vector<1x128xf32>
    %23 = vector.shape_cast %22 : vector<1x128xf32> to vector<1x128xf32>
    %24 = vector.broadcast %23 : vector<1x128xf32> to vector<16x128xf32>
    %25 = arith.select %5, %24, %10 : vector<16x128xi1>, vector<16x128xf32>
    %26 = tpu.concatenate %14, %25 in 0 : vector<64x128xf32>, vector<16x128xf32> -> vector<80x128xf32>
    %27 = arith.truncf %26 : vector<80x128xf32> to vector<80x128xbf16>
    %c0_14 = arith.constant 0 : index
    %c0_15 = arith.constant 0 : index
    %28 = vector.load %arg3[%c0_14, %c0_15] : memref<256x80xbf16, #tpu.memory_space<vmem>>, vector<256x80xbf16>
    %cst_16 = arith.constant dense<0.000000e+00> : vector<256x128xf32>
    %29 = tpu.matmul %28, %27, %cst_16 {dimension_numbers = #tpu.dot_dimension_numbers<[1], [0], [0], [1], [0, 0, 1, 1], [], []>} : vector<256x80xbf16>, vector<80x128xbf16>, vector<256x128xf32> -> vector<256x128xf32>
    %30 = vector.extract_strided_slice %29 {offsets = [0, 0], sizes = [64, 128], strides = [1, 1]} : vector<256x128xf32> to vector<64x128xf32>
    %cst_17 = arith.constant 5.000000e-01 : f32
    %31 = vector.broadcast %cst_17 : f32 to vector<64x128xf32>
    %32 = arith.mulf %31, %30 : vector<64x128xf32>
    %33 = math.tanh %32 : vector<64x128xf32>
    %cst_18 = arith.constant 1.000000e+00 : f32
    %34 = vector.broadcast %cst_18 : f32 to vector<64x128xf32>
    %35 = arith.addf %34, %33 : vector<64x128xf32>
    %cst_19 = arith.constant 5.000000e-01 : f32
    %36 = vector.broadcast %cst_19 : f32 to vector<64x128xf32>
    %37 = arith.mulf %36, %35 : vector<64x128xf32>
    %38 = vector.extract_strided_slice %29 {offsets = [64, 0], sizes = [64, 128], strides = [1, 1]} : vector<256x128xf32> to vector<64x128xf32>
    %cst_20 = arith.constant 5.000000e-01 : f32
    %39 = vector.broadcast %cst_20 : f32 to vector<64x128xf32>
    %40 = arith.mulf %39, %38 : vector<64x128xf32>
    %41 = math.tanh %40 : vector<64x128xf32>
    %cst_21 = arith.constant 1.000000e+00 : f32
    %42 = vector.broadcast %cst_21 : f32 to vector<64x128xf32>
    %43 = arith.addf %42, %41 : vector<64x128xf32>
    %cst_22 = arith.constant 5.000000e-01 : f32
    %44 = vector.broadcast %cst_22 : f32 to vector<64x128xf32>
    %45 = arith.mulf %44, %43 : vector<64x128xf32>
    %46 = vector.extract_strided_slice %29 {offsets = [128, 0], sizes = [64, 128], strides = [1, 1]} : vector<256x128xf32> to vector<64x128xf32>
    %47 = math.tanh %46 : vector<64x128xf32>
    %48 = vector.extract_strided_slice %29 {offsets = [192, 0], sizes = [64, 128], strides = [1, 1]} : vector<256x128xf32> to vector<64x128xf32>
    %cst_23 = arith.constant 5.000000e-01 : f32
    %49 = vector.broadcast %cst_23 : f32 to vector<64x128xf32>
    %50 = arith.mulf %49, %48 : vector<64x128xf32>
    %51 = math.tanh %50 : vector<64x128xf32>
    %cst_24 = arith.constant 1.000000e+00 : f32
    %52 = vector.broadcast %cst_24 : f32 to vector<64x128xf32>
    %53 = arith.addf %52, %51 : vector<64x128xf32>
    %cst_25 = arith.constant 5.000000e-01 : f32
    %54 = vector.broadcast %cst_25 : f32 to vector<64x128xf32>
    %55 = arith.mulf %54, %53 : vector<64x128xf32>
    %56 = arith.mulf %45, %15 : vector<64x128xf32>
    %57 = arith.mulf %37, %47 : vector<64x128xf32>
    %58 = arith.addf %56, %57 : vector<64x128xf32>
    %59 = math.tanh %58 : vector<64x128xf32>
    %60 = arith.mulf %55, %59 : vector<64x128xf32>
    %61 = tpu.concatenate %60, %16, %13 in 0 : vector<64x128xf32>, vector<64x128xf32>, vector<16x128xf32> -> vector<144x128xf32>
    %62 = arith.truncf %61 : vector<144x128xf32> to vector<144x128xbf16>
    %c0_26 = arith.constant 0 : index
    %c0_27 = arith.constant 0 : index
    %63 = vector.load %arg4[%c0_26, %c0_27] : memref<256x144xbf16, #tpu.memory_space<vmem>>, vector<256x144xbf16>
    %cst_28 = arith.constant dense<0.000000e+00> : vector<256x128xf32>
    %64 = tpu.matmul %63, %62, %cst_28 {dimension_numbers = #tpu.dot_dimension_numbers<[1], [0], [0], [1], [0, 0, 1, 1], [], []>} : vector<256x144xbf16>, vector<144x128xbf16>, vector<256x128xf32> -> vector<256x128xf32>
    %65 = vector.extract_strided_slice %64 {offsets = [0, 0], sizes = [64, 128], strides = [1, 1]} : vector<256x128xf32> to vector<64x128xf32>
    %cst_29 = arith.constant 5.000000e-01 : f32
    %66 = vector.broadcast %cst_29 : f32 to vector<64x128xf32>
    %67 = arith.mulf %66, %65 : vector<64x128xf32>
    %68 = math.tanh %67 : vector<64x128xf32>
    %cst_30 = arith.constant 1.000000e+00 : f32
    %69 = vector.broadcast %cst_30 : f32 to vector<64x128xf32>
    %70 = arith.addf %69, %68 : vector<64x128xf32>
    %cst_31 = arith.constant 5.000000e-01 : f32
    %71 = vector.broadcast %cst_31 : f32 to vector<64x128xf32>
    %72 = arith.mulf %71, %70 : vector<64x128xf32>
    %73 = vector.extract_strided_slice %64 {offsets = [64, 0], sizes = [64, 128], strides = [1, 1]} : vector<256x128xf32> to vector<64x128xf32>
    %cst_32 = arith.constant 5.000000e-01 : f32
    %74 = vector.broadcast %cst_32 : f32 to vector<64x128xf32>
    %75 = arith.mulf %74, %73 : vector<64x128xf32>
    %76 = math.tanh %75 : vector<64x128xf32>
    %cst_33 = arith.constant 1.000000e+00 : f32
    %77 = vector.broadcast %cst_33 : f32 to vector<64x128xf32>
    %78 = arith.addf %77, %76 : vector<64x128xf32>
    %cst_34 = arith.constant 5.000000e-01 : f32
    %79 = vector.broadcast %cst_34 : f32 to vector<64x128xf32>
    %80 = arith.mulf %79, %78 : vector<64x128xf32>
    %81 = vector.extract_strided_slice %64 {offsets = [128, 0], sizes = [64, 128], strides = [1, 1]} : vector<256x128xf32> to vector<64x128xf32>
    %82 = math.tanh %81 : vector<64x128xf32>
    %83 = vector.extract_strided_slice %64 {offsets = [192, 0], sizes = [64, 128], strides = [1, 1]} : vector<256x128xf32> to vector<64x128xf32>
    %cst_35 = arith.constant 5.000000e-01 : f32
    %84 = vector.broadcast %cst_35 : f32 to vector<64x128xf32>
    %85 = arith.mulf %84, %83 : vector<64x128xf32>
    %86 = math.tanh %85 : vector<64x128xf32>
    %cst_36 = arith.constant 1.000000e+00 : f32
    %87 = vector.broadcast %cst_36 : f32 to vector<64x128xf32>
    %88 = arith.addf %87, %86 : vector<64x128xf32>
    %cst_37 = arith.constant 5.000000e-01 : f32
    %89 = vector.broadcast %cst_37 : f32 to vector<64x128xf32>
    %90 = arith.mulf %89, %88 : vector<64x128xf32>
    %91 = arith.mulf %80, %17 : vector<64x128xf32>
    %92 = arith.mulf %72, %82 : vector<64x128xf32>
    %93 = arith.addf %91, %92 : vector<64x128xf32>
    %94 = math.tanh %93 : vector<64x128xf32>
    %95 = arith.mulf %90, %94 : vector<64x128xf32>
    %96 = vector.extract_strided_slice %21 {offsets = [1, 0], sizes = [1, 128], strides = [1, 1]} : vector<8x128xf32> to vector<1x128xf32>
    %97 = vector.shape_cast %96 : vector<1x128xf32> to vector<1x128xf32>
    %98 = vector.broadcast %97 : vector<1x128xf32> to vector<16x128xf32>
    %99 = arith.select %5, %98, %10 : vector<16x128xi1>, vector<16x128xf32>
    %100 = tpu.concatenate %60, %99 in 0 : vector<64x128xf32>, vector<16x128xf32> -> vector<80x128xf32>
    %101 = arith.truncf %100 : vector<80x128xf32> to vector<80x128xbf16>
    %c0_38 = arith.constant 0 : index
    %c0_39 = arith.constant 0 : index
    %102 = vector.load %arg3[%c0_38, %c0_39] : memref<256x80xbf16, #tpu.memory_space<vmem>>, vector<256x80xbf16>
    %cst_40 = arith.constant dense<0.000000e+00> : vector<256x128xf32>
    %103 = tpu.matmul %102, %101, %cst_40 {dimension_numbers = #tpu.dot_dimension_numbers<[1], [0], [0], [1], [0, 0, 1, 1], [], []>} : vector<256x80xbf16>, vector<80x128xbf16>, vector<256x128xf32> -> vector<256x128xf32>
    %104 = vector.extract_strided_slice %103 {offsets = [0, 0], sizes = [64, 128], strides = [1, 1]} : vector<256x128xf32> to vector<64x128xf32>
    %cst_41 = arith.constant 5.000000e-01 : f32
    %105 = vector.broadcast %cst_41 : f32 to vector<64x128xf32>
    %106 = arith.mulf %105, %104 : vector<64x128xf32>
    %107 = math.tanh %106 : vector<64x128xf32>
    %cst_42 = arith.constant 1.000000e+00 : f32
    %108 = vector.broadcast %cst_42 : f32 to vector<64x128xf32>
    %109 = arith.addf %108, %107 : vector<64x128xf32>
    %cst_43 = arith.constant 5.000000e-01 : f32
    %110 = vector.broadcast %cst_43 : f32 to vector<64x128xf32>
    %111 = arith.mulf %110, %109 : vector<64x128xf32>
    %112 = vector.extract_strided_slice %103 {offsets = [64, 0], sizes = [64, 128], strides = [1, 1]} : vector<256x128xf32> to vector<64x128xf32>
    %cst_44 = arith.constant 5.000000e-01 : f32
    %113 = vector.broadcast %cst_44 : f32 to vector<64x128xf32>
    %114 = arith.mulf %113, %112 : vector<64x128xf32>
    %115 = math.tanh %114 : vector<64x128xf32>
    %cst_45 = arith.constant 1.000000e+00 : f32
    %116 = vector.broadcast %cst_45 : f32 to vector<64x128xf32>
    %117 = arith.addf %116, %115 : vector<64x128xf32>
    %cst_46 = arith.constant 5.000000e-01 : f32
    %118 = vector.broadcast %cst_46 : f32 to vector<64x128xf32>
    %119 = arith.mulf %118, %117 : vector<64x128xf32>
    %120 = vector.extract_strided_slice %103 {offsets = [128, 0], sizes = [64, 128], strides = [1, 1]} : vector<256x128xf32> to vector<64x128xf32>
    %121 = math.tanh %120 : vector<64x128xf32>
    %122 = vector.extract_strided_slice %103 {offsets = [192, 0], sizes = [64, 128], strides = [1, 1]} : vector<256x128xf32> to vector<64x128xf32>
    %cst_47 = arith.constant 5.000000e-01 : f32
    %123 = vector.broadcast %cst_47 : f32 to vector<64x128xf32>
    %124 = arith.mulf %123, %122 : vector<64x128xf32>
    %125 = math.tanh %124 : vector<64x128xf32>
    %cst_48 = arith.constant 1.000000e+00 : f32
    %126 = vector.broadcast %cst_48 : f32 to vector<64x128xf32>
    %127 = arith.addf %126, %125 : vector<64x128xf32>
    %cst_49 = arith.constant 5.000000e-01 : f32
    %128 = vector.broadcast %cst_49 : f32 to vector<64x128xf32>
    %129 = arith.mulf %128, %127 : vector<64x128xf32>
    %130 = arith.mulf %119, %58 : vector<64x128xf32>
    %131 = arith.mulf %111, %121 : vector<64x128xf32>
    %132 = arith.addf %130, %131 : vector<64x128xf32>
    %133 = math.tanh %132 : vector<64x128xf32>
    %134 = arith.mulf %129, %133 : vector<64x128xf32>
    %135 = tpu.concatenate %134, %95, %13 in 0 : vector<64x128xf32>, vector<64x128xf32>, vector<16x128xf32> -> vector<144x128xf32>
    %136 = arith.truncf %135 : vector<144x128xf32> to vector<144x128xbf16>
    %c0_50 = arith.constant 0 : index
    %c0_51 = arith.constant 0 : index
    %137 = vector.load %arg4[%c0_50, %c0_51] : memref<256x144xbf16, #tpu.memory_space<vmem>>, vector<256x144xbf16>
    %cst_52 = arith.constant dense<0.000000e+00> : vector<256x128xf32>
    %138 = tpu.matmul %137, %136, %cst_52 {dimension_numbers = #tpu.dot_dimension_numbers<[1], [0], [0], [1], [0, 0, 1, 1], [], []>} : vector<256x144xbf16>, vector<144x128xbf16>, vector<256x128xf32> -> vector<256x128xf32>
    %139 = vector.extract_strided_slice %138 {offsets = [0, 0], sizes = [64, 128], strides = [1, 1]} : vector<256x128xf32> to vector<64x128xf32>
    %cst_53 = arith.constant 5.000000e-01 : f32
    %140 = vector.broadcast %cst_53 : f32 to vector<64x128xf32>
    %141 = arith.mulf %140, %139 : vector<64x128xf32>
    %142 = math.tanh %141 : vector<64x128xf32>
    %cst_54 = arith.constant 1.000000e+00 : f32
    %143 = vector.broadcast %cst_54 : f32 to vector<64x128xf32>
    %144 = arith.addf %143, %142 : vector<64x128xf32>
    %cst_55 = arith.constant 5.000000e-01 : f32
    %145 = vector.broadcast %cst_55 : f32 to vector<64x128xf32>
    %146 = arith.mulf %145, %144 : vector<64x128xf32>
    %147 = vector.extract_strided_slice %138 {offsets = [64, 0], sizes = [64, 128], strides = [1, 1]} : vector<256x128xf32> to vector<64x128xf32>
    %cst_56 = arith.constant 5.000000e-01 : f32
    %148 = vector.broadcast %cst_56 : f32 to vector<64x128xf32>
    %149 = arith.mulf %148, %147 : vector<64x128xf32>
    %150 = math.tanh %149 : vector<64x128xf32>
    %cst_57 = arith.constant 1.000000e+00 : f32
    %151 = vector.broadcast %cst_57 : f32 to vector<64x128xf32>
    %152 = arith.addf %151, %150 : vector<64x128xf32>
    %cst_58 = arith.constant 5.000000e-01 : f32
    %153 = vector.broadcast %cst_58 : f32 to vector<64x128xf32>
    %154 = arith.mulf %153, %152 : vector<64x128xf32>
    %155 = vector.extract_strided_slice %138 {offsets = [128, 0], sizes = [64, 128], strides = [1, 1]} : vector<256x128xf32> to vector<64x128xf32>
    %156 = math.tanh %155 : vector<64x128xf32>
    %157 = vector.extract_strided_slice %138 {offsets = [192, 0], sizes = [64, 128], strides = [1, 1]} : vector<256x128xf32> to vector<64x128xf32>
    %cst_59 = arith.constant 5.000000e-01 : f32
    %158 = vector.broadcast %cst_59 : f32 to vector<64x128xf32>
    %159 = arith.mulf %158, %157 : vector<64x128xf32>
    %160 = math.tanh %159 : vector<64x128xf32>
    %cst_60 = arith.constant 1.000000e+00 : f32
    %161 = vector.broadcast %cst_60 : f32 to vector<64x128xf32>
    %162 = arith.addf %161, %160 : vector<64x128xf32>
    %cst_61 = arith.constant 5.000000e-01 : f32
    %163 = vector.broadcast %cst_61 : f32 to vector<64x128xf32>
    %164 = arith.mulf %163, %162 : vector<64x128xf32>
    %165 = arith.mulf %154, %93 : vector<64x128xf32>
    %166 = arith.mulf %146, %156 : vector<64x128xf32>
    %167 = arith.addf %165, %166 : vector<64x128xf32>
    %168 = math.tanh %167 : vector<64x128xf32>
    %169 = arith.mulf %164, %168 : vector<64x128xf32>
    %170 = vector.extract_strided_slice %21 {offsets = [2, 0], sizes = [1, 128], strides = [1, 1]} : vector<8x128xf32> to vector<1x128xf32>
    %171 = vector.shape_cast %170 : vector<1x128xf32> to vector<1x128xf32>
    %172 = vector.broadcast %171 : vector<1x128xf32> to vector<16x128xf32>
    %173 = arith.select %5, %172, %10 : vector<16x128xi1>, vector<16x128xf32>
    %174 = tpu.concatenate %134, %173 in 0 : vector<64x128xf32>, vector<16x128xf32> -> vector<80x128xf32>
    %175 = arith.truncf %174 : vector<80x128xf32> to vector<80x128xbf16>
    %c0_62 = arith.constant 0 : index
    %c0_63 = arith.constant 0 : index
    %176 = vector.load %arg3[%c0_62, %c0_63] : memref<256x80xbf16, #tpu.memory_space<vmem>>, vector<256x80xbf16>
    %cst_64 = arith.constant dense<0.000000e+00> : vector<256x128xf32>
    %177 = tpu.matmul %176, %175, %cst_64 {dimension_numbers = #tpu.dot_dimension_numbers<[1], [0], [0], [1], [0, 0, 1, 1], [], []>} : vector<256x80xbf16>, vector<80x128xbf16>, vector<256x128xf32> -> vector<256x128xf32>
    %178 = vector.extract_strided_slice %177 {offsets = [0, 0], sizes = [64, 128], strides = [1, 1]} : vector<256x128xf32> to vector<64x128xf32>
    %cst_65 = arith.constant 5.000000e-01 : f32
    %179 = vector.broadcast %cst_65 : f32 to vector<64x128xf32>
    %180 = arith.mulf %179, %178 : vector<64x128xf32>
    %181 = math.tanh %180 : vector<64x128xf32>
    %cst_66 = arith.constant 1.000000e+00 : f32
    %182 = vector.broadcast %cst_66 : f32 to vector<64x128xf32>
    %183 = arith.addf %182, %181 : vector<64x128xf32>
    %cst_67 = arith.constant 5.000000e-01 : f32
    %184 = vector.broadcast %cst_67 : f32 to vector<64x128xf32>
    %185 = arith.mulf %184, %183 : vector<64x128xf32>
    %186 = vector.extract_strided_slice %177 {offsets = [64, 0], sizes = [64, 128], strides = [1, 1]} : vector<256x128xf32> to vector<64x128xf32>
    %cst_68 = arith.constant 5.000000e-01 : f32
    %187 = vector.broadcast %cst_68 : f32 to vector<64x128xf32>
    %188 = arith.mulf %187, %186 : vector<64x128xf32>
    %189 = math.tanh %188 : vector<64x128xf32>
    %cst_69 = arith.constant 1.000000e+00 : f32
    %190 = vector.broadcast %cst_69 : f32 to vector<64x128xf32>
    %191 = arith.addf %190, %189 : vector<64x128xf32>
    %cst_70 = arith.constant 5.000000e-01 : f32
    %192 = vector.broadcast %cst_70 : f32 to vector<64x128xf32>
    %193 = arith.mulf %192, %191 : vector<64x128xf32>
    %194 = vector.extract_strided_slice %177 {offsets = [128, 0], sizes = [64, 128], strides = [1, 1]} : vector<256x128xf32> to vector<64x128xf32>
    %195 = math.tanh %194 : vector<64x128xf32>
    %196 = vector.extract_strided_slice %177 {offsets = [192, 0], sizes = [64, 128], strides = [1, 1]} : vector<256x128xf32> to vector<64x128xf32>
    %cst_71 = arith.constant 5.000000e-01 : f32
    %197 = vector.broadcast %cst_71 : f32 to vector<64x128xf32>
    %198 = arith.mulf %197, %196 : vector<64x128xf32>
    %199 = math.tanh %198 : vector<64x128xf32>
    %cst_72 = arith.constant 1.000000e+00 : f32
    %200 = vector.broadcast %cst_72 : f32 to vector<64x128xf32>
    %201 = arith.addf %200, %199 : vector<64x128xf32>
    %cst_73 = arith.constant 5.000000e-01 : f32
    %202 = vector.broadcast %cst_73 : f32 to vector<64x128xf32>
    %203 = arith.mulf %202, %201 : vector<64x128xf32>
    %204 = arith.mulf %193, %132 : vector<64x128xf32>
    %205 = arith.mulf %185, %195 : vector<64x128xf32>
    %206 = arith.addf %204, %205 : vector<64x128xf32>
    %207 = math.tanh %206 : vector<64x128xf32>
    %208 = arith.mulf %203, %207 : vector<64x128xf32>
    %209 = tpu.concatenate %208, %169, %13 in 0 : vector<64x128xf32>, vector<64x128xf32>, vector<16x128xf32> -> vector<144x128xf32>
    %210 = arith.truncf %209 : vector<144x128xf32> to vector<144x128xbf16>
    %c0_74 = arith.constant 0 : index
    %c0_75 = arith.constant 0 : index
    %211 = vector.load %arg4[%c0_74, %c0_75] : memref<256x144xbf16, #tpu.memory_space<vmem>>, vector<256x144xbf16>
    %cst_76 = arith.constant dense<0.000000e+00> : vector<256x128xf32>
    %212 = tpu.matmul %211, %210, %cst_76 {dimension_numbers = #tpu.dot_dimension_numbers<[1], [0], [0], [1], [0, 0, 1, 1], [], []>} : vector<256x144xbf16>, vector<144x128xbf16>, vector<256x128xf32> -> vector<256x128xf32>
    %213 = vector.extract_strided_slice %212 {offsets = [0, 0], sizes = [64, 128], strides = [1, 1]} : vector<256x128xf32> to vector<64x128xf32>
    %cst_77 = arith.constant 5.000000e-01 : f32
    %214 = vector.broadcast %cst_77 : f32 to vector<64x128xf32>
    %215 = arith.mulf %214, %213 : vector<64x128xf32>
    %216 = math.tanh %215 : vector<64x128xf32>
    %cst_78 = arith.constant 1.000000e+00 : f32
    %217 = vector.broadcast %cst_78 : f32 to vector<64x128xf32>
    %218 = arith.addf %217, %216 : vector<64x128xf32>
    %cst_79 = arith.constant 5.000000e-01 : f32
    %219 = vector.broadcast %cst_79 : f32 to vector<64x128xf32>
    %220 = arith.mulf %219, %218 : vector<64x128xf32>
    %221 = vector.extract_strided_slice %212 {offsets = [64, 0], sizes = [64, 128], strides = [1, 1]} : vector<256x128xf32> to vector<64x128xf32>
    %cst_80 = arith.constant 5.000000e-01 : f32
    %222 = vector.broadcast %cst_80 : f32 to vector<64x128xf32>
    %223 = arith.mulf %222, %221 : vector<64x128xf32>
    %224 = math.tanh %223 : vector<64x128xf32>
    %cst_81 = arith.constant 1.000000e+00 : f32
    %225 = vector.broadcast %cst_81 : f32 to vector<64x128xf32>
    %226 = arith.addf %225, %224 : vector<64x128xf32>
    %cst_82 = arith.constant 5.000000e-01 : f32
    %227 = vector.broadcast %cst_82 : f32 to vector<64x128xf32>
    %228 = arith.mulf %227, %226 : vector<64x128xf32>
    %229 = vector.extract_strided_slice %212 {offsets = [128, 0], sizes = [64, 128], strides = [1, 1]} : vector<256x128xf32> to vector<64x128xf32>
    %230 = math.tanh %229 : vector<64x128xf32>
    %231 = vector.extract_strided_slice %212 {offsets = [192, 0], sizes = [64, 128], strides = [1, 1]} : vector<256x128xf32> to vector<64x128xf32>
    %cst_83 = arith.constant 5.000000e-01 : f32
    %232 = vector.broadcast %cst_83 : f32 to vector<64x128xf32>
    %233 = arith.mulf %232, %231 : vector<64x128xf32>
    %234 = math.tanh %233 : vector<64x128xf32>
    %cst_84 = arith.constant 1.000000e+00 : f32
    %235 = vector.broadcast %cst_84 : f32 to vector<64x128xf32>
    %236 = arith.addf %235, %234 : vector<64x128xf32>
    %cst_85 = arith.constant 5.000000e-01 : f32
    %237 = vector.broadcast %cst_85 : f32 to vector<64x128xf32>
    %238 = arith.mulf %237, %236 : vector<64x128xf32>
    %239 = arith.mulf %228, %167 : vector<64x128xf32>
    %240 = arith.mulf %220, %230 : vector<64x128xf32>
    %241 = arith.addf %239, %240 : vector<64x128xf32>
    %242 = math.tanh %241 : vector<64x128xf32>
    %243 = arith.mulf %238, %242 : vector<64x128xf32>
    %244 = vector.extract_strided_slice %21 {offsets = [3, 0], sizes = [1, 128], strides = [1, 1]} : vector<8x128xf32> to vector<1x128xf32>
    %245 = vector.shape_cast %244 : vector<1x128xf32> to vector<1x128xf32>
    %246 = vector.broadcast %245 : vector<1x128xf32> to vector<16x128xf32>
    %247 = arith.select %5, %246, %10 : vector<16x128xi1>, vector<16x128xf32>
    %248 = tpu.concatenate %208, %247 in 0 : vector<64x128xf32>, vector<16x128xf32> -> vector<80x128xf32>
    %249 = arith.truncf %248 : vector<80x128xf32> to vector<80x128xbf16>
    %c0_86 = arith.constant 0 : index
    %c0_87 = arith.constant 0 : index
    %250 = vector.load %arg3[%c0_86, %c0_87] : memref<256x80xbf16, #tpu.memory_space<vmem>>, vector<256x80xbf16>
    %cst_88 = arith.constant dense<0.000000e+00> : vector<256x128xf32>
    %251 = tpu.matmul %250, %249, %cst_88 {dimension_numbers = #tpu.dot_dimension_numbers<[1], [0], [0], [1], [0, 0, 1, 1], [], []>} : vector<256x80xbf16>, vector<80x128xbf16>, vector<256x128xf32> -> vector<256x128xf32>
    %252 = vector.extract_strided_slice %251 {offsets = [0, 0], sizes = [64, 128], strides = [1, 1]} : vector<256x128xf32> to vector<64x128xf32>
    %cst_89 = arith.constant 5.000000e-01 : f32
    %253 = vector.broadcast %cst_89 : f32 to vector<64x128xf32>
    %254 = arith.mulf %253, %252 : vector<64x128xf32>
    %255 = math.tanh %254 : vector<64x128xf32>
    %cst_90 = arith.constant 1.000000e+00 : f32
    %256 = vector.broadcast %cst_90 : f32 to vector<64x128xf32>
    %257 = arith.addf %256, %255 : vector<64x128xf32>
    %cst_91 = arith.constant 5.000000e-01 : f32
    %258 = vector.broadcast %cst_91 : f32 to vector<64x128xf32>
    %259 = arith.mulf %258, %257 : vector<64x128xf32>
    %260 = vector.extract_strided_slice %251 {offsets = [64, 0], sizes = [64, 128], strides = [1, 1]} : vector<256x128xf32> to vector<64x128xf32>
    %cst_92 = arith.constant 5.000000e-01 : f32
    %261 = vector.broadcast %cst_92 : f32 to vector<64x128xf32>
    %262 = arith.mulf %261, %260 : vector<64x128xf32>
    %263 = math.tanh %262 : vector<64x128xf32>
    %cst_93 = arith.constant 1.000000e+00 : f32
    %264 = vector.broadcast %cst_93 : f32 to vector<64x128xf32>
    %265 = arith.addf %264, %263 : vector<64x128xf32>
    %cst_94 = arith.constant 5.000000e-01 : f32
    %266 = vector.broadcast %cst_94 : f32 to vector<64x128xf32>
    %267 = arith.mulf %266, %265 : vector<64x128xf32>
    %268 = vector.extract_strided_slice %251 {offsets = [128, 0], sizes = [64, 128], strides = [1, 1]} : vector<256x128xf32> to vector<64x128xf32>
    %269 = math.tanh %268 : vector<64x128xf32>
    %270 = vector.extract_strided_slice %251 {offsets = [192, 0], sizes = [64, 128], strides = [1, 1]} : vector<256x128xf32> to vector<64x128xf32>
    %cst_95 = arith.constant 5.000000e-01 : f32
    %271 = vector.broadcast %cst_95 : f32 to vector<64x128xf32>
    %272 = arith.mulf %271, %270 : vector<64x128xf32>
    %273 = math.tanh %272 : vector<64x128xf32>
    %cst_96 = arith.constant 1.000000e+00 : f32
    %274 = vector.broadcast %cst_96 : f32 to vector<64x128xf32>
    %275 = arith.addf %274, %273 : vector<64x128xf32>
    %cst_97 = arith.constant 5.000000e-01 : f32
    %276 = vector.broadcast %cst_97 : f32 to vector<64x128xf32>
    %277 = arith.mulf %276, %275 : vector<64x128xf32>
    %278 = arith.mulf %267, %206 : vector<64x128xf32>
    %279 = arith.mulf %259, %269 : vector<64x128xf32>
    %280 = arith.addf %278, %279 : vector<64x128xf32>
    %281 = math.tanh %280 : vector<64x128xf32>
    %282 = arith.mulf %277, %281 : vector<64x128xf32>
    %283 = tpu.concatenate %282, %243, %13 in 0 : vector<64x128xf32>, vector<64x128xf32>, vector<16x128xf32> -> vector<144x128xf32>
    %284 = arith.truncf %283 : vector<144x128xf32> to vector<144x128xbf16>
    %c0_98 = arith.constant 0 : index
    %c0_99 = arith.constant 0 : index
    %285 = vector.load %arg4[%c0_98, %c0_99] : memref<256x144xbf16, #tpu.memory_space<vmem>>, vector<256x144xbf16>
    %cst_100 = arith.constant dense<0.000000e+00> : vector<256x128xf32>
    %286 = tpu.matmul %285, %284, %cst_100 {dimension_numbers = #tpu.dot_dimension_numbers<[1], [0], [0], [1], [0, 0, 1, 1], [], []>} : vector<256x144xbf16>, vector<144x128xbf16>, vector<256x128xf32> -> vector<256x128xf32>
    %287 = vector.extract_strided_slice %286 {offsets = [0, 0], sizes = [64, 128], strides = [1, 1]} : vector<256x128xf32> to vector<64x128xf32>
    %cst_101 = arith.constant 5.000000e-01 : f32
    %288 = vector.broadcast %cst_101 : f32 to vector<64x128xf32>
    %289 = arith.mulf %288, %287 : vector<64x128xf32>
    %290 = math.tanh %289 : vector<64x128xf32>
    %cst_102 = arith.constant 1.000000e+00 : f32
    %291 = vector.broadcast %cst_102 : f32 to vector<64x128xf32>
    %292 = arith.addf %291, %290 : vector<64x128xf32>
    %cst_103 = arith.constant 5.000000e-01 : f32
    %293 = vector.broadcast %cst_103 : f32 to vector<64x128xf32>
    %294 = arith.mulf %293, %292 : vector<64x128xf32>
    %295 = vector.extract_strided_slice %286 {offsets = [64, 0], sizes = [64, 128], strides = [1, 1]} : vector<256x128xf32> to vector<64x128xf32>
    %cst_104 = arith.constant 5.000000e-01 : f32
    %296 = vector.broadcast %cst_104 : f32 to vector<64x128xf32>
    %297 = arith.mulf %296, %295 : vector<64x128xf32>
    %298 = math.tanh %297 : vector<64x128xf32>
    %cst_105 = arith.constant 1.000000e+00 : f32
    %299 = vector.broadcast %cst_105 : f32 to vector<64x128xf32>
    %300 = arith.addf %299, %298 : vector<64x128xf32>
    %cst_106 = arith.constant 5.000000e-01 : f32
    %301 = vector.broadcast %cst_106 : f32 to vector<64x128xf32>
    %302 = arith.mulf %301, %300 : vector<64x128xf32>
    %303 = vector.extract_strided_slice %286 {offsets = [128, 0], sizes = [64, 128], strides = [1, 1]} : vector<256x128xf32> to vector<64x128xf32>
    %304 = math.tanh %303 : vector<64x128xf32>
    %305 = vector.extract_strided_slice %286 {offsets = [192, 0], sizes = [64, 128], strides = [1, 1]} : vector<256x128xf32> to vector<64x128xf32>
    %cst_107 = arith.constant 5.000000e-01 : f32
    %306 = vector.broadcast %cst_107 : f32 to vector<64x128xf32>
    %307 = arith.mulf %306, %305 : vector<64x128xf32>
    %308 = math.tanh %307 : vector<64x128xf32>
    %cst_108 = arith.constant 1.000000e+00 : f32
    %309 = vector.broadcast %cst_108 : f32 to vector<64x128xf32>
    %310 = arith.addf %309, %308 : vector<64x128xf32>
    %cst_109 = arith.constant 5.000000e-01 : f32
    %311 = vector.broadcast %cst_109 : f32 to vector<64x128xf32>
    %312 = arith.mulf %311, %310 : vector<64x128xf32>
    %313 = arith.mulf %302, %241 : vector<64x128xf32>
    %314 = arith.mulf %294, %304 : vector<64x128xf32>
    %315 = arith.addf %313, %314 : vector<64x128xf32>
    %316 = math.tanh %315 : vector<64x128xf32>
    %317 = arith.mulf %312, %316 : vector<64x128xf32>
    %318 = vector.extract_strided_slice %21 {offsets = [4, 0], sizes = [1, 128], strides = [1, 1]} : vector<8x128xf32> to vector<1x128xf32>
    %319 = vector.shape_cast %318 : vector<1x128xf32> to vector<1x128xf32>
    %320 = vector.broadcast %319 : vector<1x128xf32> to vector<16x128xf32>
    %321 = arith.select %5, %320, %10 : vector<16x128xi1>, vector<16x128xf32>
    %322 = tpu.concatenate %282, %321 in 0 : vector<64x128xf32>, vector<16x128xf32> -> vector<80x128xf32>
    %323 = arith.truncf %322 : vector<80x128xf32> to vector<80x128xbf16>
    %c0_110 = arith.constant 0 : index
    %c0_111 = arith.constant 0 : index
    %324 = vector.load %arg3[%c0_110, %c0_111] : memref<256x80xbf16, #tpu.memory_space<vmem>>, vector<256x80xbf16>
    %cst_112 = arith.constant dense<0.000000e+00> : vector<256x128xf32>
    %325 = tpu.matmul %324, %323, %cst_112 {dimension_numbers = #tpu.dot_dimension_numbers<[1], [0], [0], [1], [0, 0, 1, 1], [], []>} : vector<256x80xbf16>, vector<80x128xbf16>, vector<256x128xf32> -> vector<256x128xf32>
    %326 = vector.extract_strided_slice %325 {offsets = [0, 0], sizes = [64, 128], strides = [1, 1]} : vector<256x128xf32> to vector<64x128xf32>
    %cst_113 = arith.constant 5.000000e-01 : f32
    %327 = vector.broadcast %cst_113 : f32 to vector<64x128xf32>
    %328 = arith.mulf %327, %326 : vector<64x128xf32>
    %329 = math.tanh %328 : vector<64x128xf32>
    %cst_114 = arith.constant 1.000000e+00 : f32
    %330 = vector.broadcast %cst_114 : f32 to vector<64x128xf32>
    %331 = arith.addf %330, %329 : vector<64x128xf32>
    %cst_115 = arith.constant 5.000000e-01 : f32
    %332 = vector.broadcast %cst_115 : f32 to vector<64x128xf32>
    %333 = arith.mulf %332, %331 : vector<64x128xf32>
    %334 = vector.extract_strided_slice %325 {offsets = [64, 0], sizes = [64, 128], strides = [1, 1]} : vector<256x128xf32> to vector<64x128xf32>
    %cst_116 = arith.constant 5.000000e-01 : f32
    %335 = vector.broadcast %cst_116 : f32 to vector<64x128xf32>
    %336 = arith.mulf %335, %334 : vector<64x128xf32>
    %337 = math.tanh %336 : vector<64x128xf32>
    %cst_117 = arith.constant 1.000000e+00 : f32
    %338 = vector.broadcast %cst_117 : f32 to vector<64x128xf32>
    %339 = arith.addf %338, %337 : vector<64x128xf32>
    %cst_118 = arith.constant 5.000000e-01 : f32
    %340 = vector.broadcast %cst_118 : f32 to vector<64x128xf32>
    %341 = arith.mulf %340, %339 : vector<64x128xf32>
    %342 = vector.extract_strided_slice %325 {offsets = [128, 0], sizes = [64, 128], strides = [1, 1]} : vector<256x128xf32> to vector<64x128xf32>
    %343 = math.tanh %342 : vector<64x128xf32>
    %344 = vector.extract_strided_slice %325 {offsets = [192, 0], sizes = [64, 128], strides = [1, 1]} : vector<256x128xf32> to vector<64x128xf32>
    %cst_119 = arith.constant 5.000000e-01 : f32
    %345 = vector.broadcast %cst_119 : f32 to vector<64x128xf32>
    %346 = arith.mulf %345, %344 : vector<64x128xf32>
    %347 = math.tanh %346 : vector<64x128xf32>
    %cst_120 = arith.constant 1.000000e+00 : f32
    %348 = vector.broadcast %cst_120 : f32 to vector<64x128xf32>
    %349 = arith.addf %348, %347 : vector<64x128xf32>
    %cst_121 = arith.constant 5.000000e-01 : f32
    %350 = vector.broadcast %cst_121 : f32 to vector<64x128xf32>
    %351 = arith.mulf %350, %349 : vector<64x128xf32>
    %352 = arith.mulf %341, %280 : vector<64x128xf32>
    %353 = arith.mulf %333, %343 : vector<64x128xf32>
    %354 = arith.addf %352, %353 : vector<64x128xf32>
    %355 = math.tanh %354 : vector<64x128xf32>
    %356 = arith.mulf %351, %355 : vector<64x128xf32>
    %357 = tpu.concatenate %356, %317, %13 in 0 : vector<64x128xf32>, vector<64x128xf32>, vector<16x128xf32> -> vector<144x128xf32>
    %358 = arith.truncf %357 : vector<144x128xf32> to vector<144x128xbf16>
    %c0_122 = arith.constant 0 : index
    %c0_123 = arith.constant 0 : index
    %359 = vector.load %arg4[%c0_122, %c0_123] : memref<256x144xbf16, #tpu.memory_space<vmem>>, vector<256x144xbf16>
    %cst_124 = arith.constant dense<0.000000e+00> : vector<256x128xf32>
    %360 = tpu.matmul %359, %358, %cst_124 {dimension_numbers = #tpu.dot_dimension_numbers<[1], [0], [0], [1], [0, 0, 1, 1], [], []>} : vector<256x144xbf16>, vector<144x128xbf16>, vector<256x128xf32> -> vector<256x128xf32>
    %361 = vector.extract_strided_slice %360 {offsets = [0, 0], sizes = [64, 128], strides = [1, 1]} : vector<256x128xf32> to vector<64x128xf32>
    %cst_125 = arith.constant 5.000000e-01 : f32
    %362 = vector.broadcast %cst_125 : f32 to vector<64x128xf32>
    %363 = arith.mulf %362, %361 : vector<64x128xf32>
    %364 = math.tanh %363 : vector<64x128xf32>
    %cst_126 = arith.constant 1.000000e+00 : f32
    %365 = vector.broadcast %cst_126 : f32 to vector<64x128xf32>
    %366 = arith.addf %365, %364 : vector<64x128xf32>
    %cst_127 = arith.constant 5.000000e-01 : f32
    %367 = vector.broadcast %cst_127 : f32 to vector<64x128xf32>
    %368 = arith.mulf %367, %366 : vector<64x128xf32>
    %369 = vector.extract_strided_slice %360 {offsets = [64, 0], sizes = [64, 128], strides = [1, 1]} : vector<256x128xf32> to vector<64x128xf32>
    %cst_128 = arith.constant 5.000000e-01 : f32
    %370 = vector.broadcast %cst_128 : f32 to vector<64x128xf32>
    %371 = arith.mulf %370, %369 : vector<64x128xf32>
    %372 = math.tanh %371 : vector<64x128xf32>
    %cst_129 = arith.constant 1.000000e+00 : f32
    %373 = vector.broadcast %cst_129 : f32 to vector<64x128xf32>
    %374 = arith.addf %373, %372 : vector<64x128xf32>
    %cst_130 = arith.constant 5.000000e-01 : f32
    %375 = vector.broadcast %cst_130 : f32 to vector<64x128xf32>
    %376 = arith.mulf %375, %374 : vector<64x128xf32>
    %377 = vector.extract_strided_slice %360 {offsets = [128, 0], sizes = [64, 128], strides = [1, 1]} : vector<256x128xf32> to vector<64x128xf32>
    %378 = math.tanh %377 : vector<64x128xf32>
    %379 = vector.extract_strided_slice %360 {offsets = [192, 0], sizes = [64, 128], strides = [1, 1]} : vector<256x128xf32> to vector<64x128xf32>
    %cst_131 = arith.constant 5.000000e-01 : f32
    %380 = vector.broadcast %cst_131 : f32 to vector<64x128xf32>
    %381 = arith.mulf %380, %379 : vector<64x128xf32>
    %382 = math.tanh %381 : vector<64x128xf32>
    %cst_132 = arith.constant 1.000000e+00 : f32
    %383 = vector.broadcast %cst_132 : f32 to vector<64x128xf32>
    %384 = arith.addf %383, %382 : vector<64x128xf32>
    %cst_133 = arith.constant 5.000000e-01 : f32
    %385 = vector.broadcast %cst_133 : f32 to vector<64x128xf32>
    %386 = arith.mulf %385, %384 : vector<64x128xf32>
    %387 = arith.mulf %376, %315 : vector<64x128xf32>
    %388 = arith.mulf %368, %378 : vector<64x128xf32>
    %389 = arith.addf %387, %388 : vector<64x128xf32>
    %390 = math.tanh %389 : vector<64x128xf32>
    %391 = arith.mulf %386, %390 : vector<64x128xf32>
    %392 = vector.extract_strided_slice %21 {offsets = [5, 0], sizes = [1, 128], strides = [1, 1]} : vector<8x128xf32> to vector<1x128xf32>
    %393 = vector.shape_cast %392 : vector<1x128xf32> to vector<1x128xf32>
    %394 = vector.broadcast %393 : vector<1x128xf32> to vector<16x128xf32>
    %395 = arith.select %5, %394, %10 : vector<16x128xi1>, vector<16x128xf32>
    %396 = tpu.concatenate %356, %395 in 0 : vector<64x128xf32>, vector<16x128xf32> -> vector<80x128xf32>
    %397 = arith.truncf %396 : vector<80x128xf32> to vector<80x128xbf16>
    %c0_134 = arith.constant 0 : index
    %c0_135 = arith.constant 0 : index
    %398 = vector.load %arg3[%c0_134, %c0_135] : memref<256x80xbf16, #tpu.memory_space<vmem>>, vector<256x80xbf16>
    %cst_136 = arith.constant dense<0.000000e+00> : vector<256x128xf32>
    %399 = tpu.matmul %398, %397, %cst_136 {dimension_numbers = #tpu.dot_dimension_numbers<[1], [0], [0], [1], [0, 0, 1, 1], [], []>} : vector<256x80xbf16>, vector<80x128xbf16>, vector<256x128xf32> -> vector<256x128xf32>
    %400 = vector.extract_strided_slice %399 {offsets = [0, 0], sizes = [64, 128], strides = [1, 1]} : vector<256x128xf32> to vector<64x128xf32>
    %cst_137 = arith.constant 5.000000e-01 : f32
    %401 = vector.broadcast %cst_137 : f32 to vector<64x128xf32>
    %402 = arith.mulf %401, %400 : vector<64x128xf32>
    %403 = math.tanh %402 : vector<64x128xf32>
    %cst_138 = arith.constant 1.000000e+00 : f32
    %404 = vector.broadcast %cst_138 : f32 to vector<64x128xf32>
    %405 = arith.addf %404, %403 : vector<64x128xf32>
    %cst_139 = arith.constant 5.000000e-01 : f32
    %406 = vector.broadcast %cst_139 : f32 to vector<64x128xf32>
    %407 = arith.mulf %406, %405 : vector<64x128xf32>
    %408 = vector.extract_strided_slice %399 {offsets = [64, 0], sizes = [64, 128], strides = [1, 1]} : vector<256x128xf32> to vector<64x128xf32>
    %cst_140 = arith.constant 5.000000e-01 : f32
    %409 = vector.broadcast %cst_140 : f32 to vector<64x128xf32>
    %410 = arith.mulf %409, %408 : vector<64x128xf32>
    %411 = math.tanh %410 : vector<64x128xf32>
    %cst_141 = arith.constant 1.000000e+00 : f32
    %412 = vector.broadcast %cst_141 : f32 to vector<64x128xf32>
    %413 = arith.addf %412, %411 : vector<64x128xf32>
    %cst_142 = arith.constant 5.000000e-01 : f32
    %414 = vector.broadcast %cst_142 : f32 to vector<64x128xf32>
    %415 = arith.mulf %414, %413 : vector<64x128xf32>
    %416 = vector.extract_strided_slice %399 {offsets = [128, 0], sizes = [64, 128], strides = [1, 1]} : vector<256x128xf32> to vector<64x128xf32>
    %417 = math.tanh %416 : vector<64x128xf32>
    %418 = vector.extract_strided_slice %399 {offsets = [192, 0], sizes = [64, 128], strides = [1, 1]} : vector<256x128xf32> to vector<64x128xf32>
    %cst_143 = arith.constant 5.000000e-01 : f32
    %419 = vector.broadcast %cst_143 : f32 to vector<64x128xf32>
    %420 = arith.mulf %419, %418 : vector<64x128xf32>
    %421 = math.tanh %420 : vector<64x128xf32>
    %cst_144 = arith.constant 1.000000e+00 : f32
    %422 = vector.broadcast %cst_144 : f32 to vector<64x128xf32>
    %423 = arith.addf %422, %421 : vector<64x128xf32>
    %cst_145 = arith.constant 5.000000e-01 : f32
    %424 = vector.broadcast %cst_145 : f32 to vector<64x128xf32>
    %425 = arith.mulf %424, %423 : vector<64x128xf32>
    %426 = arith.mulf %415, %354 : vector<64x128xf32>
    %427 = arith.mulf %407, %417 : vector<64x128xf32>
    %428 = arith.addf %426, %427 : vector<64x128xf32>
    %429 = math.tanh %428 : vector<64x128xf32>
    %430 = arith.mulf %425, %429 : vector<64x128xf32>
    %431 = tpu.concatenate %430, %391, %13 in 0 : vector<64x128xf32>, vector<64x128xf32>, vector<16x128xf32> -> vector<144x128xf32>
    %432 = arith.truncf %431 : vector<144x128xf32> to vector<144x128xbf16>
    %c0_146 = arith.constant 0 : index
    %c0_147 = arith.constant 0 : index
    %433 = vector.load %arg4[%c0_146, %c0_147] : memref<256x144xbf16, #tpu.memory_space<vmem>>, vector<256x144xbf16>
    %cst_148 = arith.constant dense<0.000000e+00> : vector<256x128xf32>
    %434 = tpu.matmul %433, %432, %cst_148 {dimension_numbers = #tpu.dot_dimension_numbers<[1], [0], [0], [1], [0, 0, 1, 1], [], []>} : vector<256x144xbf16>, vector<144x128xbf16>, vector<256x128xf32> -> vector<256x128xf32>
    %435 = vector.extract_strided_slice %434 {offsets = [0, 0], sizes = [64, 128], strides = [1, 1]} : vector<256x128xf32> to vector<64x128xf32>
    %cst_149 = arith.constant 5.000000e-01 : f32
    %436 = vector.broadcast %cst_149 : f32 to vector<64x128xf32>
    %437 = arith.mulf %436, %435 : vector<64x128xf32>
    %438 = math.tanh %437 : vector<64x128xf32>
    %cst_150 = arith.constant 1.000000e+00 : f32
    %439 = vector.broadcast %cst_150 : f32 to vector<64x128xf32>
    %440 = arith.addf %439, %438 : vector<64x128xf32>
    %cst_151 = arith.constant 5.000000e-01 : f32
    %441 = vector.broadcast %cst_151 : f32 to vector<64x128xf32>
    %442 = arith.mulf %441, %440 : vector<64x128xf32>
    %443 = vector.extract_strided_slice %434 {offsets = [64, 0], sizes = [64, 128], strides = [1, 1]} : vector<256x128xf32> to vector<64x128xf32>
    %cst_152 = arith.constant 5.000000e-01 : f32
    %444 = vector.broadcast %cst_152 : f32 to vector<64x128xf32>
    %445 = arith.mulf %444, %443 : vector<64x128xf32>
    %446 = math.tanh %445 : vector<64x128xf32>
    %cst_153 = arith.constant 1.000000e+00 : f32
    %447 = vector.broadcast %cst_153 : f32 to vector<64x128xf32>
    %448 = arith.addf %447, %446 : vector<64x128xf32>
    %cst_154 = arith.constant 5.000000e-01 : f32
    %449 = vector.broadcast %cst_154 : f32 to vector<64x128xf32>
    %450 = arith.mulf %449, %448 : vector<64x128xf32>
    %451 = vector.extract_strided_slice %434 {offsets = [128, 0], sizes = [64, 128], strides = [1, 1]} : vector<256x128xf32> to vector<64x128xf32>
    %452 = math.tanh %451 : vector<64x128xf32>
    %453 = vector.extract_strided_slice %434 {offsets = [192, 0], sizes = [64, 128], strides = [1, 1]} : vector<256x128xf32> to vector<64x128xf32>
    %cst_155 = arith.constant 5.000000e-01 : f32
    %454 = vector.broadcast %cst_155 : f32 to vector<64x128xf32>
    %455 = arith.mulf %454, %453 : vector<64x128xf32>
    %456 = math.tanh %455 : vector<64x128xf32>
    %cst_156 = arith.constant 1.000000e+00 : f32
    %457 = vector.broadcast %cst_156 : f32 to vector<64x128xf32>
    %458 = arith.addf %457, %456 : vector<64x128xf32>
    %cst_157 = arith.constant 5.000000e-01 : f32
    %459 = vector.broadcast %cst_157 : f32 to vector<64x128xf32>
    %460 = arith.mulf %459, %458 : vector<64x128xf32>
    %461 = arith.mulf %450, %389 : vector<64x128xf32>
    %462 = arith.mulf %442, %452 : vector<64x128xf32>
    %463 = arith.addf %461, %462 : vector<64x128xf32>
    %464 = math.tanh %463 : vector<64x128xf32>
    %465 = arith.mulf %460, %464 : vector<64x128xf32>
    %466 = vector.extract_strided_slice %21 {offsets = [6, 0], sizes = [1, 128], strides = [1, 1]} : vector<8x128xf32> to vector<1x128xf32>
    %467 = vector.shape_cast %466 : vector<1x128xf32> to vector<1x128xf32>
    %468 = vector.broadcast %467 : vector<1x128xf32> to vector<16x128xf32>
    %469 = arith.select %5, %468, %10 : vector<16x128xi1>, vector<16x128xf32>
    %470 = tpu.concatenate %430, %469 in 0 : vector<64x128xf32>, vector<16x128xf32> -> vector<80x128xf32>
    %471 = arith.truncf %470 : vector<80x128xf32> to vector<80x128xbf16>
    %c0_158 = arith.constant 0 : index
    %c0_159 = arith.constant 0 : index
    %472 = vector.load %arg3[%c0_158, %c0_159] : memref<256x80xbf16, #tpu.memory_space<vmem>>, vector<256x80xbf16>
    %cst_160 = arith.constant dense<0.000000e+00> : vector<256x128xf32>
    %473 = tpu.matmul %472, %471, %cst_160 {dimension_numbers = #tpu.dot_dimension_numbers<[1], [0], [0], [1], [0, 0, 1, 1], [], []>} : vector<256x80xbf16>, vector<80x128xbf16>, vector<256x128xf32> -> vector<256x128xf32>
    %474 = vector.extract_strided_slice %473 {offsets = [0, 0], sizes = [64, 128], strides = [1, 1]} : vector<256x128xf32> to vector<64x128xf32>
    %cst_161 = arith.constant 5.000000e-01 : f32
    %475 = vector.broadcast %cst_161 : f32 to vector<64x128xf32>
    %476 = arith.mulf %475, %474 : vector<64x128xf32>
    %477 = math.tanh %476 : vector<64x128xf32>
    %cst_162 = arith.constant 1.000000e+00 : f32
    %478 = vector.broadcast %cst_162 : f32 to vector<64x128xf32>
    %479 = arith.addf %478, %477 : vector<64x128xf32>
    %cst_163 = arith.constant 5.000000e-01 : f32
    %480 = vector.broadcast %cst_163 : f32 to vector<64x128xf32>
    %481 = arith.mulf %480, %479 : vector<64x128xf32>
    %482 = vector.extract_strided_slice %473 {offsets = [64, 0], sizes = [64, 128], strides = [1, 1]} : vector<256x128xf32> to vector<64x128xf32>
    %cst_164 = arith.constant 5.000000e-01 : f32
    %483 = vector.broadcast %cst_164 : f32 to vector<64x128xf32>
    %484 = arith.mulf %483, %482 : vector<64x128xf32>
    %485 = math.tanh %484 : vector<64x128xf32>
    %cst_165 = arith.constant 1.000000e+00 : f32
    %486 = vector.broadcast %cst_165 : f32 to vector<64x128xf32>
    %487 = arith.addf %486, %485 : vector<64x128xf32>
    %cst_166 = arith.constant 5.000000e-01 : f32
    %488 = vector.broadcast %cst_166 : f32 to vector<64x128xf32>
    %489 = arith.mulf %488, %487 : vector<64x128xf32>
    %490 = vector.extract_strided_slice %473 {offsets = [128, 0], sizes = [64, 128], strides = [1, 1]} : vector<256x128xf32> to vector<64x128xf32>
    %491 = math.tanh %490 : vector<64x128xf32>
    %492 = vector.extract_strided_slice %473 {offsets = [192, 0], sizes = [64, 128], strides = [1, 1]} : vector<256x128xf32> to vector<64x128xf32>
    %cst_167 = arith.constant 5.000000e-01 : f32
    %493 = vector.broadcast %cst_167 : f32 to vector<64x128xf32>
    %494 = arith.mulf %493, %492 : vector<64x128xf32>
    %495 = math.tanh %494 : vector<64x128xf32>
    %cst_168 = arith.constant 1.000000e+00 : f32
    %496 = vector.broadcast %cst_168 : f32 to vector<64x128xf32>
    %497 = arith.addf %496, %495 : vector<64x128xf32>
    %cst_169 = arith.constant 5.000000e-01 : f32
    %498 = vector.broadcast %cst_169 : f32 to vector<64x128xf32>
    %499 = arith.mulf %498, %497 : vector<64x128xf32>
    %500 = arith.mulf %489, %428 : vector<64x128xf32>
    %501 = arith.mulf %481, %491 : vector<64x128xf32>
    %502 = arith.addf %500, %501 : vector<64x128xf32>
    %503 = math.tanh %502 : vector<64x128xf32>
    %504 = arith.mulf %499, %503 : vector<64x128xf32>
    %505 = tpu.concatenate %504, %465, %13 in 0 : vector<64x128xf32>, vector<64x128xf32>, vector<16x128xf32> -> vector<144x128xf32>
    %506 = arith.truncf %505 : vector<144x128xf32> to vector<144x128xbf16>
    %c0_170 = arith.constant 0 : index
    %c0_171 = arith.constant 0 : index
    %507 = vector.load %arg4[%c0_170, %c0_171] : memref<256x144xbf16, #tpu.memory_space<vmem>>, vector<256x144xbf16>
    %cst_172 = arith.constant dense<0.000000e+00> : vector<256x128xf32>
    %508 = tpu.matmul %507, %506, %cst_172 {dimension_numbers = #tpu.dot_dimension_numbers<[1], [0], [0], [1], [0, 0, 1, 1], [], []>} : vector<256x144xbf16>, vector<144x128xbf16>, vector<256x128xf32> -> vector<256x128xf32>
    %509 = vector.extract_strided_slice %508 {offsets = [0, 0], sizes = [64, 128], strides = [1, 1]} : vector<256x128xf32> to vector<64x128xf32>
    %cst_173 = arith.constant 5.000000e-01 : f32
    %510 = vector.broadcast %cst_173 : f32 to vector<64x128xf32>
    %511 = arith.mulf %510, %509 : vector<64x128xf32>
    %512 = math.tanh %511 : vector<64x128xf32>
    %cst_174 = arith.constant 1.000000e+00 : f32
    %513 = vector.broadcast %cst_174 : f32 to vector<64x128xf32>
    %514 = arith.addf %513, %512 : vector<64x128xf32>
    %cst_175 = arith.constant 5.000000e-01 : f32
    %515 = vector.broadcast %cst_175 : f32 to vector<64x128xf32>
    %516 = arith.mulf %515, %514 : vector<64x128xf32>
    %517 = vector.extract_strided_slice %508 {offsets = [64, 0], sizes = [64, 128], strides = [1, 1]} : vector<256x128xf32> to vector<64x128xf32>
    %cst_176 = arith.constant 5.000000e-01 : f32
    %518 = vector.broadcast %cst_176 : f32 to vector<64x128xf32>
    %519 = arith.mulf %518, %517 : vector<64x128xf32>
    %520 = math.tanh %519 : vector<64x128xf32>
    %cst_177 = arith.constant 1.000000e+00 : f32
    %521 = vector.broadcast %cst_177 : f32 to vector<64x128xf32>
    %522 = arith.addf %521, %520 : vector<64x128xf32>
    %cst_178 = arith.constant 5.000000e-01 : f32
    %523 = vector.broadcast %cst_178 : f32 to vector<64x128xf32>
    %524 = arith.mulf %523, %522 : vector<64x128xf32>
    %525 = vector.extract_strided_slice %508 {offsets = [128, 0], sizes = [64, 128], strides = [1, 1]} : vector<256x128xf32> to vector<64x128xf32>
    %526 = math.tanh %525 : vector<64x128xf32>
    %527 = vector.extract_strided_slice %508 {offsets = [192, 0], sizes = [64, 128], strides = [1, 1]} : vector<256x128xf32> to vector<64x128xf32>
    %cst_179 = arith.constant 5.000000e-01 : f32
    %528 = vector.broadcast %cst_179 : f32 to vector<64x128xf32>
    %529 = arith.mulf %528, %527 : vector<64x128xf32>
    %530 = math.tanh %529 : vector<64x128xf32>
    %cst_180 = arith.constant 1.000000e+00 : f32
    %531 = vector.broadcast %cst_180 : f32 to vector<64x128xf32>
    %532 = arith.addf %531, %530 : vector<64x128xf32>
    %cst_181 = arith.constant 5.000000e-01 : f32
    %533 = vector.broadcast %cst_181 : f32 to vector<64x128xf32>
    %534 = arith.mulf %533, %532 : vector<64x128xf32>
    %535 = arith.mulf %524, %463 : vector<64x128xf32>
    %536 = arith.mulf %516, %526 : vector<64x128xf32>
    %537 = arith.addf %535, %536 : vector<64x128xf32>
    %538 = math.tanh %537 : vector<64x128xf32>
    %539 = arith.mulf %534, %538 : vector<64x128xf32>
    %540 = vector.extract_strided_slice %21 {offsets = [7, 0], sizes = [1, 128], strides = [1, 1]} : vector<8x128xf32> to vector<1x128xf32>
    %541 = vector.shape_cast %540 : vector<1x128xf32> to vector<1x128xf32>
    %542 = vector.broadcast %541 : vector<1x128xf32> to vector<16x128xf32>
    %543 = arith.select %5, %542, %10 : vector<16x128xi1>, vector<16x128xf32>
    %544 = tpu.concatenate %504, %543 in 0 : vector<64x128xf32>, vector<16x128xf32> -> vector<80x128xf32>
    %545 = arith.truncf %544 : vector<80x128xf32> to vector<80x128xbf16>
    %c0_182 = arith.constant 0 : index
    %c0_183 = arith.constant 0 : index
    %546 = vector.load %arg3[%c0_182, %c0_183] : memref<256x80xbf16, #tpu.memory_space<vmem>>, vector<256x80xbf16>
    %cst_184 = arith.constant dense<0.000000e+00> : vector<256x128xf32>
    %547 = tpu.matmul %546, %545, %cst_184 {dimension_numbers = #tpu.dot_dimension_numbers<[1], [0], [0], [1], [0, 0, 1, 1], [], []>} : vector<256x80xbf16>, vector<80x128xbf16>, vector<256x128xf32> -> vector<256x128xf32>
    %548 = vector.extract_strided_slice %547 {offsets = [0, 0], sizes = [64, 128], strides = [1, 1]} : vector<256x128xf32> to vector<64x128xf32>
    %cst_185 = arith.constant 5.000000e-01 : f32
    %549 = vector.broadcast %cst_185 : f32 to vector<64x128xf32>
    %550 = arith.mulf %549, %548 : vector<64x128xf32>
    %551 = math.tanh %550 : vector<64x128xf32>
    %cst_186 = arith.constant 1.000000e+00 : f32
    %552 = vector.broadcast %cst_186 : f32 to vector<64x128xf32>
    %553 = arith.addf %552, %551 : vector<64x128xf32>
    %cst_187 = arith.constant 5.000000e-01 : f32
    %554 = vector.broadcast %cst_187 : f32 to vector<64x128xf32>
    %555 = arith.mulf %554, %553 : vector<64x128xf32>
    %556 = vector.extract_strided_slice %547 {offsets = [64, 0], sizes = [64, 128], strides = [1, 1]} : vector<256x128xf32> to vector<64x128xf32>
    %cst_188 = arith.constant 5.000000e-01 : f32
    %557 = vector.broadcast %cst_188 : f32 to vector<64x128xf32>
    %558 = arith.mulf %557, %556 : vector<64x128xf32>
    %559 = math.tanh %558 : vector<64x128xf32>
    %cst_189 = arith.constant 1.000000e+00 : f32
    %560 = vector.broadcast %cst_189 : f32 to vector<64x128xf32>
    %561 = arith.addf %560, %559 : vector<64x128xf32>
    %cst_190 = arith.constant 5.000000e-01 : f32
    %562 = vector.broadcast %cst_190 : f32 to vector<64x128xf32>
    %563 = arith.mulf %562, %561 : vector<64x128xf32>
    %564 = vector.extract_strided_slice %547 {offsets = [128, 0], sizes = [64, 128], strides = [1, 1]} : vector<256x128xf32> to vector<64x128xf32>
    %565 = math.tanh %564 : vector<64x128xf32>
    %566 = vector.extract_strided_slice %547 {offsets = [192, 0], sizes = [64, 128], strides = [1, 1]} : vector<256x128xf32> to vector<64x128xf32>
    %cst_191 = arith.constant 5.000000e-01 : f32
    %567 = vector.broadcast %cst_191 : f32 to vector<64x128xf32>
    %568 = arith.mulf %567, %566 : vector<64x128xf32>
    %569 = math.tanh %568 : vector<64x128xf32>
    %cst_192 = arith.constant 1.000000e+00 : f32
    %570 = vector.broadcast %cst_192 : f32 to vector<64x128xf32>
    %571 = arith.addf %570, %569 : vector<64x128xf32>
    %cst_193 = arith.constant 5.000000e-01 : f32
    %572 = vector.broadcast %cst_193 : f32 to vector<64x128xf32>
    %573 = arith.mulf %572, %571 : vector<64x128xf32>
    %574 = arith.mulf %563, %502 : vector<64x128xf32>
    %575 = arith.mulf %555, %565 : vector<64x128xf32>
    %576 = arith.addf %574, %575 : vector<64x128xf32>
    %577 = math.tanh %576 : vector<64x128xf32>
    %578 = arith.mulf %573, %577 : vector<64x128xf32>
    %579 = tpu.concatenate %578, %539, %13 in 0 : vector<64x128xf32>, vector<64x128xf32>, vector<16x128xf32> -> vector<144x128xf32>
    %580 = arith.truncf %579 : vector<144x128xf32> to vector<144x128xbf16>
    %c0_194 = arith.constant 0 : index
    %c0_195 = arith.constant 0 : index
    %581 = vector.load %arg4[%c0_194, %c0_195] : memref<256x144xbf16, #tpu.memory_space<vmem>>, vector<256x144xbf16>
    %cst_196 = arith.constant dense<0.000000e+00> : vector<256x128xf32>
    %582 = tpu.matmul %581, %580, %cst_196 {dimension_numbers = #tpu.dot_dimension_numbers<[1], [0], [0], [1], [0, 0, 1, 1], [], []>} : vector<256x144xbf16>, vector<144x128xbf16>, vector<256x128xf32> -> vector<256x128xf32>
    %583 = vector.extract_strided_slice %582 {offsets = [0, 0], sizes = [64, 128], strides = [1, 1]} : vector<256x128xf32> to vector<64x128xf32>
    %cst_197 = arith.constant 5.000000e-01 : f32
    %584 = vector.broadcast %cst_197 : f32 to vector<64x128xf32>
    %585 = arith.mulf %584, %583 : vector<64x128xf32>
    %586 = math.tanh %585 : vector<64x128xf32>
    %cst_198 = arith.constant 1.000000e+00 : f32
    %587 = vector.broadcast %cst_198 : f32 to vector<64x128xf32>
    %588 = arith.addf %587, %586 : vector<64x128xf32>
    %cst_199 = arith.constant 5.000000e-01 : f32
    %589 = vector.broadcast %cst_199 : f32 to vector<64x128xf32>
    %590 = arith.mulf %589, %588 : vector<64x128xf32>
    %591 = vector.extract_strided_slice %582 {offsets = [64, 0], sizes = [64, 128], strides = [1, 1]} : vector<256x128xf32> to vector<64x128xf32>
    %cst_200 = arith.constant 5.000000e-01 : f32
    %592 = vector.broadcast %cst_200 : f32 to vector<64x128xf32>
    %593 = arith.mulf %592, %591 : vector<64x128xf32>
    %594 = math.tanh %593 : vector<64x128xf32>
    %cst_201 = arith.constant 1.000000e+00 : f32
    %595 = vector.broadcast %cst_201 : f32 to vector<64x128xf32>
    %596 = arith.addf %595, %594 : vector<64x128xf32>
    %cst_202 = arith.constant 5.000000e-01 : f32
    %597 = vector.broadcast %cst_202 : f32 to vector<64x128xf32>
    %598 = arith.mulf %597, %596 : vector<64x128xf32>
    %599 = vector.extract_strided_slice %582 {offsets = [128, 0], sizes = [64, 128], strides = [1, 1]} : vector<256x128xf32> to vector<64x128xf32>
    %600 = math.tanh %599 : vector<64x128xf32>
    %601 = vector.extract_strided_slice %582 {offsets = [192, 0], sizes = [64, 128], strides = [1, 1]} : vector<256x128xf32> to vector<64x128xf32>
    %cst_203 = arith.constant 5.000000e-01 : f32
    %602 = vector.broadcast %cst_203 : f32 to vector<64x128xf32>
    %603 = arith.mulf %602, %601 : vector<64x128xf32>
    %604 = math.tanh %603 : vector<64x128xf32>
    %cst_204 = arith.constant 1.000000e+00 : f32
    %605 = vector.broadcast %cst_204 : f32 to vector<64x128xf32>
    %606 = arith.addf %605, %604 : vector<64x128xf32>
    %cst_205 = arith.constant 5.000000e-01 : f32
    %607 = vector.broadcast %cst_205 : f32 to vector<64x128xf32>
    %608 = arith.mulf %607, %606 : vector<64x128xf32>
    %609 = arith.mulf %598, %537 : vector<64x128xf32>
    %610 = arith.mulf %590, %600 : vector<64x128xf32>
    %611 = arith.addf %609, %610 : vector<64x128xf32>
    %612 = math.tanh %611 : vector<64x128xf32>
    %613 = arith.mulf %608, %612 : vector<64x128xf32>
    %c1_i32_206 = arith.constant 1 : i32
    %c0_207 = arith.constant 0 : index
    %c0_208 = arith.constant 0 : index
    %614 = vector.load %arg8[%c0_207, %c0_208] : memref<64x128xf32, #tpu.memory_space<vmem>>, vector<64x128xf32>
    tpu.vector_store %arg8[%c0_207, %c0_208], %578 {strides = array<i32>} : memref<64x128xf32, #tpu.memory_space<vmem>>, vector<64x128xf32>,
    %c0_209 = arith.constant 0 : index
    %c0_210 = arith.constant 0 : index
    %615 = vector.load %arg9[%c0_209, %c0_210] : memref<64x128xf32, #tpu.memory_space<vmem>>, vector<64x128xf32>
    tpu.vector_store %arg9[%c0_209, %c0_210], %576 {strides = array<i32>} : memref<64x128xf32, #tpu.memory_space<vmem>>, vector<64x128xf32>,
    %c0_211 = arith.constant 0 : index
    %c0_212 = arith.constant 0 : index
    %616 = vector.load %arg10[%c0_211, %c0_212] : memref<64x128xf32, #tpu.memory_space<vmem>>, vector<64x128xf32>
    tpu.vector_store %arg10[%c0_211, %c0_212], %613 {strides = array<i32>} : memref<64x128xf32, #tpu.memory_space<vmem>>, vector<64x128xf32>,
    %c0_213 = arith.constant 0 : index
    %c0_214 = arith.constant 0 : index
    %617 = vector.load %arg11[%c0_213, %c0_214] : memref<64x128xf32, #tpu.memory_space<vmem>>, vector<64x128xf32>
    tpu.vector_store %arg11[%c0_213, %c0_214], %611 {strides = array<i32>} : memref<64x128xf32, #tpu.memory_space<vmem>>, vector<64x128xf32>,
    %c0_i32_215 = arith.constant 0 : i32
    %618 = arith.cmpi eq, %arg1, %c0_i32_215 : i32
    %619 = arith.extui %618 : i1 to i32
    %c0_i32_216 = arith.constant 0 : i32
    %620 = arith.cmpi ne, %619, %c0_i32_216 : i32
    scf.if %620 {
      %c0_217 = arith.constant 0 : index
      %c0_218 = arith.constant 0 : index
      %621 = vector.load %arg10[%c0_217, %c0_218] : memref<64x128xf32, #tpu.memory_space<vmem>>, vector<64x128xf32>
      %c0_219 = arith.constant 0 : index
      %c0_220 = arith.constant 0 : index
      %622 = vector.load %arg5[%c0_219, %c0_220] : memref<64x1xf32, #tpu.memory_space<vmem>>, vector<64x1xf32>
      %623 = vector.broadcast %622 : vector<64x1xf32> to vector<64x128xf32>
      %624 = arith.mulf %621, %623 : vector<64x128xf32>
      %cst_221 = arith.constant dense<0.000000e+00> : vector<128xf32>
      %625 = vector.multi_reduction <add>, %624, %cst_221 [0] : vector<64x128xf32> to vector<128xf32>
      %626 = vector.shape_cast %625 : vector<128xf32> to vector<1x128xf32>
      %c0_222 = arith.constant 0 : index
      %c0_223 = arith.constant 0 : index
      %627 = vector.load %arg6[%c0_222, %c0_223] : memref<1x1xf32, #tpu.memory_space<vmem>>, vector<1x1xf32>
      %628 = vector.broadcast %627 : vector<1x1xf32> to vector<1x128xf32>
      %629 = arith.addf %626, %628 : vector<1x128xf32>
      %c0_224 = arith.constant 0 : index
      %c0_225 = arith.constant 0 : index
      %630 = vector.load %arg7[%c0_224, %c0_225] : memref<1x128xf32, #tpu.memory_space<vmem>>, vector<1x128xf32>
      tpu.vector_store %arg7[%c0_224, %c0_225], %629 {strides = array<i32>} : memref<1x128xf32, #tpu.memory_space<vmem>>, vector<1x128xf32>,
    } else {
    }
    return
  }
  func.func @transform_0(%arg0: i32, %arg1: i32) -> (i32, i32) {
    %c0_i32 = arith.constant 0 : i32
    return %arg1, %arg0 : i32, i32
  }
  func.func @transform_1(%arg0: i32, %arg1: i32) -> (i32, i32) {
    %c0_i32 = arith.constant 0 : i32
    %c0_i32_0 = arith.constant 0 : i32
    %c0_i32_1 = arith.constant 0 : i32
    return %c0_i32, %c0_i32_0 : i32, i32
  }
  func.func @transform_2(%arg0: i32, %arg1: i32) -> (i32, i32) {
    %c0_i32 = arith.constant 0 : i32
    %c0_i32_0 = arith.constant 0 : i32
    %c0_i32_1 = arith.constant 0 : i32
    return %c0_i32, %c0_i32_0 : i32, i32
  }
  func.func @transform_3(%arg0: i32, %arg1: i32) -> (i32, i32) {
    %c0_i32 = arith.constant 0 : i32
    %c0_i32_0 = arith.constant 0 : i32
    %c0_i32_1 = arith.constant 0 : i32
    return %c0_i32, %c0_i32_0 : i32, i32
  }
  func.func @transform_4(%arg0: i32, %arg1: i32) -> (i32, i32) {
    %c0_i32 = arith.constant 0 : i32
    %c0_i32_0 = arith.constant 0 : i32
    %c0_i32_1 = arith.constant 0 : i32
    return %c0_i32, %c0_i32_0 : i32, i32
  }
  func.func @transform_5(%arg0: i32, %arg1: i32) -> (i32, i32) {
    %c0_i32 = arith.constant 0 : i32
    %c0_i32_0 = arith.constant 0 : i32
    return %c0_i32, %arg0 : i32, i32
  }
}

</mosaic_0001>

<llo_original>
// kernel: tpu_custom_call.1
$region0: #{tpu_custom_call.1}
  #allocation0 [shape = 'u32[]', space=smem, size = 0x4, offset = 0x4, fixed_abs, tag = 'smem constant byte address 0x4 - core index']
  #allocation1 [shape = 'u32[144,128]{1,0:T(1,128)}', space=vmem, size = 0x12000, scoped, tag = 'internal scratch']
  #allocation2 [shape = 'f32[64,128]{1,0:T(8,128)}', space=vmem, size = 0x8000, scoped, tag = 'scratch operand']
  #allocation3 [shape = 'f32[64,128]{1,0:T(8,128)}', space=vmem, size = 0x8000, scoped, tag = 'scratch operand']
  #allocation4 [shape = 'f32[64,128]{1,0:T(8,128)}', space=vmem, size = 0x8000, scoped, tag = 'scratch operand']
  #allocation5 [shape = 'f32[64,128]{1,0:T(8,128)}', space=vmem, size = 0x8000, scoped, tag = 'scratch operand']
  #allocation6 [shape = 'f32[1,1]{1,0:T(1,128)S(1)}', space=vmem, size = 0x200, scoped, tag = 'scoped memory for tpu_custom_call.1']
  %s0 = inlined_call_operand.vmem [shape: f32[8,128], index: 0, kind: input, shape index: {}]
  %s1 = inlined_call_operand.vmem [shape: bf16[256,80], index: 1, kind: input, shape index: {}]
  %s2 = inlined_call_operand.vmem [shape: bf16[256,144], index: 2, kind: input, shape index: {}]
  %s3 = inlined_call_operand.vmem [shape: f32[64,1], index: 3, kind: input, shape index: {}]
  %s4 = inlined_call_operand.<no memory space> [shape: f32[1,1], index: 4, kind: input, shape index: {}]
  %s5 = inlined_call_operand.hbm [shape: f32[1,128], index: 5, kind: output, shape index: {}]
  %s6 = sld [smem:[#allocation0]]
  $region38: #{tpu_custom_call.1} parent=0
    _
  %s8 = ssub.s32 1, %s6
  %s9 = scalar_select 0, %s8, %s6
  %v10 = vstv %s4
  %11 = vst [vmem:[#allocation6] sm:$0x1] %v10
  $region1: #{tpu_custom_call.1} parent=0
    #allocation7 [shape = 'u8[512]{0}', space=vmem, size = 0x400, scoped, tag = 'output window, operand 0, single buffered']
    #allocation8 [shape = 's32[1]{0}', space=sflag, size = 0x4, scoped, tag = 'scoped memory for tpu_custom_call.1']
    %12 = vsyncpa [#allocation8], 0
    // Predicated region
    $region2: #{tpu_custom_call.1} parent=1 // pred_check
      _
    $region3: #{tpu_custom_call.1} parent=1 // pred_check_branch
      %14 = sbr.rel (0) target = $region5
    $region4: #{tpu_custom_call.1} parent=1 // pred_region
      _
    $region5: #{tpu_custom_call.1} parent=1 // pred_fallthru
      _
    // Predicated region
    $region6: #{tpu_custom_call.1} parent=1 // pred_check
      _
    $region7: #{tpu_custom_call.1} parent=1 // pred_check_branch
      %16 = sbr.rel (0) target = $region9
    $region8: #{tpu_custom_call.1} parent=1 // pred_region
      _
    $region9: #{tpu_custom_call.1} parent=1 // pred_fallthru
      _
    // Predicated region
    $region10: #{tpu_custom_call.1} parent=1 // pred_check
      _
    $region11: #{tpu_custom_call.1} parent=1 // pred_check_branch
      %18 = sbr.rel (0) target = $region13
    $region12: #{tpu_custom_call.1} parent=1 // pred_region
      _
    $region13: #{tpu_custom_call.1} parent=1 // pred_fallthru
      _
    // Predicated region
    $region14: #{tpu_custom_call.1} parent=1 // pred_check
      _
    $region15: #{tpu_custom_call.1} parent=1 // pred_check_branch
      %20 = sbr.rel (0) target = $region17
    $region16: #{tpu_custom_call.1} parent=1 // pred_region
      _
    $region17: #{tpu_custom_call.1} parent=1 // pred_fallthru
      _
    // Predicated region
    $region18: #{tpu_custom_call.1} parent=1 // pred_check
      _
    $region19: #{tpu_custom_call.1} parent=1 // pred_check_branch
      %22 = sbr.rel (0) target = $region21
    $region20: #{tpu_custom_call.1} parent=1 // pred_region
      _
    $region21: #{tpu_custom_call.1} parent=1 // pred_fallthru
      _
    %p24 = scmp.eq.s32.totalorder 0, 0
    // Predicated region
    $region22: #{tpu_custom_call.1} parent=1 // pred_check
      %p25 = pneg %p24
    $region23: #{tpu_custom_call.1} parent=1 // pred_check_branch
      %27 = sbr.rel (%p25) target = $region25
    $region24: #{tpu_custom_call.1} parent=1 // pred_region
      %28 = vst [vmem:[#allocation2] sm:$0xff] 0.0
      %29 = vst [vmem:[#allocation2 + $0x8] sm:$0xff] 0.0
      %30 = vst [vmem:[#allocation2 + $0x10] sm:$0xff] 0.0
      %31 = vst [vmem:[#allocation2 + $0x18] sm:$0xff] 0.0
      %32 = vst [vmem:[#allocation2 + $0x20] sm:$0xff] 0.0
      %33 = vst [vmem:[#allocation2 + $0x28] sm:$0xff] 0.0
      %34 = vst [vmem:[#allocation2 + $0x30] sm:$0xff] 0.0
      %35 = vst [vmem:[#allocation2 + $0x38] sm:$0xff] 0.0
      %36 = vst [vmem:[#allocation3] sm:$0xff] 0.0
      %37 = vst [vmem:[#allocation3 + $0x8] sm:$0xff] 0.0
      %38 = vst [vmem:[#allocation3 + $0x10] sm:$0xff] 0.0
      %39 = vst [vmem:[#allocation3 + $0x18] sm:$0xff] 0.0
      %40 = vst [vmem:[#allocation3 + $0x20] sm:$0xff] 0.0
      %41 = vst [vmem:[#allocation3 + $0x28] sm:$0xff] 0.0
      %42 = vst [vmem:[#allocation3 + $0x30] sm:$0xff] 0.0
      %43 = vst [vmem:[#allocation3 + $0x38] sm:$0xff] 0.0
      %44 = vst [vmem:[#allocation4] sm:$0xff] 0.0
      %45 = vst [vmem:[#allocation4 + $0x8] sm:$0xff] 0.0
      %46 = vst [vmem:[#allocation4 + $0x10] sm:$0xff] 0.0
      %47 = vst [vmem:[#allocation4 + $0x18] sm:$0xff] 0.0
      %48 = vst [vmem:[#allocation4 + $0x20] sm:$0xff] 0.0
      %49 = vst [vmem:[#allocation4 + $0x28] sm:$0xff] 0.0
      %50 = vst [vmem:[#allocation4 + $0x30] sm:$0xff] 0.0
      %51 = vst [vmem:[#allocation4 + $0x38] sm:$0xff] 0.0
      %52 = vst [vmem:[#allocation5] sm:$0xff] 0.0
      %53 = vst [vmem:[#allocation5 + $0x8] sm:$0xff] 0.0
      %54 = vst [vmem:[#allocation5 + $0x10] sm:$0xff] 0.0
      %55 = vst [vmem:[#allocation5 + $0x18] sm:$0xff] 0.0
      %56 = vst [vmem:[#allocation5 + $0x20] sm:$0xff] 0.0
      %57 = vst [vmem:[#allocation5 + $0x28] sm:$0xff] 0.0
      %58 = vst [vmem:[#allocation5 + $0x30] sm:$0xff] 0.0
      %59 = vst [vmem:[#allocation5 + $0x38] sm:$0xff] 0.0
    $region25: #{tpu_custom_call.1} parent=1 // pred_fallthru
      _
    %v60 = vlaneseq
    %v61 = vshrl.u32 %v60, 7
    %v62 = vadd.s32 %v61, 8
    %vm63 = vcmp.eq.s32.totalorder %v61, 0
    %vm64 = vcmp.eq.s32.totalorder %v62, 0
    %vm65 = vcmp.eq.s32.totalorder %v61, 1
    %vm66 = vcmp.eq.s32.totalorder %v62, 1
    %v67 = vsel %vm65, 1.0, 0.0
    %v68 = vsel %vm66, 1.0, 0.0
    %v69 = vsel %vm63, 1.0, 0.0
    %v70 = vsel %vm64, 1.0, 0.0
    %v71 = vld [vmem:[#allocation2] sm:$0xff]
    %v72 = vld [vmem:[#allocation2 + $0x8] sm:$0xff]
    %v73 = vld [vmem:[#allocation2 + $0x10] sm:$0xff]
    %v74 = vld [vmem:[#allocation2 + $0x18] sm:$0xff]
    %v75 = vld [vmem:[#allocation2 + $0x20] sm:$0xff]
    %v76 = vld [vmem:[#allocation2 + $0x28] sm:$0xff]
    %v77 = vld [vmem:[#allocation2 + $0x30] sm:$0xff]
    %v78 = vld [vmem:[#allocation2 + $0x38] sm:$0xff]
    %v79 = vld [vmem:[#allocation3] sm:$0xff]
    %v80 = vld [vmem:[#allocation3 + $0x8] sm:$0xff]
    %v81 = vld [vmem:[#allocation3 + $0x10] sm:$0xff]
    %v82 = vld [vmem:[#allocation3 + $0x18] sm:$0xff]
    %v83 = vld [vmem:[#allocation3 + $0x20] sm:$0xff]
    %v84 = vld [vmem:[#allocation3 + $0x28] sm:$0xff]
    %v85 = vld [vmem:[#allocation3 + $0x30] sm:$0xff]
    %v86 = vld [vmem:[#allocation3 + $0x38] sm:$0xff]
    %v87 = vld [vmem:[#allocation4] sm:$0xff]
    %v88 = vld [vmem:[#allocation4 + $0x8] sm:$0xff]
    %v89 = vld [vmem:[#allocation4 + $0x10] sm:$0xff]
    %v90 = vld [vmem:[#allocation4 + $0x18] sm:$0xff]
    %v91 = vld [vmem:[#allocation4 + $0x20] sm:$0xff]
    %v92 = vld [vmem:[#allocation4 + $0x28] sm:$0xff]
    %v93 = vld [vmem:[#allocation4 + $0x30] sm:$0xff]
    %v94 = vld [vmem:[#allocation4 + $0x38] sm:$0xff]
    %v95 = vld [vmem:[#allocation5] sm:$0xff]
    %v96 = vld [vmem:[#allocation5 + $0x8] sm:$0xff]
    %v97 = vld [vmem:[#allocation5 + $0x10] sm:$0xff]
    %v98 = vld [vmem:[#allocation5 + $0x18] sm:$0xff]
    %v99 = vld [vmem:[#allocation5 + $0x20] sm:$0xff]
    %v100 = vld [vmem:[#allocation5 + $0x28] sm:$0xff]
    %v101 = vld [vmem:[#allocation5 + $0x30] sm:$0xff]
    %v102 = vld [vmem:[#allocation5 + $0x38] sm:$0xff]
    %v103 = vld [vmem:[%s0] sm:$0xff]
    %v104 = vlaneseq
    %v105 = vshrl.u32 %v104, 7
    %v106 = vsub.s32 0, %v105
    %v107 = vrot.slane %v103, %v106
    %v108 = vsel %vm63, %v107, %v67
    %v109 = vsel %vm64, %v107, %v68
    %v110 = vpack.c.bf16 %v72, %v71
    %v111 = vpack.c.bf16 %v74, %v73
    %v112 = vpack.c.bf16 %v76, %v75
    %v113 = vpack.c.bf16 %v78, %v77
    %v114 = vpack.c.bf16 %v109, %v108
    %v115 = vld [vmem:[%s1] sm:$0xf]
    %v116 = vld [vmem:[%s1 + $0x4] sm:$0xf]
    %v117 = vld [vmem:[%s1 + $0x8] sm:$0xf]
    %v118 = vld [vmem:[%s1 + $0xc] sm:$0xf]
    %v119 = vld [vmem:[%s1 + $0x10] sm:$0xf]
    %v120 = vld [vmem:[%s1 + $0x14] sm:$0xf]
    %v121 = vld [vmem:[%s1 + $0x18] sm:$0xf]
    %v122 = vld [vmem:[%s1 + $0x1c] sm:$0xf]
    %v123 = vld [vmem:[%s1 + $0x20] sm:$0xf]
    %v124 = vld [vmem:[%s1 + $0x24] sm:$0xf]
    %v125 = vld [vmem:[%s1 + $0x28] sm:$0xf]
    %v126 = vld [vmem:[%s1 + $0x2c] sm:$0xf]
    %v127 = vld [vmem:[%s1 + $0x30] sm:$0xf]
    %v128 = vld [vmem:[%s1 + $0x34] sm:$0xf]
    %v129 = vld [vmem:[%s1 + $0x38] sm:$0xf]
    %v130 = vld [vmem:[%s1 + $0x3c] sm:$0xf]
    %v131 = vld [vmem:[%s1 + $0x40] sm:$0xf]
    %v132 = vld [vmem:[%s1 + $0x44] sm:$0xf]
    %v133 = vld [vmem:[%s1 + $0x48] sm:$0xf]
    %v134 = vld [vmem:[%s1 + $0x4c] sm:$0xf]
    %v135 = vld [vmem:[%s1 + $0x50] sm:$0xf]
    %v136 = vld [vmem:[%s1 + $0x54] sm:$0xf]
    %v137 = vld [vmem:[%s1 + $0x58] sm:$0xf]
    %v138 = vld [vmem:[%s1 + $0x5c] sm:$0xf]
    %v139 = vld [vmem:[%s1 + $0x60] sm:$0xf]
    %v140 = vld [vmem:[%s1 + $0x64] sm:$0xf]
    %v141 = vld [vmem:[%s1 + $0x68] sm:$0xf]
    %v142 = vld [vmem:[%s1 + $0x6c] sm:$0xf]
    %v143 = vld [vmem:[%s1 + $0x70] sm:$0xf]
    %v144 = vld [vmem:[%s1 + $0x74] sm:$0xf]
    %v145 = vld [vmem:[%s1 + $0x78] sm:$0xf]
    %v146 = vld [vmem:[%s1 + $0x7c] sm:$0xf]
    %v179 = vunpack.c.l.b16 %v115
    %v180 = vunpack.c.l.b16 %v116
    %v181 = vunpack.c.l.b16 %v117
    %v182 = vunpack.c.l.b16 %v118
    %v183 = vunpack.c.l.b16 %v119
    %v184 = vunpack.c.l.b16 %v120
    %v185 = vunpack.c.l.b16 %v121
    %v186 = vunpack.c.l.b16 %v122
    %v187 = vunpack.c.l.b16 %v123
    %v188 = vunpack.c.l.b16 %v124
    %v189 = vunpack.c.l.b16 %v125
    %v190 = vunpack.c.l.b16 %v126
    %v191 = vunpack.c.l.b16 %v127
    %v192 = vunpack.c.l.b16 %v128
    %v193 = vunpack.c.l.b16 %v129
    %v194 = vunpack.c.l.b16 %v130
    %v195 = vunpack.c.l.b16 %v131
    %v196 = vunpack.c.l.b16 %v132
    %v197 = vunpack.c.l.b16 %v133
    %v198 = vunpack.c.l.b16 %v134
    %v199 = vunpack.c.l.b16 %v135
    %v200 = vunpack.c.l.b16 %v136
    %v201 = vunpack.c.l.b16 %v137
    %v202 = vunpack.c.l.b16 %v138
    %v203 = vunpack.c.l.b16 %v139
    %v204 = vunpack.c.l.b16 %v140
    %v205 = vunpack.c.l.b16 %v141
    %v206 = vunpack.c.l.b16 %v142
    %v207 = vunpack.c.l.b16 %v143
    %v208 = vunpack.c.l.b16 %v144
    %v209 = vunpack.c.l.b16 %v145
    %v210 = vunpack.c.l.b16 %v146
    %v211 = vpack.c.b16 %v180, %v179
    %v212 = vpack.c.b16 %v182, %v181
    %v213 = vpack.c.b16 %v184, %v183
    %v214 = vpack.c.b16 %v186, %v185
    %v215 = vpack.c.b16 %v188, %v187
    %v216 = vpack.c.b16 %v190, %v189
    %v217 = vpack.c.b16 %v192, %v191
    %v218 = vpack.c.b16 %v194, %v193
    %v219 = vpack.c.b16 %v196, %v195
    %v220 = vpack.c.b16 %v198, %v197
    %v221 = vpack.c.b16 %v200, %v199
    %v222 = vpack.c.b16 %v202, %v201
    %v223 = vpack.c.b16 %v204, %v203
    %v224 = vpack.c.b16 %v206, %v205
    %v225 = vpack.c.b16 %v208, %v207
    %v226 = vpack.c.b16 %v210, %v209
    %vm227 = vcmask 654336
    %v229 = vsel %vm227, %v211, 0
    %v232 = vsel %vm227, %v212, 0
    %v235 = vsel %vm227, %v213, 0
    %v238 = vsel %vm227, %v214, 0
    %v241 = vsel %vm227, %v215, 0
    %v244 = vsel %vm227, %v216, 0
    %v247 = vsel %vm227, %v217, 0
    %v250 = vsel %vm227, %v218, 0
    %v253 = vsel %vm227, %v219, 0
    %v256 = vsel %vm227, %v220, 0
    %v259 = vsel %vm227, %v221, 0
    %v262 = vsel %vm227, %v222, 0
    %v265 = vsel %vm227, %v223, 0
    %v268 = vsel %vm227, %v224, 0
    %v271 = vsel %vm227, %v225, 0
    %v274 = vsel %vm227, %v226, 0
    %276 = vmatprep.subr.bf16.mxu0 0
    %277 = vmatpush1.bf16.msra.mxu0 %v110
    %278 = vmatprep.subr.bf16.mxu0 0
    %279 = vmatpush1.bf16.msra.mxu0 %v111
    %280 = vmatprep.subr.bf16.mxu0 0
    %281 = vmatpush1.bf16.msra.mxu0 %v112
    %282 = vmatprep.subr.bf16.mxu0 0
    %283 = vmatpush1.bf16.msra.mxu0 %v113
    %284 = vmatprep.subr.bf16.mxu0 0
    %285 = vmatpush1.bf16.msra.mxu0 %v114
    %286 = vmatprep.subr.bf16.mxu0 0
    %287 = vmatpush1.bf16.msra.mxu0 0
    %288 = vmatprep.subr.bf16.mxu0 0
    %289 = vmatpush1.bf16.msra.mxu0 0
    %290 = vmatprep.subr.bf16.mxu0 0
    %291 = vmatpush1.bf16.msra.mxu0 0
    %292 = vmatprep.subr.bf16.mxu0 0
    %293 = vmatpush1.bf16.msra.mxu0 0
    %294 = vmatprep.subr.bf16.mxu0 0
    %295 = vmatpush1.bf16.msra.mxu0 0
    %296 = vmatprep.subr.bf16.mxu0 0
    %297 = vmatpush1.bf16.msra.mxu0 0
    %298 = vmatprep.subr.bf16.mxu0 0
    %299 = vmatpush1.bf16.msra.mxu0 0
    %300 = vmatprep.subr.bf16.mxu0 0
    %301 = vmatpush1.bf16.msra.mxu0 0
    %302 = vmatprep.subr.bf16.mxu0 0
    %303 = vmatpush1.bf16.msra.mxu0 0
    %304 = vmatprep.subr.bf16.mxu0 0
    %305 = vmatpush1.bf16.msra.mxu0 0
    %306 = vmatprep.subr.bf16.mxu0 0
    %307 = vmatpush1.bf16.msra.mxu0 0
    %308 = vmatprep.mubr.bf16.mxu0 0
    %309 = vmatmul.mubr.bf16.gmra.mrb[0].mxu0 %v229
    %v310 = vpop.f32.mrb[0].mxu0
    %v311 = vadd.f32 0.0, %v310
    %v312 = vpop.f32.mrb[0].mxu0
    %v313 = vpop.f32.mrb[0].mxu0
    %v314 = vadd.f32 0.0, %v313
    %v315 = vpop.f32.mrb[0].mxu0
    %316 = vmatprep.mubr.bf16.mxu0 0
    %317 = vmatmul.mubr.bf16.gmra.mrb[0].mxu0 %v232
    %v318 = vpop.f32.mrb[0].mxu0
    %v319 = vadd.f32 0.0, %v318
    %v320 = vpop.f32.mrb[0].mxu0
    %v321 = vpop.f32.mrb[0].mxu0
    %v322 = vadd.f32 0.0, %v321
    %v323 = vpop.f32.mrb[0].mxu0
    %324 = vmatprep.mubr.bf16.mxu0 0
    %325 = vmatmul.mubr.bf16.gmra.mrb[0].mxu0 %v235
    %v326 = vpop.f32.mrb[0].mxu0
    %v327 = vadd.f32 0.0, %v326
    %v328 = vpop.f32.mrb[0].mxu0
    %v329 = vpop.f32.mrb[0].mxu0
    %v330 = vadd.f32 0.0, %v329
    %v331 = vpop.f32.mrb[0].mxu0
    %332 = vmatprep.mubr.bf16.mxu0 0
    %333 = vmatmul.mubr.bf16.gmra.mrb[0].mxu0 %v238
    %v334 = vpop.f32.mrb[0].mxu0
    %v335 = vadd.f32 0.0, %v334
    %v336 = vpop.f32.mrb[0].mxu0
    %v337 = vpop.f32.mrb[0].mxu0
    %v338 = vadd.f32 0.0, %v337
    %v339 = vpop.f32.mrb[0].mxu0
    %340 = vmatprep.mubr.bf16.mxu0 0
    %341 = vmatmul.mubr.bf16.gmra.mrb[0].mxu0 %v241
    %v342 = vpop.f32.mrb[0].mxu0
    %v343 = vadd.f32 0.0, %v342
    %v344 = vpop.f32.mrb[0].mxu0
    %v345 = vpop.f32.mrb[0].mxu0
    %v346 = vadd.f32 0.0, %v345
    %v347 = vpop.f32.mrb[0].mxu0
    %348 = vmatprep.mubr.bf16.mxu0 0
    %349 = vmatmul.mubr.bf16.gmra.mrb[0].mxu0 %v244
    %v350 = vpop.f32.mrb[0].mxu0
    %v351 = vadd.f32 0.0, %v350
    %v352 = vpop.f32.mrb[0].mxu0
    %v353 = vpop.f32.mrb[0].mxu0
    %v354 = vadd.f32 0.0, %v353
    %v355 = vpop.f32.mrb[0].mxu0
    %356 = vmatprep.mubr.bf16.mxu0 0
    %357 = vmatmul.mubr.bf16.gmra.mrb[0].mxu0 %v247
    %v358 = vpop.f32.mrb[0].mxu0
    %v359 = vadd.f32 0.0, %v358
    %v360 = vpop.f32.mrb[0].mxu0
    %v361 = vpop.f32.mrb[0].mxu0
    %v362 = vadd.f32 0.0, %v361
    %v363 = vpop.f32.mrb[0].mxu0
    %364 = vmatprep.mubr.bf16.mxu0 0
    %365 = vmatmul.mubr.bf16.gmra.mrb[0].mxu0 %v250
    %v366 = vpop.f32.mrb[0].mxu0
    %v367 = vadd.f32 0.0, %v366
    %v368 = vpop.f32.mrb[0].mxu0
    %v369 = vpop.f32.mrb[0].mxu0
    %v370 = vadd.f32 0.0, %v369
    %v371 = vpop.f32.mrb[0].mxu0
    %372 = vmatprep.mubr.bf16.mxu0 0
    %373 = vmatmul.mubr.bf16.gmra.mrb[0].mxu0 %v253
    %v374 = vpop.f32.mrb[0].mxu0
    %v375 = vadd.f32 0.0, %v374
    %v376 = vpop.f32.mrb[0].mxu0
    %v377 = vpop.f32.mrb[0].mxu0
    %v378 = vadd.f32 0.0, %v377
    %v379 = vpop.f32.mrb[0].mxu0
    %380 = vmatprep.mubr.bf16.mxu0 0
    %381 = vmatmul.mubr.bf16.gmra.mrb[0].mxu0 %v256
    %v382 = vpop.f32.mrb[0].mxu0
    %v383 = vadd.f32 0.0, %v382
    %v384 = vpop.f32.mrb[0].mxu0
    %v385 = vpop.f32.mrb[0].mxu0
    %v386 = vadd.f32 0.0, %v385
    %v387 = vpop.f32.mrb[0].mxu0
    %388 = vmatprep.mubr.bf16.mxu0 0
    %389 = vmatmul.mubr.bf16.gmra.mrb[0].mxu0 %v259
    %v390 = vpop.f32.mrb[0].mxu0
    %v391 = vadd.f32 0.0, %v390
    %v392 = vpop.f32.mrb[0].mxu0
    %v393 = vpop.f32.mrb[0].mxu0
    %v394 = vadd.f32 0.0, %v393
    %v395 = vpop.f32.mrb[0].mxu0
    %396 = vmatprep.mubr.bf16.mxu0 0
    %397 = vmatmul.mubr.bf16.gmra.mrb[0].mxu0 %v262
    %v398 = vpop.f32.mrb[0].mxu0
    %v399 = vadd.f32 0.0, %v398
    %v400 = vpop.f32.mrb[0].mxu0
    %v401 = vpop.f32.mrb[0].mxu0
    %v402 = vadd.f32 0.0, %v401
    %v403 = vpop.f32.mrb[0].mxu0
    %404 = vmatprep.mubr.bf16.mxu0 0
    %405 = vmatmul.mubr.bf16.gmra.mrb[0].mxu0 %v265
    %v406 = vpop.f32.mrb[0].mxu0
    %v407 = vadd.f32 0.0, %v406
    %v408 = vpop.f32.mrb[0].mxu0
    %v409 = vpop.f32.mrb[0].mxu0
    %v410 = vadd.f32 0.0, %v409
    %v411 = vpop.f32.mrb[0].mxu0
    %412 = vmatprep.mubr.bf16.mxu0 0
    %413 = vmatmul.mubr.bf16.gmra.mrb[0].mxu0 %v268
    %v414 = vpop.f32.mrb[0].mxu0
    %v415 = vadd.f32 0.0, %v414
    %v416 = vpop.f32.mrb[0].mxu0
    %v417 = vpop.f32.mrb[0].mxu0
    %v418 = vadd.f32 0.0, %v417
    %v419 = vpop.f32.mrb[0].mxu0
    %420 = vmatprep.mubr.bf16.mxu0 0
    %421 = vmatmul.mubr.bf16.gmra.mrb[0].mxu0 %v271
    %v422 = vpop.f32.mrb[0].mxu0
    %v423 = vadd.f32 0.0, %v422
    %v424 = vpop.f32.mrb[0].mxu0
    %v425 = vpop.f32.mrb[0].mxu0
    %v426 = vadd.f32 0.0, %v425
    %v427 = vpop.f32.mrb[0].mxu0
    %428 = vmatprep.mubr.bf16.mxu0 0
    %429 = vmatmul.mubr.bf16.gmra.mrb[0].mxu0 %v274
    %v430 = vpop.f32.mrb[0].mxu0
    %v431 = vadd.f32 0.0, %v430
    %v432 = vpop.f32.mrb[0].mxu0
    %v433 = vpop.f32.mrb[0].mxu0
    %v434 = vadd.f32 0.0, %v433
    %v435 = vpop.f32.mrb[0].mxu0
    %436 = vdwg.mxu0
    %v437 = vmul.f32 %v311, 0.5
    %v438 = vmul.f32 %v314, 0.5
    %v439 = vmul.f32 %v319, 0.5
    %v440 = vmul.f32 %v322, 0.5
    %v441 = vmul.f32 %v327, 0.5
    %v442 = vmul.f32 %v330, 0.5
    %v443 = vmul.f32 %v335, 0.5
    %v444 = vmul.f32 %v338, 0.5
    %v445 = vtanh.pop %v437
    %v446 = vtanh.pop %v438
    %v447 = vtanh.pop %v439
    %v448 = vtanh.pop %v440
    %v449 = vtanh.pop %v441
    %v450 = vtanh.pop %v442
    %v451 = vtanh.pop %v443
    %v452 = vtanh.pop %v444
    %v453 = vadd.f32 %v445, 1.0
    %v454 = vadd.f32 %v446, 1.0
    %v455 = vadd.f32 %v447, 1.0
    %v456 = vadd.f32 %v448, 1.0
    %v457 = vadd.f32 %v449, 1.0
    %v458 = vadd.f32 %v450, 1.0
    %v459 = vadd.f32 %v451, 1.0
    %v460 = vadd.f32 %v452, 1.0
    %v461 = vmul.f32 %v453, 0.5
    %v462 = vmul.f32 %v454, 0.5
    %v463 = vmul.f32 %v455, 0.5
    %v464 = vmul.f32 %v456, 0.5
    %v465 = vmul.f32 %v457, 0.5
    %v466 = vmul.f32 %v458, 0.5
    %v467 = vmul.f32 %v459, 0.5
    %v468 = vmul.f32 %v460, 0.5
    %v469 = vmul.f32 %v343, 0.5
    %v470 = vmul.f32 %v346, 0.5
    %v471 = vmul.f32 %v351, 0.5
    %v472 = vmul.f32 %v354, 0.5
    %v473 = vmul.f32 %v359, 0.5
    %v474 = vmul.f32 %v362, 0.5
    %v475 = vmul.f32 %v367, 0.5
    %v476 = vmul.f32 %v370, 0.5
    %v477 = vtanh.pop %v469
    %v478 = vtanh.pop %v470
    %v479 = vtanh.pop %v471
    %v480 = vtanh.pop %v472
    %v481 = vtanh.pop %v473
    %v482 = vtanh.pop %v474
    %v483 = vtanh.pop %v475
    %v484 = vtanh.pop %v476
    %v485 = vadd.f32 %v477, 1.0
    %v486 = vadd.f32 %v478, 1.0
    %v487 = vadd.f32 %v479, 1.0
    %v488 = vadd.f32 %v480, 1.0
    %v489 = vadd.f32 %v481, 1.0
    %v490 = vadd.f32 %v482, 1.0
    %v491 = vadd.f32 %v483, 1.0
    %v492 = vadd.f32 %v484, 1.0
    %v493 = vmul.f32 %v485, 0.5
    %v494 = vmul.f32 %v486, 0.5
    %v495 = vmul.f32 %v487, 0.5
    %v496 = vmul.f32 %v488, 0.5
    %v497 = vmul.f32 %v489, 0.5
    %v498 = vmul.f32 %v490, 0.5
    %v499 = vmul.f32 %v491, 0.5
    %v500 = vmul.f32 %v492, 0.5
    %v501 = vtanh.pop %v375
    %v502 = vtanh.pop %v378
    %v503 = vtanh.pop %v383
    %v504 = vtanh.pop %v386
    %v505 = vtanh.pop %v391
    %v506 = vtanh.pop %v394
    %v507 = vtanh.pop %v399
    %v508 = vtanh.pop %v402
    %v509 = vmul.f32 %v407, 0.5
    %v510 = vmul.f32 %v410, 0.5
    %v511 = vmul.f32 %v415, 0.5
    %v512 = vmul.f32 %v418, 0.5
    %v513 = vmul.f32 %v423, 0.5
    %v514 = vmul.f32 %v426, 0.5
    %v515 = vmul.f32 %v431, 0.5
    %v516 = vmul.f32 %v434, 0.5
    %v517 = vtanh.pop %v509
    %v518 = vtanh.pop %v510
    %v519 = vtanh.pop %v511
    %v520 = vtanh.pop %v512
    %v521 = vtanh.pop %v513
    %v522 = vtanh.pop %v514
    %v523 = vtanh.pop %v515
    %v524 = vtanh.pop %v516
    %v525 = vadd.f32 %v517, 1.0
    %v526 = vadd.f32 %v518, 1.0
    %v527 = vadd.f32 %v519, 1.0
    %v528 = vadd.f32 %v520, 1.0
    %v529 = vadd.f32 %v521, 1.0
    %v530 = vadd.f32 %v522, 1.0
    %v531 = vadd.f32 %v523, 1.0
    %v532 = vadd.f32 %v524, 1.0
    %v533 = vmul.f32 %v525, 0.5
    %v534 = vmul.f32 %v526, 0.5
    %v535 = vmul.f32 %v527, 0.5
    %v536 = vmul.f32 %v528, 0.5
    %v537 = vmul.f32 %v529, 0.5
    %v538 = vmul.f32 %v530, 0.5
    %v539 = vmul.f32 %v531, 0.5
    %v540 = vmul.f32 %v532, 0.5
    %v541 = vmul.f32 %v493, %v79
    %v542 = vmul.f32 %v494, %v80
    %v543 = vmul.f32 %v495, %v81
    %v544 = vmul.f32 %v496, %v82
    %v545 = vmul.f32 %v497, %v83
    %v546 = vmul.f32 %v498, %v84
    %v547 = vmul.f32 %v499, %v85
    %v548 = vmul.f32 %v500, %v86
    %v549 = vmul.f32 %v461, %v501
    %v550 = vmul.f32 %v462, %v502
    %v551 = vmul.f32 %v463, %v503
    %v552 = vmul.f32 %v464, %v504
    %v553 = vmul.f32 %v465, %v505
    %v554 = vmul.f32 %v466, %v506
    %v555 = vmul.f32 %v467, %v507
    %v556 = vmul.f32 %v468, %v508
    %v557 = vadd.f32 %v541, %v549
    %v558 = vadd.f32 %v542, %v550
    %v559 = vadd.f32 %v543, %v551
    %v560 = vadd.f32 %v544, %v552
    %v561 = vadd.f32 %v545, %v553
    %v562 = vadd.f32 %v546, %v554
    %v563 = vadd.f32 %v547, %v555
    %v564 = vadd.f32 %v548, %v556
    %v565 = vtanh.pop %v557
    %v566 = vtanh.pop %v558
    %v567 = vtanh.pop %v559
    %v568 = vtanh.pop %v560
    %v569 = vtanh.pop %v561
    %v570 = vtanh.pop %v562
    %v571 = vtanh.pop %v563
    %v572 = vtanh.pop %v564
    %v573 = vmul.f32 %v533, %v565
    %v574 = vmul.f32 %v534, %v566
    %v575 = vmul.f32 %v535, %v567
    %v576 = vmul.f32 %v536, %v568
    %v577 = vmul.f32 %v537, %v569
    %v578 = vmul.f32 %v538, %v570
    %v579 = vmul.f32 %v539, %v571
    %v580 = vmul.f32 %v540, %v572
    %v581 = vpack.c.bf16 %v574, %v573
    %v582 = vpack.c.bf16 %v576, %v575
    %v583 = vpack.c.bf16 %v578, %v577
    %v584 = vpack.c.bf16 %v580, %v579
    %v585 = vpack.c.bf16 %v88, %v87
    %v586 = vpack.c.bf16 %v90, %v89
    %v587 = vpack.c.bf16 %v92, %v91
    %v588 = vpack.c.bf16 %v94, %v93
    %v589 = vpack.c.bf16 %v70, %v69
    %v590 = vld [vmem:[%s2] sm:$0xff]
    %v591 = vld [vmem:[%s2 + $0x8] sm:$0xff]
    %v592 = vld [vmem:[%s2 + $0x10] sm:$0xff]
    %v593 = vld [vmem:[%s2 + $0x18] sm:$0xff]
    %v594 = vld [vmem:[%s2 + $0x20] sm:$0xff]
    %v595 = vld [vmem:[%s2 + $0x28] sm:$0xff]
    %v596 = vld [vmem:[%s2 + $0x30] sm:$0xff]
    %v597 = vld [vmem:[%s2 + $0x38] sm:$0xff]
    %v598 = vld [vmem:[%s2 + $0x40] sm:$0xff]
    %v599 = vld [vmem:[%s2 + $0x48] sm:$0xff]
    %v600 = vld [vmem:[%s2 + $0x50] sm:$0xff]
    %v601 = vld [vmem:[%s2 + $0x58] sm:$0xff]
    %v602 = vld [vmem:[%s2 + $0x60] sm:$0xff]
    %v603 = vld [vmem:[%s2 + $0x68] sm:$0xff]
    %v604 = vld [vmem:[%s2 + $0x70] sm:$0xff]
    %v605 = vld [vmem:[%s2 + $0x78] sm:$0xff]
    %v606 = vld [vmem:[%s2 + $0x80] sm:$0xff]
    %v607 = vld [vmem:[%s2 + $0x88] sm:$0xff]
    %v608 = vld [vmem:[%s2 + $0x90] sm:$0xff]
    %v609 = vld [vmem:[%s2 + $0x98] sm:$0xff]
    %v610 = vld [vmem:[%s2 + $0xa0] sm:$0xff]
    %v611 = vld [vmem:[%s2 + $0xa8] sm:$0xff]
    %v612 = vld [vmem:[%s2 + $0xb0] sm:$0xff]
    %v613 = vld [vmem:[%s2 + $0xb8] sm:$0xff]
    %v614 = vld [vmem:[%s2 + $0xc0] sm:$0xff]
    %v615 = vld [vmem:[%s2 + $0xc8] sm:$0xff]
    %v616 = vld [vmem:[%s2 + $0xd0] sm:$0xff]
    %v617 = vld [vmem:[%s2 + $0xd8] sm:$0xff]
    %v618 = vld [vmem:[%s2 + $0xe0] sm:$0xff]
    %v619 = vld [vmem:[%s2 + $0xe8] sm:$0xff]
    %v620 = vld [vmem:[%s2 + $0xf0] sm:$0xff]
    %v621 = vld [vmem:[%s2 + $0xf8] sm:$0xff]
    %v654 = vunpack.c.l.b16 %v590
    %v655 = vunpack.c.h.b16 %v590
    %v656 = vunpack.c.l.b16 %v591
    %v657 = vunpack.c.h.b16 %v591
    %v658 = vunpack.c.l.b16 %v592
    %v659 = vunpack.c.h.b16 %v592
    %v660 = vunpack.c.l.b16 %v593
    %v661 = vunpack.c.h.b16 %v593
    %v662 = vunpack.c.l.b16 %v594
    %v663 = vunpack.c.h.b16 %v594
    %v664 = vunpack.c.l.b16 %v595
    %v665 = vunpack.c.h.b16 %v595
    %v666 = vunpack.c.l.b16 %v596
    %v667 = vunpack.c.h.b16 %v596
    %v668 = vunpack.c.l.b16 %v597
    %v669 = vunpack.c.h.b16 %v597
    %v670 = vunpack.c.l.b16 %v598
    %v671 = vunpack.c.h.b16 %v598
    %v672 = vunpack.c.l.b16 %v599
    %v673 = vunpack.c.h.b16 %v599
    %v674 = vunpack.c.l.b16 %v600
    %v675 = vunpack.c.h.b16 %v600
    %v676 = vunpack.c.l.b16 %v601
    %v677 = vunpack.c.h.b16 %v601
    %v678 = vunpack.c.l.b16 %v602
    %v679 = vunpack.c.h.b16 %v602
    %v680 = vunpack.c.l.b16 %v603
    %v681 = vunpack.c.h.b16 %v603
    %v682 = vunpack.c.l.b16 %v604
    %v683 = vunpack.c.h.b16 %v604
    %v684 = vunpack.c.l.b16 %v605
    %v685 = vunpack.c.h.b16 %v605
    %v686 = vunpack.c.l.b16 %v606
    %v687 = vunpack.c.h.b16 %v606
    %v688 = vunpack.c.l.b16 %v607
    %v689 = vunpack.c.h.b16 %v607
    %v690 = vunpack.c.l.b16 %v608
    %v691 = vunpack.c.h.b16 %v608
    %v692 = vunpack.c.l.b16 %v609
    %v693 = vunpack.c.h.b16 %v609
    %v694 = vunpack.c.l.b16 %v610
    %v695 = vunpack.c.h.b16 %v610
    %v696 = vunpack.c.l.b16 %v611
    %v697 = vunpack.c.h.b16 %v611
    %v698 = vunpack.c.l.b16 %v612
    %v699 = vunpack.c.h.b16 %v612
    %v700 = vunpack.c.l.b16 %v613
    %v701 = vunpack.c.h.b16 %v613
    %v702 = vunpack.c.l.b16 %v614
    %v703 = vunpack.c.h.b16 %v614
    %v704 = vunpack.c.l.b16 %v615
    %v705 = vunpack.c.h.b16 %v615
    %v706 = vunpack.c.l.b16 %v616
    %v707 = vunpack.c.h.b16 %v616
    %v708 = vunpack.c.l.b16 %v617
    %v709 = vunpack.c.h.b16 %v617
    %v710 = vunpack.c.l.b16 %v618
    %v711 = vunpack.c.h.b16 %v618
    %v712 = vunpack.c.l.b16 %v619
    %v713 = vunpack.c.h.b16 %v619
    %v714 = vunpack.c.l.b16 %v620
    %v715 = vunpack.c.h.b16 %v620
    %v716 = vunpack.c.l.b16 %v621
    %v717 = vunpack.c.h.b16 %v621
    %v718 = vpack.c.b16 %v656, %v654
    %v719 = vpack.c.b16 %v657, %v655
    %v720 = vpack.c.b16 %v660, %v658
    %v721 = vpack.c.b16 %v661, %v659
    %v722 = vpack.c.b16 %v664, %v662
    %v723 = vpack.c.b16 %v665, %v663
    %v724 = vpack.c.b16 %v668, %v666
    %v725 = vpack.c.b16 %v669, %v667
    %v726 = vpack.c.b16 %v672, %v670
    %v727 = vpack.c.b16 %v673, %v671
    %v728 = vpack.c.b16 %v676, %v674
    %v729 = vpack.c.b16 %v677, %v675
    %v730 = vpack.c.b16 %v680, %v678
    %v731 = vpack.c.b16 %v681, %v679
    %v732 = vpack.c.b16 %v684, %v682
    %v733 = vpack.c.b16 %v685, %v683
    %v734 = vpack.c.b16 %v688, %v686
    %v735 = vpack.c.b16 %v689, %v687
    %v736 = vpack.c.b16 %v692, %v690
    %v737 = vpack.c.b16 %v693, %v691
    %v738 = vpack.c.b16 %v696, %v694
    %v739 = vpack.c.b16 %v697, %v695
    %v740 = vpack.c.b16 %v700, %v698
    %v741 = vpack.c.b16 %v701, %v699
    %v742 = vpack.c.b16 %v704, %v702
    %v743 = vpack.c.b16 %v705, %v703
    %v744 = vpack.c.b16 %v708, %v706
    %v745 = vpack.c.b16 %v709, %v707
    %v746 = vpack.c.b16 %v712, %v710
    %v747 = vpack.c.b16 %v713, %v711
    %v748 = vpack.c.b16 %v716, %v714
    %v749 = vpack.c.b16 %v717, %v715
    %vm766 = vcmask 130048
    %v768 = vsel %vm766, %v719, 0
    %v771 = vsel %vm766, %v721, 0
    %v774 = vsel %vm766, %v723, 0
    %v777 = vsel %vm766, %v725, 0
    %v780 = vsel %vm766, %v727, 0
    %v783 = vsel %vm766, %v729, 0
    %v786 = vsel %vm766, %v731, 0
    %v789 = vsel %vm766, %v733, 0
    %v792 = vsel %vm766, %v735, 0
    %v795 = vsel %vm766, %v737, 0
    %v798 = vsel %vm766, %v739, 0
    %v801 = vsel %vm766, %v741, 0
    %v804 = vsel %vm766, %v743, 0
    %v807 = vsel %vm766, %v745, 0
    %v810 = vsel %vm766, %v747, 0
    %v813 = vsel %vm766, %v749, 0
    %815 = vmatprep.subr.bf16.mxu0 0
    %816 = vmatpush1.bf16.msra.mxu0 %v581
    %817 = vmatprep.subr.bf16.mxu0 0
    %818 = vmatpush1.bf16.msra.mxu0 %v582
    %819 = vmatprep.subr.bf16.mxu0 0
    %820 = vmatpush1.bf16.msra.mxu0 %v583
    %821 = vmatprep.subr.bf16.mxu0 0
    %822 = vmatpush1.bf16.msra.mxu0 %v584
    %823 = vmatprep.subr.bf16.mxu0 0
    %824 = vmatpush1.bf16.msra.mxu0 %v585
    %825 = vmatprep.subr.bf16.mxu0 0
    %826 = vmatpush1.bf16.msra.mxu0 %v586
    %827 = vmatprep.subr.bf16.mxu0 0
    %828 = vmatpush1.bf16.msra.mxu0 %v587
    %829 = vmatprep.subr.bf16.mxu0 0
    %830 = vmatpush1.bf16.msra.mxu0 %v588
    %831 = vmatprep.subr.bf16.mxu0 0
    %832 = vmatpush1.bf16.msra.mxu0 %v589
    %833 = vmatprep.subr.bf16.mxu0 0
    %834 = vmatpush1.bf16.msra.mxu0 0
    %835 = vmatprep.subr.bf16.mxu0 0
    %836 = vmatpush1.bf16.msra.mxu0 0
    %837 = vmatprep.subr.bf16.mxu0 0
    %838 = vmatpush1.bf16.msra.mxu0 0
    %839 = vmatprep.subr.bf16.mxu0 0
    %840 = vmatpush1.bf16.msra.mxu0 0
    %841 = vmatprep.subr.bf16.mxu0 0
    %842 = vmatpush1.bf16.msra.mxu0 0
    %843 = vmatprep.subr.bf16.mxu0 0
    %844 = vmatpush1.bf16.msra.mxu0 0
    %845 = vmatprep.subr.bf16.mxu0 0
    %846 = vmatpush1.bf16.msra.mxu0 0
    %847 = vmatprep.mubr.bf16.mxu0 %v768
    %848 = vmatmul.mubr.bf16.gmra.mrb[0].mxu0 %v718
    %v849 = vpop.f32.mrb[0].mxu0
    %v850 = vadd.f32 0.0, %v849
    %v851 = vpop.f32.mrb[0].mxu0
    %v852 = vpop.f32.mrb[0].mxu0
    %v853 = vadd.f32 0.0, %v852
    %v854 = vpop.f32.mrb[0].mxu0
    %855 = vmatprep.mubr.bf16.mxu0 %v771
    %856 = vmatmul.mubr.bf16.gmra.mrb[0].mxu0 %v720
    %v857 = vpop.f32.mrb[0].mxu0
    %v858 = vadd.f32 0.0, %v857
    %v859 = vpop.f32.mrb[0].mxu0
    %v860 = vpop.f32.mrb[0].mxu0
    %v861 = vadd.f32 0.0, %v860
    %v862 = vpop.f32.mrb[0].mxu0
    %863 = vmatprep.mubr.bf16.mxu0 %v774
    %864 = vmatmul.mubr.bf16.gmra.mrb[0].mxu0 %v722
    %v865 = vpop.f32.mrb[0].mxu0
    %v866 = vadd.f32 0.0, %v865
    %v867 = vpop.f32.mrb[0].mxu0
    %v868 = vpop.f32.mrb[0].mxu0
    %v869 = vadd.f32 0.0, %v868
    %v870 = vpop.f32.mrb[0].mxu0
    %871 = vmatprep.mubr.bf16.mxu0 %v777
    %872 = vmatmul.mubr.bf16.gmra.mrb[0].mxu0 %v724
    %v873 = vpop.f32.mrb[0].mxu0
    %v874 = vadd.f32 0.0, %v873
    %v875 = vpop.f32.mrb[0].mxu0
    %v876 = vpop.f32.mrb[0].mxu0
    %v877 = vadd.f32 0.0, %v876
    %v878 = vpop.f32.mrb[0].mxu0
    %879 = vmatprep.mubr.bf16.mxu0 %v780
    %880 = vmatmul.mubr.bf16.gmra.mrb[0].mxu0 %v726
    %v881 = vpop.f32.mrb[0].mxu0
    %v882 = vadd.f32 0.0, %v881
    %v883 = vpop.f32.mrb[0].mxu0
    %v884 = vpop.f32.mrb[0].mxu0
    %v885 = vadd.f32 0.0, %v884
    %v886 = vpop.f32.mrb[0].mxu0
    %887 = vmatprep.mubr.bf16.mxu0 %v783
    %888 = vmatmul.mubr.bf16.gmra.mrb[0].mxu0 %v728
    %v889 = vpop.f32.mrb[0].mxu0
    %v890 = vadd.f32 0.0, %v889
    %v891 = vpop.f32.mrb[0].mxu0
    %v892 = vpop.f32.mrb[0].mxu0
    %v893 = vadd.f32 0.0, %v892
    %v894 = vpop.f32.mrb[0].mxu0
    %895 = vmatprep.mubr.bf16.mxu0 %v786
    %896 = vmatmul.mubr.bf16.gmra.mrb[0].mxu0 %v730
    %v897 = vpop.f32.mrb[0].mxu0
    %v898 = vadd.f32 0.0, %v897
    %v899 = vpop.f32.mrb[0].mxu0
    %v900 = vpop.f32.mrb[0].mxu0
    %v901 = vadd.f32 0.0, %v900
    %v902 = vpop.f32.mrb[0].mxu0
    %903 = vmatprep.mubr.bf16.mxu0 %v789
    %904 = vmatmul.mubr.bf16.gmra.mrb[0].mxu0 %v732
    %v905 = vpop.f32.mrb[0].mxu0
    %v906 = vadd.f32 0.0, %v905
    %v907 = vpop.f32.mrb[0].mxu0
    %v908 = vpop.f32.mrb[0].mxu0
    %v909 = vadd.f32 0.0, %v908
    %v910 = vpop.f32.mrb[0].mxu0
    %911 = vmatprep.mubr.bf16.mxu0 %v792
    %912 = vmatmul.mubr.bf16.gmra.mrb[0].mxu0 %v734
    %v913 = vpop.f32.mrb[0].mxu0
    %v914 = vadd.f32 0.0, %v913
    %v915 = vpop.f32.mrb[0].mxu0
    %v916 = vpop.f32.mrb[0].mxu0
    %v917 = vadd.f32 0.0, %v916
    %v918 = vpop.f32.mrb[0].mxu0
    %919 = vmatprep.mubr.bf16.mxu0 %v795
    %920 = vmatmul.mubr.bf16.gmra.mrb[0].mxu0 %v736
    %v921 = vpop.f32.mrb[0].mxu0
    %v922 = vadd.f32 0.0, %v921
    %v923 = vpop.f32.mrb[0].mxu0
    %v924 = vpop.f32.mrb[0].mxu0
    %v925 = vadd.f32 0.0, %v924
    %v926 = vpop.f32.mrb[0].mxu0
    %927 = vmatprep.mubr.bf16.mxu0 %v798
    %928 = vmatmul.mubr.bf16.gmra.mrb[0].mxu0 %v738
    %v929 = vpop.f32.mrb[0].mxu0
    %v930 = vadd.f32 0.0, %v929
    %v931 = vpop.f32.mrb[0].mxu0
    %v932 = vpop.f32.mrb[0].mxu0
    %v933 = vadd.f32 0.0, %v932
    %v934 = vpop.f32.mrb[0].mxu0
    %935 = vmatprep.mubr.bf16.mxu0 %v801
    %936 = vmatmul.mubr.bf16.gmra.mrb[0].mxu0 %v740
    %v937 = vpop.f32.mrb[0].mxu0
    %v938 = vadd.f32 0.0, %v937
    %v939 = vpop.f32.mrb[0].mxu0
    %v940 = vpop.f32.mrb[0].mxu0
    %v941 = vadd.f32 0.0, %v940
    %v942 = vpop.f32.mrb[0].mxu0
    %943 = vmatprep.mubr.bf16.mxu0 %v804
    %944 = vmatmul.mubr.bf16.gmra.mrb[0].mxu0 %v742
    %v945 = vpop.f32.mrb[0].mxu0
    %v946 = vadd.f32 0.0, %v945
    %v947 = vpop.f32.mrb[0].mxu0
    %v948 = vpop.f32.mrb[0].mxu0
    %v949 = vadd.f32 0.0, %v948
    %v950 = vpop.f32.mrb[0].mxu0
    %951 = vmatprep.mubr.bf16.mxu0 %v807
    %952 = vmatmul.mubr.bf16.gmra.mrb[0].mxu0 %v744
    %v953 = vpop.f32.mrb[0].mxu0
    %v954 = vadd.f32 0.0, %v953
    %v955 = vpop.f32.mrb[0].mxu0
    %v956 = vpop.f32.mrb[0].mxu0
    %v957 = vadd.f32 0.0, %v956
    %v958 = vpop.f32.mrb[0].mxu0
    %959 = vmatprep.mubr.bf16.mxu0 %v810
    %960 = vmatmul.mubr.bf16.gmra.mrb[0].mxu0 %v746
    %v961 = vpop.f32.mrb[0].mxu0
    %v962 = vadd.f32 0.0, %v961
    %v963 = vpop.f32.mrb[0].mxu0
    %v964 = vpop.f32.mrb[0].mxu0
    %v965 = vadd.f32 0.0, %v964
    %v966 = vpop.f32.mrb[0].mxu0
    %967 = vmatprep.mubr.bf16.mxu0 %v813
    %968 = vmatmul.mubr.bf16.gmra.mrb[0].mxu0 %v748
    %v969 = vpop.f32.mrb[0].mxu0
    %v970 = vadd.f32 0.0, %v969
    %v971 = vpop.f32.mrb[0].mxu0
    %v972 = vpop.f32.mrb[0].mxu0
    %v973 = vadd.f32 0.0, %v972
    %v974 = vpop.f32.mrb[0].mxu0
    %975 = vdwg.mxu0
    %v976 = vmul.f32 %v850, 0.5
    %v977 = vmul.f32 %v853, 0.5
    %v978 = vmul.f32 %v858, 0.5
    %v979 = vmul.f32 %v861, 0.5
    %v980 = vmul.f32 %v866, 0.5
    %v981 = vmul.f32 %v869, 0.5
    %v982 = vmul.f32 %v874, 0.5
    %v983 = vmul.f32 %v877, 0.5
    %v984 = vtanh.pop %v976
    %v985 = vtanh.pop %v977
    %v986 = vtanh.pop %v978
    %v987 = vtanh.pop %v979
    %v988 = vtanh.pop %v980
    %v989 = vtanh.pop %v981
    %v990 = vtanh.pop %v982
    %v991 = vtanh.pop %v983
    %v992 = vadd.f32 %v984, 1.0
    %v993 = vadd.f32 %v985, 1.0
    %v994 = vadd.f32 %v986, 1.0
    %v995 = vadd.f32 %v987, 1.0
    %v996 = vadd.f32 %v988, 1.0
    %v997 = vadd.f32 %v989, 1.0
    %v998 = vadd.f32 %v990, 1.0
    %v999 = vadd.f32 %v991, 1.0
    %v1000 = vmul.f32 %v992, 0.5
    %v1001 = vmul.f32 %v993, 0.5
    %v1002 = vmul.f32 %v994, 0.5
    %v1003 = vmul.f32 %v995, 0.5
    %v1004 = vmul.f32 %v996, 0.5
    %v1005 = vmul.f32 %v997, 0.5
    %v1006 = vmul.f32 %v998, 0.5
    %v1007 = vmul.f32 %v999, 0.5
    %v1008 = vmul.f32 %v882, 0.5
    %v1009 = vmul.f32 %v885, 0.5
    %v1010 = vmul.f32 %v890, 0.5
    %v1011 = vmul.f32 %v893, 0.5
    %v1012 = vmul.f32 %v898, 0.5
    %v1013 = vmul.f32 %v901, 0.5
    %v1014 = vmul.f32 %v906, 0.5
    %v1015 = vmul.f32 %v909, 0.5
    %v1016 = vtanh.pop %v1008
    %v1017 = vtanh.pop %v1009
    %v1018 = vtanh.pop %v1010
    %v1019 = vtanh.pop %v1011
    %v1020 = vtanh.pop %v1012
    %v1021 = vtanh.pop %v1013
    %v1022 = vtanh.pop %v1014
    %v1023 = vtanh.pop %v1015
    %v1024 = vadd.f32 %v1016, 1.0
    %v1025 = vadd.f32 %v1017, 1.0
    %v1026 = vadd.f32 %v1018, 1.0
    %v1027 = vadd.f32 %v1019, 1.0
    %v1028 = vadd.f32 %v1020, 1.0
    %v1029 = vadd.f32 %v1021, 1.0
    %v1030 = vadd.f32 %v1022, 1.0
    %v1031 = vadd.f32 %v1023, 1.0
    %v1032 = vmul.f32 %v1024, 0.5
    %v1033 = vmul.f32 %v1025, 0.5
    %v1034 = vmul.f32 %v1026, 0.5
    %v1035 = vmul.f32 %v1027, 0.5
    %v1036 = vmul.f32 %v1028, 0.5
    %v1037 = vmul.f32 %v1029, 0.5
    %v1038 = vmul.f32 %v1030, 0.5
    %v1039 = vmul.f32 %v1031, 0.5
    %v1040 = vtanh.pop %v914
    %v1041 = vtanh.pop %v917
    %v1042 = vtanh.pop %v922
    %v1043 = vtanh.pop %v925
    %v1044 = vtanh.pop %v930
    %v1045 = vtanh.pop %v933
    %v1046 = vtanh.pop %v938
    %v1047 = vtanh.pop %v941
    %v1048 = vmul.f32 %v946, 0.5
    %v1049 = vmul.f32 %v949, 0.5
    %v1050 = vmul.f32 %v954, 0.5
    %v1051 = vmul.f32 %v957, 0.5
    %v1052 = vmul.f32 %v962, 0.5
    %v1053 = vmul.f32 %v965, 0.5
    %v1054 = vmul.f32 %v970, 0.5
    %v1055 = vmul.f32 %v973, 0.5
    %v1056 = vtanh.pop %v1048
    %v1057 = vtanh.pop %v1049
    %v1058 = vtanh.pop %v1050
    %v1059 = vtanh.pop %v1051
    %v1060 = vtanh.pop %v1052
    %v1061 = vtanh.pop %v1053
    %v1062 = vtanh.pop %v1054
    %v1063 = vtanh.pop %v1055
    %v1064 = vadd.f32 %v1056, 1.0
    %v1065 = vadd.f32 %v1057, 1.0
    %v1066 = vadd.f32 %v1058, 1.0
    %v1067 = vadd.f32 %v1059, 1.0
    %v1068 = vadd.f32 %v1060, 1.0
    %v1069 = vadd.f32 %v1061, 1.0
    %v1070 = vadd.f32 %v1062, 1.0
    %v1071 = vadd.f32 %v1063, 1.0
    %v1072 = vmul.f32 %v1064, 0.5
    %v1073 = vmul.f32 %v1065, 0.5
    %v1074 = vmul.f32 %v1066, 0.5
    %v1075 = vmul.f32 %v1067, 0.5
    %v1076 = vmul.f32 %v1068, 0.5
    %v1077 = vmul.f32 %v1069, 0.5
    %v1078 = vmul.f32 %v1070, 0.5
    %v1079 = vmul.f32 %v1071, 0.5
    %v1080 = vmul.f32 %v1032, %v95
    %v1081 = vmul.f32 %v1033, %v96
    %v1082 = vmul.f32 %v1034, %v97
    %v1083 = vmul.f32 %v1035, %v98
    %v1084 = vmul.f32 %v1036, %v99
    %v1085 = vmul.f32 %v1037, %v100
    %v1086 = vmul.f32 %v1038, %v101
    %v1087 = vmul.f32 %v1039, %v102
    %v1088 = vmul.f32 %v1000, %v1040
    %v1089 = vmul.f32 %v1001, %v1041
    %v1090 = vmul.f32 %v1002, %v1042
    %v1091 = vmul.f32 %v1003, %v1043
    %v1092 = vmul.f32 %v1004, %v1044
    %v1093 = vmul.f32 %v1005, %v1045
    %v1094 = vmul.f32 %v1006, %v1046
    %v1095 = vmul.f32 %v1007, %v1047
    %v1096 = vadd.f32 %v1080, %v1088
    %v1097 = vadd.f32 %v1081, %v1089
    %v1098 = vadd.f32 %v1082, %v1090
    %v1099 = vadd.f32 %v1083, %v1091
    %v1100 = vadd.f32 %v1084, %v1092
    %v1101 = vadd.f32 %v1085, %v1093
    %v1102 = vadd.f32 %v1086, %v1094
    %v1103 = vadd.f32 %v1087, %v1095
    %v1104 = vtanh.pop %v1096
    %v1105 = vtanh.pop %v1097
    %v1106 = vtanh.pop %v1098
    %v1107 = vtanh.pop %v1099
    %v1108 = vtanh.pop %v1100
    %v1109 = vtanh.pop %v1101
    %v1110 = vtanh.pop %v1102
    %v1111 = vtanh.pop %v1103
    %v1112 = vmul.f32 %v1072, %v1104
    %v1113 = vmul.f32 %v1073, %v1105
    %v1114 = vmul.f32 %v1074, %v1106
    %v1115 = vmul.f32 %v1075, %v1107
    %v1116 = vmul.f32 %v1076, %v1108
    %v1117 = vmul.f32 %v1077, %v1109
    %v1118 = vmul.f32 %v1078, %v1110
    %v1119 = vmul.f32 %v1079, %v1111
    %v1120 = vlaneseq
    %v1121 = vshrl.u32 %v1120, 7
    %v1122 = vsub.s32 1, %v1121
    %v1123 = vrot.slane %v103, %v1122
    %v1124 = vsel %vm63, %v1123, %v67
    %v1125 = vsel %vm64, %v1123, %v68
    %v1126 = vpack.c.bf16 %v1125, %v1124
    %1127 = vmatprep.subr.bf16.mxu0 0
    %1128 = vmatpush1.bf16.msra.mxu0 %v581
    %1129 = vmatprep.subr.bf16.mxu0 0
    %1130 = vmatpush1.bf16.msra.mxu0 %v582
    %1131 = vmatprep.subr.bf16.mxu0 0
    %1132 = vmatpush1.bf16.msra.mxu0 %v583
    %1133 = vmatprep.subr.bf16.mxu0 0
    %1134 = vmatpush1.bf16.msra.mxu0 %v584
    %1135 = vmatprep.subr.bf16.mxu0 0
    %1136 = vmatpush1.bf16.msra.mxu0 %v1126
    %1137 = vmatprep.subr.bf16.mxu0 0
    %1138 = vmatpush1.bf16.msra.mxu0 0
    %1139 = vmatprep.subr.bf16.mxu0 0
    %1140 = vmatpush1.bf16.msra.mxu0 0
    %1141 = vmatprep.subr.bf16.mxu0 0
    %1142 = vmatpush1.bf16.msra.mxu0 0
    %1143 = vmatprep.subr.bf16.mxu0 0
    %1144 = vmatpush1.bf16.msra.mxu0 0
    %1145 = vmatprep.subr.bf16.mxu0 0
    %1146 = vmatpush1.bf16.msra.mxu0 0
    %1147 = vmatprep.subr.bf16.mxu0 0
    %1148 = vmatpush1.bf16.msra.mxu0 0
    %1149 = vmatprep.subr.bf16.mxu0 0
    %1150 = vmatpush1.bf16.msra.mxu0 0
    %1151 = vmatprep.subr.bf16.mxu0 0
    %1152 = vmatpush1.bf16.msra.mxu0 0
    %1153 = vmatprep.subr.bf16.mxu0 0
    %1154 = vmatpush1.bf16.msra.mxu0 0
    %1155 = vmatprep.subr.bf16.mxu0 0
    %1156 = vmatpush1.bf16.msra.mxu0 0
    %1157 = vmatprep.subr.bf16.mxu0 0
    %1158 = vmatpush1.bf16.msra.mxu0 0
    %1159 = vmatprep.mubr.bf16.mxu0 0
    %1160 = vmatmul.mubr.bf16.gmra.mrb[0].mxu0 %v229
    %v1161 = vpop.f32.mrb[0].mxu0
    %v1162 = vadd.f32 0.0, %v1161
    %v1163 = vpop.f32.mrb[0].mxu0
    %v1164 = vpop.f32.mrb[0].mxu0
    %v1165 = vadd.f32 0.0, %v1164
    %v1166 = vpop.f32.mrb[0].mxu0
    %1167 = vmatprep.mubr.bf16.mxu0 0
    %1168 = vmatmul.mubr.bf16.gmra.mrb[0].mxu0 %v232
    %v1169 = vpop.f32.mrb[0].mxu0
    %v1170 = vadd.f32 0.0, %v1169
    %v1171 = vpop.f32.mrb[0].mxu0
    %v1172 = vpop.f32.mrb[0].mxu0
    %v1173 = vadd.f32 0.0, %v1172
    %v1174 = vpop.f32.mrb[0].mxu0
    %1175 = vmatprep.mubr.bf16.mxu0 0
    %1176 = vmatmul.mubr.bf16.gmra.mrb[0].mxu0 %v235
    %v1177 = vpop.f32.mrb[0].mxu0
    %v1178 = vadd.f32 0.0, %v1177
    %v1179 = vpop.f32.mrb[0].mxu0
    %v1180 = vpop.f32.mrb[0].mxu0
    %v1181 = vadd.f32 0.0, %v1180
    %v1182 = vpop.f32.mrb[0].mxu0
    %1183 = vmatprep.mubr.bf16.mxu0 0
    %1184 = vmatmul.mubr.bf16.gmra.mrb[0].mxu0 %v238
    %v1185 = vpop.f32.mrb[0].mxu0
    %v1186 = vadd.f32 0.0, %v1185
    %v1187 = vpop.f32.mrb[0].mxu0
    %v1188 = vpop.f32.mrb[0].mxu0
    %v1189 = vadd.f32 0.0, %v1188
    %v1190 = vpop.f32.mrb[0].mxu0
    %1191 = vmatprep.mubr.bf16.mxu0 0
    %1192 = vmatmul.mubr.bf16.gmra.mrb[0].mxu0 %v241
    %v1193 = vpop.f32.mrb[0].mxu0
    %v1194 = vadd.f32 0.0, %v1193
    %v1195 = vpop.f32.mrb[0].mxu0
    %v1196 = vpop.f32.mrb[0].mxu0
    %v1197 = vadd.f32 0.0, %v1196
    %v1198 = vpop.f32.mrb[0].mxu0
    %1199 = vmatprep.mubr.bf16.mxu0 0
    %1200 = vmatmul.mubr.bf16.gmra.mrb[0].mxu0 %v244
    %v1201 = vpop.f32.mrb[0].mxu0
    %v1202 = vadd.f32 0.0, %v1201
    %v1203 = vpop.f32.mrb[0].mxu0
    %v1204 = vpop.f32.mrb[0].mxu0
    %v1205 = vadd.f32 0.0, %v1204
    %v1206 = vpop.f32.mrb[0].mxu0
    %1207 = vmatprep.mubr.bf16.mxu0 0
    %1208 = vmatmul.mubr.bf16.gmra.mrb[0].mxu0 %v247
    %v1209 = vpop.f32.mrb[0].mxu0
    %v1210 = vadd.f32 0.0, %v1209
    %v1211 = vpop.f32.mrb[0].mxu0
    %v1212 = vpop.f32.mrb[0].mxu0
    %v1213 = vadd.f32 0.0, %v1212
    %v1214 = vpop.f32.mrb[0].mxu0
    %1215 = vmatprep.mubr.bf16.mxu0 0
    %1216 = vmatmul.mubr.bf16.gmra.mrb[0].mxu0 %v250
    %v1217 = vpop.f32.mrb[0].mxu0
    %v1218 = vadd.f32 0.0, %v1217
    %v1219 = vpop.f32.mrb[0].mxu0
    %v1220 = vpop.f32.mrb[0].mxu0
    %v1221 = vadd.f32 0.0, %v1220
    %v1222 = vpop.f32.mrb[0].mxu0
    %1223 = vmatprep.mubr.bf16.mxu0 0
    %1224 = vmatmul.mubr.bf16.gmra.mrb[0].mxu0 %v253
    %v1225 = vpop.f32.mrb[0].mxu0
    %v1226 = vadd.f32 0.0, %v1225
    %v1227 = vpop.f32.mrb[0].mxu0
    %v1228 = vpop.f32.mrb[0].mxu0
    %v1229 = vadd.f32 0.0, %v1228
    %v1230 = vpop.f32.mrb[0].mxu0
    %1231 = vmatprep.mubr.bf16.mxu0 0
    %1232 = vmatmul.mubr.bf16.gmra.mrb[0].mxu0 %v256
    %v1233 = vpop.f32.mrb[0].mxu0
    %v1234 = vadd.f32 0.0, %v1233
    %v1235 = vpop.f32.mrb[0].mxu0
    %v1236 = vpop.f32.mrb[0].mxu0
    %v1237 = vadd.f32 0.0, %v1236
    %v1238 = vpop.f32.mrb[0].mxu0
    %1239 = vmatprep.mubr.bf16.mxu0 0
    %1240 = vmatmul.mubr.bf16.gmra.mrb[0].mxu0 %v259
    %v1241 = vpop.f32.mrb[0].mxu0
    %v1242 = vadd.f32 0.0, %v1241
    %v1243 = vpop.f32.mrb[0].mxu0
    %v1244 = vpop.f32.mrb[0].mxu0
    %v1245 = vadd.f32 0.0, %v1244
    %v1246 = vpop.f32.mrb[0].mxu0
    %1247 = vmatprep.mubr.bf16.mxu0 0
    %1248 = vmatmul.mubr.bf16.gmra.mrb[0].mxu0 %v262
    %v1249 = vpop.f32.mrb[0].mxu0
    %v1250 = vadd.f32 0.0, %v1249
    %v1251 = vpop.f32.mrb[0].mxu0
    %v1252 = vpop.f32.mrb[0].mxu0
    %v1253 = vadd.f32 0.0, %v1252
    %v1254 = vpop.f32.mrb[0].mxu0
    %1255 = vmatprep.mubr.bf16.mxu0 0
    %1256 = vmatmul.mubr.bf16.gmra.mrb[0].mxu0 %v265
    %v1257 = vpop.f32.mrb[0].mxu0
    %v1258 = vadd.f32 0.0, %v1257
    %v1259 = vpop.f32.mrb[0].mxu0
    %v1260 = vpop.f32.mrb[0].mxu0
    %v1261 = vadd.f32 0.0, %v1260
    %v1262 = vpop.f32.mrb[0].mxu0
    %1263 = vmatprep.mubr.bf16.mxu0 0
    %1264 = vmatmul.mubr.bf16.gmra.mrb[0].mxu0 %v268
    %v1265 = vpop.f32.mrb[0].mxu0
    %v1266 = vadd.f32 0.0, %v1265
    %v1267 = vpop.f32.mrb[0].mxu0
    %v1268 = vpop.f32.mrb[0].mxu0
    %v1269 = vadd.f32 0.0, %v1268
    %v1270 = vpop.f32.mrb[0].mxu0
    %1271 = vmatprep.mubr.bf16.mxu0 0
    %1272 = vmatmul.mubr.bf16.gmra.mrb[0].mxu0 %v271
    %v1273 = vpop.f32.mrb[0].mxu0
    %v1274 = vadd.f32 0.0, %v1273
    %v1275 = vpop.f32.mrb[0].mxu0
    %v1276 = vpop.f32.mrb[0].mxu0
    %v1277 = vadd.f32 0.0, %v1276
    %v1278 = vpop.f32.mrb[0].mxu0
    %1279 = vmatprep.mubr.bf16.mxu0 0
    %1280 = vmatmul.mubr.bf16.gmra.mrb[0].mxu0 %v274
    %v1281 = vpop.f32.mrb[0].mxu0
    %v1282 = vadd.f32 0.0, %v1281
    %v1283 = vpop.f32.mrb[0].mxu0
    %v1284 = vpop.f32.mrb[0].mxu0
    %v1285 = vadd.f32 0.0, %v1284
    %v1286 = vpop.f32.mrb[0].mxu0
    %1287 = vdwg.mxu0
    %v1288 = vmul.f32 %v1162, 0.5
    %v1289 = vmul.f32 %v1165, 0.5
    %v1290 = vmul.f32 %v1170, 0.5
    %v1291 = vmul.f32 %v1173, 0.5
    %v1292 = vmul.f32 %v1178, 0.5
    %v1293 = vmul.f32 %v1181, 0.5
    %v1294 = vmul.f32 %v1186, 0.5
    %v1295 = vmul.f32 %v1189, 0.5
    %v1296 = vtanh.pop %v1288
    %v1297 = vtanh.pop %v1289
    %v1298 = vtanh.pop %v1290
    %v1299 = vtanh.pop %v1291
    %v1300 = vtanh.pop %v1292
    %v1301 = vtanh.pop %v1293
    %v1302 = vtanh.pop %v1294
    %v1303 = vtanh.pop %v1295
    %v1304 = vadd.f32 %v1296, 1.0
    %v1305 = vadd.f32 %v1297, 1.0
    %v1306 = vadd.f32 %v1298, 1.0
    %v1307 = vadd.f32 %v1299, 1.0
    %v1308 = vadd.f32 %v1300, 1.0
    %v1309 = vadd.f32 %v1301, 1.0
    %v1310 = vadd.f32 %v1302, 1.0
    %v1311 = vadd.f32 %v1303, 1.0
    %v1312 = vmul.f32 %v1304, 0.5
    %v1313 = vmul.f32 %v1305, 0.5
    %v1314 = vmul.f32 %v1306, 0.5
    %v1315 = vmul.f32 %v1307, 0.5
    %v1316 = vmul.f32 %v1308, 0.5
    %v1317 = vmul.f32 %v1309, 0.5
    %v1318 = vmul.f32 %v1310, 0.5
    %v1319 = vmul.f32 %v1311, 0.5
    %v1320 = vmul.f32 %v1194, 0.5
    %v1321 = vmul.f32 %v1197, 0.5
    %v1322 = vmul.f32 %v1202, 0.5
    %v1323 = vmul.f32 %v1205, 0.5
    %v1324 = vmul.f32 %v1210, 0.5
    %v1325 = vmul.f32 %v1213, 0.5
    %v1326 = vmul.f32 %v1218, 0.5
    %v1327 = vmul.f32 %v1221, 0.5
    %v1328 = vtanh.pop %v1320
    %v1329 = vtanh.pop %v1321
    %v1330 = vtanh.pop %v1322
    %v1331 = vtanh.pop %v1323
    %v1332 = vtanh.pop %v1324
    %v1333 = vtanh.pop %v1325
    %v1334 = vtanh.pop %v1326
    %v1335 = vtanh.pop %v1327
    %v1336 = vadd.f32 %v1328, 1.0
    %v1337 = vadd.f32 %v1329, 1.0
    %v1338 = vadd.f32 %v1330, 1.0
    %v1339 = vadd.f32 %v1331, 1.0
    %v1340 = vadd.f32 %v1332, 1.0
    %v1341 = vadd.f32 %v1333, 1.0
    %v1342 = vadd.f32 %v1334, 1.0
    %v1343 = vadd.f32 %v1335, 1.0
    %v1344 = vmul.f32 %v1336, 0.5
    %v1345 = vmul.f32 %v1337, 0.5
    %v1346 = vmul.f32 %v1338, 0.5
    %v1347 = vmul.f32 %v1339, 0.5
    %v1348 = vmul.f32 %v1340, 0.5
    %v1349 = vmul.f32 %v1341, 0.5
    %v1350 = vmul.f32 %v1342, 0.5
    %v1351 = vmul.f32 %v1343, 0.5
    %v1352 = vtanh.pop %v1226
    %v1353 = vtanh.pop %v1229
    %v1354 = vtanh.pop %v1234
    %v1355 = vtanh.pop %v1237
    %v1356 = vtanh.pop %v1242
    %v1357 = vtanh.pop %v1245
    %v1358 = vtanh.pop %v1250
    %v1359 = vtanh.pop %v1253
    %v1360 = vmul.f32 %v1258, 0.5
    %v1361 = vmul.f32 %v1261, 0.5
    %v1362 = vmul.f32 %v1266, 0.5
    %v1363 = vmul.f32 %v1269, 0.5
    %v1364 = vmul.f32 %v1274, 0.5
    %v1365 = vmul.f32 %v1277, 0.5
    %v1366 = vmul.f32 %v1282, 0.5
    %v1367 = vmul.f32 %v1285, 0.5
    %v1368 = vtanh.pop %v1360
    %v1369 = vtanh.pop %v1361
    %v1370 = vtanh.pop %v1362
    %v1371 = vtanh.pop %v1363
    %v1372 = vtanh.pop %v1364
    %v1373 = vtanh.pop %v1365
    %v1374 = vtanh.pop %v1366
    %v1375 = vtanh.pop %v1367
    %v1376 = vadd.f32 %v1368, 1.0
    %v1377 = vadd.f32 %v1369, 1.0
    %v1378 = vadd.f32 %v1370, 1.0
    %v1379 = vadd.f32 %v1371, 1.0
    %v1380 = vadd.f32 %v1372, 1.0
    %v1381 = vadd.f32 %v1373, 1.0
    %v1382 = vadd.f32 %v1374, 1.0
    %v1383 = vadd.f32 %v1375, 1.0
    %v1384 = vmul.f32 %v1376, 0.5
    %v1385 = vmul.f32 %v1377, 0.5
    %v1386 = vmul.f32 %v1378, 0.5
    %v1387 = vmul.f32 %v1379, 0.5
    %v1388 = vmul.f32 %v1380, 0.5
    %v1389 = vmul.f32 %v1381, 0.5
    %v1390 = vmul.f32 %v1382, 0.5
    %v1391 = vmul.f32 %v1383, 0.5
    %v1392 = vmul.f32 %v1344, %v557
    %v1393 = vmul.f32 %v1345, %v558
    %v1394 = vmul.f32 %v1346, %v559
    %v1395 = vmul.f32 %v1347, %v560
    %v1396 = vmul.f32 %v1348, %v561
    %v1397 = vmul.f32 %v1349, %v562
    %v1398 = vmul.f32 %v1350, %v563
    %v1399 = vmul.f32 %v1351, %v564
    %v1400 = vmul.f32 %v1312, %v1352
    %v1401 = vmul.f32 %v1313, %v1353
    %v1402 = vmul.f32 %v1314, %v1354
    %v1403 = vmul.f32 %v1315, %v1355
    %v1404 = vmul.f32 %v1316, %v1356
    %v1405 = vmul.f32 %v1317, %v1357
    %v1406 = vmul.f32 %v1318, %v1358
    %v1407 = vmul.f32 %v1319, %v1359
    %v1408 = vadd.f32 %v1392, %v1400
    %v1409 = vadd.f32 %v1393, %v1401
    %v1410 = vadd.f32 %v1394, %v1402
    %v1411 = vadd.f32 %v1395, %v1403
    %v1412 = vadd.f32 %v1396, %v1404
    %v1413 = vadd.f32 %v1397, %v1405
    %v1414 = vadd.f32 %v1398, %v1406
    %v1415 = vadd.f32 %v1399, %v1407
    %v1416 = vtanh.pop %v1408
    %v1417 = vtanh.pop %v1409
    %v1418 = vtanh.pop %v1410
    %v1419 = vtanh.pop %v1411
    %v1420 = vtanh.pop %v1412
    %v1421 = vtanh.pop %v1413
    %v1422 = vtanh.pop %v1414
    %v1423 = vtanh.pop %v1415
    %v1424 = vmul.f32 %v1384, %v1416
    %v1425 = vmul.f32 %v1385, %v1417
    %v1426 = vmul.f32 %v1386, %v1418
    %v1427 = vmul.f32 %v1387, %v1419
    %v1428 = vmul.f32 %v1388, %v1420
    %v1429 = vmul.f32 %v1389, %v1421
    %v1430 = vmul.f32 %v1390, %v1422
    %v1431 = vmul.f32 %v1391, %v1423
    %v1432 = vpack.c.bf16 %v1425, %v1424
    %v1433 = vpack.c.bf16 %v1427, %v1426
    %v1434 = vpack.c.bf16 %v1429, %v1428
    %v1435 = vpack.c.bf16 %v1431, %v1430
    %v1436 = vpack.c.bf16 %v1113, %v1112
    %v1437 = vpack.c.bf16 %v1115, %v1114
    %v1438 = vpack.c.bf16 %v1117, %v1116
    %v1439 = vpack.c.bf16 %v1119, %v1118
    %1440 = vmatprep.subr.bf16.mxu0 0
    %1441 = vmatpush1.bf16.msra.mxu0 %v1432
    %1442 = vmatprep.subr.bf16.mxu0 0
    %1443 = vmatpush1.bf16.msra.mxu0 %v1433
    %1444 = vmatprep.subr.bf16.mxu0 0
    %1445 = vmatpush1.bf16.msra.mxu0 %v1434
    %1446 = vmatprep.subr.bf16.mxu0 0
    %1447 = vmatpush1.bf16.msra.mxu0 %v1435
    %1448 = vmatprep.subr.bf16.mxu0 0
    %1449 = vmatpush1.bf16.msra.mxu0 %v1436
    %1450 = vmatprep.subr.bf16.mxu0 0
    %1451 = vmatpush1.bf16.msra.mxu0 %v1437
    %1452 = vmatprep.subr.bf16.mxu0 0
    %1453 = vmatpush1.bf16.msra.mxu0 %v1438
    %1454 = vmatprep.subr.bf16.mxu0 0
    %1455 = vmatpush1.bf16.msra.mxu0 %v1439
    %1456 = vmatprep.subr.bf16.mxu0 0
    %1457 = vmatpush1.bf16.msra.mxu0 %v589
    %1458 = vmatprep.subr.bf16.mxu0 0
    %1459 = vmatpush1.bf16.msra.mxu0 0
    %1460 = vmatprep.subr.bf16.mxu0 0
    %1461 = vmatpush1.bf16.msra.mxu0 0
    %1462 = vmatprep.subr.bf16.mxu0 0
    %1463 = vmatpush1.bf16.msra.mxu0 0
    %1464 = vmatprep.subr.bf16.mxu0 0
    %1465 = vmatpush1.bf16.msra.mxu0 0
    %1466 = vmatprep.subr.bf16.mxu0 0
    %1467 = vmatpush1.bf16.msra.mxu0 0
    %1468 = vmatprep.subr.bf16.mxu0 0
    %1469 = vmatpush1.bf16.msra.mxu0 0
    %1470 = vmatprep.subr.bf16.mxu0 0
    %1471 = vmatpush1.bf16.msra.mxu0 0
    %1472 = vmatprep.mubr.bf16.mxu0 %v768
    %1473 = vmatmul.mubr.bf16.gmra.mrb[0].mxu0 %v718
    %v1474 = vpop.f32.mrb[0].mxu0
    %v1475 = vadd.f32 0.0, %v1474
    %v1476 = vpop.f32.mrb[0].mxu0
    %v1477 = vpop.f32.mrb[0].mxu0
    %v1478 = vadd.f32 0.0, %v1477
    %v1479 = vpop.f32.mrb[0].mxu0
    %1480 = vmatprep.mubr.bf16.mxu0 %v771
    %1481 = vmatmul.mubr.bf16.gmra.mrb[0].mxu0 %v720
    %v1482 = vpop.f32.mrb[0].mxu0
    %v1483 = vadd.f32 0.0, %v1482
    %v1484 = vpop.f32.mrb[0].mxu0
    %v1485 = vpop.f32.mrb[0].mxu0
    %v1486 = vadd.f32 0.0, %v1485
    %v1487 = vpop.f32.mrb[0].mxu0
    %1488 = vmatprep.mubr.bf16.mxu0 %v774
    %1489 = vmatmul.mubr.bf16.gmra.mrb[0].mxu0 %v722
    %v1490 = vpop.f32.mrb[0].mxu0
    %v1491 = vadd.f32 0.0, %v1490
    %v1492 = vpop.f32.mrb[0].mxu0
    %v1493 = vpop.f32.mrb[0].mxu0
    %v1494 = vadd.f32 0.0, %v1493
    %v1495 = vpop.f32.mrb[0].mxu0
    %1496 = vmatprep.mubr.bf16.mxu0 %v777
    %1497 = vmatmul.mubr.bf16.gmra.mrb[0].mxu0 %v724
    %v1498 = vpop.f32.mrb[0].mxu0
    %v1499 = vadd.f32 0.0, %v1498
    %v1500 = vpop.f32.mrb[0].mxu0
    %v1501 = vpop.f32.mrb[0].mxu0
    %v1502 = vadd.f32 0.0, %v1501
    %v1503 = vpop.f32.mrb[0].mxu0
    %1504 = vmatprep.mubr.bf16.mxu0 %v780
    %1505 = vmatmul.mubr.bf16.gmra.mrb[0].mxu0 %v726
    %v1506 = vpop.f32.mrb[0].mxu0
    %v1507 = vadd.f32 0.0, %v1506
    %v1508 = vpop.f32.mrb[0].mxu0
    %v1509 = vpop.f32.mrb[0].mxu0
    %v1510 = vadd.f32 0.0, %v1509
    %v1511 = vpop.f32.mrb[0].mxu0
    %1512 = vmatprep.mubr.bf16.mxu0 %v783
    %1513 = vmatmul.mubr.bf16.gmra.mrb[0].mxu0 %v728
    %v1514 = vpop.f32.mrb[0].mxu0
    %v1515 = vadd.f32 0.0, %v1514
    %v1516 = vpop.f32.mrb[0].mxu0
    %v1517 = vpop.f32.mrb[0].mxu0
    %v1518 = vadd.f32 0.0, %v1517
    %v1519 = vpop.f32.mrb[0].mxu0
    %1520 = vmatprep.mubr.bf16.mxu0 %v786
    %1521 = vmatmul.mubr.bf16.gmra.mrb[0].mxu0 %v730
    %v1522 = vpop.f32.mrb[0].mxu0
    %v1523 = vadd.f32 0.0, %v1522
    %v1524 = vpop.f32.mrb[0].mxu0
    %v1525 = vpop.f32.mrb[0].mxu0
    %v1526 = vadd.f32 0.0, %v1525
    %v1527 = vpop.f32.mrb[0].mxu0
    %1528 = vmatprep.mubr.bf16.mxu0 %v789
    %1529 = vmatmul.mubr.bf16.gmra.mrb[0].mxu0 %v732
    %v1530 = vpop.f32.mrb[0].mxu0
    %v1531 = vadd.f32 0.0, %v1530
    %v1532 = vpop.f32.mrb[0].mxu0
    %v1533 = vpop.f32.mrb[0].mxu0
    %v1534 = vadd.f32 0.0, %v1533
    %v1535 = vpop.f32.mrb[0].mxu0
    %1536 = vmatprep.mubr.bf16.mxu0 %v792
    %1537 = vmatmul.mubr.bf16.gmra.mrb[0].mxu0 %v734
    %v1538 = vpop.f32.mrb[0].mxu0
    %v1539 = vadd.f32 0.0, %v1538
    %v1540 = vpop.f32.mrb[0].mxu0
    %v1541 = vpop.f32.mrb[0].mxu0
    %v1542 = vadd.f32 0.0, %v1541
    %v1543 = vpop.f32.mrb[0].mxu0
    %1544 = vmatprep.mubr.bf16.mxu0 %v795
    %1545 = vmatmul.mubr.bf16.gmra.mrb[0].mxu0 %v736
    %v1546 = vpop.f32.mrb[0].mxu0
    %v1547 = vadd.f32 0.0, %v1546
    %v1548 = vpop.f32.mrb[0].mxu0
    %v1549 = vpop.f32.mrb[0].mxu0
    %v1550 = vadd.f32 0.0, %v1549
    %v1551 = vpop.f32.mrb[0].mxu0
    %1552 = vmatprep.mubr.bf16.mxu0 %v798
    %1553 = vmatmul.mubr.bf16.gmra.mrb[0].mxu0 %v738
    %v1554 = vpop.f32.mrb[0].mxu0
    %v1555 = vadd.f32 0.0, %v1554
    %v1556 = vpop.f32.mrb[0].mxu0
    %v1557 = vpop.f32.mrb[0].mxu0
    %v1558 = vadd.f32 0.0, %v1557
    %v1559 = vpop.f32.mrb[0].mxu0
    %1560 = vmatprep.mubr.bf16.mxu0 %v801
    %1561 = vmatmul.mubr.bf16.gmra.mrb[0].mxu0 %v740
    %v1562 = vpop.f32.mrb[0].mxu0
    %v1563 = vadd.f32 0.0, %v1562
    %v1564 = vpop.f32.mrb[0].mxu0
    %v1565 = vpop.f32.mrb[0].mxu0
    %v1566 = vadd.f32 0.0, %v1565
    %v1567 = vpop.f32.mrb[0].mxu0
    %1568 = vmatprep.mubr.bf16.mxu0 %v804
    %1569 = vmatmul.mubr.bf16.gmra.mrb[0].mxu0 %v742
    %v1570 = vpop.f32.mrb[0].mxu0
    %v1571 = vadd.f32 0.0, %v1570
    %v1572 = vpop.f32.mrb[0].mxu0
    %v1573 = vpop.f32.mrb[0].mxu0
    %v1574 = vadd.f32 0.0, %v1573
    %v1575 = vpop.f32.mrb[0].mxu0
    %1576 = vmatprep.mubr.bf16.mxu0 %v807
    %1577 = vmatmul.mubr.bf16.gmra.mrb[0].mxu0 %v744
    %v1578 = vpop.f32.mrb[0].mxu0
    %v1579 = vadd.f32 0.0, %v1578
    %v1580 = vpop.f32.mrb[0].mxu0
    %v1581 = vpop.f32.mrb[0].mxu0
    %v1582 = vadd.f32 0.0, %v1581
    %v1583 = vpop.f32.mrb[0].mxu0
    %1584 = vmatprep.mubr.bf16.mxu0 %v810
    %1585 = vmatmul.mubr.bf16.gmra.mrb[0].mxu0 %v746
    %v1586 = vpop.f32.mrb[0].mxu0
    %v1587 = vadd.f32 0.0, %v1586
    %v1588 = vpop.f32.mrb[0].mxu0
    %v1589 = vpop.f32.mrb[0].mxu0
    %v1590 = vadd.f32 0.0, %v1589
    %v1591 = vpop.f32.mrb[0].mxu0
    %1592 = vmatprep.mubr.bf16.mxu0 %v813
    %1593 = vmatmul.mubr.bf16.gmra.mrb[0].mxu0 %v748
    %v1594 = vpop.f32.mrb[0].mxu0
    %v1595 = vadd.f32 0.0, %v1594
    %v1596 = vpop.f32.mrb[0].mxu0
    %v1597 = vpop.f32.mrb[0].mxu0
    %v1598 = vadd.f32 0.0, %v1597
    %v1599 = vpop.f32.mrb[0].mxu0
    %1600 = vdwg.mxu0
    %v1601 = vmul.f32 %v1475, 0.5
    %v1602 = vmul.f32 %v1478, 0.5
    %v1603 = vmul.f32 %v1483, 0.5
    %v1604 = vmul.f32 %v1486, 0.5
    %v1605 = vmul.f32 %v1491, 0.5
    %v1606 = vmul.f32 %v1494, 0.5
    %v1607 = vmul.f32 %v1499, 0.5
    %v1608 = vmul.f32 %v1502, 0.5
    %v1609 = vtanh.pop %v1601
    %v1610 = vtanh.pop %v1602
    %v1611 = vtanh.pop %v1603
    %v1612 = vtanh.pop %v1604
    %v1613 = vtanh.pop %v1605
    %v1614 = vtanh.pop %v1606
    %v1615 = vtanh.pop %v1607
    %v1616 = vtanh.pop %v1608
    %v1617 = vadd.f32 %v1609, 1.0
    %v1618 = vadd.f32 %v1610, 1.0
    %v1619 = vadd.f32 %v1611, 1.0
    %v1620 = vadd.f32 %v1612, 1.0
    %v1621 = vadd.f32 %v1613, 1.0
    %v1622 = vadd.f32 %v1614, 1.0
    %v1623 = vadd.f32 %v1615, 1.0
    %v1624 = vadd.f32 %v1616, 1.0
    %v1625 = vmul.f32 %v1617, 0.5
    %v1626 = vmul.f32 %v1618, 0.5
    %v1627 = vmul.f32 %v1619, 0.5
    %v1628 = vmul.f32 %v1620, 0.5
    %v1629 = vmul.f32 %v1621, 0.5
    %v1630 = vmul.f32 %v1622, 0.5
    %v1631 = vmul.f32 %v1623, 0.5
    %v1632 = vmul.f32 %v1624, 0.5
    %v1633 = vmul.f32 %v1507, 0.5
    %v1634 = vmul.f32 %v1510, 0.5
    %v1635 = vmul.f32 %v1515, 0.5
    %v1636 = vmul.f32 %v1518, 0.5
    %v1637 = vmul.f32 %v1523, 0.5
    %v1638 = vmul.f32 %v1526, 0.5
    %v1639 = vmul.f32 %v1531, 0.5
    %v1640 = vmul.f32 %v1534, 0.5
    %v1641 = vtanh.pop %v1633
    %v1642 = vtanh.pop %v1634
    %v1643 = vtanh.pop %v1635
    %v1644 = vtanh.pop %v1636
    %v1645 = vtanh.pop %v1637
    %v1646 = vtanh.pop %v1638
    %v1647 = vtanh.pop %v1639
    %v1648 = vtanh.pop %v1640
    %v1649 = vadd.f32 %v1641, 1.0
    %v1650 = vadd.f32 %v1642, 1.0
    %v1651 = vadd.f32 %v1643, 1.0
    %v1652 = vadd.f32 %v1644, 1.0
    %v1653 = vadd.f32 %v1645, 1.0
    %v1654 = vadd.f32 %v1646, 1.0
    %v1655 = vadd.f32 %v1647, 1.0
    %v1656 = vadd.f32 %v1648, 1.0
    %v1657 = vmul.f32 %v1649, 0.5
    %v1658 = vmul.f32 %v1650, 0.5
    %v1659 = vmul.f32 %v1651, 0.5
    %v1660 = vmul.f32 %v1652, 0.5
    %v1661 = vmul.f32 %v1653, 0.5
    %v1662 = vmul.f32 %v1654, 0.5
    %v1663 = vmul.f32 %v1655, 0.5
    %v1664 = vmul.f32 %v1656, 0.5
    %v1665 = vtanh.pop %v1539
    %v1666 = vtanh.pop %v1542
    %v1667 = vtanh.pop %v1547
    %v1668 = vtanh.pop %v1550
    %v1669 = vtanh.pop %v1555
    %v1670 = vtanh.pop %v1558
    %v1671 = vtanh.pop %v1563
    %v1672 = vtanh.pop %v1566
    %v1673 = vmul.f32 %v1571, 0.5
    %v1674 = vmul.f32 %v1574, 0.5
    %v1675 = vmul.f32 %v1579, 0.5
    %v1676 = vmul.f32 %v1582, 0.5
    %v1677 = vmul.f32 %v1587, 0.5
    %v1678 = vmul.f32 %v1590, 0.5
    %v1679 = vmul.f32 %v1595, 0.5
    %v1680 = vmul.f32 %v1598, 0.5
    %v1681 = vtanh.pop %v1673
    %v1682 = vtanh.pop %v1674
    %v1683 = vtanh.pop %v1675
    %v1684 = vtanh.pop %v1676
    %v1685 = vtanh.pop %v1677
    %v1686 = vtanh.pop %v1678
    %v1687 = vtanh.pop %v1679
    %v1688 = vtanh.pop %v1680
    %v1689 = vadd.f32 %v1681, 1.0
    %v1690 = vadd.f32 %v1682, 1.0
    %v1691 = vadd.f32 %v1683, 1.0
    %v1692 = vadd.f32 %v1684, 1.0
    %v1693 = vadd.f32 %v1685, 1.0
    %v1694 = vadd.f32 %v1686, 1.0
    %v1695 = vadd.f32 %v1687, 1.0
    %v1696 = vadd.f32 %v1688, 1.0
    %v1697 = vmul.f32 %v1689, 0.5
    %v1698 = vmul.f32 %v1690, 0.5
    %v1699 = vmul.f32 %v1691, 0.5
    %v1700 = vmul.f32 %v1692, 0.5
    %v1701 = vmul.f32 %v1693, 0.5
    %v1702 = vmul.f32 %v1694, 0.5
    %v1703 = vmul.f32 %v1695, 0.5
    %v1704 = vmul.f32 %v1696, 0.5
    %v1705 = vmul.f32 %v1657, %v1096
    %v1706 = vmul.f32 %v1658, %v1097
    %v1707 = vmul.f32 %v1659, %v1098
    %v1708 = vmul.f32 %v1660, %v1099
    %v1709 = vmul.f32 %v1661, %v1100
    %v1710 = vmul.f32 %v1662, %v1101
    %v1711 = vmul.f32 %v1663, %v1102
    %v1712 = vmul.f32 %v1664, %v1103
    %v1713 = vmul.f32 %v1625, %v1665
    %v1714 = vmul.f32 %v1626, %v1666
    %v1715 = vmul.f32 %v1627, %v1667
    %v1716 = vmul.f32 %v1628, %v1668
    %v1717 = vmul.f32 %v1629, %v1669
    %v1718 = vmul.f32 %v1630, %v1670
    %v1719 = vmul.f32 %v1631, %v1671
    %v1720 = vmul.f32 %v1632, %v1672
    %v1721 = vadd.f32 %v1705, %v1713
    %v1722 = vadd.f32 %v1706, %v1714
    %v1723 = vadd.f32 %v1707, %v1715
    %v1724 = vadd.f32 %v1708, %v1716
    %v1725 = vadd.f32 %v1709, %v1717
    %v1726 = vadd.f32 %v1710, %v1718
    %v1727 = vadd.f32 %v1711, %v1719
    %v1728 = vadd.f32 %v1712, %v1720
    %v1729 = vtanh.pop %v1721
    %v1730 = vtanh.pop %v1722
    %v1731 = vtanh.pop %v1723
    %v1732 = vtanh.pop %v1724
    %v1733 = vtanh.pop %v1725
    %v1734 = vtanh.pop %v1726
    %v1735 = vtanh.pop %v1727
    %v1736 = vtanh.pop %v1728
    %v1737 = vmul.f32 %v1697, %v1729
    %v1738 = vmul.f32 %v1698, %v1730
    %v1739 = vmul.f32 %v1699, %v1731
    %v1740 = vmul.f32 %v1700, %v1732
    %v1741 = vmul.f32 %v1701, %v1733
    %v1742 = vmul.f32 %v1702, %v1734
    %v1743 = vmul.f32 %v1703, %v1735
    %v1744 = vmul.f32 %v1704, %v1736
    %v1745 = vlaneseq
    %v1746 = vshrl.u32 %v1745, 7
    %v1747 = vsub.s32 2, %v1746
    %v1748 = vrot.slane %v103, %v1747
    %v1749 = vsel %vm63, %v1748, %v67
    %v1750 = vsel %vm64, %v1748, %v68
    %v1751 = vpack.c.bf16 %v1750, %v1749
    %1752 = vmatprep.subr.bf16.mxu0 0
    %1753 = vmatpush1.bf16.msra.mxu0 %v1432
    %1754 = vmatprep.subr.bf16.mxu0 0
    %1755 = vmatpush1.bf16.msra.mxu0 %v1433
    %1756 = vmatprep.subr.bf16.mxu0 0
    %1757 = vmatpush1.bf16.msra.mxu0 %v1434
    %1758 = vmatprep.subr.bf16.mxu0 0
    %1759 = vmatpush1.bf16.msra.mxu0 %v1435
    %1760 = vmatprep.subr.bf16.mxu0 0
    %1761 = vmatpush1.bf16.msra.mxu0 %v1751
    %1762 = vmatprep.subr.bf16.mxu0 0
    %1763 = vmatpush1.bf16.msra.mxu0 0
    %1764 = vmatprep.subr.bf16.mxu0 0
    %1765 = vmatpush1.bf16.msra.mxu0 0
    %1766 = vmatprep.subr.bf16.mxu0 0
    %1767 = vmatpush1.bf16.msra.mxu0 0
    %1768 = vmatprep.subr.bf16.mxu0 0
    %1769 = vmatpush1.bf16.msra.mxu0 0
    %1770 = vmatprep.subr.bf16.mxu0 0
    %1771 = vmatpush1.bf16.msra.mxu0 0
    %1772 = vmatprep.subr.bf16.mxu0 0
    %1773 = vmatpush1.bf16.msra.mxu0 0
    %1774 = vmatprep.subr.bf16.mxu0 0
    %1775 = vmatpush1.bf16.msra.mxu0 0
    %1776 = vmatprep.subr.bf16.mxu0 0
    %1777 = vmatpush1.bf16.msra.mxu0 0
    %1778 = vmatprep.subr.bf16.mxu0 0
    %1779 = vmatpush1.bf16.msra.mxu0 0
    %1780 = vmatprep.subr.bf16.mxu0 0
    %1781 = vmatpush1.bf16.msra.mxu0 0
    %1782 = vmatprep.subr.bf16.mxu0 0
    %1783 = vmatpush1.bf16.msra.mxu0 0
    %1784 = vmatprep.mubr.bf16.mxu0 0
    %1785 = vmatmul.mubr.bf16.gmra.mrb[0].mxu0 %v229
    %v1786 = vpop.f32.mrb[0].mxu0
    %v1787 = vadd.f32 0.0, %v1786
    %v1788 = vpop.f32.mrb[0].mxu0
    %v1789 = vpop.f32.mrb[0].mxu0
    %v1790 = vadd.f32 0.0, %v1789
    %v1791 = vpop.f32.mrb[0].mxu0
    %1792 = vmatprep.mubr.bf16.mxu0 0
    %1793 = vmatmul.mubr.bf16.gmra.mrb[0].mxu0 %v232
    %v1794 = vpop.f32.mrb[0].mxu0
    %v1795 = vadd.f32 0.0, %v1794
    %v1796 = vpop.f32.mrb[0].mxu0
    %v1797 = vpop.f32.mrb[0].mxu0
    %v1798 = vadd.f32 0.0, %v1797
    %v1799 = vpop.f32.mrb[0].mxu0
    %1800 = vmatprep.mubr.bf16.mxu0 0
    %1801 = vmatmul.mubr.bf16.gmra.mrb[0].mxu0 %v235
    %v1802 = vpop.f32.mrb[0].mxu0
    %v1803 = vadd.f32 0.0, %v1802
    %v1804 = vpop.f32.mrb[0].mxu0
    %v1805 = vpop.f32.mrb[0].mxu0
    %v1806 = vadd.f32 0.0, %v1805
    %v1807 = vpop.f32.mrb[0].mxu0
    %1808 = vmatprep.mubr.bf16.mxu0 0
    %1809 = vmatmul.mubr.bf16.gmra.mrb[0].mxu0 %v238
    %v1810 = vpop.f32.mrb[0].mxu0
    %v1811 = vadd.f32 0.0, %v1810
    %v1812 = vpop.f32.mrb[0].mxu0
    %v1813 = vpop.f32.mrb[0].mxu0
    %v1814 = vadd.f32 0.0, %v1813
    %v1815 = vpop.f32.mrb[0].mxu0
    %1816 = vmatprep.mubr.bf16.mxu0 0
    %1817 = vmatmul.mubr.bf16.gmra.mrb[0].mxu0 %v241
    %v1818 = vpop.f32.mrb[0].mxu0
    %v1819 = vadd.f32 0.0, %v1818
    %v1820 = vpop.f32.mrb[0].mxu0
    %v1821 = vpop.f32.mrb[0].mxu0
    %v1822 = vadd.f32 0.0, %v1821
    %v1823 = vpop.f32.mrb[0].mxu0
    %1824 = vmatprep.mubr.bf16.mxu0 0
    %1825 = vmatmul.mubr.bf16.gmra.mrb[0].mxu0 %v244
    %v1826 = vpop.f32.mrb[0].mxu0
    %v1827 = vadd.f32 0.0, %v1826
    %v1828 = vpop.f32.mrb[0].mxu0
    %v1829 = vpop.f32.mrb[0].mxu0
    %v1830 = vadd.f32 0.0, %v1829
    %v1831 = vpop.f32.mrb[0].mxu0
    %1832 = vmatprep.mubr.bf16.mxu0 0
    %1833 = vmatmul.mubr.bf16.gmra.mrb[0].mxu0 %v247
    %v1834 = vpop.f32.mrb[0].mxu0
    %v1835 = vadd.f32 0.0, %v1834
    %v1836 = vpop.f32.mrb[0].mxu0
    %v1837 = vpop.f32.mrb[0].mxu0
    %v1838 = vadd.f32 0.0, %v1837
    %v1839 = vpop.f32.mrb[0].mxu0
    %1840 = vmatprep.mubr.bf16.mxu0 0
    %1841 = vmatmul.mubr.bf16.gmra.mrb[0].mxu0 %v250
    %v1842 = vpop.f32.mrb[0].mxu0
    %v1843 = vadd.f32 0.0, %v1842
    %v1844 = vpop.f32.mrb[0].mxu0
    %v1845 = vpop.f32.mrb[0].mxu0
    %v1846 = vadd.f32 0.0, %v1845
    %v1847 = vpop.f32.mrb[0].mxu0
    %1848 = vmatprep.mubr.bf16.mxu0 0
    %1849 = vmatmul.mubr.bf16.gmra.mrb[0].mxu0 %v253
    %v1850 = vpop.f32.mrb[0].mxu0
    %v1851 = vadd.f32 0.0, %v1850
    %v1852 = vpop.f32.mrb[0].mxu0
    %v1853 = vpop.f32.mrb[0].mxu0
    %v1854 = vadd.f32 0.0, %v1853
    %v1855 = vpop.f32.mrb[0].mxu0
    %1856 = vmatprep.mubr.bf16.mxu0 0
    %1857 = vmatmul.mubr.bf16.gmra.mrb[0].mxu0 %v256
    %v1858 = vpop.f32.mrb[0].mxu0
    %v1859 = vadd.f32 0.0, %v1858
    %v1860 = vpop.f32.mrb[0].mxu0
    %v1861 = vpop.f32.mrb[0].mxu0
    %v1862 = vadd.f32 0.0, %v1861
    %v1863 = vpop.f32.mrb[0].mxu0
    %1864 = vmatprep.mubr.bf16.mxu0 0
    %1865 = vmatmul.mubr.bf16.gmra.mrb[0].mxu0 %v259
    %v1866 = vpop.f32.mrb[0].mxu0
    %v1867 = vadd.f32 0.0, %v1866
    %v1868 = vpop.f32.mrb[0].mxu0
    %v1869 = vpop.f32.mrb[0].mxu0
    %v1870 = vadd.f32 0.0, %v1869
    %v1871 = vpop.f32.mrb[0].mxu0
    %1872 = vmatprep.mubr.bf16.mxu0 0
    %1873 = vmatmul.mubr.bf16.gmra.mrb[0].mxu0 %v262
    %v1874 = vpop.f32.mrb[0].mxu0
    %v1875 = vadd.f32 0.0, %v1874
    %v1876 = vpop.f32.mrb[0].mxu0
    %v1877 = vpop.f32.mrb[0].mxu0
    %v1878 = vadd.f32 0.0, %v1877
    %v1879 = vpop.f32.mrb[0].mxu0
    %1880 = vmatprep.mubr.bf16.mxu0 0
    %1881 = vmatmul.mubr.bf16.gmra.mrb[0].mxu0 %v265
    %v1882 = vpop.f32.mrb[0].mxu0
    %v1883 = vadd.f32 0.0, %v1882
    %v1884 = vpop.f32.mrb[0].mxu0
    %v1885 = vpop.f32.mrb[0].mxu0
    %v1886 = vadd.f32 0.0, %v1885
    %v1887 = vpop.f32.mrb[0].mxu0
    %1888 = vmatprep.mubr.bf16.mxu0 0
    %1889 = vmatmul.mubr.bf16.gmra.mrb[0].mxu0 %v268
    %v1890 = vpop.f32.mrb[0].mxu0
    %v1891 = vadd.f32 0.0, %v1890
    %v1892 = vpop.f32.mrb[0].mxu0
    %v1893 = vpop.f32.mrb[0].mxu0
    %v1894 = vadd.f32 0.0, %v1893
    %v1895 = vpop.f32.mrb[0].mxu0
    %1896 = vmatprep.mubr.bf16.mxu0 0
    %1897 = vmatmul.mubr.bf16.gmra.mrb[0].mxu0 %v271
    %v1898 = vpop.f32.mrb[0].mxu0
    %v1899 = vadd.f32 0.0, %v1898
    %v1900 = vpop.f32.mrb[0].mxu0
    %v1901 = vpop.f32.mrb[0].mxu0
    %v1902 = vadd.f32 0.0, %v1901
    %v1903 = vpop.f32.mrb[0].mxu0
    %1904 = vmatprep.mubr.bf16.mxu0 0
    %1905 = vmatmul.mubr.bf16.gmra.mrb[0].mxu0 %v274
    %v1906 = vpop.f32.mrb[0].mxu0
    %v1907 = vadd.f32 0.0, %v1906
    %v1908 = vpop.f32.mrb[0].mxu0
    %v1909 = vpop.f32.mrb[0].mxu0
    %v1910 = vadd.f32 0.0, %v1909
    %v1911 = vpop.f32.mrb[0].mxu0
    %1912 = vdwg.mxu0
    %v1913 = vmul.f32 %v1787, 0.5
    %v1914 = vmul.f32 %v1790, 0.5
    %v1915 = vmul.f32 %v1795, 0.5
    %v1916 = vmul.f32 %v1798, 0.5
    %v1917 = vmul.f32 %v1803, 0.5
    %v1918 = vmul.f32 %v1806, 0.5
    %v1919 = vmul.f32 %v1811, 0.5
    %v1920 = vmul.f32 %v1814, 0.5
    %v1921 = vtanh.pop %v1913
    %v1922 = vtanh.pop %v1914
    %v1923 = vtanh.pop %v1915
    %v1924 = vtanh.pop %v1916
    %v1925 = vtanh.pop %v1917
    %v1926 = vtanh.pop %v1918
    %v1927 = vtanh.pop %v1919
    %v1928 = vtanh.pop %v1920
    %v1929 = vadd.f32 %v1921, 1.0
    %v1930 = vadd.f32 %v1922, 1.0
    %v1931 = vadd.f32 %v1923, 1.0
    %v1932 = vadd.f32 %v1924, 1.0
    %v1933 = vadd.f32 %v1925, 1.0
    %v1934 = vadd.f32 %v1926, 1.0
    %v1935 = vadd.f32 %v1927, 1.0
    %v1936 = vadd.f32 %v1928, 1.0
    %v1937 = vmul.f32 %v1929, 0.5
    %v1938 = vmul.f32 %v1930, 0.5
    %v1939 = vmul.f32 %v1931, 0.5
    %v1940 = vmul.f32 %v1932, 0.5
    %v1941 = vmul.f32 %v1933, 0.5
    %v1942 = vmul.f32 %v1934, 0.5
    %v1943 = vmul.f32 %v1935, 0.5
    %v1944 = vmul.f32 %v1936, 0.5
    %v1945 = vmul.f32 %v1819, 0.5
    %v1946 = vmul.f32 %v1822, 0.5
    %v1947 = vmul.f32 %v1827, 0.5
    %v1948 = vmul.f32 %v1830, 0.5
    %v1949 = vmul.f32 %v1835, 0.5
    %v1950 = vmul.f32 %v1838, 0.5
    %v1951 = vmul.f32 %v1843, 0.5
    %v1952 = vmul.f32 %v1846, 0.5
    %v1953 = vtanh.pop %v1945
    %v1954 = vtanh.pop %v1946
    %v1955 = vtanh.pop %v1947
    %v1956 = vtanh.pop %v1948
    %v1957 = vtanh.pop %v1949
    %v1958 = vtanh.pop %v1950
    %v1959 = vtanh.pop %v1951
    %v1960 = vtanh.pop %v1952
    %v1961 = vadd.f32 %v1953, 1.0
    %v1962 = vadd.f32 %v1954, 1.0
    %v1963 = vadd.f32 %v1955, 1.0
    %v1964 = vadd.f32 %v1956, 1.0
    %v1965 = vadd.f32 %v1957, 1.0
    %v1966 = vadd.f32 %v1958, 1.0
    %v1967 = vadd.f32 %v1959, 1.0
    %v1968 = vadd.f32 %v1960, 1.0
    %v1969 = vmul.f32 %v1961, 0.5
    %v1970 = vmul.f32 %v1962, 0.5
    %v1971 = vmul.f32 %v1963, 0.5
    %v1972 = vmul.f32 %v1964, 0.5
    %v1973 = vmul.f32 %v1965, 0.5
    %v1974 = vmul.f32 %v1966, 0.5
    %v1975 = vmul.f32 %v1967, 0.5
    %v1976 = vmul.f32 %v1968, 0.5
    %v1977 = vtanh.pop %v1851
    %v1978 = vtanh.pop %v1854
    %v1979 = vtanh.pop %v1859
    %v1980 = vtanh.pop %v1862
    %v1981 = vtanh.pop %v1867
    %v1982 = vtanh.pop %v1870
    %v1983 = vtanh.pop %v1875
    %v1984 = vtanh.pop %v1878
    %v1985 = vmul.f32 %v1883, 0.5
    %v1986 = vmul.f32 %v1886, 0.5
    %v1987 = vmul.f32 %v1891, 0.5
    %v1988 = vmul.f32 %v1894, 0.5
    %v1989 = vmul.f32 %v1899, 0.5
    %v1990 = vmul.f32 %v1902, 0.5
    %v1991 = vmul.f32 %v1907, 0.5
    %v1992 = vmul.f32 %v1910, 0.5
    %v1993 = vtanh.pop %v1985
    %v1994 = vtanh.pop %v1986
    %v1995 = vtanh.pop %v1987
    %v1996 = vtanh.pop %v1988
    %v1997 = vtanh.pop %v1989
    %v1998 = vtanh.pop %v1990
    %v1999 = vtanh.pop %v1991
    %v2000 = vtanh.pop %v1992
    %v2001 = vadd.f32 %v1993, 1.0
    %v2002 = vadd.f32 %v1994, 1.0
    %v2003 = vadd.f32 %v1995, 1.0
    %v2004 = vadd.f32 %v1996, 1.0
    %v2005 = vadd.f32 %v1997, 1.0
    %v2006 = vadd.f32 %v1998, 1.0
    %v2007 = vadd.f32 %v1999, 1.0
    %v2008 = vadd.f32 %v2000, 1.0
    %v2009 = vmul.f32 %v2001, 0.5
    %v2010 = vmul.f32 %v2002, 0.5
    %v2011 = vmul.f32 %v2003, 0.5
    %v2012 = vmul.f32 %v2004, 0.5
    %v2013 = vmul.f32 %v2005, 0.5
    %v2014 = vmul.f32 %v2006, 0.5
    %v2015 = vmul.f32 %v2007, 0.5
    %v2016 = vmul.f32 %v2008, 0.5
    %v2017 = vmul.f32 %v1969, %v1408
    %v2018 = vmul.f32 %v1970, %v1409
    %v2019 = vmul.f32 %v1971, %v1410
    %v2020 = vmul.f32 %v1972, %v1411
    %v2021 = vmul.f32 %v1973, %v1412
    %v2022 = vmul.f32 %v1974, %v1413
    %v2023 = vmul.f32 %v1975, %v1414
    %v2024 = vmul.f32 %v1976, %v1415
    %v2025 = vmul.f32 %v1937, %v1977
    %v2026 = vmul.f32 %v1938, %v1978
    %v2027 = vmul.f32 %v1939, %v1979
    %v2028 = vmul.f32 %v1940, %v1980
    %v2029 = vmul.f32 %v1941, %v1981
    %v2030 = vmul.f32 %v1942, %v1982
    %v2031 = vmul.f32 %v1943, %v1983
    %v2032 = vmul.f32 %v1944, %v1984
    %v2033 = vadd.f32 %v2017, %v2025
    %v2034 = vadd.f32 %v2018, %v2026
    %v2035 = vadd.f32 %v2019, %v2027
    %v2036 = vadd.f32 %v2020, %v2028
    %v2037 = vadd.f32 %v2021, %v2029
    %v2038 = vadd.f32 %v2022, %v2030
    %v2039 = vadd.f32 %v2023, %v2031
    %v2040 = vadd.f32 %v2024, %v2032
    %v2041 = vtanh.pop %v2033
    %v2042 = vtanh.pop %v2034
    %v2043 = vtanh.pop %v2035
    %v2044 = vtanh.pop %v2036
    %v2045 = vtanh.pop %v2037
    %v2046 = vtanh.pop %v2038
    %v2047 = vtanh.pop %v2039
    %v2048 = vtanh.pop %v2040
    %v2049 = vmul.f32 %v2009, %v2041
    %v2050 = vmul.f32 %v2010, %v2042
    %v2051 = vmul.f32 %v2011, %v2043
    %v2052 = vmul.f32 %v2012, %v2044
    %v2053 = vmul.f32 %v2013, %v2045
    %v2054 = vmul.f32 %v2014, %v2046
    %v2055 = vmul.f32 %v2015, %v2047
    %v2056 = vmul.f32 %v2016, %v2048
    %v2057 = vpack.c.bf16 %v2050, %v2049
    %v2058 = vpack.c.bf16 %v2052, %v2051
    %v2059 = vpack.c.bf16 %v2054, %v2053
    %v2060 = vpack.c.bf16 %v2056, %v2055
    %v2061 = vpack.c.bf16 %v1738, %v1737
    %v2062 = vpack.c.bf16 %v1740, %v1739
    %v2063 = vpack.c.bf16 %v1742, %v1741
    %v2064 = vpack.c.bf16 %v1744, %v1743
    %2065 = vmatprep.subr.bf16.mxu0 0
    %2066 = vmatpush1.bf16.msra.mxu0 %v2057
    %2067 = vmatprep.subr.bf16.mxu0 0
    %2068 = vmatpush1.bf16.msra.mxu0 %v2058
    %2069 = vmatprep.subr.bf16.mxu0 0
    %2070 = vmatpush1.bf16.msra.mxu0 %v2059
    %2071 = vmatprep.subr.bf16.mxu0 0
    %2072 = vmatpush1.bf16.msra.mxu0 %v2060
    %2073 = vmatprep.subr.bf16.mxu0 0
    %2074 = vmatpush1.bf16.msra.mxu0 %v2061
    %2075 = vmatprep.subr.bf16.mxu0 0
    %2076 = vmatpush1.bf16.msra.mxu0 %v2062
    %2077 = vmatprep.subr.bf16.mxu0 0
    %2078 = vmatpush1.bf16.msra.mxu0 %v2063
    %2079 = vmatprep.subr.bf16.mxu0 0
    %2080 = vmatpush1.bf16.msra.mxu0 %v2064
    %2081 = vmatprep.subr.bf16.mxu0 0
    %2082 = vmatpush1.bf16.msra.mxu0 %v589
    %2083 = vmatprep.subr.bf16.mxu0 0
    %2084 = vmatpush1.bf16.msra.mxu0 0
    %2085 = vmatprep.subr.bf16.mxu0 0
    %2086 = vmatpush1.bf16.msra.mxu0 0
    %2087 = vmatprep.subr.bf16.mxu0 0
    %2088 = vmatpush1.bf16.msra.mxu0 0
    %2089 = vmatprep.subr.bf16.mxu0 0
    %2090 = vmatpush1.bf16.msra.mxu0 0
    %2091 = vmatprep.subr.bf16.mxu0 0
    %2092 = vmatpush1.bf16.msra.mxu0 0
    %2093 = vmatprep.subr.bf16.mxu0 0
    %2094 = vmatpush1.bf16.msra.mxu0 0
    %2095 = vmatprep.subr.bf16.mxu0 0
    %2096 = vmatpush1.bf16.msra.mxu0 0
    %2097 = vmatprep.mubr.bf16.mxu0 %v768
    %2098 = vmatmul.mubr.bf16.gmra.mrb[0].mxu0 %v718
    %v2099 = vpop.f32.mrb[0].mxu0
    %v2100 = vadd.f32 0.0, %v2099
    %v2101 = vpop.f32.mrb[0].mxu0
    %v2102 = vpop.f32.mrb[0].mxu0
    %v2103 = vadd.f32 0.0, %v2102
    %v2104 = vpop.f32.mrb[0].mxu0
    %2105 = vmatprep.mubr.bf16.mxu0 %v771
    %2106 = vmatmul.mubr.bf16.gmra.mrb[0].mxu0 %v720
    %v2107 = vpop.f32.mrb[0].mxu0
    %v2108 = vadd.f32 0.0, %v2107
    %v2109 = vpop.f32.mrb[0].mxu0
    %v2110 = vpop.f32.mrb[0].mxu0
    %v2111 = vadd.f32 0.0, %v2110
    %v2112 = vpop.f32.mrb[0].mxu0
    %2113 = vmatprep.mubr.bf16.mxu0 %v774
    %2114 = vmatmul.mubr.bf16.gmra.mrb[0].mxu0 %v722
    %v2115 = vpop.f32.mrb[0].mxu0
    %v2116 = vadd.f32 0.0, %v2115
    %v2117 = vpop.f32.mrb[0].mxu0
    %v2118 = vpop.f32.mrb[0].mxu0
    %v2119 = vadd.f32 0.0, %v2118
    %v2120 = vpop.f32.mrb[0].mxu0
    %2121 = vmatprep.mubr.bf16.mxu0 %v777
    %2122 = vmatmul.mubr.bf16.gmra.mrb[0].mxu0 %v724
    %v2123 = vpop.f32.mrb[0].mxu0
    %v2124 = vadd.f32 0.0, %v2123
    %v2125 = vpop.f32.mrb[0].mxu0
    %v2126 = vpop.f32.mrb[0].mxu0
    %v2127 = vadd.f32 0.0, %v2126
    %v2128 = vpop.f32.mrb[0].mxu0
    %2129 = vmatprep.mubr.bf16.mxu0 %v780
    %2130 = vmatmul.mubr.bf16.gmra.mrb[0].mxu0 %v726
    %v2131 = vpop.f32.mrb[0].mxu0
    %v2132 = vadd.f32 0.0, %v2131
    %v2133 = vpop.f32.mrb[0].mxu0
    %v2134 = vpop.f32.mrb[0].mxu0
    %v2135 = vadd.f32 0.0, %v2134
    %v2136 = vpop.f32.mrb[0].mxu0
    %2137 = vmatprep.mubr.bf16.mxu0 %v783
    %2138 = vmatmul.mubr.bf16.gmra.mrb[0].mxu0 %v728
    %v2139 = vpop.f32.mrb[0].mxu0
    %v2140 = vadd.f32 0.0, %v2139
    %v2141 = vpop.f32.mrb[0].mxu0
    %v2142 = vpop.f32.mrb[0].mxu0
    %v2143 = vadd.f32 0.0, %v2142
    %v2144 = vpop.f32.mrb[0].mxu0
    %2145 = vmatprep.mubr.bf16.mxu0 %v786
    %2146 = vmatmul.mubr.bf16.gmra.mrb[0].mxu0 %v730
    %v2147 = vpop.f32.mrb[0].mxu0
    %v2148 = vadd.f32 0.0, %v2147
    %v2149 = vpop.f32.mrb[0].mxu0
    %v2150 = vpop.f32.mrb[0].mxu0
    %v2151 = vadd.f32 0.0, %v2150
    %v2152 = vpop.f32.mrb[0].mxu0
    %2153 = vmatprep.mubr.bf16.mxu0 %v789
    %2154 = vmatmul.mubr.bf16.gmra.mrb[0].mxu0 %v732
    %v2155 = vpop.f32.mrb[0].mxu0
    %v2156 = vadd.f32 0.0, %v2155
    %v2157 = vpop.f32.mrb[0].mxu0
    %v2158 = vpop.f32.mrb[0].mxu0
    %v2159 = vadd.f32 0.0, %v2158
    %v2160 = vpop.f32.mrb[0].mxu0
    %2161 = vmatprep.mubr.bf16.mxu0 %v792
    %2162 = vmatmul.mubr.bf16.gmra.mrb[0].mxu0 %v734
    %v2163 = vpop.f32.mrb[0].mxu0
    %v2164 = vadd.f32 0.0, %v2163
    %v2165 = vpop.f32.mrb[0].mxu0
    %v2166 = vpop.f32.mrb[0].mxu0
    %v2167 = vadd.f32 0.0, %v2166
    %v2168 = vpop.f32.mrb[0].mxu0
    %2169 = vmatprep.mubr.bf16.mxu0 %v795
    %2170 = vmatmul.mubr.bf16.gmra.mrb[0].mxu0 %v736
    %v2171 = vpop.f32.mrb[0].mxu0
    %v2172 = vadd.f32 0.0, %v2171
    %v2173 = vpop.f32.mrb[0].mxu0
    %v2174 = vpop.f32.mrb[0].mxu0
    %v2175 = vadd.f32 0.0, %v2174
    %v2176 = vpop.f32.mrb[0].mxu0
    %2177 = vmatprep.mubr.bf16.mxu0 %v798
    %2178 = vmatmul.mubr.bf16.gmra.mrb[0].mxu0 %v738
    %v2179 = vpop.f32.mrb[0].mxu0
    %v2180 = vadd.f32 0.0, %v2179
    %v2181 = vpop.f32.mrb[0].mxu0
    %v2182 = vpop.f32.mrb[0].mxu0
    %v2183 = vadd.f32 0.0, %v2182
    %v2184 = vpop.f32.mrb[0].mxu0
    %2185 = vmatprep.mubr.bf16.mxu0 %v801
    %2186 = vmatmul.mubr.bf16.gmra.mrb[0].mxu0 %v740
    %v2187 = vpop.f32.mrb[0].mxu0
    %v2188 = vadd.f32 0.0, %v2187
    %v2189 = vpop.f32.mrb[0].mxu0
    %v2190 = vpop.f32.mrb[0].mxu0
    %v2191 = vadd.f32 0.0, %v2190
    %v2192 = vpop.f32.mrb[0].mxu0
    %2193 = vmatprep.mubr.bf16.mxu0 %v804
    %2194 = vmatmul.mubr.bf16.gmra.mrb[0].mxu0 %v742
    %v2195 = vpop.f32.mrb[0].mxu0
    %v2196 = vadd.f32 0.0, %v2195
    %v2197 = vpop.f32.mrb[0].mxu0
    %v2198 = vpop.f32.mrb[0].mxu0
    %v2199 = vadd.f32 0.0, %v2198
    %v2200 = vpop.f32.mrb[0].mxu0
    %2201 = vmatprep.mubr.bf16.mxu0 %v807
    %2202 = vmatmul.mubr.bf16.gmra.mrb[0].mxu0 %v744
    %v2203 = vpop.f32.mrb[0].mxu0
    %v2204 = vadd.f32 0.0, %v2203
    %v2205 = vpop.f32.mrb[0].mxu0
    %v2206 = vpop.f32.mrb[0].mxu0
    %v2207 = vadd.f32 0.0, %v2206
    %v2208 = vpop.f32.mrb[0].mxu0
    %2209 = vmatprep.mubr.bf16.mxu0 %v810
    %2210 = vmatmul.mubr.bf16.gmra.mrb[0].mxu0 %v746
    %v2211 = vpop.f32.mrb[0].mxu0
    %v2212 = vadd.f32 0.0, %v2211
    %v2213 = vpop.f32.mrb[0].mxu0
    %v2214 = vpop.f32.mrb[0].mxu0
    %v2215 = vadd.f32 0.0, %v2214
    %v2216 = vpop.f32.mrb[0].mxu0
    %2217 = vmatprep.mubr.bf16.mxu0 %v813
    %2218 = vmatmul.mubr.bf16.gmra.mrb[0].mxu0 %v748
    %v2219 = vpop.f32.mrb[0].mxu0
    %v2220 = vadd.f32 0.0, %v2219
    %v2221 = vpop.f32.mrb[0].mxu0
    %v2222 = vpop.f32.mrb[0].mxu0
    %v2223 = vadd.f32 0.0, %v2222
    %v2224 = vpop.f32.mrb[0].mxu0
    %2225 = vdwg.mxu0
    %v2226 = vmul.f32 %v2100, 0.5
    %v2227 = vmul.f32 %v2103, 0.5
    %v2228 = vmul.f32 %v2108, 0.5
    %v2229 = vmul.f32 %v2111, 0.5
    %v2230 = vmul.f32 %v2116, 0.5
    %v2231 = vmul.f32 %v2119, 0.5
    %v2232 = vmul.f32 %v2124, 0.5
    %v2233 = vmul.f32 %v2127, 0.5
    %v2234 = vtanh.pop %v2226
    %v2235 = vtanh.pop %v2227
    %v2236 = vtanh.pop %v2228
    %v2237 = vtanh.pop %v2229
    %v2238 = vtanh.pop %v2230
    %v2239 = vtanh.pop %v2231
    %v2240 = vtanh.pop %v2232
    %v2241 = vtanh.pop %v2233
    %v2242 = vadd.f32 %v2234, 1.0
    %v2243 = vadd.f32 %v2235, 1.0
    %v2244 = vadd.f32 %v2236, 1.0
    %v2245 = vadd.f32 %v2237, 1.0
    %v2246 = vadd.f32 %v2238, 1.0
    %v2247 = vadd.f32 %v2239, 1.0
    %v2248 = vadd.f32 %v2240, 1.0
    %v2249 = vadd.f32 %v2241, 1.0
    %v2250 = vmul.f32 %v2242, 0.5
    %v2251 = vmul.f32 %v2243, 0.5
    %v2252 = vmul.f32 %v2244, 0.5
    %v2253 = vmul.f32 %v2245, 0.5
    %v2254 = vmul.f32 %v2246, 0.5
    %v2255 = vmul.f32 %v2247, 0.5
    %v2256 = vmul.f32 %v2248, 0.5
    %v2257 = vmul.f32 %v2249, 0.5
    %v2258 = vmul.f32 %v2132, 0.5
    %v2259 = vmul.f32 %v2135, 0.5
    %v2260 = vmul.f32 %v2140, 0.5
    %v2261 = vmul.f32 %v2143, 0.5
    %v2262 = vmul.f32 %v2148, 0.5
    %v2263 = vmul.f32 %v2151, 0.5
    %v2264 = vmul.f32 %v2156, 0.5
    %v2265 = vmul.f32 %v2159, 0.5
    %v2266 = vtanh.pop %v2258
    %v2267 = vtanh.pop %v2259
    %v2268 = vtanh.pop %v2260
    %v2269 = vtanh.pop %v2261
    %v2270 = vtanh.pop %v2262
    %v2271 = vtanh.pop %v2263
    %v2272 = vtanh.pop %v2264
    %v2273 = vtanh.pop %v2265
    %v2274 = vadd.f32 %v2266, 1.0
    %v2275 = vadd.f32 %v2267, 1.0
    %v2276 = vadd.f32 %v2268, 1.0
    %v2277 = vadd.f32 %v2269, 1.0
    %v2278 = vadd.f32 %v2270, 1.0
    %v2279 = vadd.f32 %v2271, 1.0
    %v2280 = vadd.f32 %v2272, 1.0
    %v2281 = vadd.f32 %v2273, 1.0
    %v2282 = vmul.f32 %v2274, 0.5
    %v2283 = vmul.f32 %v2275, 0.5
    %v2284 = vmul.f32 %v2276, 0.5
    %v2285 = vmul.f32 %v2277, 0.5
    %v2286 = vmul.f32 %v2278, 0.5
    %v2287 = vmul.f32 %v2279, 0.5
    %v2288 = vmul.f32 %v2280, 0.5
    %v2289 = vmul.f32 %v2281, 0.5
    %v2290 = vtanh.pop %v2164
    %v2291 = vtanh.pop %v2167
    %v2292 = vtanh.pop %v2172
    %v2293 = vtanh.pop %v2175
    %v2294 = vtanh.pop %v2180
    %v2295 = vtanh.pop %v2183
    %v2296 = vtanh.pop %v2188
    %v2297 = vtanh.pop %v2191
    %v2298 = vmul.f32 %v2196, 0.5
    %v2299 = vmul.f32 %v2199, 0.5
    %v2300 = vmul.f32 %v2204, 0.5
    %v2301 = vmul.f32 %v2207, 0.5
    %v2302 = vmul.f32 %v2212, 0.5
    %v2303 = vmul.f32 %v2215, 0.5
    %v2304 = vmul.f32 %v2220, 0.5
    %v2305 = vmul.f32 %v2223, 0.5
    %v2306 = vtanh.pop %v2298
    %v2307 = vtanh.pop %v2299
    %v2308 = vtanh.pop %v2300
    %v2309 = vtanh.pop %v2301
    %v2310 = vtanh.pop %v2302
    %v2311 = vtanh.pop %v2303
    %v2312 = vtanh.pop %v2304
    %v2313 = vtanh.pop %v2305
    %v2314 = vadd.f32 %v2306, 1.0
    %v2315 = vadd.f32 %v2307, 1.0
    %v2316 = vadd.f32 %v2308, 1.0
    %v2317 = vadd.f32 %v2309, 1.0
    %v2318 = vadd.f32 %v2310, 1.0
    %v2319 = vadd.f32 %v2311, 1.0
    %v2320 = vadd.f32 %v2312, 1.0
    %v2321 = vadd.f32 %v2313, 1.0
    %v2322 = vmul.f32 %v2314, 0.5
    %v2323 = vmul.f32 %v2315, 0.5
    %v2324 = vmul.f32 %v2316, 0.5
    %v2325 = vmul.f32 %v2317, 0.5
    %v2326 = vmul.f32 %v2318, 0.5
    %v2327 = vmul.f32 %v2319, 0.5
    %v2328 = vmul.f32 %v2320, 0.5
    %v2329 = vmul.f32 %v2321, 0.5
    %v2330 = vmul.f32 %v2282, %v1721
    %v2331 = vmul.f32 %v2283, %v1722
    %v2332 = vmul.f32 %v2284, %v1723
    %v2333 = vmul.f32 %v2285, %v1724
    %v2334 = vmul.f32 %v2286, %v1725
    %v2335 = vmul.f32 %v2287, %v1726
    %v2336 = vmul.f32 %v2288, %v1727
    %v2337 = vmul.f32 %v2289, %v1728
    %v2338 = vmul.f32 %v2250, %v2290
    %v2339 = vmul.f32 %v2251, %v2291
    %v2340 = vmul.f32 %v2252, %v2292
    %v2341 = vmul.f32 %v2253, %v2293
    %v2342 = vmul.f32 %v2254, %v2294
    %v2343 = vmul.f32 %v2255, %v2295
    %v2344 = vmul.f32 %v2256, %v2296
    %v2345 = vmul.f32 %v2257, %v2297
    %v2346 = vadd.f32 %v2330, %v2338
    %v2347 = vadd.f32 %v2331, %v2339
    %v2348 = vadd.f32 %v2332, %v2340
    %v2349 = vadd.f32 %v2333, %v2341
    %v2350 = vadd.f32 %v2334, %v2342
    %v2351 = vadd.f32 %v2335, %v2343
    %v2352 = vadd.f32 %v2336, %v2344
    %v2353 = vadd.f32 %v2337, %v2345
    %v2354 = vtanh.pop %v2346
    %v2355 = vtanh.pop %v2347
    %v2356 = vtanh.pop %v2348
    %v2357 = vtanh.pop %v2349
    %v2358 = vtanh.pop %v2350
    %v2359 = vtanh.pop %v2351
    %v2360 = vtanh.pop %v2352
    %v2361 = vtanh.pop %v2353
    %v2362 = vmul.f32 %v2322, %v2354
    %v2363 = vmul.f32 %v2323, %v2355
    %v2364 = vmul.f32 %v2324, %v2356
    %v2365 = vmul.f32 %v2325, %v2357
    %v2366 = vmul.f32 %v2326, %v2358
    %v2367 = vmul.f32 %v2327, %v2359
    %v2368 = vmul.f32 %v2328, %v2360
    %v2369 = vmul.f32 %v2329, %v2361
    %v2370 = vlaneseq
    %v2371 = vshrl.u32 %v2370, 7
    %v2372 = vsub.s32 3, %v2371
    %v2373 = vrot.slane %v103, %v2372
    %v2374 = vsel %vm63, %v2373, %v67
    %v2375 = vsel %vm64, %v2373, %v68
    %v2376 = vpack.c.bf16 %v2375, %v2374
    %2377 = vmatprep.subr.bf16.mxu0 0
    %2378 = vmatpush1.bf16.msra.mxu0 %v2057
    %2379 = vmatprep.subr.bf16.mxu0 0
    %2380 = vmatpush1.bf16.msra.mxu0 %v2058
    %2381 = vmatprep.subr.bf16.mxu0 0
    %2382 = vmatpush1.bf16.msra.mxu0 %v2059
    %2383 = vmatprep.subr.bf16.mxu0 0
    %2384 = vmatpush1.bf16.msra.mxu0 %v2060
    %2385 = vmatprep.subr.bf16.mxu0 0
    %2386 = vmatpush1.bf16.msra.mxu0 %v2376
    %2387 = vmatprep.subr.bf16.mxu0 0
    %2388 = vmatpush1.bf16.msra.mxu0 0
    %2389 = vmatprep.subr.bf16.mxu0 0
    %2390 = vmatpush1.bf16.msra.mxu0 0
    %2391 = vmatprep.subr.bf16.mxu0 0
    %2392 = vmatpush1.bf16.msra.mxu0 0
    %2393 = vmatprep.subr.bf16.mxu0 0
    %2394 = vmatpush1.bf16.msra.mxu0 0
    %2395 = vmatprep.subr.bf16.mxu0 0
    %2396 = vmatpush1.bf16.msra.mxu0 0
    %2397 = vmatprep.subr.bf16.mxu0 0
    %2398 = vmatpush1.bf16.msra.mxu0 0
    %2399 = vmatprep.subr.bf16.mxu0 0
    %2400 = vmatpush1.bf16.msra.mxu0 0
    %2401 = vmatprep.subr.bf16.mxu0 0
    %2402 = vmatpush1.bf16.msra.mxu0 0
    %2403 = vmatprep.subr.bf16.mxu0 0
    %2404 = vmatpush1.bf16.msra.mxu0 0
    %2405 = vmatprep.subr.bf16.mxu0 0
    %2406 = vmatpush1.bf16.msra.mxu0 0
    %2407 = vmatprep.subr.bf16.mxu0 0
    %2408 = vmatpush1.bf16.msra.mxu0 0
    %2409 = vmatprep.mubr.bf16.mxu0 0
    %2410 = vmatmul.mubr.bf16.gmra.mrb[0].mxu0 %v229
    %v2411 = vpop.f32.mrb[0].mxu0
    %v2412 = vadd.f32 0.0, %v2411
    %v2413 = vpop.f32.mrb[0].mxu0
    %v2414 = vpop.f32.mrb[0].mxu0
    %v2415 = vadd.f32 0.0, %v2414
    %v2416 = vpop.f32.mrb[0].mxu0
    %2417 = vmatprep.mubr.bf16.mxu0 0
    %2418 = vmatmul.mubr.bf16.gmra.mrb[0].mxu0 %v232
    %v2419 = vpop.f32.mrb[0].mxu0
    %v2420 = vadd.f32 0.0, %v2419
    %v2421 = vpop.f32.mrb[0].mxu0
    %v2422 = vpop.f32.mrb[0].mxu0
    %v2423 = vadd.f32 0.0, %v2422
    %v2424 = vpop.f32.mrb[0].mxu0
    %2425 = vmatprep.mubr.bf16.mxu0 0
    %2426 = vmatmul.mubr.bf16.gmra.mrb[0].mxu0 %v235
    %v2427 = vpop.f32.mrb[0].mxu0
    %v2428 = vadd.f32 0.0, %v2427
    %v2429 = vpop.f32.mrb[0].mxu0
    %v2430 = vpop.f32.mrb[0].mxu0
    %v2431 = vadd.f32 0.0, %v2430
    %v2432 = vpop.f32.mrb[0].mxu0
    %2433 = vmatprep.mubr.bf16.mxu0 0
    %2434 = vmatmul.mubr.bf16.gmra.mrb[0].mxu0 %v238
    %v2435 = vpop.f32.mrb[0].mxu0
    %v2436 = vadd.f32 0.0, %v2435
    %v2437 = vpop.f32.mrb[0].mxu0
    %v2438 = vpop.f32.mrb[0].mxu0
    %v2439 = vadd.f32 0.0, %v2438
    %v2440 = vpop.f32.mrb[0].mxu0
    %2441 = vmatprep.mubr.bf16.mxu0 0
    %2442 = vmatmul.mubr.bf16.gmra.mrb[0].mxu0 %v241
    %v2443 = vpop.f32.mrb[0].mxu0
    %v2444 = vadd.f32 0.0, %v2443
    %v2445 = vpop.f32.mrb[0].mxu0
    %v2446 = vpop.f32.mrb[0].mxu0
    %v2447 = vadd.f32 0.0, %v2446
    %v2448 = vpop.f32.mrb[0].mxu0
    %2449 = vmatprep.mubr.bf16.mxu0 0
    %2450 = vmatmul.mubr.bf16.gmra.mrb[0].mxu0 %v244
    %v2451 = vpop.f32.mrb[0].mxu0
    %v2452 = vadd.f32 0.0, %v2451
    %v2453 = vpop.f32.mrb[0].mxu0
    %v2454 = vpop.f32.mrb[0].mxu0
    %v2455 = vadd.f32 0.0, %v2454
    %v2456 = vpop.f32.mrb[0].mxu0
    %2457 = vmatprep.mubr.bf16.mxu0 0
    %2458 = vmatmul.mubr.bf16.gmra.mrb[0].mxu0 %v247
    %v2459 = vpop.f32.mrb[0].mxu0
    %v2460 = vadd.f32 0.0, %v2459
    %v2461 = vpop.f32.mrb[0].mxu0
    %v2462 = vpop.f32.mrb[0].mxu0
    %v2463 = vadd.f32 0.0, %v2462
    %v2464 = vpop.f32.mrb[0].mxu0
    %2465 = vmatprep.mubr.bf16.mxu0 0
    %2466 = vmatmul.mubr.bf16.gmra.mrb[0].mxu0 %v250
    %v2467 = vpop.f32.mrb[0].mxu0
    %v2468 = vadd.f32 0.0, %v2467
    %v2469 = vpop.f32.mrb[0].mxu0
    %v2470 = vpop.f32.mrb[0].mxu0
    %v2471 = vadd.f32 0.0, %v2470
    %v2472 = vpop.f32.mrb[0].mxu0
    %2473 = vmatprep.mubr.bf16.mxu0 0
    %2474 = vmatmul.mubr.bf16.gmra.mrb[0].mxu0 %v253
    %v2475 = vpop.f32.mrb[0].mxu0
    %v2476 = vadd.f32 0.0, %v2475
    %v2477 = vpop.f32.mrb[0].mxu0
    %v2478 = vpop.f32.mrb[0].mxu0
    %v2479 = vadd.f32 0.0, %v2478
    %v2480 = vpop.f32.mrb[0].mxu0
    %2481 = vmatprep.mubr.bf16.mxu0 0
    %2482 = vmatmul.mubr.bf16.gmra.mrb[0].mxu0 %v256
    %v2483 = vpop.f32.mrb[0].mxu0
    %v2484 = vadd.f32 0.0, %v2483
    %v2485 = vpop.f32.mrb[0].mxu0
    %v2486 = vpop.f32.mrb[0].mxu0
    %v2487 = vadd.f32 0.0, %v2486
    %v2488 = vpop.f32.mrb[0].mxu0
    %2489 = vmatprep.mubr.bf16.mxu0 0
    %2490 = vmatmul.mubr.bf16.gmra.mrb[0].mxu0 %v259
    %v2491 = vpop.f32.mrb[0].mxu0
    %v2492 = vadd.f32 0.0, %v2491
    %v2493 = vpop.f32.mrb[0].mxu0
    %v2494 = vpop.f32.mrb[0].mxu0
    %v2495 = vadd.f32 0.0, %v2494
    %v2496 = vpop.f32.mrb[0].mxu0
    %2497 = vmatprep.mubr.bf16.mxu0 0
    %2498 = vmatmul.mubr.bf16.gmra.mrb[0].mxu0 %v262
    %v2499 = vpop.f32.mrb[0].mxu0
    %v2500 = vadd.f32 0.0, %v2499
    %v2501 = vpop.f32.mrb[0].mxu0
    %v2502 = vpop.f32.mrb[0].mxu0
    %v2503 = vadd.f32 0.0, %v2502
    %v2504 = vpop.f32.mrb[0].mxu0
    %2505 = vmatprep.mubr.bf16.mxu0 0
    %2506 = vmatmul.mubr.bf16.gmra.mrb[0].mxu0 %v265
    %v2507 = vpop.f32.mrb[0].mxu0
    %v2508 = vadd.f32 0.0, %v2507
    %v2509 = vpop.f32.mrb[0].mxu0
    %v2510 = vpop.f32.mrb[0].mxu0
    %v2511 = vadd.f32 0.0, %v2510
    %v2512 = vpop.f32.mrb[0].mxu0
    %2513 = vmatprep.mubr.bf16.mxu0 0
    %2514 = vmatmul.mubr.bf16.gmra.mrb[0].mxu0 %v268
    %v2515 = vpop.f32.mrb[0].mxu0
    %v2516 = vadd.f32 0.0, %v2515
    %v2517 = vpop.f32.mrb[0].mxu0
    %v2518 = vpop.f32.mrb[0].mxu0
    %v2519 = vadd.f32 0.0, %v2518
    %v2520 = vpop.f32.mrb[0].mxu0
    %2521 = vmatprep.mubr.bf16.mxu0 0
    %2522 = vmatmul.mubr.bf16.gmra.mrb[0].mxu0 %v271
    %v2523 = vpop.f32.mrb[0].mxu0
    %v2524 = vadd.f32 0.0, %v2523
    %v2525 = vpop.f32.mrb[0].mxu0
    %v2526 = vpop.f32.mrb[0].mxu0
    %v2527 = vadd.f32 0.0, %v2526
    %v2528 = vpop.f32.mrb[0].mxu0
    %2529 = vmatprep.mubr.bf16.mxu0 0
    %2530 = vmatmul.mubr.bf16.gmra.mrb[0].mxu0 %v274
    %v2531 = vpop.f32.mrb[0].mxu0
    %v2532 = vadd.f32 0.0, %v2531
    %v2533 = vpop.f32.mrb[0].mxu0
    %v2534 = vpop.f32.mrb[0].mxu0
    %v2535 = vadd.f32 0.0, %v2534
    %v2536 = vpop.f32.mrb[0].mxu0
    %2537 = vdwg.mxu0
    %v2538 = vmul.f32 %v2412, 0.5
    %v2539 = vmul.f32 %v2415, 0.5
    %v2540 = vmul.f32 %v2420, 0.5
    %v2541 = vmul.f32 %v2423, 0.5
    %v2542 = vmul.f32 %v2428, 0.5
    %v2543 = vmul.f32 %v2431, 0.5
    %v2544 = vmul.f32 %v2436, 0.5
    %v2545 = vmul.f32 %v2439, 0.5
    %v2546 = vtanh.pop %v2538
    %v2547 = vtanh.pop %v2539
    %v2548 = vtanh.pop %v2540
    %v2549 = vtanh.pop %v2541
    %v2550 = vtanh.pop %v2542
    %v2551 = vtanh.pop %v2543
    %v2552 = vtanh.pop %v2544
    %v2553 = vtanh.pop %v2545
    %v2554 = vadd.f32 %v2546, 1.0
    %v2555 = vadd.f32 %v2547, 1.0
    %v2556 = vadd.f32 %v2548, 1.0
    %v2557 = vadd.f32 %v2549, 1.0
    %v2558 = vadd.f32 %v2550, 1.0
    %v2559 = vadd.f32 %v2551, 1.0
    %v2560 = vadd.f32 %v2552, 1.0
    %v2561 = vadd.f32 %v2553, 1.0
    %v2562 = vmul.f32 %v2554, 0.5
    %v2563 = vmul.f32 %v2555, 0.5
    %v2564 = vmul.f32 %v2556, 0.5
    %v2565 = vmul.f32 %v2557, 0.5
    %v2566 = vmul.f32 %v2558, 0.5
    %v2567 = vmul.f32 %v2559, 0.5
    %v2568 = vmul.f32 %v2560, 0.5
    %v2569 = vmul.f32 %v2561, 0.5
    %v2570 = vmul.f32 %v2444, 0.5
    %v2571 = vmul.f32 %v2447, 0.5
    %v2572 = vmul.f32 %v2452, 0.5
    %v2573 = vmul.f32 %v2455, 0.5
    %v2574 = vmul.f32 %v2460, 0.5
    %v2575 = vmul.f32 %v2463, 0.5
    %v2576 = vmul.f32 %v2468, 0.5
    %v2577 = vmul.f32 %v2471, 0.5
    %v2578 = vtanh.pop %v2570
    %v2579 = vtanh.pop %v2571
    %v2580 = vtanh.pop %v2572
    %v2581 = vtanh.pop %v2573
    %v2582 = vtanh.pop %v2574
    %v2583 = vtanh.pop %v2575
    %v2584 = vtanh.pop %v2576
    %v2585 = vtanh.pop %v2577
    %v2586 = vadd.f32 %v2578, 1.0
    %v2587 = vadd.f32 %v2579, 1.0
    %v2588 = vadd.f32 %v2580, 1.0
    %v2589 = vadd.f32 %v2581, 1.0
    %v2590 = vadd.f32 %v2582, 1.0
    %v2591 = vadd.f32 %v2583, 1.0
    %v2592 = vadd.f32 %v2584, 1.0
    %v2593 = vadd.f32 %v2585, 1.0
    %v2594 = vmul.f32 %v2586, 0.5
    %v2595 = vmul.f32 %v2587, 0.5
    %v2596 = vmul.f32 %v2588, 0.5
    %v2597 = vmul.f32 %v2589, 0.5
    %v2598 = vmul.f32 %v2590, 0.5
    %v2599 = vmul.f32 %v2591, 0.5
    %v2600 = vmul.f32 %v2592, 0.5
    %v2601 = vmul.f32 %v2593, 0.5
    %v2602 = vtanh.pop %v2476
    %v2603 = vtanh.pop %v2479
    %v2604 = vtanh.pop %v2484
    %v2605 = vtanh.pop %v2487
    %v2606 = vtanh.pop %v2492
    %v2607 = vtanh.pop %v2495
    %v2608 = vtanh.pop %v2500
    %v2609 = vtanh.pop %v2503
    %v2610 = vmul.f32 %v2508, 0.5
    %v2611 = vmul.f32 %v2511, 0.5
    %v2612 = vmul.f32 %v2516, 0.5
    %v2613 = vmul.f32 %v2519, 0.5
    %v2614 = vmul.f32 %v2524, 0.5
    %v2615 = vmul.f32 %v2527, 0.5
    %v2616 = vmul.f32 %v2532, 0.5
    %v2617 = vmul.f32 %v2535, 0.5
    %v2618 = vtanh.pop %v2610
    %v2619 = vtanh.pop %v2611
    %v2620 = vtanh.pop %v2612
    %v2621 = vtanh.pop %v2613
    %v2622 = vtanh.pop %v2614
    %v2623 = vtanh.pop %v2615
    %v2624 = vtanh.pop %v2616
    %v2625 = vtanh.pop %v2617
    %v2626 = vadd.f32 %v2618, 1.0
    %v2627 = vadd.f32 %v2619, 1.0
    %v2628 = vadd.f32 %v2620, 1.0
    %v2629 = vadd.f32 %v2621, 1.0
    %v2630 = vadd.f32 %v2622, 1.0
    %v2631 = vadd.f32 %v2623, 1.0
    %v2632 = vadd.f32 %v2624, 1.0
    %v2633 = vadd.f32 %v2625, 1.0
    %v2634 = vmul.f32 %v2626, 0.5
    %v2635 = vmul.f32 %v2627, 0.5
    %v2636 = vmul.f32 %v2628, 0.5
    %v2637 = vmul.f32 %v2629, 0.5
    %v2638 = vmul.f32 %v2630, 0.5
    %v2639 = vmul.f32 %v2631, 0.5
    %v2640 = vmul.f32 %v2632, 0.5
    %v2641 = vmul.f32 %v2633, 0.5
    %v2642 = vmul.f32 %v2594, %v2033
    %v2643 = vmul.f32 %v2595, %v2034
    %v2644 = vmul.f32 %v2596, %v2035
    %v2645 = vmul.f32 %v2597, %v2036
    %v2646 = vmul.f32 %v2598, %v2037
    %v2647 = vmul.f32 %v2599, %v2038
    %v2648 = vmul.f32 %v2600, %v2039
    %v2649 = vmul.f32 %v2601, %v2040
    %v2650 = vmul.f32 %v2562, %v2602
    %v2651 = vmul.f32 %v2563, %v2603
    %v2652 = vmul.f32 %v2564, %v2604
    %v2653 = vmul.f32 %v2565, %v2605
    %v2654 = vmul.f32 %v2566, %v2606
    %v2655 = vmul.f32 %v2567, %v2607
    %v2656 = vmul.f32 %v2568, %v2608
    %v2657 = vmul.f32 %v2569, %v2609
    %v2658 = vadd.f32 %v2642, %v2650
    %v2659 = vadd.f32 %v2643, %v2651
    %v2660 = vadd.f32 %v2644, %v2652
    %v2661 = vadd.f32 %v2645, %v2653
    %v2662 = vadd.f32 %v2646, %v2654
    %v2663 = vadd.f32 %v2647, %v2655
    %v2664 = vadd.f32 %v2648, %v2656
    %v2665 = vadd.f32 %v2649, %v2657
    %v2666 = vtanh.pop %v2658
    %v2667 = vtanh.pop %v2659
    %v2668 = vtanh.pop %v2660
    %v2669 = vtanh.pop %v2661
    %v2670 = vtanh.pop %v2662
    %v2671 = vtanh.pop %v2663
    %v2672 = vtanh.pop %v2664
    %v2673 = vtanh.pop %v2665
    %v2674 = vmul.f32 %v2634, %v2666
    %v2675 = vmul.f32 %v2635, %v2667
    %v2676 = vmul.f32 %v2636, %v2668
    %v2677 = vmul.f32 %v2637, %v2669
    %v2678 = vmul.f32 %v2638, %v2670
    %v2679 = vmul.f32 %v2639, %v2671
    %v2680 = vmul.f32 %v2640, %v2672
    %v2681 = vmul.f32 %v2641, %v2673
    %v2682 = vpack.c.bf16 %v2675, %v2674
    %v2683 = vpack.c.bf16 %v2677, %v2676
    %v2684 = vpack.c.bf16 %v2679, %v2678
    %v2685 = vpack.c.bf16 %v2681, %v2680
    %v2686 = vpack.c.bf16 %v2363, %v2362
    %v2687 = vpack.c.bf16 %v2365, %v2364
    %v2688 = vpack.c.bf16 %v2367, %v2366
    %v2689 = vpack.c.bf16 %v2369, %v2368
    %2690 = vmatprep.subr.bf16.mxu0 0
    %2691 = vmatpush1.bf16.msra.mxu0 %v2682
    %2692 = vmatprep.subr.bf16.mxu0 0
    %2693 = vmatpush1.bf16.msra.mxu0 %v2683
    %2694 = vmatprep.subr.bf16.mxu0 0
    %2695 = vmatpush1.bf16.msra.mxu0 %v2684
    %2696 = vmatprep.subr.bf16.mxu0 0
    %2697 = vmatpush1.bf16.msra.mxu0 %v2685
    %2698 = vmatprep.subr.bf16.mxu0 0
    %2699 = vmatpush1.bf16.msra.mxu0 %v2686
    %2700 = vmatprep.subr.bf16.mxu0 0
    %2701 = vmatpush1.bf16.msra.mxu0 %v2687
    %2702 = vmatprep.subr.bf16.mxu0 0
    %2703 = vmatpush1.bf16.msra.mxu0 %v2688
    %2704 = vmatprep.subr.bf16.mxu0 0
    %2705 = vmatpush1.bf16.msra.mxu0 %v2689
    %2706 = vmatprep.subr.bf16.mxu0 0
    %2707 = vmatpush1.bf16.msra.mxu0 %v589
    %2708 = vmatprep.subr.bf16.mxu0 0
    %2709 = vmatpush1.bf16.msra.mxu0 0
    %2710 = vmatprep.subr.bf16.mxu0 0
    %2711 = vmatpush1.bf16.msra.mxu0 0
    %2712 = vmatprep.subr.bf16.mxu0 0
    %2713 = vmatpush1.bf16.msra.mxu0 0
    %2714 = vmatprep.subr.bf16.mxu0 0
    %2715 = vmatpush1.bf16.msra.mxu0 0
    %2716 = vmatprep.subr.bf16.mxu0 0
    %2717 = vmatpush1.bf16.msra.mxu0 0
    %2718 = vmatprep.subr.bf16.mxu0 0
    %2719 = vmatpush1.bf16.msra.mxu0 0
    %2720 = vmatprep.subr.bf16.mxu0 0
    %2721 = vmatpush1.bf16.msra.mxu0 0
    %2722 = vmatprep.mubr.bf16.mxu0 %v768
    %2723 = vmatmul.mubr.bf16.gmra.mrb[0].mxu0 %v718
    %v2724 = vpop.f32.mrb[0].mxu0
    %v2725 = vadd.f32 0.0, %v2724
    %v2726 = vpop.f32.mrb[0].mxu0
    %v2727 = vpop.f32.mrb[0].mxu0
    %v2728 = vadd.f32 0.0, %v2727
    %v2729 = vpop.f32.mrb[0].mxu0
    %2730 = vmatprep.mubr.bf16.mxu0 %v771
    %2731 = vmatmul.mubr.bf16.gmra.mrb[0].mxu0 %v720
    %v2732 = vpop.f32.mrb[0].mxu0
    %v2733 = vadd.f32 0.0, %v2732
    %v2734 = vpop.f32.mrb[0].mxu0
    %v2735 = vpop.f32.mrb[0].mxu0
    %v2736 = vadd.f32 0.0, %v2735
    %v2737 = vpop.f32.mrb[0].mxu0
    %2738 = vmatprep.mubr.bf16.mxu0 %v774
    %2739 = vmatmul.mubr.bf16.gmra.mrb[0].mxu0 %v722
    %v2740 = vpop.f32.mrb[0].mxu0
    %v2741 = vadd.f32 0.0, %v2740
    %v2742 = vpop.f32.mrb[0].mxu0
    %v2743 = vpop.f32.mrb[0].mxu0
    %v2744 = vadd.f32 0.0, %v2743
    %v2745 = vpop.f32.mrb[0].mxu0
    %2746 = vmatprep.mubr.bf16.mxu0 %v777
    %2747 = vmatmul.mubr.bf16.gmra.mrb[0].mxu0 %v724
    %v2748 = vpop.f32.mrb[0].mxu0
    %v2749 = vadd.f32 0.0, %v2748
    %v2750 = vpop.f32.mrb[0].mxu0
    %v2751 = vpop.f32.mrb[0].mxu0
    %v2752 = vadd.f32 0.0, %v2751
    %v2753 = vpop.f32.mrb[0].mxu0
    %2754 = vmatprep.mubr.bf16.mxu0 %v780
    %2755 = vmatmul.mubr.bf16.gmra.mrb[0].mxu0 %v726
    %v2756 = vpop.f32.mrb[0].mxu0
    %v2757 = vadd.f32 0.0, %v2756
    %v2758 = vpop.f32.mrb[0].mxu0
    %v2759 = vpop.f32.mrb[0].mxu0
    %v2760 = vadd.f32 0.0, %v2759
    %v2761 = vpop.f32.mrb[0].mxu0
    %2762 = vmatprep.mubr.bf16.mxu0 %v783
    %2763 = vmatmul.mubr.bf16.gmra.mrb[0].mxu0 %v728
    %v2764 = vpop.f32.mrb[0].mxu0
    %v2765 = vadd.f32 0.0, %v2764
    %v2766 = vpop.f32.mrb[0].mxu0
    %v2767 = vpop.f32.mrb[0].mxu0
    %v2768 = vadd.f32 0.0, %v2767
    %v2769 = vpop.f32.mrb[0].mxu0
    %2770 = vmatprep.mubr.bf16.mxu0 %v786
    %2771 = vmatmul.mubr.bf16.gmra.mrb[0].mxu0 %v730
    %v2772 = vpop.f32.mrb[0].mxu0
    %v2773 = vadd.f32 0.0, %v2772
    %v2774 = vpop.f32.mrb[0].mxu0
    %v2775 = vpop.f32.mrb[0].mxu0
    %v2776 = vadd.f32 0.0, %v2775
    %v2777 = vpop.f32.mrb[0].mxu0
    %2778 = vmatprep.mubr.bf16.mxu0 %v789
    %2779 = vmatmul.mubr.bf16.gmra.mrb[0].mxu0 %v732
    %v2780 = vpop.f32.mrb[0].mxu0
    %v2781 = vadd.f32 0.0, %v2780
    %v2782 = vpop.f32.mrb[0].mxu0
    %v2783 = vpop.f32.mrb[0].mxu0
    %v2784 = vadd.f32 0.0, %v2783
    %v2785 = vpop.f32.mrb[0].mxu0
    %2786 = vmatprep.mubr.bf16.mxu0 %v792
    %2787 = vmatmul.mubr.bf16.gmra.mrb[0].mxu0 %v734
    %v2788 = vpop.f32.mrb[0].mxu0
    %v2789 = vadd.f32 0.0, %v2788
    %v2790 = vpop.f32.mrb[0].mxu0
    %v2791 = vpop.f32.mrb[0].mxu0
    %v2792 = vadd.f32 0.0, %v2791
    %v2793 = vpop.f32.mrb[0].mxu0
    %2794 = vmatprep.mubr.bf16.mxu0 %v795
    %2795 = vmatmul.mubr.bf16.gmra.mrb[0].mxu0 %v736
    %v2796 = vpop.f32.mrb[0].mxu0
    %v2797 = vadd.f32 0.0, %v2796
    %v2798 = vpop.f32.mrb[0].mxu0
    %v2799 = vpop.f32.mrb[0].mxu0
    %v2800 = vadd.f32 0.0, %v2799
    %v2801 = vpop.f32.mrb[0].mxu0
    %2802 = vmatprep.mubr.bf16.mxu0 %v798
    %2803 = vmatmul.mubr.bf16.gmra.mrb[0].mxu0 %v738
    %v2804 = vpop.f32.mrb[0].mxu0
    %v2805 = vadd.f32 0.0, %v2804
    %v2806 = vpop.f32.mrb[0].mxu0
    %v2807 = vpop.f32.mrb[0].mxu0
    %v2808 = vadd.f32 0.0, %v2807
    %v2809 = vpop.f32.mrb[0].mxu0
    %2810 = vmatprep.mubr.bf16.mxu0 %v801
    %2811 = vmatmul.mubr.bf16.gmra.mrb[0].mxu0 %v740
    %v2812 = vpop.f32.mrb[0].mxu0
    %v2813 = vadd.f32 0.0, %v2812
    %v2814 = vpop.f32.mrb[0].mxu0
    %v2815 = vpop.f32.mrb[0].mxu0
    %v2816 = vadd.f32 0.0, %v2815
    %v2817 = vpop.f32.mrb[0].mxu0
    %2818 = vmatprep.mubr.bf16.mxu0 %v804
    %2819 = vmatmul.mubr.bf16.gmra.mrb[0].mxu0 %v742
    %v2820 = vpop.f32.mrb[0].mxu0
    %v2821 = vadd.f32 0.0, %v2820
    %v2822 = vpop.f32.mrb[0].mxu0
    %v2823 = vpop.f32.mrb[0].mxu0
    %v2824 = vadd.f32 0.0, %v2823
    %v2825 = vpop.f32.mrb[0].mxu0
    %2826 = vmatprep.mubr.bf16.mxu0 %v807
    %2827 = vmatmul.mubr.bf16.gmra.mrb[0].mxu0 %v744
    %v2828 = vpop.f32.mrb[0].mxu0
    %v2829 = vadd.f32 0.0, %v2828
    %v2830 = vpop.f32.mrb[0].mxu0
    %v2831 = vpop.f32.mrb[0].mxu0
    %v2832 = vadd.f32 0.0, %v2831
    %v2833 = vpop.f32.mrb[0].mxu0
    %2834 = vmatprep.mubr.bf16.mxu0 %v810
    %2835 = vmatmul.mubr.bf16.gmra.mrb[0].mxu0 %v746
    %v2836 = vpop.f32.mrb[0].mxu0
    %v2837 = vadd.f32 0.0, %v2836
    %v2838 = vpop.f32.mrb[0].mxu0
    %v2839 = vpop.f32.mrb[0].mxu0
    %v2840 = vadd.f32 0.0, %v2839
    %v2841 = vpop.f32.mrb[0].mxu0
    %2842 = vmatprep.mubr.bf16.mxu0 %v813
    %2843 = vmatmul.mubr.bf16.gmra.mrb[0].mxu0 %v748
    %v2844 = vpop.f32.mrb[0].mxu0
    %v2845 = vadd.f32 0.0, %v2844
    %v2846 = vpop.f32.mrb[0].mxu0
    %v2847 = vpop.f32.mrb[0].mxu0
    %v2848 = vadd.f32 0.0, %v2847
    %v2849 = vpop.f32.mrb[0].mxu0
    %2850 = vdwg.mxu0
    %v2851 = vmul.f32 %v2725, 0.5
    %v2852 = vmul.f32 %v2728, 0.5
    %v2853 = vmul.f32 %v2733, 0.5
    %v2854 = vmul.f32 %v2736, 0.5
    %v2855 = vmul.f32 %v2741, 0.5
    %v2856 = vmul.f32 %v2744, 0.5
    %v2857 = vmul.f32 %v2749, 0.5
    %v2858 = vmul.f32 %v2752, 0.5
    %v2859 = vtanh.pop %v2851
    %v2860 = vtanh.pop %v2852
    %v2861 = vtanh.pop %v2853
    %v2862 = vtanh.pop %v2854
    %v2863 = vtanh.pop %v2855
    %v2864 = vtanh.pop %v2856
    %v2865 = vtanh.pop %v2857
    %v2866 = vtanh.pop %v2858
    %v2867 = vadd.f32 %v2859, 1.0
    %v2868 = vadd.f32 %v2860, 1.0
    %v2869 = vadd.f32 %v2861, 1.0
    %v2870 = vadd.f32 %v2862, 1.0
    %v2871 = vadd.f32 %v2863, 1.0
    %v2872 = vadd.f32 %v2864, 1.0
    %v2873 = vadd.f32 %v2865, 1.0
    %v2874 = vadd.f32 %v2866, 1.0
    %v2875 = vmul.f32 %v2867, 0.5
    %v2876 = vmul.f32 %v2868, 0.5
    %v2877 = vmul.f32 %v2869, 0.5
    %v2878 = vmul.f32 %v2870, 0.5
    %v2879 = vmul.f32 %v2871, 0.5
    %v2880 = vmul.f32 %v2872, 0.5
    %v2881 = vmul.f32 %v2873, 0.5
    %v2882 = vmul.f32 %v2874, 0.5
    %v2883 = vmul.f32 %v2757, 0.5
    %v2884 = vmul.f32 %v2760, 0.5
    %v2885 = vmul.f32 %v2765, 0.5
    %v2886 = vmul.f32 %v2768, 0.5
    %v2887 = vmul.f32 %v2773, 0.5
    %v2888 = vmul.f32 %v2776, 0.5
    %v2889 = vmul.f32 %v2781, 0.5
    %v2890 = vmul.f32 %v2784, 0.5
    %v2891 = vtanh.pop %v2883
    %v2892 = vtanh.pop %v2884
    %v2893 = vtanh.pop %v2885
    %v2894 = vtanh.pop %v2886
    %v2895 = vtanh.pop %v2887
    %v2896 = vtanh.pop %v2888
    %v2897 = vtanh.pop %v2889
    %v2898 = vtanh.pop %v2890
    %v2899 = vadd.f32 %v2891, 1.0
    %v2900 = vadd.f32 %v2892, 1.0
    %v2901 = vadd.f32 %v2893, 1.0
    %v2902 = vadd.f32 %v2894, 1.0
    %v2903 = vadd.f32 %v2895, 1.0
    %v2904 = vadd.f32 %v2896, 1.0
    %v2905 = vadd.f32 %v2897, 1.0
    %v2906 = vadd.f32 %v2898, 1.0
    %v2907 = vmul.f32 %v2899, 0.5
    %v2908 = vmul.f32 %v2900, 0.5
    %v2909 = vmul.f32 %v2901, 0.5
    %v2910 = vmul.f32 %v2902, 0.5
    %v2911 = vmul.f32 %v2903, 0.5
    %v2912 = vmul.f32 %v2904, 0.5
    %v2913 = vmul.f32 %v2905, 0.5
    %v2914 = vmul.f32 %v2906, 0.5
    %v2915 = vtanh.pop %v2789
    %v2916 = vtanh.pop %v2792
    %v2917 = vtanh.pop %v2797
    %v2918 = vtanh.pop %v2800
    %v2919 = vtanh.pop %v2805
    %v2920 = vtanh.pop %v2808
    %v2921 = vtanh.pop %v2813
    %v2922 = vtanh.pop %v2816
    %v2923 = vmul.f32 %v2821, 0.5
    %v2924 = vmul.f32 %v2824, 0.5
    %v2925 = vmul.f32 %v2829, 0.5
    %v2926 = vmul.f32 %v2832, 0.5
    %v2927 = vmul.f32 %v2837, 0.5
    %v2928 = vmul.f32 %v2840, 0.5
    %v2929 = vmul.f32 %v2845, 0.5
    %v2930 = vmul.f32 %v2848, 0.5
    %v2931 = vtanh.pop %v2923
    %v2932 = vtanh.pop %v2924
    %v2933 = vtanh.pop %v2925
    %v2934 = vtanh.pop %v2926
    %v2935 = vtanh.pop %v2927
    %v2936 = vtanh.pop %v2928
    %v2937 = vtanh.pop %v2929
    %v2938 = vtanh.pop %v2930
    %v2939 = vadd.f32 %v2931, 1.0
    %v2940 = vadd.f32 %v2932, 1.0
    %v2941 = vadd.f32 %v2933, 1.0
    %v2942 = vadd.f32 %v2934, 1.0
    %v2943 = vadd.f32 %v2935, 1.0
    %v2944 = vadd.f32 %v2936, 1.0
    %v2945 = vadd.f32 %v2937, 1.0
    %v2946 = vadd.f32 %v2938, 1.0
    %v2947 = vmul.f32 %v2939, 0.5
    %v2948 = vmul.f32 %v2940, 0.5
    %v2949 = vmul.f32 %v2941, 0.5
    %v2950 = vmul.f32 %v2942, 0.5
    %v2951 = vmul.f32 %v2943, 0.5
    %v2952 = vmul.f32 %v2944, 0.5
    %v2953 = vmul.f32 %v2945, 0.5
    %v2954 = vmul.f32 %v2946, 0.5
    %v2955 = vmul.f32 %v2907, %v2346
    %v2956 = vmul.f32 %v2908, %v2347
    %v2957 = vmul.f32 %v2909, %v2348
    %v2958 = vmul.f32 %v2910, %v2349
    %v2959 = vmul.f32 %v2911, %v2350
    %v2960 = vmul.f32 %v2912, %v2351
    %v2961 = vmul.f32 %v2913, %v2352
    %v2962 = vmul.f32 %v2914, %v2353
    %v2963 = vmul.f32 %v2875, %v2915
    %v2964 = vmul.f32 %v2876, %v2916
    %v2965 = vmul.f32 %v2877, %v2917
    %v2966 = vmul.f32 %v2878, %v2918
    %v2967 = vmul.f32 %v2879, %v2919
    %v2968 = vmul.f32 %v2880, %v2920
    %v2969 = vmul.f32 %v2881, %v2921
    %v2970 = vmul.f32 %v2882, %v2922
    %v2971 = vadd.f32 %v2955, %v2963
    %v2972 = vadd.f32 %v2956, %v2964
    %v2973 = vadd.f32 %v2957, %v2965
    %v2974 = vadd.f32 %v2958, %v2966
    %v2975 = vadd.f32 %v2959, %v2967
    %v2976 = vadd.f32 %v2960, %v2968
    %v2977 = vadd.f32 %v2961, %v2969
    %v2978 = vadd.f32 %v2962, %v2970
    %v2979 = vtanh.pop %v2971
    %v2980 = vtanh.pop %v2972
    %v2981 = vtanh.pop %v2973
    %v2982 = vtanh.pop %v2974
    %v2983 = vtanh.pop %v2975
    %v2984 = vtanh.pop %v2976
    %v2985 = vtanh.pop %v2977
    %v2986 = vtanh.pop %v2978
    %v2987 = vmul.f32 %v2947, %v2979
    %v2988 = vmul.f32 %v2948, %v2980
    %v2989 = vmul.f32 %v2949, %v2981
    %v2990 = vmul.f32 %v2950, %v2982
    %v2991 = vmul.f32 %v2951, %v2983
    %v2992 = vmul.f32 %v2952, %v2984
    %v2993 = vmul.f32 %v2953, %v2985
    %v2994 = vmul.f32 %v2954, %v2986
    %v2995 = vlaneseq
    %v2996 = vshrl.u32 %v2995, 7
    %v2997 = vsub.s32 4, %v2996
    %v2998 = vrot.slane %v103, %v2997
    %v2999 = vsel %vm63, %v2998, %v67
    %v3000 = vsel %vm64, %v2998, %v68
    %v3001 = vpack.c.bf16 %v3000, %v2999
    %3002 = vmatprep.subr.bf16.mxu0 0
    %3003 = vmatpush1.bf16.msra.mxu0 %v2682
    %3004 = vmatprep.subr.bf16.mxu0 0
    %3005 = vmatpush1.bf16.msra.mxu0 %v2683
    %3006 = vmatprep.subr.bf16.mxu0 0
    %3007 = vmatpush1.bf16.msra.mxu0 %v2684
    %3008 = vmatprep.subr.bf16.mxu0 0
    %3009 = vmatpush1.bf16.msra.mxu0 %v2685
    %3010 = vmatprep.subr.bf16.mxu0 0
    %3011 = vmatpush1.bf16.msra.mxu0 %v3001
    %3012 = vmatprep.subr.bf16.mxu0 0
    %3013 = vmatpush1.bf16.msra.mxu0 0
    %3014 = vmatprep.subr.bf16.mxu0 0
    %3015 = vmatpush1.bf16.msra.mxu0 0
    %3016 = vmatprep.subr.bf16.mxu0 0
    %3017 = vmatpush1.bf16.msra.mxu0 0
    %3018 = vmatprep.subr.bf16.mxu0 0
    %3019 = vmatpush1.bf16.msra.mxu0 0
    %3020 = vmatprep.subr.bf16.mxu0 0
    %3021 = vmatpush1.bf16.msra.mxu0 0
    %3022 = vmatprep.subr.bf16.mxu0 0
    %3023 = vmatpush1.bf16.msra.mxu0 0
    %3024 = vmatprep.subr.bf16.mxu0 0
    %3025 = vmatpush1.bf16.msra.mxu0 0
    %3026 = vmatprep.subr.bf16.mxu0 0
    %3027 = vmatpush1.bf16.msra.mxu0 0
    %3028 = vmatprep.subr.bf16.mxu0 0
    %3029 = vmatpush1.bf16.msra.mxu0 0
    %3030 = vmatprep.subr.bf16.mxu0 0
    %3031 = vmatpush1.bf16.msra.mxu0 0
    %3032 = vmatprep.subr.bf16.mxu0 0
    %3033 = vmatpush1.bf16.msra.mxu0 0
    %3034 = vmatprep.mubr.bf16.mxu0 0
    %3035 = vmatmul.mubr.bf16.gmra.mrb[0].mxu0 %v229
    %v3036 = vpop.f32.mrb[0].mxu0
    %v3037 = vadd.f32 0.0, %v3036
    %v3038 = vpop.f32.mrb[0].mxu0
    %v3039 = vpop.f32.mrb[0].mxu0
    %v3040 = vadd.f32 0.0, %v3039
    %v3041 = vpop.f32.mrb[0].mxu0
    %3042 = vmatprep.mubr.bf16.mxu0 0
    %3043 = vmatmul.mubr.bf16.gmra.mrb[0].mxu0 %v232
    %v3044 = vpop.f32.mrb[0].mxu0
    %v3045 = vadd.f32 0.0, %v3044
    %v3046 = vpop.f32.mrb[0].mxu0
    %v3047 = vpop.f32.mrb[0].mxu0
    %v3048 = vadd.f32 0.0, %v3047
    %v3049 = vpop.f32.mrb[0].mxu0
    %3050 = vmatprep.mubr.bf16.mxu0 0
    %3051 = vmatmul.mubr.bf16.gmra.mrb[0].mxu0 %v235
    %v3052 = vpop.f32.mrb[0].mxu0
    %v3053 = vadd.f32 0.0, %v3052
    %v3054 = vpop.f32.mrb[0].mxu0
    %v3055 = vpop.f32.mrb[0].mxu0
    %v3056 = vadd.f32 0.0, %v3055
    %v3057 = vpop.f32.mrb[0].mxu0
    %3058 = vmatprep.mubr.bf16.mxu0 0
    %3059 = vmatmul.mubr.bf16.gmra.mrb[0].mxu0 %v238
    %v3060 = vpop.f32.mrb[0].mxu0
    %v3061 = vadd.f32 0.0, %v3060
    %v3062 = vpop.f32.mrb[0].mxu0
    %v3063 = vpop.f32.mrb[0].mxu0
    %v3064 = vadd.f32 0.0, %v3063
    %v3065 = vpop.f32.mrb[0].mxu0
    %3066 = vmatprep.mubr.bf16.mxu0 0
    %3067 = vmatmul.mubr.bf16.gmra.mrb[0].mxu0 %v241
    %v3068 = vpop.f32.mrb[0].mxu0
    %v3069 = vadd.f32 0.0, %v3068
    %v3070 = vpop.f32.mrb[0].mxu0
    %v3071 = vpop.f32.mrb[0].mxu0
    %v3072 = vadd.f32 0.0, %v3071
    %v3073 = vpop.f32.mrb[0].mxu0
    %3074 = vmatprep.mubr.bf16.mxu0 0
    %3075 = vmatmul.mubr.bf16.gmra.mrb[0].mxu0 %v244
    %v3076 = vpop.f32.mrb[0].mxu0
    %v3077 = vadd.f32 0.0, %v3076
    %v3078 = vpop.f32.mrb[0].mxu0
    %v3079 = vpop.f32.mrb[0].mxu0
    %v3080 = vadd.f32 0.0, %v3079
    %v3081 = vpop.f32.mrb[0].mxu0
    %3082 = vmatprep.mubr.bf16.mxu0 0
    %3083 = vmatmul.mubr.bf16.gmra.mrb[0].mxu0 %v247
    %v3084 = vpop.f32.mrb[0].mxu0
    %v3085 = vadd.f32 0.0, %v3084
    %v3086 = vpop.f32.mrb[0].mxu0
    %v3087 = vpop.f32.mrb[0].mxu0
    %v3088 = vadd.f32 0.0, %v3087
    %v3089 = vpop.f32.mrb[0].mxu0
    %3090 = vmatprep.mubr.bf16.mxu0 0
    %3091 = vmatmul.mubr.bf16.gmra.mrb[0].mxu0 %v250
    %v3092 = vpop.f32.mrb[0].mxu0
    %v3093 = vadd.f32 0.0, %v3092
    %v3094 = vpop.f32.mrb[0].mxu0
    %v3095 = vpop.f32.mrb[0].mxu0
    %v3096 = vadd.f32 0.0, %v3095
    %v3097 = vpop.f32.mrb[0].mxu0
    %3098 = vmatprep.mubr.bf16.mxu0 0
    %3099 = vmatmul.mubr.bf16.gmra.mrb[0].mxu0 %v253
    %v3100 = vpop.f32.mrb[0].mxu0
    %v3101 = vadd.f32 0.0, %v3100
    %v3102 = vpop.f32.mrb[0].mxu0
    %v3103 = vpop.f32.mrb[0].mxu0
    %v3104 = vadd.f32 0.0, %v3103
    %v3105 = vpop.f32.mrb[0].mxu0
    %3106 = vmatprep.mubr.bf16.mxu0 0
    %3107 = vmatmul.mubr.bf16.gmra.mrb[0].mxu0 %v256
    %v3108 = vpop.f32.mrb[0].mxu0
    %v3109 = vadd.f32 0.0, %v3108
    %v3110 = vpop.f32.mrb[0].mxu0
    %v3111 = vpop.f32.mrb[0].mxu0
    %v3112 = vadd.f32 0.0, %v3111
    %v3113 = vpop.f32.mrb[0].mxu0
    %3114 = vmatprep.mubr.bf16.mxu0 0
    %3115 = vmatmul.mubr.bf16.gmra.mrb[0].mxu0 %v259
    %v3116 = vpop.f32.mrb[0].mxu0
    %v3117 = vadd.f32 0.0, %v3116
    %v3118 = vpop.f32.mrb[0].mxu0
    %v3119 = vpop.f32.mrb[0].mxu0
    %v3120 = vadd.f32 0.0, %v3119
    %v3121 = vpop.f32.mrb[0].mxu0
    %3122 = vmatprep.mubr.bf16.mxu0 0
    %3123 = vmatmul.mubr.bf16.gmra.mrb[0].mxu0 %v262
    %v3124 = vpop.f32.mrb[0].mxu0
    %v3125 = vadd.f32 0.0, %v3124
    %v3126 = vpop.f32.mrb[0].mxu0
    %v3127 = vpop.f32.mrb[0].mxu0
    %v3128 = vadd.f32 0.0, %v3127
    %v3129 = vpop.f32.mrb[0].mxu0
    %3130 = vmatprep.mubr.bf16.mxu0 0
    %3131 = vmatmul.mubr.bf16.gmra.mrb[0].mxu0 %v265
    %v3132 = vpop.f32.mrb[0].mxu0
    %v3133 = vadd.f32 0.0, %v3132
    %v3134 = vpop.f32.mrb[0].mxu0
    %v3135 = vpop.f32.mrb[0].mxu0
    %v3136 = vadd.f32 0.0, %v3135
    %v3137 = vpop.f32.mrb[0].mxu0
    %3138 = vmatprep.mubr.bf16.mxu0 0
    %3139 = vmatmul.mubr.bf16.gmra.mrb[0].mxu0 %v268
    %v3140 = vpop.f32.mrb[0].mxu0
    %v3141 = vadd.f32 0.0, %v3140
    %v3142 = vpop.f32.mrb[0].mxu0
    %v3143 = vpop.f32.mrb[0].mxu0
    %v3144 = vadd.f32 0.0, %v3143
    %v3145 = vpop.f32.mrb[0].mxu0
    %3146 = vmatprep.mubr.bf16.mxu0 0
    %3147 = vmatmul.mubr.bf16.gmra.mrb[0].mxu0 %v271
    %v3148 = vpop.f32.mrb[0].mxu0
    %v3149 = vadd.f32 0.0, %v3148
    %v3150 = vpop.f32.mrb[0].mxu0
    %v3151 = vpop.f32.mrb[0].mxu0
    %v3152 = vadd.f32 0.0, %v3151
    %v3153 = vpop.f32.mrb[0].mxu0
    %3154 = vmatprep.mubr.bf16.mxu0 0
    %3155 = vmatmul.mubr.bf16.gmra.mrb[0].mxu0 %v274
    %v3156 = vpop.f32.mrb[0].mxu0
    %v3157 = vadd.f32 0.0, %v3156
    %v3158 = vpop.f32.mrb[0].mxu0
    %v3159 = vpop.f32.mrb[0].mxu0
    %v3160 = vadd.f32 0.0, %v3159
    %v3161 = vpop.f32.mrb[0].mxu0
    %3162 = vdwg.mxu0
    %v3163 = vmul.f32 %v3037, 0.5
    %v3164 = vmul.f32 %v3040, 0.5
    %v3165 = vmul.f32 %v3045, 0.5
    %v3166 = vmul.f32 %v3048, 0.5
    %v3167 = vmul.f32 %v3053, 0.5
    %v3168 = vmul.f32 %v3056, 0.5
    %v3169 = vmul.f32 %v3061, 0.5
    %v3170 = vmul.f32 %v3064, 0.5
    %v3171 = vtanh.pop %v3163
    %v3172 = vtanh.pop %v3164
    %v3173 = vtanh.pop %v3165
    %v3174 = vtanh.pop %v3166
    %v3175 = vtanh.pop %v3167
    %v3176 = vtanh.pop %v3168
    %v3177 = vtanh.pop %v3169
    %v3178 = vtanh.pop %v3170
    %v3179 = vadd.f32 %v3171, 1.0
    %v3180 = vadd.f32 %v3172, 1.0
    %v3181 = vadd.f32 %v3173, 1.0
    %v3182 = vadd.f32 %v3174, 1.0
    %v3183 = vadd.f32 %v3175, 1.0
    %v3184 = vadd.f32 %v3176, 1.0
    %v3185 = vadd.f32 %v3177, 1.0
    %v3186 = vadd.f32 %v3178, 1.0
    %v3187 = vmul.f32 %v3179, 0.5
    %v3188 = vmul.f32 %v3180, 0.5
    %v3189 = vmul.f32 %v3181, 0.5
    %v3190 = vmul.f32 %v3182, 0.5
    %v3191 = vmul.f32 %v3183, 0.5
    %v3192 = vmul.f32 %v3184, 0.5
    %v3193 = vmul.f32 %v3185, 0.5
    %v3194 = vmul.f32 %v3186, 0.5
    %v3195 = vmul.f32 %v3069, 0.5
    %v3196 = vmul.f32 %v3072, 0.5
    %v3197 = vmul.f32 %v3077, 0.5
    %v3198 = vmul.f32 %v3080, 0.5
    %v3199 = vmul.f32 %v3085, 0.5
    %v3200 = vmul.f32 %v3088, 0.5
    %v3201 = vmul.f32 %v3093, 0.5
    %v3202 = vmul.f32 %v3096, 0.5
    %v3203 = vtanh.pop %v3195
    %v3204 = vtanh.pop %v3196
    %v3205 = vtanh.pop %v3197
    %v3206 = vtanh.pop %v3198
    %v3207 = vtanh.pop %v3199
    %v3208 = vtanh.pop %v3200
    %v3209 = vtanh.pop %v3201
    %v3210 = vtanh.pop %v3202
    %v3211 = vadd.f32 %v3203, 1.0
    %v3212 = vadd.f32 %v3204, 1.0
    %v3213 = vadd.f32 %v3205, 1.0
    %v3214 = vadd.f32 %v3206, 1.0
    %v3215 = vadd.f32 %v3207, 1.0
    %v3216 = vadd.f32 %v3208, 1.0
    %v3217 = vadd.f32 %v3209, 1.0
    %v3218 = vadd.f32 %v3210, 1.0
    %v3219 = vmul.f32 %v3211, 0.5
    %v3220 = vmul.f32 %v3212, 0.5
    %v3221 = vmul.f32 %v3213, 0.5
    %v3222 = vmul.f32 %v3214, 0.5
    %v3223 = vmul.f32 %v3215, 0.5
    %v3224 = vmul.f32 %v3216, 0.5
    %v3225 = vmul.f32 %v3217, 0.5
    %v3226 = vmul.f32 %v3218, 0.5
    %v3227 = vtanh.pop %v3101
    %v3228 = vtanh.pop %v3104
    %v3229 = vtanh.pop %v3109
    %v3230 = vtanh.pop %v3112
    %v3231 = vtanh.pop %v3117
    %v3232 = vtanh.pop %v3120
    %v3233 = vtanh.pop %v3125
    %v3234 = vtanh.pop %v3128
    %v3235 = vmul.f32 %v3133, 0.5
    %v3236 = vmul.f32 %v3136, 0.5
    %v3237 = vmul.f32 %v3141, 0.5
    %v3238 = vmul.f32 %v3144, 0.5
    %v3239 = vmul.f32 %v3149, 0.5
    %v3240 = vmul.f32 %v3152, 0.5
    %v3241 = vmul.f32 %v3157, 0.5
    %v3242 = vmul.f32 %v3160, 0.5
    %v3243 = vtanh.pop %v3235
    %v3244 = vtanh.pop %v3236
    %v3245 = vtanh.pop %v3237
    %v3246 = vtanh.pop %v3238
    %v3247 = vtanh.pop %v3239
    %v3248 = vtanh.pop %v3240
    %v3249 = vtanh.pop %v3241
    %v3250 = vtanh.pop %v3242
    %v3251 = vadd.f32 %v3243, 1.0
    %v3252 = vadd.f32 %v3244, 1.0
    %v3253 = vadd.f32 %v3245, 1.0
    %v3254 = vadd.f32 %v3246, 1.0
    %v3255 = vadd.f32 %v3247, 1.0
    %v3256 = vadd.f32 %v3248, 1.0
    %v3257 = vadd.f32 %v3249, 1.0
    %v3258 = vadd.f32 %v3250, 1.0
    %v3259 = vmul.f32 %v3251, 0.5
    %v3260 = vmul.f32 %v3252, 0.5
    %v3261 = vmul.f32 %v3253, 0.5
    %v3262 = vmul.f32 %v3254, 0.5
    %v3263 = vmul.f32 %v3255, 0.5
    %v3264 = vmul.f32 %v3256, 0.5
    %v3265 = vmul.f32 %v3257, 0.5
    %v3266 = vmul.f32 %v3258, 0.5
    %v3267 = vmul.f32 %v3219, %v2658
    %v3268 = vmul.f32 %v3220, %v2659
    %v3269 = vmul.f32 %v3221, %v2660
    %v3270 = vmul.f32 %v3222, %v2661
    %v3271 = vmul.f32 %v3223, %v2662
    %v3272 = vmul.f32 %v3224, %v2663
    %v3273 = vmul.f32 %v3225, %v2664
    %v3274 = vmul.f32 %v3226, %v2665
    %v3275 = vmul.f32 %v3187, %v3227
    %v3276 = vmul.f32 %v3188, %v3228
    %v3277 = vmul.f32 %v3189, %v3229
    %v3278 = vmul.f32 %v3190, %v3230
    %v3279 = vmul.f32 %v3191, %v3231
    %v3280 = vmul.f32 %v3192, %v3232
    %v3281 = vmul.f32 %v3193, %v3233
    %v3282 = vmul.f32 %v3194, %v3234
    %v3283 = vadd.f32 %v3267, %v3275
    %v3284 = vadd.f32 %v3268, %v3276
    %v3285 = vadd.f32 %v3269, %v3277
    %v3286 = vadd.f32 %v3270, %v3278
    %v3287 = vadd.f32 %v3271, %v3279
    %v3288 = vadd.f32 %v3272, %v3280
    %v3289 = vadd.f32 %v3273, %v3281
    %v3290 = vadd.f32 %v3274, %v3282
    %v3291 = vtanh.pop %v3283
    %v3292 = vtanh.pop %v3284
    %v3293 = vtanh.pop %v3285
    %v3294 = vtanh.pop %v3286
    %v3295 = vtanh.pop %v3287
    %v3296 = vtanh.pop %v3288
    %v3297 = vtanh.pop %v3289
    %v3298 = vtanh.pop %v3290
    %v3299 = vmul.f32 %v3259, %v3291
    %v3300 = vmul.f32 %v3260, %v3292
    %v3301 = vmul.f32 %v3261, %v3293
    %v3302 = vmul.f32 %v3262, %v3294
    %v3303 = vmul.f32 %v3263, %v3295
    %v3304 = vmul.f32 %v3264, %v3296
    %v3305 = vmul.f32 %v3265, %v3297
    %v3306 = vmul.f32 %v3266, %v3298
    %v3307 = vpack.c.bf16 %v3300, %v3299
    %v3308 = vpack.c.bf16 %v3302, %v3301
    %v3309 = vpack.c.bf16 %v3304, %v3303
    %v3310 = vpack.c.bf16 %v3306, %v3305
    %v3311 = vpack.c.bf16 %v2988, %v2987
    %v3312 = vpack.c.bf16 %v2990, %v2989
    %v3313 = vpack.c.bf16 %v2992, %v2991
    %v3314 = vpack.c.bf16 %v2994, %v2993
    %3315 = vmatprep.subr.bf16.mxu0 0
    %3316 = vmatpush1.bf16.msra.mxu0 %v3307
    %3317 = vmatprep.subr.bf16.mxu0 0
    %3318 = vmatpush1.bf16.msra.mxu0 %v3308
    %3319 = vmatprep.subr.bf16.mxu0 0
    %3320 = vmatpush1.bf16.msra.mxu0 %v3309
    %3321 = vmatprep.subr.bf16.mxu0 0
    %3322 = vmatpush1.bf16.msra.mxu0 %v3310
    %3323 = vmatprep.subr.bf16.mxu0 0
    %3324 = vmatpush1.bf16.msra.mxu0 %v3311
    %3325 = vmatprep.subr.bf16.mxu0 0
    %3326 = vmatpush1.bf16.msra.mxu0 %v3312
    %3327 = vmatprep.subr.bf16.mxu0 0
    %3328 = vmatpush1.bf16.msra.mxu0 %v3313
    %3329 = vmatprep.subr.bf16.mxu0 0
    %3330 = vmatpush1.bf16.msra.mxu0 %v3314
    %3331 = vmatprep.subr.bf16.mxu0 0
    %3332 = vmatpush1.bf16.msra.mxu0 %v589
    %3333 = vmatprep.subr.bf16.mxu0 0
    %3334 = vmatpush1.bf16.msra.mxu0 0
    %3335 = vmatprep.subr.bf16.mxu0 0
    %3336 = vmatpush1.bf16.msra.mxu0 0
    %3337 = vmatprep.subr.bf16.mxu0 0
    %3338 = vmatpush1.bf16.msra.mxu0 0
    %3339 = vmatprep.subr.bf16.mxu0 0
    %3340 = vmatpush1.bf16.msra.mxu0 0
    %3341 = vmatprep.subr.bf16.mxu0 0
    %3342 = vmatpush1.bf16.msra.mxu0 0
    %3343 = vmatprep.subr.bf16.mxu0 0
    %3344 = vmatpush1.bf16.msra.mxu0 0
    %3345 = vmatprep.subr.bf16.mxu0 0
    %3346 = vmatpush1.bf16.msra.mxu0 0
    %3347 = vmatprep.mubr.bf16.mxu0 %v768
    %3348 = vmatmul.mubr.bf16.gmra.mrb[0].mxu0 %v718
    %v3349 = vpop.f32.mrb[0].mxu0
    %v3350 = vadd.f32 0.0, %v3349
    %v3351 = vpop.f32.mrb[0].mxu0
    %v3352 = vpop.f32.mrb[0].mxu0
    %v3353 = vadd.f32 0.0, %v3352
    %v3354 = vpop.f32.mrb[0].mxu0
    %3355 = vmatprep.mubr.bf16.mxu0 %v771
    %3356 = vmatmul.mubr.bf16.gmra.mrb[0].mxu0 %v720
    %v3357 = vpop.f32.mrb[0].mxu0
    %v3358 = vadd.f32 0.0, %v3357
    %v3359 = vpop.f32.mrb[0].mxu0
    %v3360 = vpop.f32.mrb[0].mxu0
    %v3361 = vadd.f32 0.0, %v3360
    %v3362 = vpop.f32.mrb[0].mxu0
    %3363 = vmatprep.mubr.bf16.mxu0 %v774
    %3364 = vmatmul.mubr.bf16.gmra.mrb[0].mxu0 %v722
    %v3365 = vpop.f32.mrb[0].mxu0
    %v3366 = vadd.f32 0.0, %v3365
    %v3367 = vpop.f32.mrb[0].mxu0
    %v3368 = vpop.f32.mrb[0].mxu0
    %v3369 = vadd.f32 0.0, %v3368
    %v3370 = vpop.f32.mrb[0].mxu0
    %3371 = vmatprep.mubr.bf16.mxu0 %v777
    %3372 = vmatmul.mubr.bf16.gmra.mrb[0].mxu0 %v724
    %v3373 = vpop.f32.mrb[0].mxu0
    %v3374 = vadd.f32 0.0, %v3373
    %v3375 = vpop.f32.mrb[0].mxu0
    %v3376 = vpop.f32.mrb[0].mxu0
    %v3377 = vadd.f32 0.0, %v3376
    %v3378 = vpop.f32.mrb[0].mxu0
    %3379 = vmatprep.mubr.bf16.mxu0 %v780
    %3380 = vmatmul.mubr.bf16.gmra.mrb[0].mxu0 %v726
    %v3381 = vpop.f32.mrb[0].mxu0
    %v3382 = vadd.f32 0.0, %v3381
    %v3383 = vpop.f32.mrb[0].mxu0
    %v3384 = vpop.f32.mrb[0].mxu0
    %v3385 = vadd.f32 0.0, %v3384
    %v3386 = vpop.f32.mrb[0].mxu0
    %3387 = vmatprep.mubr.bf16.mxu0 %v783
    %3388 = vmatmul.mubr.bf16.gmra.mrb[0].mxu0 %v728
    %v3389 = vpop.f32.mrb[0].mxu0
    %v3390 = vadd.f32 0.0, %v3389
    %v3391 = vpop.f32.mrb[0].mxu0
    %v3392 = vpop.f32.mrb[0].mxu0
    %v3393 = vadd.f32 0.0, %v3392
    %v3394 = vpop.f32.mrb[0].mxu0
    %3395 = vmatprep.mubr.bf16.mxu0 %v786
    %3396 = vmatmul.mubr.bf16.gmra.mrb[0].mxu0 %v730
    %v3397 = vpop.f32.mrb[0].mxu0
    %v3398 = vadd.f32 0.0, %v3397
    %v3399 = vpop.f32.mrb[0].mxu0
    %v3400 = vpop.f32.mrb[0].mxu0
    %v3401 = vadd.f32 0.0, %v3400
    %v3402 = vpop.f32.mrb[0].mxu0
    %3403 = vmatprep.mubr.bf16.mxu0 %v789
    %3404 = vmatmul.mubr.bf16.gmra.mrb[0].mxu0 %v732
    %v3405 = vpop.f32.mrb[0].mxu0
    %v3406 = vadd.f32 0.0, %v3405
    %v3407 = vpop.f32.mrb[0].mxu0
    %v3408 = vpop.f32.mrb[0].mxu0
    %v3409 = vadd.f32 0.0, %v3408
    %v3410 = vpop.f32.mrb[0].mxu0
    %3411 = vmatprep.mubr.bf16.mxu0 %v792
    %3412 = vmatmul.mubr.bf16.gmra.mrb[0].mxu0 %v734
    %v3413 = vpop.f32.mrb[0].mxu0
    %v3414 = vadd.f32 0.0, %v3413
    %v3415 = vpop.f32.mrb[0].mxu0
    %v3416 = vpop.f32.mrb[0].mxu0
    %v3417 = vadd.f32 0.0, %v3416
    %v3418 = vpop.f32.mrb[0].mxu0
    %3419 = vmatprep.mubr.bf16.mxu0 %v795
    %3420 = vmatmul.mubr.bf16.gmra.mrb[0].mxu0 %v736
    %v3421 = vpop.f32.mrb[0].mxu0
    %v3422 = vadd.f32 0.0, %v3421
    %v3423 = vpop.f32.mrb[0].mxu0
    %v3424 = vpop.f32.mrb[0].mxu0
    %v3425 = vadd.f32 0.0, %v3424
    %v3426 = vpop.f32.mrb[0].mxu0
    %3427 = vmatprep.mubr.bf16.mxu0 %v798
    %3428 = vmatmul.mubr.bf16.gmra.mrb[0].mxu0 %v738
    %v3429 = vpop.f32.mrb[0].mxu0
    %v3430 = vadd.f32 0.0, %v3429
    %v3431 = vpop.f32.mrb[0].mxu0
    %v3432 = vpop.f32.mrb[0].mxu0
    %v3433 = vadd.f32 0.0, %v3432
    %v3434 = vpop.f32.mrb[0].mxu0
    %3435 = vmatprep.mubr.bf16.mxu0 %v801
    %3436 = vmatmul.mubr.bf16.gmra.mrb[0].mxu0 %v740
    %v3437 = vpop.f32.mrb[0].mxu0
    %v3438 = vadd.f32 0.0, %v3437
    %v3439 = vpop.f32.mrb[0].mxu0
    %v3440 = vpop.f32.mrb[0].mxu0
    %v3441 = vadd.f32 0.0, %v3440
    %v3442 = vpop.f32.mrb[0].mxu0
    %3443 = vmatprep.mubr.bf16.mxu0 %v804
    %3444 = vmatmul.mubr.bf16.gmra.mrb[0].mxu0 %v742
    %v3445 = vpop.f32.mrb[0].mxu0
    %v3446 = vadd.f32 0.0, %v3445
    %v3447 = vpop.f32.mrb[0].mxu0
    %v3448 = vpop.f32.mrb[0].mxu0
    %v3449 = vadd.f32 0.0, %v3448
    %v3450 = vpop.f32.mrb[0].mxu0
    %3451 = vmatprep.mubr.bf16.mxu0 %v807
    %3452 = vmatmul.mubr.bf16.gmra.mrb[0].mxu0 %v744
    %v3453 = vpop.f32.mrb[0].mxu0
    %v3454 = vadd.f32 0.0, %v3453
    %v3455 = vpop.f32.mrb[0].mxu0
    %v3456 = vpop.f32.mrb[0].mxu0
    %v3457 = vadd.f32 0.0, %v3456
    %v3458 = vpop.f32.mrb[0].mxu0
    %3459 = vmatprep.mubr.bf16.mxu0 %v810
    %3460 = vmatmul.mubr.bf16.gmra.mrb[0].mxu0 %v746
    %v3461 = vpop.f32.mrb[0].mxu0
    %v3462 = vadd.f32 0.0, %v3461
    %v3463 = vpop.f32.mrb[0].mxu0
    %v3464 = vpop.f32.mrb[0].mxu0
    %v3465 = vadd.f32 0.0, %v3464
    %v3466 = vpop.f32.mrb[0].mxu0
    %3467 = vmatprep.mubr.bf16.mxu0 %v813
    %3468 = vmatmul.mubr.bf16.gmra.mrb[0].mxu0 %v748
    %v3469 = vpop.f32.mrb[0].mxu0
    %v3470 = vadd.f32 0.0, %v3469
    %v3471 = vpop.f32.mrb[0].mxu0
    %v3472 = vpop.f32.mrb[0].mxu0
    %v3473 = vadd.f32 0.0, %v3472
    %v3474 = vpop.f32.mrb[0].mxu0
    %3475 = vdwg.mxu0
    %v3476 = vmul.f32 %v3350, 0.5
    %v3477 = vmul.f32 %v3353, 0.5
    %v3478 = vmul.f32 %v3358, 0.5
    %v3479 = vmul.f32 %v3361, 0.5
    %v3480 = vmul.f32 %v3366, 0.5
    %v3481 = vmul.f32 %v3369, 0.5
    %v3482 = vmul.f32 %v3374, 0.5
    %v3483 = vmul.f32 %v3377, 0.5
    %v3484 = vtanh.pop %v3476
    %v3485 = vtanh.pop %v3477
    %v3486 = vtanh.pop %v3478
    %v3487 = vtanh.pop %v3479
    %v3488 = vtanh.pop %v3480
    %v3489 = vtanh.pop %v3481
    %v3490 = vtanh.pop %v3482
    %v3491 = vtanh.pop %v3483
    %v3492 = vadd.f32 %v3484, 1.0
    %v3493 = vadd.f32 %v3485, 1.0
    %v3494 = vadd.f32 %v3486, 1.0
    %v3495 = vadd.f32 %v3487, 1.0
    %v3496 = vadd.f32 %v3488, 1.0
    %v3497 = vadd.f32 %v3489, 1.0
    %v3498 = vadd.f32 %v3490, 1.0
    %v3499 = vadd.f32 %v3491, 1.0
    %v3500 = vmul.f32 %v3492, 0.5
    %v3501 = vmul.f32 %v3493, 0.5
    %v3502 = vmul.f32 %v3494, 0.5
    %v3503 = vmul.f32 %v3495, 0.5
    %v3504 = vmul.f32 %v3496, 0.5
    %v3505 = vmul.f32 %v3497, 0.5
    %v3506 = vmul.f32 %v3498, 0.5
    %v3507 = vmul.f32 %v3499, 0.5
    %v3508 = vmul.f32 %v3382, 0.5
    %v3509 = vmul.f32 %v3385, 0.5
    %v3510 = vmul.f32 %v3390, 0.5
    %v3511 = vmul.f32 %v3393, 0.5
    %v3512 = vmul.f32 %v3398, 0.5
    %v3513 = vmul.f32 %v3401, 0.5
    %v3514 = vmul.f32 %v3406, 0.5
    %v3515 = vmul.f32 %v3409, 0.5
    %v3516 = vtanh.pop %v3508
    %v3517 = vtanh.pop %v3509
    %v3518 = vtanh.pop %v3510
    %v3519 = vtanh.pop %v3511
    %v3520 = vtanh.pop %v3512
    %v3521 = vtanh.pop %v3513
    %v3522 = vtanh.pop %v3514
    %v3523 = vtanh.pop %v3515
    %v3524 = vadd.f32 %v3516, 1.0
    %v3525 = vadd.f32 %v3517, 1.0
    %v3526 = vadd.f32 %v3518, 1.0
    %v3527 = vadd.f32 %v3519, 1.0
    %v3528 = vadd.f32 %v3520, 1.0
    %v3529 = vadd.f32 %v3521, 1.0
    %v3530 = vadd.f32 %v3522, 1.0
    %v3531 = vadd.f32 %v3523, 1.0
    %v3532 = vmul.f32 %v3524, 0.5
    %v3533 = vmul.f32 %v3525, 0.5
    %v3534 = vmul.f32 %v3526, 0.5
    %v3535 = vmul.f32 %v3527, 0.5
    %v3536 = vmul.f32 %v3528, 0.5
    %v3537 = vmul.f32 %v3529, 0.5
    %v3538 = vmul.f32 %v3530, 0.5
    %v3539 = vmul.f32 %v3531, 0.5
    %v3540 = vtanh.pop %v3414
    %v3541 = vtanh.pop %v3417
    %v3542 = vtanh.pop %v3422
    %v3543 = vtanh.pop %v3425
    %v3544 = vtanh.pop %v3430
    %v3545 = vtanh.pop %v3433
    %v3546 = vtanh.pop %v3438
    %v3547 = vtanh.pop %v3441
    %v3548 = vmul.f32 %v3446, 0.5
    %v3549 = vmul.f32 %v3449, 0.5
    %v3550 = vmul.f32 %v3454, 0.5
    %v3551 = vmul.f32 %v3457, 0.5
    %v3552 = vmul.f32 %v3462, 0.5
    %v3553 = vmul.f32 %v3465, 0.5
    %v3554 = vmul.f32 %v3470, 0.5
    %v3555 = vmul.f32 %v3473, 0.5
    %v3556 = vtanh.pop %v3548
    %v3557 = vtanh.pop %v3549
    %v3558 = vtanh.pop %v3550
    %v3559 = vtanh.pop %v3551
    %v3560 = vtanh.pop %v3552
    %v3561 = vtanh.pop %v3553
    %v3562 = vtanh.pop %v3554
    %v3563 = vtanh.pop %v3555
    %v3564 = vadd.f32 %v3556, 1.0
    %v3565 = vadd.f32 %v3557, 1.0
    %v3566 = vadd.f32 %v3558, 1.0
    %v3567 = vadd.f32 %v3559, 1.0
    %v3568 = vadd.f32 %v3560, 1.0
    %v3569 = vadd.f32 %v3561, 1.0
    %v3570 = vadd.f32 %v3562, 1.0
    %v3571 = vadd.f32 %v3563, 1.0
    %v3572 = vmul.f32 %v3564, 0.5
    %v3573 = vmul.f32 %v3565, 0.5
    %v3574 = vmul.f32 %v3566, 0.5
    %v3575 = vmul.f32 %v3567, 0.5
    %v3576 = vmul.f32 %v3568, 0.5
    %v3577 = vmul.f32 %v3569, 0.5
    %v3578 = vmul.f32 %v3570, 0.5
    %v3579 = vmul.f32 %v3571, 0.5
    %v3580 = vmul.f32 %v3532, %v2971
    %v3581 = vmul.f32 %v3533, %v2972
    %v3582 = vmul.f32 %v3534, %v2973
    %v3583 = vmul.f32 %v3535, %v2974
    %v3584 = vmul.f32 %v3536, %v2975
    %v3585 = vmul.f32 %v3537, %v2976
    %v3586 = vmul.f32 %v3538, %v2977
    %v3587 = vmul.f32 %v3539, %v2978
    %v3588 = vmul.f32 %v3500, %v3540
    %v3589 = vmul.f32 %v3501, %v3541
    %v3590 = vmul.f32 %v3502, %v3542
    %v3591 = vmul.f32 %v3503, %v3543
    %v3592 = vmul.f32 %v3504, %v3544
    %v3593 = vmul.f32 %v3505, %v3545
    %v3594 = vmul.f32 %v3506, %v3546
    %v3595 = vmul.f32 %v3507, %v3547
    %v3596 = vadd.f32 %v3580, %v3588
    %v3597 = vadd.f32 %v3581, %v3589
    %v3598 = vadd.f32 %v3582, %v3590
    %v3599 = vadd.f32 %v3583, %v3591
    %v3600 = vadd.f32 %v3584, %v3592
    %v3601 = vadd.f32 %v3585, %v3593
    %v3602 = vadd.f32 %v3586, %v3594
    %v3603 = vadd.f32 %v3587, %v3595
    %v3604 = vtanh.pop %v3596
    %v3605 = vtanh.pop %v3597
    %v3606 = vtanh.pop %v3598
    %v3607 = vtanh.pop %v3599
    %v3608 = vtanh.pop %v3600
    %v3609 = vtanh.pop %v3601
    %v3610 = vtanh.pop %v3602
    %v3611 = vtanh.pop %v3603
    %v3612 = vmul.f32 %v3572, %v3604
    %v3613 = vmul.f32 %v3573, %v3605
    %v3614 = vmul.f32 %v3574, %v3606
    %v3615 = vmul.f32 %v3575, %v3607
    %v3616 = vmul.f32 %v3576, %v3608
    %v3617 = vmul.f32 %v3577, %v3609
    %v3618 = vmul.f32 %v3578, %v3610
    %v3619 = vmul.f32 %v3579, %v3611
    %v3620 = vlaneseq
    %v3621 = vshrl.u32 %v3620, 7
    %v3622 = vsub.s32 5, %v3621
    %v3623 = vrot.slane %v103, %v3622
    %v3624 = vsel %vm63, %v3623, %v67
    %v3625 = vsel %vm64, %v3623, %v68
    %v3626 = vpack.c.bf16 %v3625, %v3624
    %3627 = vmatprep.subr.bf16.mxu0 0
    %3628 = vmatpush1.bf16.msra.mxu0 %v3307
    %3629 = vmatprep.subr.bf16.mxu0 0
    %3630 = vmatpush1.bf16.msra.mxu0 %v3308
    %3631 = vmatprep.subr.bf16.mxu0 0
    %3632 = vmatpush1.bf16.msra.mxu0 %v3309
    %3633 = vmatprep.subr.bf16.mxu0 0
    %3634 = vmatpush1.bf16.msra.mxu0 %v3310
    %3635 = vmatprep.subr.bf16.mxu0 0
    %3636 = vmatpush1.bf16.msra.mxu0 %v3626
    %3637 = vmatprep.subr.bf16.mxu0 0
    %3638 = vmatpush1.bf16.msra.mxu0 0
    %3639 = vmatprep.subr.bf16.mxu0 0
    %3640 = vmatpush1.bf16.msra.mxu0 0
    %3641 = vmatprep.subr.bf16.mxu0 0
    %3642 = vmatpush1.bf16.msra.mxu0 0
    %3643 = vmatprep.subr.bf16.mxu0 0
    %3644 = vmatpush1.bf16.msra.mxu0 0
    %3645 = vmatprep.subr.bf16.mxu0 0
    %3646 = vmatpush1.bf16.msra.mxu0 0
    %3647 = vmatprep.subr.bf16.mxu0 0
    %3648 = vmatpush1.bf16.msra.mxu0 0
    %3649 = vmatprep.subr.bf16.mxu0 0
    %3650 = vmatpush1.bf16.msra.mxu0 0
    %3651 = vmatprep.subr.bf16.mxu0 0
    %3652 = vmatpush1.bf16.msra.mxu0 0
    %3653 = vmatprep.subr.bf16.mxu0 0
    %3654 = vmatpush1.bf16.msra.mxu0 0
    %3655 = vmatprep.subr.bf16.mxu0 0
    %3656 = vmatpush1.bf16.msra.mxu0 0
    %3657 = vmatprep.subr.bf16.mxu0 0
    %3658 = vmatpush1.bf16.msra.mxu0 0
    %3659 = vmatprep.mubr.bf16.mxu0 0
    %3660 = vmatmul.mubr.bf16.gmra.mrb[0].mxu0 %v229
    %v3661 = vpop.f32.mrb[0].mxu0
    %v3662 = vadd.f32 0.0, %v3661
    %v3663 = vpop.f32.mrb[0].mxu0
    %v3664 = vpop.f32.mrb[0].mxu0
    %v3665 = vadd.f32 0.0, %v3664
    %v3666 = vpop.f32.mrb[0].mxu0
    %3667 = vmatprep.mubr.bf16.mxu0 0
    %3668 = vmatmul.mubr.bf16.gmra.mrb[0].mxu0 %v232
    %v3669 = vpop.f32.mrb[0].mxu0
    %v3670 = vadd.f32 0.0, %v3669
    %v3671 = vpop.f32.mrb[0].mxu0
    %v3672 = vpop.f32.mrb[0].mxu0
    %v3673 = vadd.f32 0.0, %v3672
    %v3674 = vpop.f32.mrb[0].mxu0
    %3675 = vmatprep.mubr.bf16.mxu0 0
    %3676 = vmatmul.mubr.bf16.gmra.mrb[0].mxu0 %v235
    %v3677 = vpop.f32.mrb[0].mxu0
    %v3678 = vadd.f32 0.0, %v3677
    %v3679 = vpop.f32.mrb[0].mxu0
    %v3680 = vpop.f32.mrb[0].mxu0
    %v3681 = vadd.f32 0.0, %v3680
    %v3682 = vpop.f32.mrb[0].mxu0
    %3683 = vmatprep.mubr.bf16.mxu0 0
    %3684 = vmatmul.mubr.bf16.gmra.mrb[0].mxu0 %v238
    %v3685 = vpop.f32.mrb[0].mxu0
    %v3686 = vadd.f32 0.0, %v3685
    %v3687 = vpop.f32.mrb[0].mxu0
    %v3688 = vpop.f32.mrb[0].mxu0
    %v3689 = vadd.f32 0.0, %v3688
    %v3690 = vpop.f32.mrb[0].mxu0
    %3691 = vmatprep.mubr.bf16.mxu0 0
    %3692 = vmatmul.mubr.bf16.gmra.mrb[0].mxu0 %v241
    %v3693 = vpop.f32.mrb[0].mxu0
    %v3694 = vadd.f32 0.0, %v3693
    %v3695 = vpop.f32.mrb[0].mxu0
    %v3696 = vpop.f32.mrb[0].mxu0
    %v3697 = vadd.f32 0.0, %v3696
    %v3698 = vpop.f32.mrb[0].mxu0
    %3699 = vmatprep.mubr.bf16.mxu0 0
    %3700 = vmatmul.mubr.bf16.gmra.mrb[0].mxu0 %v244
    %v3701 = vpop.f32.mrb[0].mxu0
    %v3702 = vadd.f32 0.0, %v3701
    %v3703 = vpop.f32.mrb[0].mxu0
    %v3704 = vpop.f32.mrb[0].mxu0
    %v3705 = vadd.f32 0.0, %v3704
    %v3706 = vpop.f32.mrb[0].mxu0
    %3707 = vmatprep.mubr.bf16.mxu0 0
    %3708 = vmatmul.mubr.bf16.gmra.mrb[0].mxu0 %v247
    %v3709 = vpop.f32.mrb[0].mxu0
    %v3710 = vadd.f32 0.0, %v3709
    %v3711 = vpop.f32.mrb[0].mxu0
    %v3712 = vpop.f32.mrb[0].mxu0
    %v3713 = vadd.f32 0.0, %v3712
    %v3714 = vpop.f32.mrb[0].mxu0
    %3715 = vmatprep.mubr.bf16.mxu0 0
    %3716 = vmatmul.mubr.bf16.gmra.mrb[0].mxu0 %v250
    %v3717 = vpop.f32.mrb[0].mxu0
    %v3718 = vadd.f32 0.0, %v3717
    %v3719 = vpop.f32.mrb[0].mxu0
    %v3720 = vpop.f32.mrb[0].mxu0
    %v3721 = vadd.f32 0.0, %v3720
    %v3722 = vpop.f32.mrb[0].mxu0
    %3723 = vmatprep.mubr.bf16.mxu0 0
    %3724 = vmatmul.mubr.bf16.gmra.mrb[0].mxu0 %v253
    %v3725 = vpop.f32.mrb[0].mxu0
    %v3726 = vadd.f32 0.0, %v3725
    %v3727 = vpop.f32.mrb[0].mxu0
    %v3728 = vpop.f32.mrb[0].mxu0
    %v3729 = vadd.f32 0.0, %v3728
    %v3730 = vpop.f32.mrb[0].mxu0
    %3731 = vmatprep.mubr.bf16.mxu0 0
    %3732 = vmatmul.mubr.bf16.gmra.mrb[0].mxu0 %v256
    %v3733 = vpop.f32.mrb[0].mxu0
    %v3734 = vadd.f32 0.0, %v3733
    %v3735 = vpop.f32.mrb[0].mxu0
    %v3736 = vpop.f32.mrb[0].mxu0
    %v3737 = vadd.f32 0.0, %v3736
    %v3738 = vpop.f32.mrb[0].mxu0
    %3739 = vmatprep.mubr.bf16.mxu0 0
    %3740 = vmatmul.mubr.bf16.gmra.mrb[0].mxu0 %v259
    %v3741 = vpop.f32.mrb[0].mxu0
    %v3742 = vadd.f32 0.0, %v3741
    %v3743 = vpop.f32.mrb[0].mxu0
    %v3744 = vpop.f32.mrb[0].mxu0
    %v3745 = vadd.f32 0.0, %v3744
    %v3746 = vpop.f32.mrb[0].mxu0
    %3747 = vmatprep.mubr.bf16.mxu0 0
    %3748 = vmatmul.mubr.bf16.gmra.mrb[0].mxu0 %v262
    %v3749 = vpop.f32.mrb[0].mxu0
    %v3750 = vadd.f32 0.0, %v3749
    %v3751 = vpop.f32.mrb[0].mxu0
    %v3752 = vpop.f32.mrb[0].mxu0
    %v3753 = vadd.f32 0.0, %v3752
    %v3754 = vpop.f32.mrb[0].mxu0
    %3755 = vmatprep.mubr.bf16.mxu0 0
    %3756 = vmatmul.mubr.bf16.gmra.mrb[0].mxu0 %v265
    %v3757 = vpop.f32.mrb[0].mxu0
    %v3758 = vadd.f32 0.0, %v3757
    %v3759 = vpop.f32.mrb[0].mxu0
    %v3760 = vpop.f32.mrb[0].mxu0
    %v3761 = vadd.f32 0.0, %v3760
    %v3762 = vpop.f32.mrb[0].mxu0
    %3763 = vmatprep.mubr.bf16.mxu0 0
    %3764 = vmatmul.mubr.bf16.gmra.mrb[0].mxu0 %v268
    %v3765 = vpop.f32.mrb[0].mxu0
    %v3766 = vadd.f32 0.0, %v3765
    %v3767 = vpop.f32.mrb[0].mxu0
    %v3768 = vpop.f32.mrb[0].mxu0
    %v3769 = vadd.f32 0.0, %v3768
    %v3770 = vpop.f32.mrb[0].mxu0
    %3771 = vmatprep.mubr.bf16.mxu0 0
    %3772 = vmatmul.mubr.bf16.gmra.mrb[0].mxu0 %v271
    %v3773 = vpop.f32.mrb[0].mxu0
    %v3774 = vadd.f32 0.0, %v3773
    %v3775 = vpop.f32.mrb[0].mxu0
    %v3776 = vpop.f32.mrb[0].mxu0
    %v3777 = vadd.f32 0.0, %v3776
    %v3778 = vpop.f32.mrb[0].mxu0
    %3779 = vmatprep.mubr.bf16.mxu0 0
    %3780 = vmatmul.mubr.bf16.gmra.mrb[0].mxu0 %v274
    %v3781 = vpop.f32.mrb[0].mxu0
    %v3782 = vadd.f32 0.0, %v3781
    %v3783 = vpop.f32.mrb[0].mxu0
    %v3784 = vpop.f32.mrb[0].mxu0
    %v3785 = vadd.f32 0.0, %v3784
    %v3786 = vpop.f32.mrb[0].mxu0
    %3787 = vdwg.mxu0
    %v3788 = vmul.f32 %v3662, 0.5
    %v3789 = vmul.f32 %v3665, 0.5
    %v3790 = vmul.f32 %v3670, 0.5
    %v3791 = vmul.f32 %v3673, 0.5
    %v3792 = vmul.f32 %v3678, 0.5
    %v3793 = vmul.f32 %v3681, 0.5
    %v3794 = vmul.f32 %v3686, 0.5
    %v3795 = vmul.f32 %v3689, 0.5
    %v3796 = vtanh.pop %v3788
    %v3797 = vtanh.pop %v3789
    %v3798 = vtanh.pop %v3790
    %v3799 = vtanh.pop %v3791
    %v3800 = vtanh.pop %v3792
    %v3801 = vtanh.pop %v3793
    %v3802 = vtanh.pop %v3794
    %v3803 = vtanh.pop %v3795
    %v3804 = vadd.f32 %v3796, 1.0
    %v3805 = vadd.f32 %v3797, 1.0
    %v3806 = vadd.f32 %v3798, 1.0
    %v3807 = vadd.f32 %v3799, 1.0
    %v3808 = vadd.f32 %v3800, 1.0
    %v3809 = vadd.f32 %v3801, 1.0
    %v3810 = vadd.f32 %v3802, 1.0
    %v3811 = vadd.f32 %v3803, 1.0
    %v3812 = vmul.f32 %v3804, 0.5
    %v3813 = vmul.f32 %v3805, 0.5
    %v3814 = vmul.f32 %v3806, 0.5
    %v3815 = vmul.f32 %v3807, 0.5
    %v3816 = vmul.f32 %v3808, 0.5
    %v3817 = vmul.f32 %v3809, 0.5
    %v3818 = vmul.f32 %v3810, 0.5
    %v3819 = vmul.f32 %v3811, 0.5
    %v3820 = vmul.f32 %v3694, 0.5
    %v3821 = vmul.f32 %v3697, 0.5
    %v3822 = vmul.f32 %v3702, 0.5
    %v3823 = vmul.f32 %v3705, 0.5
    %v3824 = vmul.f32 %v3710, 0.5
    %v3825 = vmul.f32 %v3713, 0.5
    %v3826 = vmul.f32 %v3718, 0.5
    %v3827 = vmul.f32 %v3721, 0.5
    %v3828 = vtanh.pop %v3820
    %v3829 = vtanh.pop %v3821
    %v3830 = vtanh.pop %v3822
    %v3831 = vtanh.pop %v3823
    %v3832 = vtanh.pop %v3824
    %v3833 = vtanh.pop %v3825
    %v3834 = vtanh.pop %v3826
    %v3835 = vtanh.pop %v3827
    %v3836 = vadd.f32 %v3828, 1.0
    %v3837 = vadd.f32 %v3829, 1.0
    %v3838 = vadd.f32 %v3830, 1.0
    %v3839 = vadd.f32 %v3831, 1.0
    %v3840 = vadd.f32 %v3832, 1.0
    %v3841 = vadd.f32 %v3833, 1.0
    %v3842 = vadd.f32 %v3834, 1.0
    %v3843 = vadd.f32 %v3835, 1.0
    %v3844 = vmul.f32 %v3836, 0.5
    %v3845 = vmul.f32 %v3837, 0.5
    %v3846 = vmul.f32 %v3838, 0.5
    %v3847 = vmul.f32 %v3839, 0.5
    %v3848 = vmul.f32 %v3840, 0.5
    %v3849 = vmul.f32 %v3841, 0.5
    %v3850 = vmul.f32 %v3842, 0.5
    %v3851 = vmul.f32 %v3843, 0.5
    %v3852 = vtanh.pop %v3726
    %v3853 = vtanh.pop %v3729
    %v3854 = vtanh.pop %v3734
    %v3855 = vtanh.pop %v3737
    %v3856 = vtanh.pop %v3742
    %v3857 = vtanh.pop %v3745
    %v3858 = vtanh.pop %v3750
    %v3859 = vtanh.pop %v3753
    %v3860 = vmul.f32 %v3758, 0.5
    %v3861 = vmul.f32 %v3761, 0.5
    %v3862 = vmul.f32 %v3766, 0.5
    %v3863 = vmul.f32 %v3769, 0.5
    %v3864 = vmul.f32 %v3774, 0.5
    %v3865 = vmul.f32 %v3777, 0.5
    %v3866 = vmul.f32 %v3782, 0.5
    %v3867 = vmul.f32 %v3785, 0.5
    %v3868 = vtanh.pop %v3860
    %v3869 = vtanh.pop %v3861
    %v3870 = vtanh.pop %v3862
    %v3871 = vtanh.pop %v3863
    %v3872 = vtanh.pop %v3864
    %v3873 = vtanh.pop %v3865
    %v3874 = vtanh.pop %v3866
    %v3875 = vtanh.pop %v3867
    %v3876 = vadd.f32 %v3868, 1.0
    %v3877 = vadd.f32 %v3869, 1.0
    %v3878 = vadd.f32 %v3870, 1.0
    %v3879 = vadd.f32 %v3871, 1.0
    %v3880 = vadd.f32 %v3872, 1.0
    %v3881 = vadd.f32 %v3873, 1.0
    %v3882 = vadd.f32 %v3874, 1.0
    %v3883 = vadd.f32 %v3875, 1.0
    %v3884 = vmul.f32 %v3876, 0.5
    %v3885 = vmul.f32 %v3877, 0.5
    %v3886 = vmul.f32 %v3878, 0.5
    %v3887 = vmul.f32 %v3879, 0.5
    %v3888 = vmul.f32 %v3880, 0.5
    %v3889 = vmul.f32 %v3881, 0.5
    %v3890 = vmul.f32 %v3882, 0.5
    %v3891 = vmul.f32 %v3883, 0.5
    %v3892 = vmul.f32 %v3844, %v3283
    %v3893 = vmul.f32 %v3845, %v3284
    %v3894 = vmul.f32 %v3846, %v3285
    %v3895 = vmul.f32 %v3847, %v3286
    %v3896 = vmul.f32 %v3848, %v3287
    %v3897 = vmul.f32 %v3849, %v3288
    %v3898 = vmul.f32 %v3850, %v3289
    %v3899 = vmul.f32 %v3851, %v3290
    %v3900 = vmul.f32 %v3812, %v3852
    %v3901 = vmul.f32 %v3813, %v3853
    %v3902 = vmul.f32 %v3814, %v3854
    %v3903 = vmul.f32 %v3815, %v3855
    %v3904 = vmul.f32 %v3816, %v3856
    %v3905 = vmul.f32 %v3817, %v3857
    %v3906 = vmul.f32 %v3818, %v3858
    %v3907 = vmul.f32 %v3819, %v3859
    %v3908 = vadd.f32 %v3892, %v3900
    %v3909 = vadd.f32 %v3893, %v3901
    %v3910 = vadd.f32 %v3894, %v3902
    %v3911 = vadd.f32 %v3895, %v3903
    %v3912 = vadd.f32 %v3896, %v3904
    %v3913 = vadd.f32 %v3897, %v3905
    %v3914 = vadd.f32 %v3898, %v3906
    %v3915 = vadd.f32 %v3899, %v3907
    %v3916 = vtanh.pop %v3908
    %v3917 = vtanh.pop %v3909
    %v3918 = vtanh.pop %v3910
    %v3919 = vtanh.pop %v3911
    %v3920 = vtanh.pop %v3912
    %v3921 = vtanh.pop %v3913
    %v3922 = vtanh.pop %v3914
    %v3923 = vtanh.pop %v3915
    %v3924 = vmul.f32 %v3884, %v3916
    %v3925 = vmul.f32 %v3885, %v3917
    %v3926 = vmul.f32 %v3886, %v3918
    %v3927 = vmul.f32 %v3887, %v3919
    %v3928 = vmul.f32 %v3888, %v3920
    %v3929 = vmul.f32 %v3889, %v3921
    %v3930 = vmul.f32 %v3890, %v3922
    %v3931 = vmul.f32 %v3891, %v3923
    %v3932 = vpack.c.bf16 %v3925, %v3924
    %v3933 = vpack.c.bf16 %v3927, %v3926
    %v3934 = vpack.c.bf16 %v3929, %v3928
    %v3935 = vpack.c.bf16 %v3931, %v3930
    %v3936 = vpack.c.bf16 %v3613, %v3612
    %v3937 = vpack.c.bf16 %v3615, %v3614
    %v3938 = vpack.c.bf16 %v3617, %v3616
    %v3939 = vpack.c.bf16 %v3619, %v3618
    %3940 = vmatprep.subr.bf16.mxu0 0
    %3941 = vmatpush1.bf16.msra.mxu0 %v3932
    %3942 = vmatprep.subr.bf16.mxu0 0
    %3943 = vmatpush1.bf16.msra.mxu0 %v3933
    %3944 = vmatprep.subr.bf16.mxu0 0
    %3945 = vmatpush1.bf16.msra.mxu0 %v3934
    %3946 = vmatprep.subr.bf16.mxu0 0
    %3947 = vmatpush1.bf16.msra.mxu0 %v3935
    %3948 = vmatprep.subr.bf16.mxu0 0
    %3949 = vmatpush1.bf16.msra.mxu0 %v3936
    %3950 = vmatprep.subr.bf16.mxu0 0
    %3951 = vmatpush1.bf16.msra.mxu0 %v3937
    %3952 = vmatprep.subr.bf16.mxu0 0
    %3953 = vmatpush1.bf16.msra.mxu0 %v3938
    %3954 = vmatprep.subr.bf16.mxu0 0
    %3955 = vmatpush1.bf16.msra.mxu0 %v3939
    %3956 = vmatprep.subr.bf16.mxu0 0
    %3957 = vmatpush1.bf16.msra.mxu0 %v589
    %3958 = vmatprep.subr.bf16.mxu0 0
    %3959 = vmatpush1.bf16.msra.mxu0 0
    %3960 = vmatprep.subr.bf16.mxu0 0
    %3961 = vmatpush1.bf16.msra.mxu0 0
    %3962 = vmatprep.subr.bf16.mxu0 0
    %3963 = vmatpush1.bf16.msra.mxu0 0
    %3964 = vmatprep.subr.bf16.mxu0 0
    %3965 = vmatpush1.bf16.msra.mxu0 0
    %3966 = vmatprep.subr.bf16.mxu0 0
    %3967 = vmatpush1.bf16.msra.mxu0 0
    %3968 = vmatprep.subr.bf16.mxu0 0
    %3969 = vmatpush1.bf16.msra.mxu0 0
    %3970 = vmatprep.subr.bf16.mxu0 0
    %3971 = vmatpush1.bf16.msra.mxu0 0
    %3972 = vmatprep.mubr.bf16.mxu0 %v768
    %3973 = vmatmul.mubr.bf16.gmra.mrb[0].mxu0 %v718
    %v3974 = vpop.f32.mrb[0].mxu0
    %v3975 = vadd.f32 0.0, %v3974
    %v3976 = vpop.f32.mrb[0].mxu0
    %v3977 = vpop.f32.mrb[0].mxu0
    %v3978 = vadd.f32 0.0, %v3977
    %v3979 = vpop.f32.mrb[0].mxu0
    %3980 = vmatprep.mubr.bf16.mxu0 %v771
    %3981 = vmatmul.mubr.bf16.gmra.mrb[0].mxu0 %v720
    %v3982 = vpop.f32.mrb[0].mxu0
    %v3983 = vadd.f32 0.0, %v3982
    %v3984 = vpop.f32.mrb[0].mxu0
    %v3985 = vpop.f32.mrb[0].mxu0
    %v3986 = vadd.f32 0.0, %v3985
    %v3987 = vpop.f32.mrb[0].mxu0
    %3988 = vmatprep.mubr.bf16.mxu0 %v774
    %3989 = vmatmul.mubr.bf16.gmra.mrb[0].mxu0 %v722
    %v3990 = vpop.f32.mrb[0].mxu0
    %v3991 = vadd.f32 0.0, %v3990
    %v3992 = vpop.f32.mrb[0].mxu0
    %v3993 = vpop.f32.mrb[0].mxu0
    %v3994 = vadd.f32 0.0, %v3993
    %v3995 = vpop.f32.mrb[0].mxu0
    %3996 = vmatprep.mubr.bf16.mxu0 %v777
    %3997 = vmatmul.mubr.bf16.gmra.mrb[0].mxu0 %v724
    %v3998 = vpop.f32.mrb[0].mxu0
    %v3999 = vadd.f32 0.0, %v3998
    %v4000 = vpop.f32.mrb[0].mxu0
    %v4001 = vpop.f32.mrb[0].mxu0
    %v4002 = vadd.f32 0.0, %v4001
    %v4003 = vpop.f32.mrb[0].mxu0
    %4004 = vmatprep.mubr.bf16.mxu0 %v780
    %4005 = vmatmul.mubr.bf16.gmra.mrb[0].mxu0 %v726
    %v4006 = vpop.f32.mrb[0].mxu0
    %v4007 = vadd.f32 0.0, %v4006
    %v4008 = vpop.f32.mrb[0].mxu0
    %v4009 = vpop.f32.mrb[0].mxu0
    %v4010 = vadd.f32 0.0, %v4009
    %v4011 = vpop.f32.mrb[0].mxu0
    %4012 = vmatprep.mubr.bf16.mxu0 %v783
    %4013 = vmatmul.mubr.bf16.gmra.mrb[0].mxu0 %v728
    %v4014 = vpop.f32.mrb[0].mxu0
    %v4015 = vadd.f32 0.0, %v4014
    %v4016 = vpop.f32.mrb[0].mxu0
    %v4017 = vpop.f32.mrb[0].mxu0
    %v4018 = vadd.f32 0.0, %v4017
    %v4019 = vpop.f32.mrb[0].mxu0
    %4020 = vmatprep.mubr.bf16.mxu0 %v786
    %4021 = vmatmul.mubr.bf16.gmra.mrb[0].mxu0 %v730
    %v4022 = vpop.f32.mrb[0].mxu0
    %v4023 = vadd.f32 0.0, %v4022
    %v4024 = vpop.f32.mrb[0].mxu0
    %v4025 = vpop.f32.mrb[0].mxu0
    %v4026 = vadd.f32 0.0, %v4025
    %v4027 = vpop.f32.mrb[0].mxu0
    %4028 = vmatprep.mubr.bf16.mxu0 %v789
    %4029 = vmatmul.mubr.bf16.gmra.mrb[0].mxu0 %v732
    %v4030 = vpop.f32.mrb[0].mxu0
    %v4031 = vadd.f32 0.0, %v4030
    %v4032 = vpop.f32.mrb[0].mxu0
    %v4033 = vpop.f32.mrb[0].mxu0
    %v4034 = vadd.f32 0.0, %v4033
    %v4035 = vpop.f32.mrb[0].mxu0
    %4036 = vmatprep.mubr.bf16.mxu0 %v792
    %4037 = vmatmul.mubr.bf16.gmra.mrb[0].mxu0 %v734
    %v4038 = vpop.f32.mrb[0].mxu0
    %v4039 = vadd.f32 0.0, %v4038
    %v4040 = vpop.f32.mrb[0].mxu0
    %v4041 = vpop.f32.mrb[0].mxu0
    %v4042 = vadd.f32 0.0, %v4041
    %v4043 = vpop.f32.mrb[0].mxu0
    %4044 = vmatprep.mubr.bf16.mxu0 %v795
    %4045 = vmatmul.mubr.bf16.gmra.mrb[0].mxu0 %v736
    %v4046 = vpop.f32.mrb[0].mxu0
    %v4047 = vadd.f32 0.0, %v4046
    %v4048 = vpop.f32.mrb[0].mxu0
    %v4049 = vpop.f32.mrb[0].mxu0
    %v4050 = vadd.f32 0.0, %v4049
    %v4051 = vpop.f32.mrb[0].mxu0
    %4052 = vmatprep.mubr.bf16.mxu0 %v798
    %4053 = vmatmul.mubr.bf16.gmra.mrb[0].mxu0 %v738
    %v4054 = vpop.f32.mrb[0].mxu0
    %v4055 = vadd.f32 0.0, %v4054
    %v4056 = vpop.f32.mrb[0].mxu0
    %v4057 = vpop.f32.mrb[0].mxu0
    %v4058 = vadd.f32 0.0, %v4057
    %v4059 = vpop.f32.mrb[0].mxu0
    %4060 = vmatprep.mubr.bf16.mxu0 %v801
    %4061 = vmatmul.mubr.bf16.gmra.mrb[0].mxu0 %v740
    %v4062 = vpop.f32.mrb[0].mxu0
    %v4063 = vadd.f32 0.0, %v4062
    %v4064 = vpop.f32.mrb[0].mxu0
    %v4065 = vpop.f32.mrb[0].mxu0
    %v4066 = vadd.f32 0.0, %v4065
    %v4067 = vpop.f32.mrb[0].mxu0
    %4068 = vmatprep.mubr.bf16.mxu0 %v804
    %4069 = vmatmul.mubr.bf16.gmra.mrb[0].mxu0 %v742
    %v4070 = vpop.f32.mrb[0].mxu0
    %v4071 = vadd.f32 0.0, %v4070
    %v4072 = vpop.f32.mrb[0].mxu0
    %v4073 = vpop.f32.mrb[0].mxu0
    %v4074 = vadd.f32 0.0, %v4073
    %v4075 = vpop.f32.mrb[0].mxu0
    %4076 = vmatprep.mubr.bf16.mxu0 %v807
    %4077 = vmatmul.mubr.bf16.gmra.mrb[0].mxu0 %v744
    %v4078 = vpop.f32.mrb[0].mxu0
    %v4079 = vadd.f32 0.0, %v4078
    %v4080 = vpop.f32.mrb[0].mxu0
    %v4081 = vpop.f32.mrb[0].mxu0
    %v4082 = vadd.f32 0.0, %v4081
    %v4083 = vpop.f32.mrb[0].mxu0
    %4084 = vmatprep.mubr.bf16.mxu0 %v810
    %4085 = vmatmul.mubr.bf16.gmra.mrb[0].mxu0 %v746
    %v4086 = vpop.f32.mrb[0].mxu0
    %v4087 = vadd.f32 0.0, %v4086
    %v4088 = vpop.f32.mrb[0].mxu0
    %v4089 = vpop.f32.mrb[0].mxu0
    %v4090 = vadd.f32 0.0, %v4089
    %v4091 = vpop.f32.mrb[0].mxu0
    %4092 = vmatprep.mubr.bf16.mxu0 %v813
    %4093 = vmatmul.mubr.bf16.gmra.mrb[0].mxu0 %v748
    %v4094 = vpop.f32.mrb[0].mxu0
    %v4095 = vadd.f32 0.0, %v4094
    %v4096 = vpop.f32.mrb[0].mxu0
    %v4097 = vpop.f32.mrb[0].mxu0
    %v4098 = vadd.f32 0.0, %v4097
    %v4099 = vpop.f32.mrb[0].mxu0
    %4100 = vdwg.mxu0
    %v4101 = vmul.f32 %v3975, 0.5
    %v4102 = vmul.f32 %v3978, 0.5
    %v4103 = vmul.f32 %v3983, 0.5
    %v4104 = vmul.f32 %v3986, 0.5
    %v4105 = vmul.f32 %v3991, 0.5
    %v4106 = vmul.f32 %v3994, 0.5
    %v4107 = vmul.f32 %v3999, 0.5
    %v4108 = vmul.f32 %v4002, 0.5
    %v4109 = vtanh.pop %v4101
    %v4110 = vtanh.pop %v4102
    %v4111 = vtanh.pop %v4103
    %v4112 = vtanh.pop %v4104
    %v4113 = vtanh.pop %v4105
    %v4114 = vtanh.pop %v4106
    %v4115 = vtanh.pop %v4107
    %v4116 = vtanh.pop %v4108
    %v4117 = vadd.f32 %v4109, 1.0
    %v4118 = vadd.f32 %v4110, 1.0
    %v4119 = vadd.f32 %v4111, 1.0
    %v4120 = vadd.f32 %v4112, 1.0
    %v4121 = vadd.f32 %v4113, 1.0
    %v4122 = vadd.f32 %v4114, 1.0
    %v4123 = vadd.f32 %v4115, 1.0
    %v4124 = vadd.f32 %v4116, 1.0
    %v4125 = vmul.f32 %v4117, 0.5
    %v4126 = vmul.f32 %v4118, 0.5
    %v4127 = vmul.f32 %v4119, 0.5
    %v4128 = vmul.f32 %v4120, 0.5
    %v4129 = vmul.f32 %v4121, 0.5
    %v4130 = vmul.f32 %v4122, 0.5
    %v4131 = vmul.f32 %v4123, 0.5
    %v4132 = vmul.f32 %v4124, 0.5
    %v4133 = vmul.f32 %v4007, 0.5
    %v4134 = vmul.f32 %v4010, 0.5
    %v4135 = vmul.f32 %v4015, 0.5
    %v4136 = vmul.f32 %v4018, 0.5
    %v4137 = vmul.f32 %v4023, 0.5
    %v4138 = vmul.f32 %v4026, 0.5
    %v4139 = vmul.f32 %v4031, 0.5
    %v4140 = vmul.f32 %v4034, 0.5
    %v4141 = vtanh.pop %v4133
    %v4142 = vtanh.pop %v4134
    %v4143 = vtanh.pop %v4135
    %v4144 = vtanh.pop %v4136
    %v4145 = vtanh.pop %v4137
    %v4146 = vtanh.pop %v4138
    %v4147 = vtanh.pop %v4139
    %v4148 = vtanh.pop %v4140
    %v4149 = vadd.f32 %v4141, 1.0
    %v4150 = vadd.f32 %v4142, 1.0
    %v4151 = vadd.f32 %v4143, 1.0
    %v4152 = vadd.f32 %v4144, 1.0
    %v4153 = vadd.f32 %v4145, 1.0
    %v4154 = vadd.f32 %v4146, 1.0
    %v4155 = vadd.f32 %v4147, 1.0
    %v4156 = vadd.f32 %v4148, 1.0
    %v4157 = vmul.f32 %v4149, 0.5
    %v4158 = vmul.f32 %v4150, 0.5
    %v4159 = vmul.f32 %v4151, 0.5
    %v4160 = vmul.f32 %v4152, 0.5
    %v4161 = vmul.f32 %v4153, 0.5
    %v4162 = vmul.f32 %v4154, 0.5
    %v4163 = vmul.f32 %v4155, 0.5
    %v4164 = vmul.f32 %v4156, 0.5
    %v4165 = vtanh.pop %v4039
    %v4166 = vtanh.pop %v4042
    %v4167 = vtanh.pop %v4047
    %v4168 = vtanh.pop %v4050
    %v4169 = vtanh.pop %v4055
    %v4170 = vtanh.pop %v4058
    %v4171 = vtanh.pop %v4063
    %v4172 = vtanh.pop %v4066
    %v4173 = vmul.f32 %v4071, 0.5
    %v4174 = vmul.f32 %v4074, 0.5
    %v4175 = vmul.f32 %v4079, 0.5
    %v4176 = vmul.f32 %v4082, 0.5
    %v4177 = vmul.f32 %v4087, 0.5
    %v4178 = vmul.f32 %v4090, 0.5
    %v4179 = vmul.f32 %v4095, 0.5
    %v4180 = vmul.f32 %v4098, 0.5
    %v4181 = vtanh.pop %v4173
    %v4182 = vtanh.pop %v4174
    %v4183 = vtanh.pop %v4175
    %v4184 = vtanh.pop %v4176
    %v4185 = vtanh.pop %v4177
    %v4186 = vtanh.pop %v4178
    %v4187 = vtanh.pop %v4179
    %v4188 = vtanh.pop %v4180
    %v4189 = vadd.f32 %v4181, 1.0
    %v4190 = vadd.f32 %v4182, 1.0
    %v4191 = vadd.f32 %v4183, 1.0
    %v4192 = vadd.f32 %v4184, 1.0
    %v4193 = vadd.f32 %v4185, 1.0
    %v4194 = vadd.f32 %v4186, 1.0
    %v4195 = vadd.f32 %v4187, 1.0
    %v4196 = vadd.f32 %v4188, 1.0
    %v4197 = vmul.f32 %v4189, 0.5
    %v4198 = vmul.f32 %v4190, 0.5
    %v4199 = vmul.f32 %v4191, 0.5
    %v4200 = vmul.f32 %v4192, 0.5
    %v4201 = vmul.f32 %v4193, 0.5
    %v4202 = vmul.f32 %v4194, 0.5
    %v4203 = vmul.f32 %v4195, 0.5
    %v4204 = vmul.f32 %v4196, 0.5
    %v4205 = vmul.f32 %v4157, %v3596
    %v4206 = vmul.f32 %v4158, %v3597
    %v4207 = vmul.f32 %v4159, %v3598
    %v4208 = vmul.f32 %v4160, %v3599
    %v4209 = vmul.f32 %v4161, %v3600
    %v4210 = vmul.f32 %v4162, %v3601
    %v4211 = vmul.f32 %v4163, %v3602
    %v4212 = vmul.f32 %v4164, %v3603
    %v4213 = vmul.f32 %v4125, %v4165
    %v4214 = vmul.f32 %v4126, %v4166
    %v4215 = vmul.f32 %v4127, %v4167
    %v4216 = vmul.f32 %v4128, %v4168
    %v4217 = vmul.f32 %v4129, %v4169
    %v4218 = vmul.f32 %v4130, %v4170
    %v4219 = vmul.f32 %v4131, %v4171
    %v4220 = vmul.f32 %v4132, %v4172
    %v4221 = vadd.f32 %v4205, %v4213
    %v4222 = vadd.f32 %v4206, %v4214
    %v4223 = vadd.f32 %v4207, %v4215
    %v4224 = vadd.f32 %v4208, %v4216
    %v4225 = vadd.f32 %v4209, %v4217
    %v4226 = vadd.f32 %v4210, %v4218
    %v4227 = vadd.f32 %v4211, %v4219
    %v4228 = vadd.f32 %v4212, %v4220
    %v4229 = vtanh.pop %v4221
    %v4230 = vtanh.pop %v4222
    %v4231 = vtanh.pop %v4223
    %v4232 = vtanh.pop %v4224
    %v4233 = vtanh.pop %v4225
    %v4234 = vtanh.pop %v4226
    %v4235 = vtanh.pop %v4227
    %v4236 = vtanh.pop %v4228
    %v4237 = vmul.f32 %v4197, %v4229
    %v4238 = vmul.f32 %v4198, %v4230
    %v4239 = vmul.f32 %v4199, %v4231
    %v4240 = vmul.f32 %v4200, %v4232
    %v4241 = vmul.f32 %v4201, %v4233
    %v4242 = vmul.f32 %v4202, %v4234
    %v4243 = vmul.f32 %v4203, %v4235
    %v4244 = vmul.f32 %v4204, %v4236
    %v4245 = vlaneseq
    %v4246 = vshrl.u32 %v4245, 7
    %v4247 = vsub.s32 6, %v4246
    %v4248 = vrot.slane %v103, %v4247
    %v4249 = vsel %vm63, %v4248, %v67
    %v4250 = vsel %vm64, %v4248, %v68
    %v4251 = vpack.c.bf16 %v4250, %v4249
    %4252 = vmatprep.subr.bf16.mxu0 0
    %4253 = vmatpush1.bf16.msra.mxu0 %v3932
    %4254 = vmatprep.subr.bf16.mxu0 0
    %4255 = vmatpush1.bf16.msra.mxu0 %v3933
    %4256 = vmatprep.subr.bf16.mxu0 0
    %4257 = vmatpush1.bf16.msra.mxu0 %v3934
    %4258 = vmatprep.subr.bf16.mxu0 0
    %4259 = vmatpush1.bf16.msra.mxu0 %v3935
    %4260 = vmatprep.subr.bf16.mxu0 0
    %4261 = vmatpush1.bf16.msra.mxu0 %v4251
    %4262 = vmatprep.subr.bf16.mxu0 0
    %4263 = vmatpush1.bf16.msra.mxu0 0
    %4264 = vmatprep.subr.bf16.mxu0 0
    %4265 = vmatpush1.bf16.msra.mxu0 0
    %4266 = vmatprep.subr.bf16.mxu0 0
    %4267 = vmatpush1.bf16.msra.mxu0 0
    %4268 = vmatprep.subr.bf16.mxu0 0
    %4269 = vmatpush1.bf16.msra.mxu0 0
    %4270 = vmatprep.subr.bf16.mxu0 0
    %4271 = vmatpush1.bf16.msra.mxu0 0
    %4272 = vmatprep.subr.bf16.mxu0 0
    %4273 = vmatpush1.bf16.msra.mxu0 0
    %4274 = vmatprep.subr.bf16.mxu0 0
    %4275 = vmatpush1.bf16.msra.mxu0 0
    %4276 = vmatprep.subr.bf16.mxu0 0
    %4277 = vmatpush1.bf16.msra.mxu0 0
    %4278 = vmatprep.subr.bf16.mxu0 0
    %4279 = vmatpush1.bf16.msra.mxu0 0
    %4280 = vmatprep.subr.bf16.mxu0 0
    %4281 = vmatpush1.bf16.msra.mxu0 0
    %4282 = vmatprep.subr.bf16.mxu0 0
    %4283 = vmatpush1.bf16.msra.mxu0 0
    %4284 = vmatprep.mubr.bf16.mxu0 0
    %4285 = vmatmul.mubr.bf16.gmra.mrb[0].mxu0 %v229
    %v4286 = vpop.f32.mrb[0].mxu0
    %v4287 = vadd.f32 0.0, %v4286
    %v4288 = vpop.f32.mrb[0].mxu0
    %v4289 = vpop.f32.mrb[0].mxu0
    %v4290 = vadd.f32 0.0, %v4289
    %v4291 = vpop.f32.mrb[0].mxu0
    %4292 = vmatprep.mubr.bf16.mxu0 0
    %4293 = vmatmul.mubr.bf16.gmra.mrb[0].mxu0 %v232
    %v4294 = vpop.f32.mrb[0].mxu0
    %v4295 = vadd.f32 0.0, %v4294
    %v4296 = vpop.f32.mrb[0].mxu0
    %v4297 = vpop.f32.mrb[0].mxu0
    %v4298 = vadd.f32 0.0, %v4297
    %v4299 = vpop.f32.mrb[0].mxu0
    %4300 = vmatprep.mubr.bf16.mxu0 0
    %4301 = vmatmul.mubr.bf16.gmra.mrb[0].mxu0 %v235
    %v4302 = vpop.f32.mrb[0].mxu0
    %v4303 = vadd.f32 0.0, %v4302
    %v4304 = vpop.f32.mrb[0].mxu0
    %v4305 = vpop.f32.mrb[0].mxu0
    %v4306 = vadd.f32 0.0, %v4305
    %v4307 = vpop.f32.mrb[0].mxu0
    %4308 = vmatprep.mubr.bf16.mxu0 0
    %4309 = vmatmul.mubr.bf16.gmra.mrb[0].mxu0 %v238
    %v4310 = vpop.f32.mrb[0].mxu0
    %v4311 = vadd.f32 0.0, %v4310
    %v4312 = vpop.f32.mrb[0].mxu0
    %v4313 = vpop.f32.mrb[0].mxu0
    %v4314 = vadd.f32 0.0, %v4313
    %v4315 = vpop.f32.mrb[0].mxu0
    %4316 = vmatprep.mubr.bf16.mxu0 0
    %4317 = vmatmul.mubr.bf16.gmra.mrb[0].mxu0 %v241
    %v4318 = vpop.f32.mrb[0].mxu0
    %v4319 = vadd.f32 0.0, %v4318
    %v4320 = vpop.f32.mrb[0].mxu0
    %v4321 = vpop.f32.mrb[0].mxu0
    %v4322 = vadd.f32 0.0, %v4321
    %v4323 = vpop.f32.mrb[0].mxu0
    %4324 = vmatprep.mubr.bf16.mxu0 0
    %4325 = vmatmul.mubr.bf16.gmra.mrb[0].mxu0 %v244
    %v4326 = vpop.f32.mrb[0].mxu0
    %v4327 = vadd.f32 0.0, %v4326
    %v4328 = vpop.f32.mrb[0].mxu0
    %v4329 = vpop.f32.mrb[0].mxu0
    %v4330 = vadd.f32 0.0, %v4329
    %v4331 = vpop.f32.mrb[0].mxu0
    %4332 = vmatprep.mubr.bf16.mxu0 0
    %4333 = vmatmul.mubr.bf16.gmra.mrb[0].mxu0 %v247
    %v4334 = vpop.f32.mrb[0].mxu0
    %v4335 = vadd.f32 0.0, %v4334
    %v4336 = vpop.f32.mrb[0].mxu0
    %v4337 = vpop.f32.mrb[0].mxu0
    %v4338 = vadd.f32 0.0, %v4337
    %v4339 = vpop.f32.mrb[0].mxu0
    %4340 = vmatprep.mubr.bf16.mxu0 0
    %4341 = vmatmul.mubr.bf16.gmra.mrb[0].mxu0 %v250
    %v4342 = vpop.f32.mrb[0].mxu0
    %v4343 = vadd.f32 0.0, %v4342
    %v4344 = vpop.f32.mrb[0].mxu0
    %v4345 = vpop.f32.mrb[0].mxu0
    %v4346 = vadd.f32 0.0, %v4345
    %v4347 = vpop.f32.mrb[0].mxu0
    %4348 = vmatprep.mubr.bf16.mxu0 0
    %4349 = vmatmul.mubr.bf16.gmra.mrb[0].mxu0 %v253
    %v4350 = vpop.f32.mrb[0].mxu0
    %v4351 = vadd.f32 0.0, %v4350
    %v4352 = vpop.f32.mrb[0].mxu0
    %v4353 = vpop.f32.mrb[0].mxu0
    %v4354 = vadd.f32 0.0, %v4353
    %v4355 = vpop.f32.mrb[0].mxu0
    %4356 = vmatprep.mubr.bf16.mxu0 0
    %4357 = vmatmul.mubr.bf16.gmra.mrb[0].mxu0 %v256
    %v4358 = vpop.f32.mrb[0].mxu0
    %v4359 = vadd.f32 0.0, %v4358
    %v4360 = vpop.f32.mrb[0].mxu0
    %v4361 = vpop.f32.mrb[0].mxu0
    %v4362 = vadd.f32 0.0, %v4361
    %v4363 = vpop.f32.mrb[0].mxu0
    %4364 = vmatprep.mubr.bf16.mxu0 0
    %4365 = vmatmul.mubr.bf16.gmra.mrb[0].mxu0 %v259
    %v4366 = vpop.f32.mrb[0].mxu0
    %v4367 = vadd.f32 0.0, %v4366
    %v4368 = vpop.f32.mrb[0].mxu0
    %v4369 = vpop.f32.mrb[0].mxu0
    %v4370 = vadd.f32 0.0, %v4369
    %v4371 = vpop.f32.mrb[0].mxu0
    %4372 = vmatprep.mubr.bf16.mxu0 0
    %4373 = vmatmul.mubr.bf16.gmra.mrb[0].mxu0 %v262
    %v4374 = vpop.f32.mrb[0].mxu0
    %v4375 = vadd.f32 0.0, %v4374
    %v4376 = vpop.f32.mrb[0].mxu0
    %v4377 = vpop.f32.mrb[0].mxu0
    %v4378 = vadd.f32 0.0, %v4377
    %v4379 = vpop.f32.mrb[0].mxu0
    %4380 = vmatprep.mubr.bf16.mxu0 0
    %4381 = vmatmul.mubr.bf16.gmra.mrb[0].mxu0 %v265
    %v4382 = vpop.f32.mrb[0].mxu0
    %v4383 = vadd.f32 0.0, %v4382
    %v4384 = vpop.f32.mrb[0].mxu0
    %v4385 = vpop.f32.mrb[0].mxu0
    %v4386 = vadd.f32 0.0, %v4385
    %v4387 = vpop.f32.mrb[0].mxu0
    %4388 = vmatprep.mubr.bf16.mxu0 0
    %4389 = vmatmul.mubr.bf16.gmra.mrb[0].mxu0 %v268
    %v4390 = vpop.f32.mrb[0].mxu0
    %v4391 = vadd.f32 0.0, %v4390
    %v4392 = vpop.f32.mrb[0].mxu0
    %v4393 = vpop.f32.mrb[0].mxu0
    %v4394 = vadd.f32 0.0, %v4393
    %v4395 = vpop.f32.mrb[0].mxu0
    %4396 = vmatprep.mubr.bf16.mxu0 0
    %4397 = vmatmul.mubr.bf16.gmra.mrb[0].mxu0 %v271
    %v4398 = vpop.f32.mrb[0].mxu0
    %v4399 = vadd.f32 0.0, %v4398
    %v4400 = vpop.f32.mrb[0].mxu0
    %v4401 = vpop.f32.mrb[0].mxu0
    %v4402 = vadd.f32 0.0, %v4401
    %v4403 = vpop.f32.mrb[0].mxu0
    %4404 = vmatprep.mubr.bf16.mxu0 0
    %4405 = vmatmul.mubr.bf16.gmra.mrb[0].mxu0 %v274
    %v4406 = vpop.f32.mrb[0].mxu0
    %v4407 = vadd.f32 0.0, %v4406
    %v4408 = vpop.f32.mrb[0].mxu0
    %v4409 = vpop.f32.mrb[0].mxu0
    %v4410 = vadd.f32 0.0, %v4409
    %v4411 = vpop.f32.mrb[0].mxu0
    %4412 = vdwg.mxu0
    %v4413 = vmul.f32 %v4287, 0.5
    %v4414 = vmul.f32 %v4290, 0.5
    %v4415 = vmul.f32 %v4295, 0.5
    %v4416 = vmul.f32 %v4298, 0.5
    %v4417 = vmul.f32 %v4303, 0.5
    %v4418 = vmul.f32 %v4306, 0.5
    %v4419 = vmul.f32 %v4311, 0.5
    %v4420 = vmul.f32 %v4314, 0.5
    %v4421 = vtanh.pop %v4413
    %v4422 = vtanh.pop %v4414
    %v4423 = vtanh.pop %v4415
    %v4424 = vtanh.pop %v4416
    %v4425 = vtanh.pop %v4417
    %v4426 = vtanh.pop %v4418
    %v4427 = vtanh.pop %v4419
    %v4428 = vtanh.pop %v4420
    %v4429 = vadd.f32 %v4421, 1.0
    %v4430 = vadd.f32 %v4422, 1.0
    %v4431 = vadd.f32 %v4423, 1.0
    %v4432 = vadd.f32 %v4424, 1.0
    %v4433 = vadd.f32 %v4425, 1.0
    %v4434 = vadd.f32 %v4426, 1.0
    %v4435 = vadd.f32 %v4427, 1.0
    %v4436 = vadd.f32 %v4428, 1.0
    %v4437 = vmul.f32 %v4429, 0.5
    %v4438 = vmul.f32 %v4430, 0.5
    %v4439 = vmul.f32 %v4431, 0.5
    %v4440 = vmul.f32 %v4432, 0.5
    %v4441 = vmul.f32 %v4433, 0.5
    %v4442 = vmul.f32 %v4434, 0.5
    %v4443 = vmul.f32 %v4435, 0.5
    %v4444 = vmul.f32 %v4436, 0.5
    %v4445 = vmul.f32 %v4319, 0.5
    %v4446 = vmul.f32 %v4322, 0.5
    %v4447 = vmul.f32 %v4327, 0.5
    %v4448 = vmul.f32 %v4330, 0.5
    %v4449 = vmul.f32 %v4335, 0.5
    %v4450 = vmul.f32 %v4338, 0.5
    %v4451 = vmul.f32 %v4343, 0.5
    %v4452 = vmul.f32 %v4346, 0.5
    %v4453 = vtanh.pop %v4445
    %v4454 = vtanh.pop %v4446
    %v4455 = vtanh.pop %v4447
    %v4456 = vtanh.pop %v4448
    %v4457 = vtanh.pop %v4449
    %v4458 = vtanh.pop %v4450
    %v4459 = vtanh.pop %v4451
    %v4460 = vtanh.pop %v4452
    %v4461 = vadd.f32 %v4453, 1.0
    %v4462 = vadd.f32 %v4454, 1.0
    %v4463 = vadd.f32 %v4455, 1.0
    %v4464 = vadd.f32 %v4456, 1.0
    %v4465 = vadd.f32 %v4457, 1.0
    %v4466 = vadd.f32 %v4458, 1.0
    %v4467 = vadd.f32 %v4459, 1.0
    %v4468 = vadd.f32 %v4460, 1.0
    %v4469 = vmul.f32 %v4461, 0.5
    %v4470 = vmul.f32 %v4462, 0.5
    %v4471 = vmul.f32 %v4463, 0.5
    %v4472 = vmul.f32 %v4464, 0.5
    %v4473 = vmul.f32 %v4465, 0.5
    %v4474 = vmul.f32 %v4466, 0.5
    %v4475 = vmul.f32 %v4467, 0.5
    %v4476 = vmul.f32 %v4468, 0.5
    %v4477 = vtanh.pop %v4351
    %v4478 = vtanh.pop %v4354
    %v4479 = vtanh.pop %v4359
    %v4480 = vtanh.pop %v4362
    %v4481 = vtanh.pop %v4367
    %v4482 = vtanh.pop %v4370
    %v4483 = vtanh.pop %v4375
    %v4484 = vtanh.pop %v4378
    %v4485 = vmul.f32 %v4383, 0.5
    %v4486 = vmul.f32 %v4386, 0.5
    %v4487 = vmul.f32 %v4391, 0.5
    %v4488 = vmul.f32 %v4394, 0.5
    %v4489 = vmul.f32 %v4399, 0.5
    %v4490 = vmul.f32 %v4402, 0.5
    %v4491 = vmul.f32 %v4407, 0.5
    %v4492 = vmul.f32 %v4410, 0.5
    %v4493 = vtanh.pop %v4485
    %v4494 = vtanh.pop %v4486
    %v4495 = vtanh.pop %v4487
    %v4496 = vtanh.pop %v4488
    %v4497 = vtanh.pop %v4489
    %v4498 = vtanh.pop %v4490
    %v4499 = vtanh.pop %v4491
    %v4500 = vtanh.pop %v4492
    %v4501 = vadd.f32 %v4493, 1.0
    %v4502 = vadd.f32 %v4494, 1.0
    %v4503 = vadd.f32 %v4495, 1.0
    %v4504 = vadd.f32 %v4496, 1.0
    %v4505 = vadd.f32 %v4497, 1.0
    %v4506 = vadd.f32 %v4498, 1.0
    %v4507 = vadd.f32 %v4499, 1.0
    %v4508 = vadd.f32 %v4500, 1.0
    %v4509 = vmul.f32 %v4501, 0.5
    %v4510 = vmul.f32 %v4502, 0.5
    %v4511 = vmul.f32 %v4503, 0.5
    %v4512 = vmul.f32 %v4504, 0.5
    %v4513 = vmul.f32 %v4505, 0.5
    %v4514 = vmul.f32 %v4506, 0.5
    %v4515 = vmul.f32 %v4507, 0.5
    %v4516 = vmul.f32 %v4508, 0.5
    %v4517 = vmul.f32 %v4469, %v3908
    %v4518 = vmul.f32 %v4470, %v3909
    %v4519 = vmul.f32 %v4471, %v3910
    %v4520 = vmul.f32 %v4472, %v3911
    %v4521 = vmul.f32 %v4473, %v3912
    %v4522 = vmul.f32 %v4474, %v3913
    %v4523 = vmul.f32 %v4475, %v3914
    %v4524 = vmul.f32 %v4476, %v3915
    %v4525 = vmul.f32 %v4437, %v4477
    %v4526 = vmul.f32 %v4438, %v4478
    %v4527 = vmul.f32 %v4439, %v4479
    %v4528 = vmul.f32 %v4440, %v4480
    %v4529 = vmul.f32 %v4441, %v4481
    %v4530 = vmul.f32 %v4442, %v4482
    %v4531 = vmul.f32 %v4443, %v4483
    %v4532 = vmul.f32 %v4444, %v4484
    %v4533 = vadd.f32 %v4517, %v4525
    %v4534 = vadd.f32 %v4518, %v4526
    %v4535 = vadd.f32 %v4519, %v4527
    %v4536 = vadd.f32 %v4520, %v4528
    %v4537 = vadd.f32 %v4521, %v4529
    %v4538 = vadd.f32 %v4522, %v4530
    %v4539 = vadd.f32 %v4523, %v4531
    %v4540 = vadd.f32 %v4524, %v4532
    %v4541 = vtanh.pop %v4533
    %v4542 = vtanh.pop %v4534
    %v4543 = vtanh.pop %v4535
    %v4544 = vtanh.pop %v4536
    %v4545 = vtanh.pop %v4537
    %v4546 = vtanh.pop %v4538
    %v4547 = vtanh.pop %v4539
    %v4548 = vtanh.pop %v4540
    %v4549 = vmul.f32 %v4509, %v4541
    %v4550 = vmul.f32 %v4510, %v4542
    %v4551 = vmul.f32 %v4511, %v4543
    %v4552 = vmul.f32 %v4512, %v4544
    %v4553 = vmul.f32 %v4513, %v4545
    %v4554 = vmul.f32 %v4514, %v4546
    %v4555 = vmul.f32 %v4515, %v4547
    %v4556 = vmul.f32 %v4516, %v4548
    %v4557 = vpack.c.bf16 %v4550, %v4549
    %v4558 = vpack.c.bf16 %v4552, %v4551
    %v4559 = vpack.c.bf16 %v4554, %v4553
    %v4560 = vpack.c.bf16 %v4556, %v4555
    %v4561 = vpack.c.bf16 %v4238, %v4237
    %v4562 = vpack.c.bf16 %v4240, %v4239
    %v4563 = vpack.c.bf16 %v4242, %v4241
    %v4564 = vpack.c.bf16 %v4244, %v4243
    %4565 = vmatprep.subr.bf16.mxu0 0
    %4566 = vmatpush1.bf16.msra.mxu0 %v4557
    %4567 = vmatprep.subr.bf16.mxu0 0
    %4568 = vmatpush1.bf16.msra.mxu0 %v4558
    %4569 = vmatprep.subr.bf16.mxu0 0
    %4570 = vmatpush1.bf16.msra.mxu0 %v4559
    %4571 = vmatprep.subr.bf16.mxu0 0
    %4572 = vmatpush1.bf16.msra.mxu0 %v4560
    %4573 = vmatprep.subr.bf16.mxu0 0
    %4574 = vmatpush1.bf16.msra.mxu0 %v4561
    %4575 = vmatprep.subr.bf16.mxu0 0
    %4576 = vmatpush1.bf16.msra.mxu0 %v4562
    %4577 = vmatprep.subr.bf16.mxu0 0
    %4578 = vmatpush1.bf16.msra.mxu0 %v4563
    %4579 = vmatprep.subr.bf16.mxu0 0
    %4580 = vmatpush1.bf16.msra.mxu0 %v4564
    %4581 = vmatprep.subr.bf16.mxu0 0
    %4582 = vmatpush1.bf16.msra.mxu0 %v589
    %4583 = vmatprep.subr.bf16.mxu0 0
    %4584 = vmatpush1.bf16.msra.mxu0 0
    %4585 = vmatprep.subr.bf16.mxu0 0
    %4586 = vmatpush1.bf16.msra.mxu0 0
    %4587 = vmatprep.subr.bf16.mxu0 0
    %4588 = vmatpush1.bf16.msra.mxu0 0
    %4589 = vmatprep.subr.bf16.mxu0 0
    %4590 = vmatpush1.bf16.msra.mxu0 0
    %4591 = vmatprep.subr.bf16.mxu0 0
    %4592 = vmatpush1.bf16.msra.mxu0 0
    %4593 = vmatprep.subr.bf16.mxu0 0
    %4594 = vmatpush1.bf16.msra.mxu0 0
    %4595 = vmatprep.subr.bf16.mxu0 0
    %4596 = vmatpush1.bf16.msra.mxu0 0
    %4597 = vmatprep.mubr.bf16.mxu0 %v768
    %4598 = vmatmul.mubr.bf16.gmra.mrb[0].mxu0 %v718
    %v4599 = vpop.f32.mrb[0].mxu0
    %v4600 = vadd.f32 0.0, %v4599
    %v4601 = vpop.f32.mrb[0].mxu0
    %v4602 = vpop.f32.mrb[0].mxu0
    %v4603 = vadd.f32 0.0, %v4602
    %v4604 = vpop.f32.mrb[0].mxu0
    %4605 = vmatprep.mubr.bf16.mxu0 %v771
    %4606 = vmatmul.mubr.bf16.gmra.mrb[0].mxu0 %v720
    %v4607 = vpop.f32.mrb[0].mxu0
    %v4608 = vadd.f32 0.0, %v4607
    %v4609 = vpop.f32.mrb[0].mxu0
    %v4610 = vpop.f32.mrb[0].mxu0
    %v4611 = vadd.f32 0.0, %v4610
    %v4612 = vpop.f32.mrb[0].mxu0
    %4613 = vmatprep.mubr.bf16.mxu0 %v774
    %4614 = vmatmul.mubr.bf16.gmra.mrb[0].mxu0 %v722
    %v4615 = vpop.f32.mrb[0].mxu0
    %v4616 = vadd.f32 0.0, %v4615
    %v4617 = vpop.f32.mrb[0].mxu0
    %v4618 = vpop.f32.mrb[0].mxu0
    %v4619 = vadd.f32 0.0, %v4618
    %v4620 = vpop.f32.mrb[0].mxu0
    %4621 = vmatprep.mubr.bf16.mxu0 %v777
    %4622 = vmatmul.mubr.bf16.gmra.mrb[0].mxu0 %v724
    %v4623 = vpop.f32.mrb[0].mxu0
    %v4624 = vadd.f32 0.0, %v4623
    %v4625 = vpop.f32.mrb[0].mxu0
    %v4626 = vpop.f32.mrb[0].mxu0
    %v4627 = vadd.f32 0.0, %v4626
    %v4628 = vpop.f32.mrb[0].mxu0
    %4629 = vmatprep.mubr.bf16.mxu0 %v780
    %4630 = vmatmul.mubr.bf16.gmra.mrb[0].mxu0 %v726
    %v4631 = vpop.f32.mrb[0].mxu0
    %v4632 = vadd.f32 0.0, %v4631
    %v4633 = vpop.f32.mrb[0].mxu0
    %v4634 = vpop.f32.mrb[0].mxu0
    %v4635 = vadd.f32 0.0, %v4634
    %v4636 = vpop.f32.mrb[0].mxu0
    %4637 = vmatprep.mubr.bf16.mxu0 %v783
    %4638 = vmatmul.mubr.bf16.gmra.mrb[0].mxu0 %v728
    %v4639 = vpop.f32.mrb[0].mxu0
    %v4640 = vadd.f32 0.0, %v4639
    %v4641 = vpop.f32.mrb[0].mxu0
    %v4642 = vpop.f32.mrb[0].mxu0
    %v4643 = vadd.f32 0.0, %v4642
    %v4644 = vpop.f32.mrb[0].mxu0
    %4645 = vmatprep.mubr.bf16.mxu0 %v786
    %4646 = vmatmul.mubr.bf16.gmra.mrb[0].mxu0 %v730
    %v4647 = vpop.f32.mrb[0].mxu0
    %v4648 = vadd.f32 0.0, %v4647
    %v4649 = vpop.f32.mrb[0].mxu0
    %v4650 = vpop.f32.mrb[0].mxu0
    %v4651 = vadd.f32 0.0, %v4650
    %v4652 = vpop.f32.mrb[0].mxu0
    %4653 = vmatprep.mubr.bf16.mxu0 %v789
    %4654 = vmatmul.mubr.bf16.gmra.mrb[0].mxu0 %v732
    %v4655 = vpop.f32.mrb[0].mxu0
    %v4656 = vadd.f32 0.0, %v4655
    %v4657 = vpop.f32.mrb[0].mxu0
    %v4658 = vpop.f32.mrb[0].mxu0
    %v4659 = vadd.f32 0.0, %v4658
    %v4660 = vpop.f32.mrb[0].mxu0
    %4661 = vmatprep.mubr.bf16.mxu0 %v792
    %4662 = vmatmul.mubr.bf16.gmra.mrb[0].mxu0 %v734
    %v4663 = vpop.f32.mrb[0].mxu0
    %v4664 = vadd.f32 0.0, %v4663
    %v4665 = vpop.f32.mrb[0].mxu0
    %v4666 = vpop.f32.mrb[0].mxu0
    %v4667 = vadd.f32 0.0, %v4666
    %v4668 = vpop.f32.mrb[0].mxu0
    %4669 = vmatprep.mubr.bf16.mxu0 %v795
    %4670 = vmatmul.mubr.bf16.gmra.mrb[0].mxu0 %v736
    %v4671 = vpop.f32.mrb[0].mxu0
    %v4672 = vadd.f32 0.0, %v4671
    %v4673 = vpop.f32.mrb[0].mxu0
    %v4674 = vpop.f32.mrb[0].mxu0
    %v4675 = vadd.f32 0.0, %v4674
    %v4676 = vpop.f32.mrb[0].mxu0
    %4677 = vmatprep.mubr.bf16.mxu0 %v798
    %4678 = vmatmul.mubr.bf16.gmra.mrb[0].mxu0 %v738
    %v4679 = vpop.f32.mrb[0].mxu0
    %v4680 = vadd.f32 0.0, %v4679
    %v4681 = vpop.f32.mrb[0].mxu0
    %v4682 = vpop.f32.mrb[0].mxu0
    %v4683 = vadd.f32 0.0, %v4682
    %v4684 = vpop.f32.mrb[0].mxu0
    %4685 = vmatprep.mubr.bf16.mxu0 %v801
    %4686 = vmatmul.mubr.bf16.gmra.mrb[0].mxu0 %v740
    %v4687 = vpop.f32.mrb[0].mxu0
    %v4688 = vadd.f32 0.0, %v4687
    %v4689 = vpop.f32.mrb[0].mxu0
    %v4690 = vpop.f32.mrb[0].mxu0
    %v4691 = vadd.f32 0.0, %v4690
    %v4692 = vpop.f32.mrb[0].mxu0
    %4693 = vmatprep.mubr.bf16.mxu0 %v804
    %4694 = vmatmul.mubr.bf16.gmra.mrb[0].mxu0 %v742
    %v4695 = vpop.f32.mrb[0].mxu0
    %v4696 = vadd.f32 0.0, %v4695
    %v4697 = vpop.f32.mrb[0].mxu0
    %v4698 = vpop.f32.mrb[0].mxu0
    %v4699 = vadd.f32 0.0, %v4698
    %v4700 = vpop.f32.mrb[0].mxu0
    %4701 = vmatprep.mubr.bf16.mxu0 %v807
    %4702 = vmatmul.mubr.bf16.gmra.mrb[0].mxu0 %v744
    %v4703 = vpop.f32.mrb[0].mxu0
    %v4704 = vadd.f32 0.0, %v4703
    %v4705 = vpop.f32.mrb[0].mxu0
    %v4706 = vpop.f32.mrb[0].mxu0
    %v4707 = vadd.f32 0.0, %v4706
    %v4708 = vpop.f32.mrb[0].mxu0
    %4709 = vmatprep.mubr.bf16.mxu0 %v810
    %4710 = vmatmul.mubr.bf16.gmra.mrb[0].mxu0 %v746
    %v4711 = vpop.f32.mrb[0].mxu0
    %v4712 = vadd.f32 0.0, %v4711
    %v4713 = vpop.f32.mrb[0].mxu0
    %v4714 = vpop.f32.mrb[0].mxu0
    %v4715 = vadd.f32 0.0, %v4714
    %v4716 = vpop.f32.mrb[0].mxu0
    %4717 = vmatprep.mubr.bf16.mxu0 %v813
    %4718 = vmatmul.mubr.bf16.gmra.mrb[0].mxu0 %v748
    %v4719 = vpop.f32.mrb[0].mxu0
    %v4720 = vadd.f32 0.0, %v4719
    %v4721 = vpop.f32.mrb[0].mxu0
    %v4722 = vpop.f32.mrb[0].mxu0
    %v4723 = vadd.f32 0.0, %v4722
    %v4724 = vpop.f32.mrb[0].mxu0
    %4725 = vdwg.mxu0
    %v4726 = vmul.f32 %v4600, 0.5
    %v4727 = vmul.f32 %v4603, 0.5
    %v4728 = vmul.f32 %v4608, 0.5
    %v4729 = vmul.f32 %v4611, 0.5
    %v4730 = vmul.f32 %v4616, 0.5
    %v4731 = vmul.f32 %v4619, 0.5
    %v4732 = vmul.f32 %v4624, 0.5
    %v4733 = vmul.f32 %v4627, 0.5
    %v4734 = vtanh.pop %v4726
    %v4735 = vtanh.pop %v4727
    %v4736 = vtanh.pop %v4728
    %v4737 = vtanh.pop %v4729
    %v4738 = vtanh.pop %v4730
    %v4739 = vtanh.pop %v4731
    %v4740 = vtanh.pop %v4732
    %v4741 = vtanh.pop %v4733
    %v4742 = vadd.f32 %v4734, 1.0
    %v4743 = vadd.f32 %v4735, 1.0
    %v4744 = vadd.f32 %v4736, 1.0
    %v4745 = vadd.f32 %v4737, 1.0
    %v4746 = vadd.f32 %v4738, 1.0
    %v4747 = vadd.f32 %v4739, 1.0
    %v4748 = vadd.f32 %v4740, 1.0
    %v4749 = vadd.f32 %v4741, 1.0
    %v4750 = vmul.f32 %v4742, 0.5
    %v4751 = vmul.f32 %v4743, 0.5
    %v4752 = vmul.f32 %v4744, 0.5
    %v4753 = vmul.f32 %v4745, 0.5
    %v4754 = vmul.f32 %v4746, 0.5
    %v4755 = vmul.f32 %v4747, 0.5
    %v4756 = vmul.f32 %v4748, 0.5
    %v4757 = vmul.f32 %v4749, 0.5
    %v4758 = vmul.f32 %v4632, 0.5
    %v4759 = vmul.f32 %v4635, 0.5
    %v4760 = vmul.f32 %v4640, 0.5
    %v4761 = vmul.f32 %v4643, 0.5
    %v4762 = vmul.f32 %v4648, 0.5
    %v4763 = vmul.f32 %v4651, 0.5
    %v4764 = vmul.f32 %v4656, 0.5
    %v4765 = vmul.f32 %v4659, 0.5
    %v4766 = vtanh.pop %v4758
    %v4767 = vtanh.pop %v4759
    %v4768 = vtanh.pop %v4760
    %v4769 = vtanh.pop %v4761
    %v4770 = vtanh.pop %v4762
    %v4771 = vtanh.pop %v4763
    %v4772 = vtanh.pop %v4764
    %v4773 = vtanh.pop %v4765
    %v4774 = vadd.f32 %v4766, 1.0
    %v4775 = vadd.f32 %v4767, 1.0
    %v4776 = vadd.f32 %v4768, 1.0
    %v4777 = vadd.f32 %v4769, 1.0
    %v4778 = vadd.f32 %v4770, 1.0
    %v4779 = vadd.f32 %v4771, 1.0
    %v4780 = vadd.f32 %v4772, 1.0
    %v4781 = vadd.f32 %v4773, 1.0
    %v4782 = vmul.f32 %v4774, 0.5
    %v4783 = vmul.f32 %v4775, 0.5
    %v4784 = vmul.f32 %v4776, 0.5
    %v4785 = vmul.f32 %v4777, 0.5
    %v4786 = vmul.f32 %v4778, 0.5
    %v4787 = vmul.f32 %v4779, 0.5
    %v4788 = vmul.f32 %v4780, 0.5
    %v4789 = vmul.f32 %v4781, 0.5
    %v4790 = vtanh.pop %v4664
    %v4791 = vtanh.pop %v4667
    %v4792 = vtanh.pop %v4672
    %v4793 = vtanh.pop %v4675
    %v4794 = vtanh.pop %v4680
    %v4795 = vtanh.pop %v4683
    %v4796 = vtanh.pop %v4688
    %v4797 = vtanh.pop %v4691
    %v4798 = vmul.f32 %v4696, 0.5
    %v4799 = vmul.f32 %v4699, 0.5
    %v4800 = vmul.f32 %v4704, 0.5
    %v4801 = vmul.f32 %v4707, 0.5
    %v4802 = vmul.f32 %v4712, 0.5
    %v4803 = vmul.f32 %v4715, 0.5
    %v4804 = vmul.f32 %v4720, 0.5
    %v4805 = vmul.f32 %v4723, 0.5
    %v4806 = vtanh.pop %v4798
    %v4807 = vtanh.pop %v4799
    %v4808 = vtanh.pop %v4800
    %v4809 = vtanh.pop %v4801
    %v4810 = vtanh.pop %v4802
    %v4811 = vtanh.pop %v4803
    %v4812 = vtanh.pop %v4804
    %v4813 = vtanh.pop %v4805
    %v4814 = vadd.f32 %v4806, 1.0
    %v4815 = vadd.f32 %v4807, 1.0
    %v4816 = vadd.f32 %v4808, 1.0
    %v4817 = vadd.f32 %v4809, 1.0
    %v4818 = vadd.f32 %v4810, 1.0
    %v4819 = vadd.f32 %v4811, 1.0
    %v4820 = vadd.f32 %v4812, 1.0
    %v4821 = vadd.f32 %v4813, 1.0
    %v4822 = vmul.f32 %v4814, 0.5
    %v4823 = vmul.f32 %v4815, 0.5
    %v4824 = vmul.f32 %v4816, 0.5
    %v4825 = vmul.f32 %v4817, 0.5
    %v4826 = vmul.f32 %v4818, 0.5
    %v4827 = vmul.f32 %v4819, 0.5
    %v4828 = vmul.f32 %v4820, 0.5
    %v4829 = vmul.f32 %v4821, 0.5
    %v4830 = vmul.f32 %v4782, %v4221
    %v4831 = vmul.f32 %v4783, %v4222
    %v4832 = vmul.f32 %v4784, %v4223
    %v4833 = vmul.f32 %v4785, %v4224
    %v4834 = vmul.f32 %v4786, %v4225
    %v4835 = vmul.f32 %v4787, %v4226
    %v4836 = vmul.f32 %v4788, %v4227
    %v4837 = vmul.f32 %v4789, %v4228
    %v4838 = vmul.f32 %v4750, %v4790
    %v4839 = vmul.f32 %v4751, %v4791
    %v4840 = vmul.f32 %v4752, %v4792
    %v4841 = vmul.f32 %v4753, %v4793
    %v4842 = vmul.f32 %v4754, %v4794
    %v4843 = vmul.f32 %v4755, %v4795
    %v4844 = vmul.f32 %v4756, %v4796
    %v4845 = vmul.f32 %v4757, %v4797
    %v4846 = vadd.f32 %v4830, %v4838
    %v4847 = vadd.f32 %v4831, %v4839
    %v4848 = vadd.f32 %v4832, %v4840
    %v4849 = vadd.f32 %v4833, %v4841
    %v4850 = vadd.f32 %v4834, %v4842
    %v4851 = vadd.f32 %v4835, %v4843
    %v4852 = vadd.f32 %v4836, %v4844
    %v4853 = vadd.f32 %v4837, %v4845
    %v4854 = vtanh.pop %v4846
    %v4855 = vtanh.pop %v4847
    %v4856 = vtanh.pop %v4848
    %v4857 = vtanh.pop %v4849
    %v4858 = vtanh.pop %v4850
    %v4859 = vtanh.pop %v4851
    %v4860 = vtanh.pop %v4852
    %v4861 = vtanh.pop %v4853
    %v4862 = vmul.f32 %v4822, %v4854
    %v4863 = vmul.f32 %v4823, %v4855
    %v4864 = vmul.f32 %v4824, %v4856
    %v4865 = vmul.f32 %v4825, %v4857
    %v4866 = vmul.f32 %v4826, %v4858
    %v4867 = vmul.f32 %v4827, %v4859
    %v4868 = vmul.f32 %v4828, %v4860
    %v4869 = vmul.f32 %v4829, %v4861
    %v4870 = vlaneseq
    %v4871 = vshrl.u32 %v4870, 7
    %v4872 = vsub.s32 7, %v4871
    %v4873 = vrot.slane %v103, %v4872
    %v4874 = vsel %vm63, %v4873, %v67
    %v4875 = vsel %vm64, %v4873, %v68
    %v4876 = vpack.c.bf16 %v4875, %v4874
    %4877 = vmatprep.subr.bf16.mxu0 0
    %4878 = vmatpush1.bf16.msra.mxu0 %v4557
    %4879 = vmatprep.subr.bf16.mxu0 0
    %4880 = vmatpush1.bf16.msra.mxu0 %v4558
    %4881 = vmatprep.subr.bf16.mxu0 0
    %4882 = vmatpush1.bf16.msra.mxu0 %v4559
    %4883 = vmatprep.subr.bf16.mxu0 0
    %4884 = vmatpush1.bf16.msra.mxu0 %v4560
    %4885 = vmatprep.subr.bf16.mxu0 0
    %4886 = vmatpush1.bf16.msra.mxu0 %v4876
    %4887 = vmatprep.subr.bf16.mxu0 0
    %4888 = vmatpush1.bf16.msra.mxu0 0
    %4889 = vmatprep.subr.bf16.mxu0 0
    %4890 = vmatpush1.bf16.msra.mxu0 0
    %4891 = vmatprep.subr.bf16.mxu0 0
    %4892 = vmatpush1.bf16.msra.mxu0 0
    %4893 = vmatprep.subr.bf16.mxu0 0
    %4894 = vmatpush1.bf16.msra.mxu0 0
    %4895 = vmatprep.subr.bf16.mxu0 0
    %4896 = vmatpush1.bf16.msra.mxu0 0
    %4897 = vmatprep.subr.bf16.mxu0 0
    %4898 = vmatpush1.bf16.msra.mxu0 0
    %4899 = vmatprep.subr.bf16.mxu0 0
    %4900 = vmatpush1.bf16.msra.mxu0 0
    %4901 = vmatprep.subr.bf16.mxu0 0
    %4902 = vmatpush1.bf16.msra.mxu0 0
    %4903 = vmatprep.subr.bf16.mxu0 0
    %4904 = vmatpush1.bf16.msra.mxu0 0
    %4905 = vmatprep.subr.bf16.mxu0 0
    %4906 = vmatpush1.bf16.msra.mxu0 0
    %4907 = vmatprep.subr.bf16.mxu0 0
    %4908 = vmatpush1.bf16.msra.mxu0 0
    %4909 = vmatprep.mubr.bf16.mxu0 0
    %4910 = vmatmul.mubr.bf16.gmra.mrb[0].mxu0 %v229
    %v4911 = vpop.f32.mrb[0].mxu0
    %v4912 = vadd.f32 0.0, %v4911
    %v4913 = vpop.f32.mrb[0].mxu0
    %v4914 = vpop.f32.mrb[0].mxu0
    %v4915 = vadd.f32 0.0, %v4914
    %v4916 = vpop.f32.mrb[0].mxu0
    %4917 = vmatprep.mubr.bf16.mxu0 0
    %4918 = vmatmul.mubr.bf16.gmra.mrb[0].mxu0 %v232
    %v4919 = vpop.f32.mrb[0].mxu0
    %v4920 = vadd.f32 0.0, %v4919
    %v4921 = vpop.f32.mrb[0].mxu0
    %v4922 = vpop.f32.mrb[0].mxu0
    %v4923 = vadd.f32 0.0, %v4922
    %v4924 = vpop.f32.mrb[0].mxu0
    %4925 = vmatprep.mubr.bf16.mxu0 0
    %4926 = vmatmul.mubr.bf16.gmra.mrb[0].mxu0 %v235
    %v4927 = vpop.f32.mrb[0].mxu0
    %v4928 = vadd.f32 0.0, %v4927
    %v4929 = vpop.f32.mrb[0].mxu0
    %v4930 = vpop.f32.mrb[0].mxu0
    %v4931 = vadd.f32 0.0, %v4930
    %v4932 = vpop.f32.mrb[0].mxu0
    %4933 = vmatprep.mubr.bf16.mxu0 0
    %4934 = vmatmul.mubr.bf16.gmra.mrb[0].mxu0 %v238
    %v4935 = vpop.f32.mrb[0].mxu0
    %v4936 = vadd.f32 0.0, %v4935
    %v4937 = vpop.f32.mrb[0].mxu0
    %v4938 = vpop.f32.mrb[0].mxu0
    %v4939 = vadd.f32 0.0, %v4938
    %v4940 = vpop.f32.mrb[0].mxu0
    %4941 = vmatprep.mubr.bf16.mxu0 0
    %4942 = vmatmul.mubr.bf16.gmra.mrb[0].mxu0 %v241
    %v4943 = vpop.f32.mrb[0].mxu0
    %v4944 = vadd.f32 0.0, %v4943
    %v4945 = vpop.f32.mrb[0].mxu0
    %v4946 = vpop.f32.mrb[0].mxu0
    %v4947 = vadd.f32 0.0, %v4946
    %v4948 = vpop.f32.mrb[0].mxu0
    %4949 = vmatprep.mubr.bf16.mxu0 0
    %4950 = vmatmul.mubr.bf16.gmra.mrb[0].mxu0 %v244
    %v4951 = vpop.f32.mrb[0].mxu0
    %v4952 = vadd.f32 0.0, %v4951
    %v4953 = vpop.f32.mrb[0].mxu0
    %v4954 = vpop.f32.mrb[0].mxu0
    %v4955 = vadd.f32 0.0, %v4954
    %v4956 = vpop.f32.mrb[0].mxu0
    %4957 = vmatprep.mubr.bf16.mxu0 0
    %4958 = vmatmul.mubr.bf16.gmra.mrb[0].mxu0 %v247
    %v4959 = vpop.f32.mrb[0].mxu0
    %v4960 = vadd.f32 0.0, %v4959
    %v4961 = vpop.f32.mrb[0].mxu0
    %v4962 = vpop.f32.mrb[0].mxu0
    %v4963 = vadd.f32 0.0, %v4962
    %v4964 = vpop.f32.mrb[0].mxu0
    %4965 = vmatprep.mubr.bf16.mxu0 0
    %4966 = vmatmul.mubr.bf16.gmra.mrb[0].mxu0 %v250
    %v4967 = vpop.f32.mrb[0].mxu0
    %v4968 = vadd.f32 0.0, %v4967
    %v4969 = vpop.f32.mrb[0].mxu0
    %v4970 = vpop.f32.mrb[0].mxu0
    %v4971 = vadd.f32 0.0, %v4970
    %v4972 = vpop.f32.mrb[0].mxu0
    %4973 = vmatprep.mubr.bf16.mxu0 0
    %4974 = vmatmul.mubr.bf16.gmra.mrb[0].mxu0 %v253
    %v4975 = vpop.f32.mrb[0].mxu0
    %v4976 = vadd.f32 0.0, %v4975
    %v4977 = vpop.f32.mrb[0].mxu0
    %v4978 = vpop.f32.mrb[0].mxu0
    %v4979 = vadd.f32 0.0, %v4978
    %v4980 = vpop.f32.mrb[0].mxu0
    %4981 = vmatprep.mubr.bf16.mxu0 0
    %4982 = vmatmul.mubr.bf16.gmra.mrb[0].mxu0 %v256
    %v4983 = vpop.f32.mrb[0].mxu0
    %v4984 = vadd.f32 0.0, %v4983
    %v4985 = vpop.f32.mrb[0].mxu0
    %v4986 = vpop.f32.mrb[0].mxu0
    %v4987 = vadd.f32 0.0, %v4986
    %v4988 = vpop.f32.mrb[0].mxu0
    %4989 = vmatprep.mubr.bf16.mxu0 0
    %4990 = vmatmul.mubr.bf16.gmra.mrb[0].mxu0 %v259
    %v4991 = vpop.f32.mrb[0].mxu0
    %v4992 = vadd.f32 0.0, %v4991
    %v4993 = vpop.f32.mrb[0].mxu0
    %v4994 = vpop.f32.mrb[0].mxu0
    %v4995 = vadd.f32 0.0, %v4994
    %v4996 = vpop.f32.mrb[0].mxu0
    %4997 = vmatprep.mubr.bf16.mxu0 0
    %4998 = vmatmul.mubr.bf16.gmra.mrb[0].mxu0 %v262
    %v4999 = vpop.f32.mrb[0].mxu0
    %v5000 = vadd.f32 0.0, %v4999
    %v5001 = vpop.f32.mrb[0].mxu0
    %v5002 = vpop.f32.mrb[0].mxu0
    %v5003 = vadd.f32 0.0, %v5002
    %v5004 = vpop.f32.mrb[0].mxu0
    %5005 = vmatprep.mubr.bf16.mxu0 0
    %5006 = vmatmul.mubr.bf16.gmra.mrb[0].mxu0 %v265
    %v5007 = vpop.f32.mrb[0].mxu0
    %v5008 = vadd.f32 0.0, %v5007
    %v5009 = vpop.f32.mrb[0].mxu0
    %v5010 = vpop.f32.mrb[0].mxu0
    %v5011 = vadd.f32 0.0, %v5010
    %v5012 = vpop.f32.mrb[0].mxu0
    %5013 = vmatprep.mubr.bf16.mxu0 0
    %5014 = vmatmul.mubr.bf16.gmra.mrb[0].mxu0 %v268
    %v5015 = vpop.f32.mrb[0].mxu0
    %v5016 = vadd.f32 0.0, %v5015
    %v5017 = vpop.f32.mrb[0].mxu0
    %v5018 = vpop.f32.mrb[0].mxu0
    %v5019 = vadd.f32 0.0, %v5018
    %v5020 = vpop.f32.mrb[0].mxu0
    %5021 = vmatprep.mubr.bf16.mxu0 0
    %5022 = vmatmul.mubr.bf16.gmra.mrb[0].mxu0 %v271
    %v5023 = vpop.f32.mrb[0].mxu0
    %v5024 = vadd.f32 0.0, %v5023
    %v5025 = vpop.f32.mrb[0].mxu0
    %v5026 = vpop.f32.mrb[0].mxu0
    %v5027 = vadd.f32 0.0, %v5026
    %v5028 = vpop.f32.mrb[0].mxu0
    %5029 = vmatprep.mubr.bf16.mxu0 0
    %5030 = vmatmul.mubr.bf16.gmra.mrb[0].mxu0 %v274
    %v5031 = vpop.f32.mrb[0].mxu0
    %v5032 = vadd.f32 0.0, %v5031
    %v5033 = vpop.f32.mrb[0].mxu0
    %v5034 = vpop.f32.mrb[0].mxu0
    %v5035 = vadd.f32 0.0, %v5034
    %v5036 = vpop.f32.mrb[0].mxu0
    %5037 = vdwg.mxu0
    %v5038 = vmul.f32 %v4912, 0.5
    %v5039 = vmul.f32 %v4915, 0.5
    %v5040 = vmul.f32 %v4920, 0.5
    %v5041 = vmul.f32 %v4923, 0.5
    %v5042 = vmul.f32 %v4928, 0.5
    %v5043 = vmul.f32 %v4931, 0.5
    %v5044 = vmul.f32 %v4936, 0.5
    %v5045 = vmul.f32 %v4939, 0.5
    %v5046 = vtanh.pop %v5038
    %v5047 = vtanh.pop %v5039
    %v5048 = vtanh.pop %v5040
    %v5049 = vtanh.pop %v5041
    %v5050 = vtanh.pop %v5042
    %v5051 = vtanh.pop %v5043
    %v5052 = vtanh.pop %v5044
    %v5053 = vtanh.pop %v5045
    %v5054 = vadd.f32 %v5046, 1.0
    %v5055 = vadd.f32 %v5047, 1.0
    %v5056 = vadd.f32 %v5048, 1.0
    %v5057 = vadd.f32 %v5049, 1.0
    %v5058 = vadd.f32 %v5050, 1.0
    %v5059 = vadd.f32 %v5051, 1.0
    %v5060 = vadd.f32 %v5052, 1.0
    %v5061 = vadd.f32 %v5053, 1.0
    %v5062 = vmul.f32 %v5054, 0.5
    %v5063 = vmul.f32 %v5055, 0.5
    %v5064 = vmul.f32 %v5056, 0.5
    %v5065 = vmul.f32 %v5057, 0.5
    %v5066 = vmul.f32 %v5058, 0.5
    %v5067 = vmul.f32 %v5059, 0.5
    %v5068 = vmul.f32 %v5060, 0.5
    %v5069 = vmul.f32 %v5061, 0.5
    %v5070 = vmul.f32 %v4944, 0.5
    %v5071 = vmul.f32 %v4947, 0.5
    %v5072 = vmul.f32 %v4952, 0.5
    %v5073 = vmul.f32 %v4955, 0.5
    %v5074 = vmul.f32 %v4960, 0.5
    %v5075 = vmul.f32 %v4963, 0.5
    %v5076 = vmul.f32 %v4968, 0.5
    %v5077 = vmul.f32 %v4971, 0.5
    %v5078 = vtanh.pop %v5070
    %v5079 = vtanh.pop %v5071
    %v5080 = vtanh.pop %v5072
    %v5081 = vtanh.pop %v5073
    %v5082 = vtanh.pop %v5074
    %v5083 = vtanh.pop %v5075
    %v5084 = vtanh.pop %v5076
    %v5085 = vtanh.pop %v5077
    %v5086 = vadd.f32 %v5078, 1.0
    %v5087 = vadd.f32 %v5079, 1.0
    %v5088 = vadd.f32 %v5080, 1.0
    %v5089 = vadd.f32 %v5081, 1.0
    %v5090 = vadd.f32 %v5082, 1.0
    %v5091 = vadd.f32 %v5083, 1.0
    %v5092 = vadd.f32 %v5084, 1.0
    %v5093 = vadd.f32 %v5085, 1.0
    %v5094 = vmul.f32 %v5086, 0.5
    %v5095 = vmul.f32 %v5087, 0.5
    %v5096 = vmul.f32 %v5088, 0.5
    %v5097 = vmul.f32 %v5089, 0.5
    %v5098 = vmul.f32 %v5090, 0.5
    %v5099 = vmul.f32 %v5091, 0.5
    %v5100 = vmul.f32 %v5092, 0.5
    %v5101 = vmul.f32 %v5093, 0.5
    %v5102 = vtanh.pop %v4976
    %v5103 = vtanh.pop %v4979
    %v5104 = vtanh.pop %v4984
    %v5105 = vtanh.pop %v4987
    %v5106 = vtanh.pop %v4992
    %v5107 = vtanh.pop %v4995
    %v5108 = vtanh.pop %v5000
    %v5109 = vtanh.pop %v5003
    %v5110 = vmul.f32 %v5008, 0.5
    %v5111 = vmul.f32 %v5011, 0.5
    %v5112 = vmul.f32 %v5016, 0.5
    %v5113 = vmul.f32 %v5019, 0.5
    %v5114 = vmul.f32 %v5024, 0.5
    %v5115 = vmul.f32 %v5027, 0.5
    %v5116 = vmul.f32 %v5032, 0.5
    %v5117 = vmul.f32 %v5035, 0.5
    %v5118 = vtanh.pop %v5110
    %v5119 = vtanh.pop %v5111
    %v5120 = vtanh.pop %v5112
    %v5121 = vtanh.pop %v5113
    %v5122 = vtanh.pop %v5114
    %v5123 = vtanh.pop %v5115
    %v5124 = vtanh.pop %v5116
    %v5125 = vtanh.pop %v5117
    %v5126 = vadd.f32 %v5118, 1.0
    %v5127 = vadd.f32 %v5119, 1.0
    %v5128 = vadd.f32 %v5120, 1.0
    %v5129 = vadd.f32 %v5121, 1.0
    %v5130 = vadd.f32 %v5122, 1.0
    %v5131 = vadd.f32 %v5123, 1.0
    %v5132 = vadd.f32 %v5124, 1.0
    %v5133 = vadd.f32 %v5125, 1.0
    %v5134 = vmul.f32 %v5126, 0.5
    %v5135 = vmul.f32 %v5127, 0.5
    %v5136 = vmul.f32 %v5128, 0.5
    %v5137 = vmul.f32 %v5129, 0.5
    %v5138 = vmul.f32 %v5130, 0.5
    %v5139 = vmul.f32 %v5131, 0.5
    %v5140 = vmul.f32 %v5132, 0.5
    %v5141 = vmul.f32 %v5133, 0.5
    %v5142 = vmul.f32 %v5094, %v4533
    %v5143 = vmul.f32 %v5095, %v4534
    %v5144 = vmul.f32 %v5096, %v4535
    %v5145 = vmul.f32 %v5097, %v4536
    %v5146 = vmul.f32 %v5098, %v4537
    %v5147 = vmul.f32 %v5099, %v4538
    %v5148 = vmul.f32 %v5100, %v4539
    %v5149 = vmul.f32 %v5101, %v4540
    %v5150 = vmul.f32 %v5062, %v5102
    %v5151 = vmul.f32 %v5063, %v5103
    %v5152 = vmul.f32 %v5064, %v5104
    %v5153 = vmul.f32 %v5065, %v5105
    %v5154 = vmul.f32 %v5066, %v5106
    %v5155 = vmul.f32 %v5067, %v5107
    %v5156 = vmul.f32 %v5068, %v5108
    %v5157 = vmul.f32 %v5069, %v5109
    %v5158 = vadd.f32 %v5142, %v5150
    %v5159 = vadd.f32 %v5143, %v5151
    %v5160 = vadd.f32 %v5144, %v5152
    %v5161 = vadd.f32 %v5145, %v5153
    %v5162 = vadd.f32 %v5146, %v5154
    %v5163 = vadd.f32 %v5147, %v5155
    %v5164 = vadd.f32 %v5148, %v5156
    %v5165 = vadd.f32 %v5149, %v5157
    %v5166 = vtanh.pop %v5158
    %v5167 = vtanh.pop %v5159
    %v5168 = vtanh.pop %v5160
    %v5169 = vtanh.pop %v5161
    %v5170 = vtanh.pop %v5162
    %v5171 = vtanh.pop %v5163
    %v5172 = vtanh.pop %v5164
    %v5173 = vtanh.pop %v5165
    %v5174 = vmul.f32 %v5134, %v5166
    %v5175 = vmul.f32 %v5135, %v5167
    %v5176 = vmul.f32 %v5136, %v5168
    %v5177 = vmul.f32 %v5137, %v5169
    %v5178 = vmul.f32 %v5138, %v5170
    %v5179 = vmul.f32 %v5139, %v5171
    %v5180 = vmul.f32 %v5140, %v5172
    %v5181 = vmul.f32 %v5141, %v5173
    %v5182 = vpack.c.bf16 %v5175, %v5174
    %v5183 = vpack.c.bf16 %v5177, %v5176
    %v5184 = vpack.c.bf16 %v5179, %v5178
    %v5185 = vpack.c.bf16 %v5181, %v5180
    %v5186 = vpack.c.bf16 %v4863, %v4862
    %v5187 = vpack.c.bf16 %v4865, %v4864
    %v5188 = vpack.c.bf16 %v4867, %v4866
    %v5189 = vpack.c.bf16 %v4869, %v4868
    %5190 = vmatprep.subr.bf16.mxu0 0
    %5191 = vmatpush1.bf16.msra.mxu0 %v5182
    %5192 = vmatprep.subr.bf16.mxu0 0
    %5193 = vmatpush1.bf16.msra.mxu0 %v5183
    %5194 = vmatprep.subr.bf16.mxu0 0
    %5195 = vmatpush1.bf16.msra.mxu0 %v5184
    %5196 = vmatprep.subr.bf16.mxu0 0
    %5197 = vmatpush1.bf16.msra.mxu0 %v5185
    %5198 = vmatprep.subr.bf16.mxu0 0
    %5199 = vmatpush1.bf16.msra.mxu0 %v5186
    %5200 = vmatprep.subr.bf16.mxu0 0
    %5201 = vmatpush1.bf16.msra.mxu0 %v5187
    %5202 = vmatprep.subr.bf16.mxu0 0
    %5203 = vmatpush1.bf16.msra.mxu0 %v5188
    %5204 = vmatprep.subr.bf16.mxu0 0
    %5205 = vmatpush1.bf16.msra.mxu0 %v5189
    %5206 = vmatprep.subr.bf16.mxu0 0
    %5207 = vmatpush1.bf16.msra.mxu0 %v589
    %5208 = vmatprep.subr.bf16.mxu0 0
    %5209 = vmatpush1.bf16.msra.mxu0 0
    %5210 = vmatprep.subr.bf16.mxu0 0
    %5211 = vmatpush1.bf16.msra.mxu0 0
    %5212 = vmatprep.subr.bf16.mxu0 0
    %5213 = vmatpush1.bf16.msra.mxu0 0
    %5214 = vmatprep.subr.bf16.mxu0 0
    %5215 = vmatpush1.bf16.msra.mxu0 0
    %5216 = vmatprep.subr.bf16.mxu0 0
    %5217 = vmatpush1.bf16.msra.mxu0 0
    %5218 = vmatprep.subr.bf16.mxu0 0
    %5219 = vmatpush1.bf16.msra.mxu0 0
    %5220 = vmatprep.subr.bf16.mxu0 0
    %5221 = vmatpush1.bf16.msra.mxu0 0
    %5222 = vmatprep.mubr.bf16.mxu0 %v768
    %5223 = vmatmul.mubr.bf16.gmra.mrb[0].mxu0 %v718
    %v5224 = vpop.f32.mrb[0].mxu0
    %v5225 = vadd.f32 0.0, %v5224
    %v5226 = vpop.f32.mrb[0].mxu0
    %v5227 = vpop.f32.mrb[0].mxu0
    %v5228 = vadd.f32 0.0, %v5227
    %v5229 = vpop.f32.mrb[0].mxu0
    %5230 = vmatprep.mubr.bf16.mxu0 %v771
    %5231 = vmatmul.mubr.bf16.gmra.mrb[0].mxu0 %v720
    %v5232 = vpop.f32.mrb[0].mxu0
    %v5233 = vadd.f32 0.0, %v5232
    %v5234 = vpop.f32.mrb[0].mxu0
    %v5235 = vpop.f32.mrb[0].mxu0
    %v5236 = vadd.f32 0.0, %v5235
    %v5237 = vpop.f32.mrb[0].mxu0
    %5238 = vmatprep.mubr.bf16.mxu0 %v774
    %5239 = vmatmul.mubr.bf16.gmra.mrb[0].mxu0 %v722
    %v5240 = vpop.f32.mrb[0].mxu0
    %v5241 = vadd.f32 0.0, %v5240
    %v5242 = vpop.f32.mrb[0].mxu0
    %v5243 = vpop.f32.mrb[0].mxu0
    %v5244 = vadd.f32 0.0, %v5243
    %v5245 = vpop.f32.mrb[0].mxu0
    %5246 = vmatprep.mubr.bf16.mxu0 %v777
    %5247 = vmatmul.mubr.bf16.gmra.mrb[0].mxu0 %v724
    %v5248 = vpop.f32.mrb[0].mxu0
    %v5249 = vadd.f32 0.0, %v5248
    %v5250 = vpop.f32.mrb[0].mxu0
    %v5251 = vpop.f32.mrb[0].mxu0
    %v5252 = vadd.f32 0.0, %v5251
    %v5253 = vpop.f32.mrb[0].mxu0
    %5254 = vmatprep.mubr.bf16.mxu0 %v780
    %5255 = vmatmul.mubr.bf16.gmra.mrb[0].mxu0 %v726
    %v5256 = vpop.f32.mrb[0].mxu0
    %v5257 = vadd.f32 0.0, %v5256
    %v5258 = vpop.f32.mrb[0].mxu0
    %v5259 = vpop.f32.mrb[0].mxu0
    %v5260 = vadd.f32 0.0, %v5259
    %v5261 = vpop.f32.mrb[0].mxu0
    %5262 = vmatprep.mubr.bf16.mxu0 %v783
    %5263 = vmatmul.mubr.bf16.gmra.mrb[0].mxu0 %v728
    %v5264 = vpop.f32.mrb[0].mxu0
    %v5265 = vadd.f32 0.0, %v5264
    %v5266 = vpop.f32.mrb[0].mxu0
    %v5267 = vpop.f32.mrb[0].mxu0
    %v5268 = vadd.f32 0.0, %v5267
    %v5269 = vpop.f32.mrb[0].mxu0
    %5270 = vmatprep.mubr.bf16.mxu0 %v786
    %5271 = vmatmul.mubr.bf16.gmra.mrb[0].mxu0 %v730
    %v5272 = vpop.f32.mrb[0].mxu0
    %v5273 = vadd.f32 0.0, %v5272
    %v5274 = vpop.f32.mrb[0].mxu0
    %v5275 = vpop.f32.mrb[0].mxu0
    %v5276 = vadd.f32 0.0, %v5275
    %v5277 = vpop.f32.mrb[0].mxu0
    %5278 = vmatprep.mubr.bf16.mxu0 %v789
    %5279 = vmatmul.mubr.bf16.gmra.mrb[0].mxu0 %v732
    %v5280 = vpop.f32.mrb[0].mxu0
    %v5281 = vadd.f32 0.0, %v5280
    %v5282 = vpop.f32.mrb[0].mxu0
    %v5283 = vpop.f32.mrb[0].mxu0
    %v5284 = vadd.f32 0.0, %v5283
    %v5285 = vpop.f32.mrb[0].mxu0
    %5286 = vmatprep.mubr.bf16.mxu0 %v792
    %5287 = vmatmul.mubr.bf16.gmra.mrb[0].mxu0 %v734
    %v5288 = vpop.f32.mrb[0].mxu0
    %v5289 = vadd.f32 0.0, %v5288
    %v5290 = vpop.f32.mrb[0].mxu0
    %v5291 = vpop.f32.mrb[0].mxu0
    %v5292 = vadd.f32 0.0, %v5291
    %v5293 = vpop.f32.mrb[0].mxu0
    %5294 = vmatprep.mubr.bf16.mxu0 %v795
    %5295 = vmatmul.mubr.bf16.gmra.mrb[0].mxu0 %v736
    %v5296 = vpop.f32.mrb[0].mxu0
    %v5297 = vadd.f32 0.0, %v5296
    %v5298 = vpop.f32.mrb[0].mxu0
    %v5299 = vpop.f32.mrb[0].mxu0
    %v5300 = vadd.f32 0.0, %v5299
    %v5301 = vpop.f32.mrb[0].mxu0
    %5302 = vmatprep.mubr.bf16.mxu0 %v798
    %5303 = vmatmul.mubr.bf16.gmra.mrb[0].mxu0 %v738
    %v5304 = vpop.f32.mrb[0].mxu0
    %v5305 = vadd.f32 0.0, %v5304
    %v5306 = vpop.f32.mrb[0].mxu0
    %v5307 = vpop.f32.mrb[0].mxu0
    %v5308 = vadd.f32 0.0, %v5307
    %v5309 = vpop.f32.mrb[0].mxu0
    %5310 = vmatprep.mubr.bf16.mxu0 %v801
    %5311 = vmatmul.mubr.bf16.gmra.mrb[0].mxu0 %v740
    %v5312 = vpop.f32.mrb[0].mxu0
    %v5313 = vadd.f32 0.0, %v5312
    %v5314 = vpop.f32.mrb[0].mxu0
    %v5315 = vpop.f32.mrb[0].mxu0
    %v5316 = vadd.f32 0.0, %v5315
    %v5317 = vpop.f32.mrb[0].mxu0
    %5318 = vmatprep.mubr.bf16.mxu0 %v804
    %5319 = vmatmul.mubr.bf16.gmra.mrb[0].mxu0 %v742
    %v5320 = vpop.f32.mrb[0].mxu0
    %v5321 = vadd.f32 0.0, %v5320
    %v5322 = vpop.f32.mrb[0].mxu0
    %v5323 = vpop.f32.mrb[0].mxu0
    %v5324 = vadd.f32 0.0, %v5323
    %v5325 = vpop.f32.mrb[0].mxu0
    %5326 = vmatprep.mubr.bf16.mxu0 %v807
    %5327 = vmatmul.mubr.bf16.gmra.mrb[0].mxu0 %v744
    %v5328 = vpop.f32.mrb[0].mxu0
    %v5329 = vadd.f32 0.0, %v5328
    %v5330 = vpop.f32.mrb[0].mxu0
    %v5331 = vpop.f32.mrb[0].mxu0
    %v5332 = vadd.f32 0.0, %v5331
    %v5333 = vpop.f32.mrb[0].mxu0
    %5334 = vmatprep.mubr.bf16.mxu0 %v810
    %5335 = vmatmul.mubr.bf16.gmra.mrb[0].mxu0 %v746
    %v5336 = vpop.f32.mrb[0].mxu0
    %v5337 = vadd.f32 0.0, %v5336
    %v5338 = vpop.f32.mrb[0].mxu0
    %v5339 = vpop.f32.mrb[0].mxu0
    %v5340 = vadd.f32 0.0, %v5339
    %v5341 = vpop.f32.mrb[0].mxu0
    %5342 = vmatprep.mubr.bf16.mxu0 %v813
    %5343 = vmatmul.mubr.bf16.gmra.mrb[0].mxu0 %v748
    %v5344 = vpop.f32.mrb[0].mxu0
    %v5345 = vadd.f32 0.0, %v5344
    %v5346 = vpop.f32.mrb[0].mxu0
    %v5347 = vpop.f32.mrb[0].mxu0
    %v5348 = vadd.f32 0.0, %v5347
    %v5349 = vpop.f32.mrb[0].mxu0
    %5350 = vdwg.mxu0
    %v5351 = vmul.f32 %v5225, 0.5
    %v5352 = vmul.f32 %v5228, 0.5
    %v5353 = vmul.f32 %v5233, 0.5
    %v5354 = vmul.f32 %v5236, 0.5
    %v5355 = vmul.f32 %v5241, 0.5
    %v5356 = vmul.f32 %v5244, 0.5
    %v5357 = vmul.f32 %v5249, 0.5
    %v5358 = vmul.f32 %v5252, 0.5
    %v5359 = vtanh.pop %v5351
    %v5360 = vtanh.pop %v5352
    %v5361 = vtanh.pop %v5353
    %v5362 = vtanh.pop %v5354
    %v5363 = vtanh.pop %v5355
    %v5364 = vtanh.pop %v5356
    %v5365 = vtanh.pop %v5357
    %v5366 = vtanh.pop %v5358
    %v5367 = vadd.f32 %v5359, 1.0
    %v5368 = vadd.f32 %v5360, 1.0
    %v5369 = vadd.f32 %v5361, 1.0
    %v5370 = vadd.f32 %v5362, 1.0
    %v5371 = vadd.f32 %v5363, 1.0
    %v5372 = vadd.f32 %v5364, 1.0
    %v5373 = vadd.f32 %v5365, 1.0
    %v5374 = vadd.f32 %v5366, 1.0
    %v5375 = vmul.f32 %v5367, 0.5
    %v5376 = vmul.f32 %v5368, 0.5
    %v5377 = vmul.f32 %v5369, 0.5
    %v5378 = vmul.f32 %v5370, 0.5
    %v5379 = vmul.f32 %v5371, 0.5
    %v5380 = vmul.f32 %v5372, 0.5
    %v5381 = vmul.f32 %v5373, 0.5
    %v5382 = vmul.f32 %v5374, 0.5
    %v5383 = vmul.f32 %v5257, 0.5
    %v5384 = vmul.f32 %v5260, 0.5
    %v5385 = vmul.f32 %v5265, 0.5
    %v5386 = vmul.f32 %v5268, 0.5
    %v5387 = vmul.f32 %v5273, 0.5
    %v5388 = vmul.f32 %v5276, 0.5
    %v5389 = vmul.f32 %v5281, 0.5
    %v5390 = vmul.f32 %v5284, 0.5
    %v5391 = vtanh.pop %v5383
    %v5392 = vtanh.pop %v5384
    %v5393 = vtanh.pop %v5385
    %v5394 = vtanh.pop %v5386
    %v5395 = vtanh.pop %v5387
    %v5396 = vtanh.pop %v5388
    %v5397 = vtanh.pop %v5389
    %v5398 = vtanh.pop %v5390
    %v5399 = vadd.f32 %v5391, 1.0
    %v5400 = vadd.f32 %v5392, 1.0
    %v5401 = vadd.f32 %v5393, 1.0
    %v5402 = vadd.f32 %v5394, 1.0
    %v5403 = vadd.f32 %v5395, 1.0
    %v5404 = vadd.f32 %v5396, 1.0
    %v5405 = vadd.f32 %v5397, 1.0
    %v5406 = vadd.f32 %v5398, 1.0
    %v5407 = vmul.f32 %v5399, 0.5
    %v5408 = vmul.f32 %v5400, 0.5
    %v5409 = vmul.f32 %v5401, 0.5
    %v5410 = vmul.f32 %v5402, 0.5
    %v5411 = vmul.f32 %v5403, 0.5
    %v5412 = vmul.f32 %v5404, 0.5
    %v5413 = vmul.f32 %v5405, 0.5
    %v5414 = vmul.f32 %v5406, 0.5
    %v5415 = vtanh.pop %v5289
    %v5416 = vtanh.pop %v5292
    %v5417 = vtanh.pop %v5297
    %v5418 = vtanh.pop %v5300
    %v5419 = vtanh.pop %v5305
    %v5420 = vtanh.pop %v5308
    %v5421 = vtanh.pop %v5313
    %v5422 = vtanh.pop %v5316
    %v5423 = vmul.f32 %v5321, 0.5
    %v5424 = vmul.f32 %v5324, 0.5
    %v5425 = vmul.f32 %v5329, 0.5
    %v5426 = vmul.f32 %v5332, 0.5
    %v5427 = vmul.f32 %v5337, 0.5
    %v5428 = vmul.f32 %v5340, 0.5
    %v5429 = vmul.f32 %v5345, 0.5
    %v5430 = vmul.f32 %v5348, 0.5
    %v5431 = vtanh.pop %v5423
    %v5432 = vtanh.pop %v5424
    %v5433 = vtanh.pop %v5425
    %v5434 = vtanh.pop %v5426
    %v5435 = vtanh.pop %v5427
    %v5436 = vtanh.pop %v5428
    %v5437 = vtanh.pop %v5429
    %v5438 = vtanh.pop %v5430
    %v5439 = vadd.f32 %v5431, 1.0
    %v5440 = vadd.f32 %v5432, 1.0
    %v5441 = vadd.f32 %v5433, 1.0
    %v5442 = vadd.f32 %v5434, 1.0
    %v5443 = vadd.f32 %v5435, 1.0
    %v5444 = vadd.f32 %v5436, 1.0
    %v5445 = vadd.f32 %v5437, 1.0
    %v5446 = vadd.f32 %v5438, 1.0
    %v5447 = vmul.f32 %v5439, 0.5
    %v5448 = vmul.f32 %v5440, 0.5
    %v5449 = vmul.f32 %v5441, 0.5
    %v5450 = vmul.f32 %v5442, 0.5
    %v5451 = vmul.f32 %v5443, 0.5
    %v5452 = vmul.f32 %v5444, 0.5
    %v5453 = vmul.f32 %v5445, 0.5
    %v5454 = vmul.f32 %v5446, 0.5
    %v5455 = vmul.f32 %v5407, %v4846
    %v5456 = vmul.f32 %v5408, %v4847
    %v5457 = vmul.f32 %v5409, %v4848
    %v5458 = vmul.f32 %v5410, %v4849
    %v5459 = vmul.f32 %v5411, %v4850
    %v5460 = vmul.f32 %v5412, %v4851
    %v5461 = vmul.f32 %v5413, %v4852
    %v5462 = vmul.f32 %v5414, %v4853
    %v5463 = vmul.f32 %v5375, %v5415
    %v5464 = vmul.f32 %v5376, %v5416
    %v5465 = vmul.f32 %v5377, %v5417
    %v5466 = vmul.f32 %v5378, %v5418
    %v5467 = vmul.f32 %v5379, %v5419
    %v5468 = vmul.f32 %v5380, %v5420
    %v5469 = vmul.f32 %v5381, %v5421
    %v5470 = vmul.f32 %v5382, %v5422
    %v5471 = vadd.f32 %v5455, %v5463
    %v5472 = vadd.f32 %v5456, %v5464
    %v5473 = vadd.f32 %v5457, %v5465
    %v5474 = vadd.f32 %v5458, %v5466
    %v5475 = vadd.f32 %v5459, %v5467
    %v5476 = vadd.f32 %v5460, %v5468
    %v5477 = vadd.f32 %v5461, %v5469
    %v5478 = vadd.f32 %v5462, %v5470
    %v5479 = vtanh.pop %v5471
    %v5480 = vtanh.pop %v5472
    %v5481 = vtanh.pop %v5473
    %v5482 = vtanh.pop %v5474
    %v5483 = vtanh.pop %v5475
    %v5484 = vtanh.pop %v5476
    %v5485 = vtanh.pop %v5477
    %v5486 = vtanh.pop %v5478
    %v5487 = vmul.f32 %v5447, %v5479
    %v5488 = vmul.f32 %v5448, %v5480
    %v5489 = vmul.f32 %v5449, %v5481
    %v5490 = vmul.f32 %v5450, %v5482
    %v5491 = vmul.f32 %v5451, %v5483
    %v5492 = vmul.f32 %v5452, %v5484
    %v5493 = vmul.f32 %v5453, %v5485
    %v5494 = vmul.f32 %v5454, %v5486
    %5495 = vst [vmem:[#allocation2] sm:$0xff] %v5174
    %5496 = vst [vmem:[#allocation2 + $0x8] sm:$0xff] %v5175
    %5497 = vst [vmem:[#allocation2 + $0x10] sm:$0xff] %v5176
    %5498 = vst [vmem:[#allocation2 + $0x18] sm:$0xff] %v5177
    %5499 = vst [vmem:[#allocation2 + $0x20] sm:$0xff] %v5178
    %5500 = vst [vmem:[#allocation2 + $0x28] sm:$0xff] %v5179
    %5501 = vst [vmem:[#allocation2 + $0x30] sm:$0xff] %v5180
    %5502 = vst [vmem:[#allocation2 + $0x38] sm:$0xff] %v5181
    %5503 = vst [vmem:[#allocation3] sm:$0xff] %v5158
    %5504 = vst [vmem:[#allocation3 + $0x8] sm:$0xff] %v5159
    %5505 = vst [vmem:[#allocation3 + $0x10] sm:$0xff] %v5160
    %5506 = vst [vmem:[#allocation3 + $0x18] sm:$0xff] %v5161
    %5507 = vst [vmem:[#allocation3 + $0x20] sm:$0xff] %v5162
    %5508 = vst [vmem:[#allocation3 + $0x28] sm:$0xff] %v5163
    %5509 = vst [vmem:[#allocation3 + $0x30] sm:$0xff] %v5164
    %5510 = vst [vmem:[#allocation3 + $0x38] sm:$0xff] %v5165
    %5511 = vst [vmem:[#allocation4] sm:$0xff] %v5487
    %5512 = vst [vmem:[#allocation4 + $0x8] sm:$0xff] %v5488
    %5513 = vst [vmem:[#allocation4 + $0x10] sm:$0xff] %v5489
    %5514 = vst [vmem:[#allocation4 + $0x18] sm:$0xff] %v5490
    %5515 = vst [vmem:[#allocation4 + $0x20] sm:$0xff] %v5491
    %5516 = vst [vmem:[#allocation4 + $0x28] sm:$0xff] %v5492
    %5517 = vst [vmem:[#allocation4 + $0x30] sm:$0xff] %v5493
    %5518 = vst [vmem:[#allocation4 + $0x38] sm:$0xff] %v5494
    %5519 = vst [vmem:[#allocation5] sm:$0xff] %v5471
    %5520 = vst [vmem:[#allocation5 + $0x8] sm:$0xff] %v5472
    %5521 = vst [vmem:[#allocation5 + $0x10] sm:$0xff] %v5473
    %5522 = vst [vmem:[#allocation5 + $0x18] sm:$0xff] %v5474
    %5523 = vst [vmem:[#allocation5 + $0x20] sm:$0xff] %v5475
    %5524 = vst [vmem:[#allocation5 + $0x28] sm:$0xff] %v5476
    %5525 = vst [vmem:[#allocation5 + $0x30] sm:$0xff] %v5477
    %5526 = vst [vmem:[#allocation5 + $0x38] sm:$0xff] %v5478
    // Predicated region
    $region26: #{tpu_custom_call.1} parent=1 // pred_check
      %p5527 = pneg %p24
    $region27: #{tpu_custom_call.1} parent=1 // pred_check_branch
      %5529 = sbr.rel (%p5527) target = $region29
    $region28: #{tpu_custom_call.1} parent=1 // pred_region
      %v5530 = vld [vmem:[#allocation4] sm:$0xff]
      %v5531 = vld [vmem:[#allocation4 + $0x8] sm:$0xff]
      %v5532 = vld [vmem:[#allocation4 + $0x10] sm:$0xff]
      %v5533 = vld [vmem:[#allocation4 + $0x18] sm:$0xff]
      %v5534 = vld [vmem:[#allocation4 + $0x20] sm:$0xff]
      %v5535 = vld [vmem:[#allocation4 + $0x28] sm:$0xff]
      %v5536 = vld [vmem:[#allocation4 + $0x30] sm:$0xff]
      %v5537 = vld [vmem:[#allocation4 + $0x38] sm:$0xff]
      %v5538 = vld [vmem:[%s3] sm:$0xff]
      %v5539 = vld [vmem:[%s3 + $0x8] sm:$0xff]
      %v5540 = vld [vmem:[%s3 + $0x10] sm:$0xff]
      %v5541 = vld [vmem:[%s3 + $0x18] sm:$0xff]
      %v5542 = vld [vmem:[%s3 + $0x20] sm:$0xff]
      %v5543 = vld [vmem:[%s3 + $0x28] sm:$0xff]
      %v5544 = vld [vmem:[%s3 + $0x30] sm:$0xff]
      %v5545 = vld [vmem:[%s3 + $0x38] sm:$0xff]
      %5547 = vset.pattern.permute.xlu0 0
      %5548 = vperm.xlu0 %5547, %v5538
      %v5549 = vpop.permute.xlu0 %5548
      %5552 = vset.pattern.permute.xlu0 0
      %5553 = vperm.xlu0 %5552, %v5539
      %v5554 = vpop.permute.xlu0 %5553
      %5557 = vset.pattern.permute.xlu0 0
      %5558 = vperm.xlu0 %5557, %v5540
      %v5559 = vpop.permute.xlu0 %5558
      %5562 = vset.pattern.permute.xlu0 0
      %5563 = vperm.xlu0 %5562, %v5541
      %v5564 = vpop.permute.xlu0 %5563
      %5567 = vset.pattern.permute.xlu0 0
      %5568 = vperm.xlu0 %5567, %v5542
      %v5569 = vpop.permute.xlu0 %5568
      %5572 = vset.pattern.permute.xlu0 0
      %5573 = vperm.xlu0 %5572, %v5543
      %v5574 = vpop.permute.xlu0 %5573
      %5577 = vset.pattern.permute.xlu0 0
      %5578 = vperm.xlu0 %5577, %v5544
      %v5579 = vpop.permute.xlu0 %5578
      %5582 = vset.pattern.permute.xlu0 0
      %5583 = vperm.xlu0 %5582, %v5545
      %v5584 = vpop.permute.xlu0 %5583
      %v5586 = vmul.f32 %v5530, %v5549
      %v5587 = vmul.f32 %v5531, %v5554
      %v5588 = vmul.f32 %v5532, %v5559
      %v5589 = vmul.f32 %v5533, %v5564
      %v5590 = vmul.f32 %v5534, %v5569
      %v5591 = vmul.f32 %v5535, %v5574
      %v5592 = vmul.f32 %v5536, %v5579
      %v5593 = vmul.f32 %v5537, %v5584
      %v5594 = vadd.f32 %v5586, %v5587
      %v5595 = vadd.f32 %v5594, %v5588
      %v5596 = vadd.f32 %v5595, %v5589
      %v5597 = vadd.f32 %v5596, %v5590
      %v5598 = vadd.f32 %v5597, %v5591
      %v5599 = vadd.f32 %v5598, %v5592
      %v5600 = vadd.f32 %v5599, %v5593
      %v5601 = vrot.slane %v5600, 4
      %v5602 = vadd.f32 %v5600, %v5601
      %v5603 = vrot.slane %v5602, 2
      %v5604 = vadd.f32 %v5602, %v5603
      %v5605 = vrot.slane %v5604, 1
      %v5606 = vadd.f32 %v5604, %v5605
      %v5607 = vld [vmem:[#allocation6] sm:$0x1]
      %5609 = vset.pattern.permute.xlu0 0
      %5610 = vperm.xlu0 %5609, %v5607
      %v5611 = vpop.permute.xlu0 %5610
      %v5613 = vlaneseq
      %v5614 = vshrl.u32 %v5613, 7
      %v5615 = vsub.s32 0, %v5614
      %v5616 = vrot.slane %v5611, %v5615
      %v5617 = vadd.f32 %v5606, %v5616
      %5618 = vst [vmem:[#allocation7] sm:$0x1] %v5617
    $region29: #{tpu_custom_call.1} parent=1 // pred_fallthru
      _
    // Predicated region
    $region30: #{tpu_custom_call.1} parent=1 // pred_check
      _
    $region31: #{tpu_custom_call.1} parent=1 // pred_check_branch
      %5620 = sbr.rel (0) target = $region33
    $region32: #{tpu_custom_call.1} parent=1 // pred_region
      %s5622 = ssub.s32 16, 16
      %5623 = vsyncadd [#allocation8], %s5622
      %s5625 = sshll.u32 [#allocation7], 4
      %s5626 = int_to_ptr.vmem [resolvable:$true] %s5625
      %5628 = dma.vmem_to_hbm [thread:$0]  %s5626, 16, %s5, [#allocation8]
    $region33: #{tpu_custom_call.1} parent=1 // pred_fallthru
      _
    // Predicated region
    $region34: #{tpu_custom_call.1} parent=1 // pred_check
      _
    $region35: #{tpu_custom_call.1} parent=1 // pred_check_branch
      %5630 = sbr.rel (0) target = $region37
    $region36: #{tpu_custom_call.1} parent=1 // pred_region
      %5631 = dma.done [#allocation8], 16
    $region37: #{tpu_custom_call.1} parent=1 // pred_fallthru
      _
    %5632 = vsyncpa [#allocation8], 1

</llo_original>
